<compile_context>
chip_gen: v5e
topology: v5e:2x2
jax: 0.10.0
libtpu: 0.0.40
codegen_flags: <defaults>
</compile_context>

<pallas_src>
import jax
import jax.numpy as jnp
from jax.experimental import pallas as pl
from jax.experimental.pallas import tpu as pltpu

BF16 = jnp.bfloat16
F32 = jnp.float32


def _conv_slabs(p, w_ref, s_ref, b_ref, KH, KW, R, Wv, C):
    """relu(conv_valid(p, w) * scale + bias) via per-kh matmul slabs.

    p:      (R+KH-1, Wv+KW-1, C) bf16 ref or value.  Vertical taps come from
            the extra rows; horizontal 'same' zero-padding must already be in p.
    w_ref:  (KH, KW*C, Cout) bf16.   s_ref/b_ref: (1, Cout) f32.
    Returns (R*Wv, Cout) f32.
    """
    acc = None
    for kh in range(KH):
        if KW == 1:
            slab = p[kh:kh + R, :, :].reshape(R * Wv, C)
        else:
            slab = jnp.concatenate(
                [p[kh:kh + R, kw:kw + Wv, :].reshape(R * Wv, C)
                 for kw in range(KW)], axis=-1)                 # (R*Wv, KW*C)
        part = jnp.dot(slab, w_ref[kh], preferred_element_type=F32)
        acc = part if acc is None else acc + part
    return jnp.maximum(acc * s_ref[...] + b_ref[...], 0.0)


def _make_kernel(H, W, TH, out_dtype):
    EXT = TH + 6          # 3-row halo each side
    RR = TH + 2           # rows carried by the right-branch intermediates

    def kernel(x_ref,
               w11_ref, s11_ref, b11_ref,
               wl2_ref, sl2_ref, bl2_ref,
               wr2_ref, sr2_ref, br2_ref,
               wr3_ref, sr3_ref, br3_ref,
               wr4_ref, sr4_ref, br4_ref,
               o_ref,
               xe_ref, y_ref, lpad_ref, r3pad_ref, r4pad_ref):
        h_idx = pl.program_id(1)
        nh = pl.num_programs(1)
        h0 = h_idx * TH
        if TH % 8 == 0:
            h0 = pl.multiple_of(h0, 8)

        # ---- gather TH+6 input rows into xe_ref (zero rows beyond the image) --
        xe_ref[3:3 + TH, :, :] = x_ref[0, pl.ds(h0, TH), :, :]

        @pl.when(h_idx == 0)
        def _():
            xe_ref[0:3, :, :] = jnp.zeros((3, W, 160), BF16)

        @pl.when(h_idx > 0)
        def _():
            top = jnp.maximum(h0 - 3, 0)
            xe_ref[0:3, :, :] = x_ref[0, pl.ds(top, 3), :, :]

        @pl.when(h_idx == nh - 1)
        def _():
            xe_ref[TH + 3:TH + 6, :, :] = jnp.zeros((3, W, 160), BF16)

        @pl.when(h_idx < nh - 1)
        def _():
            bot = jnp.minimum(h0 + TH, H - 3)
            xe_ref[TH + 3:TH + 6, :, :] = x_ref[0, pl.ds(bot, 3), :, :]

        # ---- fused left/right 1x1 stems: one (EXT*W,160)x(160,128) matmul ----
        y = jnp.dot(xe_ref[...].reshape(EXT * W, 160), w11_ref[...],
                    preferred_element_type=F32)
        y = jnp.maximum(y * s11_ref[...] + b11_ref[...], 0.0)
        y_ref[...] = y.reshape(EXT, W, 128).astype(BF16)

        # Rows outside the image must be ZERO (they are the zero-padding of the
        # stem activations for the following 'same' convs), not relu(bias).
        @pl.when(h_idx == 0)
        def _():
            y_ref[0:3, :, :] = jnp.zeros((3, W, 128), BF16)

        @pl.when(h_idx == nh - 1)
        def _():
            y_ref[TH + 3:TH + 6, :, :] = jnp.zeros((3, W, 128), BF16)

        zc1 = jnp.zeros((RR, 1, 64), BF16)

        # ---- LEFT branch: 3x3 same, 64 -> 96 ---------------------------------
        lpad_ref[:, 0:1, :] = zc1
        lpad_ref[:, W + 1:W + 2, :] = zc1
        lpad_ref[:, 1:W + 1, :] = y_ref[2:TH + 4, :, 0:64]
        l2 = _conv_slabs(lpad_ref, wl2_ref, sl2_ref, bl2_ref, 3, 3, TH, W, 64)
        # store immediately: frees the f32 result before the right branch runs
        o_ref[0, :, :, 0:96] = l2.reshape(TH, W, 96).astype(out_dtype)

        # ---- RIGHT branch -----------------------------------------------------
        # 5x1 same, 64 -> 64: vertical taps straight off the extended rows
        r1 = y_ref[:, :, 64:128]                                  # (EXT, W, 64)
        r2 = _conv_slabs(r1, wr2_ref, sr2_ref, br2_ref, 5, 1, RR, W, 64)

        # 1x5 same, 64 -> 64: horizontal conv, 2-column zero pad
        zc2 = jnp.zeros((RR, 2, 64), BF16)
        r3pad_ref[:, 0:2, :] = zc2
        r3pad_ref[:, W + 2:W + 4, :] = zc2
        r3pad_ref[:, 2:W + 2, :] = r2.reshape(RR, W, 64).astype(BF16)
        r3 = _conv_slabs(r3pad_ref, wr3_ref, sr3_ref, br3_ref, 1, 5, RR, W, 64)

        # 3x3 same, 64 -> 96
        r4pad_ref[:, 0:1, :] = zc1
        r4pad_ref[:, W + 1:W + 2, :] = zc1
        r4pad_ref[:, 1:W + 1, :] = r3.reshape(RR, W, 64).astype(BF16)

        # r3 rows falling outside the image are the trailing 3x3's zero padding
        @pl.when(h_idx == 0)
        def _():
            r4pad_ref[0:1, :, :] = jnp.zeros((1, W + 2, 64), BF16)

        @pl.when(h_idx == nh - 1)
        def _():
            r4pad_ref[TH + 1:TH + 2, :, :] = jnp.zeros((1, W + 2, 64), BF16)

        r4 = _conv_slabs(r4pad_ref, wr4_ref, sr4_ref, br4_ref, 3, 3, TH, W, 64)
        o_ref[0, :, :, 96:192] = r4.reshape(TH, W, 96).astype(out_dtype)

    return kernel


def _prep_layer(p):
    """(HWIO f32 w, scale, bias) -> ((KH, KW*Cin, Cout) bf16 w, (1,Cout) f32 s/b)."""
    w, s, b = p
    KH, KW, Cin, Cout = w.shape
    return (w.reshape(KH, KW * Cin, Cout).astype(BF16),
            s.reshape(1, Cout).astype(F32),
            b.reshape(1, Cout).astype(F32))


def _pick_tile_rows(H, W, th=None):
    if th is not None:
        assert th == H or (H % th == 0 and th % 8 == 0 and th >= 8), th
        return th
    if H % 8 != 0:
        return H
    # smallest multiple-of-8 divisor of H that keeps the MXU M-stream >= 512 rows
    for cand in range(8, H + 1, 8):
        if H % cand == 0 and cand * W >= 512:
            return cand
    return H


def _vmem_limit_bytes():
    # Raise the scoped-VMEM cap (defaults: 16 MiB v5e / 32 MiB v6e,v7x) with
    # headroom below physical (64 MiB v7x, 128 MiB v5e/v6e).
    try:
        cap = int(pltpu.get_tpu_info().vmem_capacity_bytes)
        return min(cap * 3 // 4, 100 * 1024 * 1024)
    except Exception:
        return None


def inception2_forward(x, params, *, th=None, out_dtype=BF16):
    """Fused Pallas implementation of Inception2.forward.  x: (N,H,W,160) NHWC."""
    N, H, W, C = x.shape
    assert C == 160
    TH = _pick_tile_rows(H, W, th)
    nh = H // TH

    x = x.astype(BF16)  # bf16 HBM I/O (native MXU dtype, halves input DMA)

    wl1, sl1, bl1 = _prep_layer(params["l1"])
    wr1, sr1, br1 = _prep_layer(params["r1"])
    # both 1x1 stems read the same input -> fuse their weights along Cout
    w11 = jnp.concatenate([wl1[0], wr1[0]], axis=-1)     # (160, 128)
    s11 = jnp.concatenate([sl1, sr1], axis=-1)           # (1, 128)
    b11 = jnp.concatenate([bl1, br1], axis=-1)           # (1, 128)
    wl2, sl2, bl2 = _prep_layer(params["l2"])            # (3, 192, 96)
    wr2, sr2, br2 = _prep_layer(params["r2"])            # (5, 64, 64)
    wr3, sr3, br3 = _prep_layer(params["r3"])            # (1, 320, 64)
    wr4, sr4, br4 = _prep_layer(params["r4"])            # (3, 192, 96)

    pargs = (w11, s11, b11, wl2, sl2, bl2,
             wr2, sr2, br2, wr3, sr3, br3, wr4, sr4, br4)

    def _const_spec(a):
        nd = a.ndim
        return pl.BlockSpec(a.shape, lambda n, h, _nd=nd: (0,) * _nd)

    in_specs = [pl.BlockSpec((1, H, W, 160), lambda n, h: (n, 0, 0, 0))]
    in_specs += [_const_spec(a) for a in pargs]

    kernel = _make_kernel(H, W, TH, out_dtype)

    return pl.pallas_call(
        kernel,
        out_shape=jax.ShapeDtypeStruct((N, H, W, 192), out_dtype),
        grid=(N, nh),
        in_specs=in_specs,
        out_specs=pl.BlockSpec((1, TH, W, 192), lambda n, h: (n, h, 0, 0)),
        scratch_shapes=[
            pltpu.VMEM((TH + 6, W, 160), BF16),      # extended input rows
            pltpu.VMEM((TH + 6, W, 128), BF16),      # fused stem output (l1|r1)
            pltpu.VMEM((TH + 2, W + 2, 64), BF16),   # left 3x3 W-pad
            pltpu.VMEM((TH + 2, W + 4, 64), BF16),   # 1x5 W-pad
            pltpu.VMEM((TH + 2, W + 2, 64), BF16),   # right 3x3 W-pad
        ],
        compiler_params=pltpu.CompilerParams(
            dimension_semantics=("parallel", "parallel"),
            vmem_limit_bytes=_vmem_limit_bytes()),
    )(x, *pargs)


def _init_convblock(key, Cin, Cout, KH, KW, eps=1e-5):
    """Deterministic synthetic Conv2d + BatchNorm2d(eval) params, BN folded."""
    k1, k2, k3, k4, k5, k6 = jax.random.split(key, 6)
    fan_in = Cin * KH * KW
    w_oihw = jax.random.normal(k1, (Cout, Cin, KH, KW), F32) / jnp.sqrt(fan_in)
    conv_b = 0.1 * jax.random.normal(k2, (Cout,), F32)
    gamma = 1.0 + 0.1 * jax.random.normal(k3, (Cout,), F32)
    beta = 0.1 * jax.random.normal(k4, (Cout,), F32)
    run_mean = 0.1 * jax.random.normal(k5, (Cout,), F32)
    run_var = 1.0 + 0.1 * jax.random.uniform(k6, (Cout,), F32)
    scale = gamma / jnp.sqrt(run_var + eps)
    bias = beta + (conv_b - run_mean) * scale
    w_hwio = jnp.transpose(w_oihw, (2, 3, 1, 0))  # (KH, KW, Cin, Cout)
    return w_hwio, scale, bias


# ---- pure-JAX reference (mirrors the bf16 matmul inputs) --------------------
def _ref_conv_bn_relu(x, w, scale, bias):
    y = jax.lax.conv_general_dilated(
        x.astype(BF16), w.astype(BF16),
        window_strides=(1, 1), padding="SAME",
        dimension_numbers=("NHWC", "HWIO", "NHWC"),
        preferred_element_type=F32)
    return jnp.maximum(y * scale + bias, 0.0)


def inception2_reference(x, params):
    l = _ref_conv_bn_relu(x, *params["l1"])
    l = _ref_conv_bn_relu(l, *params["l2"])
    r = _ref_conv_bn_relu(x, *params["r1"])
    r = _ref_conv_bn_relu(r, *params["r2"])
    r = _ref_conv_bn_relu(r, *params["r3"])
    r = _ref_conv_bn_relu(r, *params["r4"])
    return jnp.concatenate([l, r], axis=-1)


if __name__ == "__main__":
    key = jax.random.PRNGKey(0)
    kx, kp = jax.random.split(key)
    N, H, W, Cin = 2, 16, 16, 160   # Inception2 requires 160 input channels
    x = jax.random.normal(kx, (N, H, W, Cin), F32)

    pkeys = jax.random.split(kp, 6)
    params = {
        "l1": _init_convblock(pkeys[0], 160, 64, 1, 1),
        "l2": _init_convblock(pkeys[1], 64, 96, 3, 3),
        "r1": _init_convblock(pkeys[2], 160, 64, 1, 1),
        "r2": _init_convblock(pkeys[3], 64, 64, 5, 1),
        "r3": _init_convblock(pkeys[4], 64, 64, 1, 5),
        "r4": _init_convblock(pkeys[5], 64, 96, 3, 3),
    }

    # th=8 -> two row-tiles per image, exercising the halo / boundary logic.
    fwd = jax.jit(lambda xx: inception2_forward(xx, params, th=8))
    out = jax.block_until_ready(fwd(x))
    assert out.shape == (N, H, W, 96 + 96), out.shape

    ref = jax.block_until_ready(inception2_reference(x, params))
    out_f32 = out.astype(F32)
    max_err = float(jnp.max(jnp.abs(out_f32 - ref)))
    assert jnp.allclose(out_f32, ref, atol=6e-2, rtol=6e-2), max_err

    print("KERNEL_OK")
</pallas_src>

<mosaic_0001>
module attributes {stable_mosaic.version = 11 : i64} {
  func.func @kernel(%arg0: i32, %arg1: i32, %arg2: memref<1x16x16x160xbf16, #tpu.memory_space<vmem>>, %arg3: memref<160x128xbf16, #tpu.memory_space<vmem>>, %arg4: memref<1x128xf32, #tpu.memory_space<vmem>>, %arg5: memref<1x128xf32, #tpu.memory_space<vmem>>, %arg6: memref<3x192x96xbf16, #tpu.memory_space<vmem>>, %arg7: memref<1x96xf32, #tpu.memory_space<vmem>>, %arg8: memref<1x96xf32, #tpu.memory_space<vmem>>, %arg9: memref<5x64x64xbf16, #tpu.memory_space<vmem>>, %arg10: memref<1x64xf32, #tpu.memory_space<vmem>>, %arg11: memref<1x64xf32, #tpu.memory_space<vmem>>, %arg12: memref<1x320x64xbf16, #tpu.memory_space<vmem>>, %arg13: memref<1x64xf32, #tpu.memory_space<vmem>>, %arg14: memref<1x64xf32, #tpu.memory_space<vmem>>, %arg15: memref<3x192x96xbf16, #tpu.memory_space<vmem>>, %arg16: memref<1x96xf32, #tpu.memory_space<vmem>>, %arg17: memref<1x96xf32, #tpu.memory_space<vmem>>, %arg18: memref<1x8x16x192xbf16, #tpu.memory_space<vmem>>, %arg19: memref<14x16x160xbf16, #tpu.memory_space<vmem>>, %arg20: memref<14x16x128xbf16, #tpu.memory_space<vmem>>, %arg21: memref<10x18x64xbf16, #tpu.memory_space<vmem>>, %arg22: memref<10x20x64xbf16, #tpu.memory_space<vmem>>, %arg23: memref<10x18x64xbf16, #tpu.memory_space<vmem>>) attributes {dimension_semantics = [#tpu.dimension_semantics<parallel>, #tpu.dimension_semantics<parallel>], iteration_bounds = array<i64: 2, 2>, scalar_prefetch = 0 : i64, scratch_operands = 5 : i64, tpu.core_type = #tpu.core_type<tc>, window_params = [{transform_indices = @transform_0, window_bounds = array<i64: 1, 16, 16, 160>}, {pipeline_mode = #tpu.pipeline_mode<synchronous>, transform_indices = @transform_1, window_bounds = array<i64: 160, 128>}, {pipeline_mode = #tpu.pipeline_mode<synchronous>, transform_indices = @transform_2, window_bounds = array<i64: 1, 128>}, {pipeline_mode = #tpu.pipeline_mode<synchronous>, transform_indices = @transform_3, window_bounds = array<i64: 1, 128>}, {pipeline_mode = #tpu.pipeline_mode<synchronous>, transform_indices = @transform_4, window_bounds = array<i64: 3, 192, 96>}, {pipeline_mode = #tpu.pipeline_mode<synchronous>, transform_indices = @transform_5, window_bounds = array<i64: 1, 96>}, {pipeline_mode = #tpu.pipeline_mode<synchronous>, transform_indices = @transform_6, window_bounds = array<i64: 1, 96>}, {pipeline_mode = #tpu.pipeline_mode<synchronous>, transform_indices = @transform_7, window_bounds = array<i64: 5, 64, 64>}, {pipeline_mode = #tpu.pipeline_mode<synchronous>, transform_indices = @transform_8, window_bounds = array<i64: 1, 64>}, {pipeline_mode = #tpu.pipeline_mode<synchronous>, transform_indices = @transform_9, window_bounds = array<i64: 1, 64>}, {pipeline_mode = #tpu.pipeline_mode<synchronous>, transform_indices = @transform_10, window_bounds = array<i64: 1, 320, 64>}, {pipeline_mode = #tpu.pipeline_mode<synchronous>, transform_indices = @transform_11, window_bounds = array<i64: 1, 64>}, {pipeline_mode = #tpu.pipeline_mode<synchronous>, transform_indices = @transform_12, window_bounds = array<i64: 1, 64>}, {pipeline_mode = #tpu.pipeline_mode<synchronous>, transform_indices = @transform_13, window_bounds = array<i64: 3, 192, 96>}, {pipeline_mode = #tpu.pipeline_mode<synchronous>, transform_indices = @transform_14, window_bounds = array<i64: 1, 96>}, {pipeline_mode = #tpu.pipeline_mode<synchronous>, transform_indices = @transform_15, window_bounds = array<i64: 1, 96>}, {transform_indices = @transform_16, window_bounds = array<i64: 1, 8, 16, 192>}]} {
    %c8_i32 = arith.constant 8 : i32
    %0 = arith.muli %arg1, %c8_i32 : i32
    %1 = tpu.assume_multiple %0, 8 : i32
    %c0 = arith.constant 0 : index
    %2 = arith.index_cast %1 : i32 to index
    %c0_0 = arith.constant 0 : index
    %c0_1 = arith.constant 0 : index
    %3 = vector.load %arg2[%c0, %2, %c0_0, %c0_1] : memref<1x16x16x160xbf16, #tpu.memory_space<vmem>>, vector<1x8x16x160xbf16>
    %4 = vector.shape_cast %3 : vector<1x8x16x160xbf16> to vector<8x16x160xbf16>
    %c3 = arith.constant 3 : index
    %c0_2 = arith.constant 0 : index
    %c0_3 = arith.constant 0 : index
    %5 = vector.load %arg19[%c3, %c0_2, %c0_3] : memref<14x16x160xbf16, #tpu.memory_space<vmem>>, vector<8x16x160xbf16>
    tpu.vector_store %arg19[%c3, %c0_2, %c0_3], %4 {strides = array<i32>} : memref<14x16x160xbf16, #tpu.memory_space<vmem>>, vector<8x16x160xbf16>,
    %c0_i32 = arith.constant 0 : i32
    %6 = arith.cmpi eq, %arg1, %c0_i32 : i32
    %7 = arith.extui %6 : i1 to i32
    %c0_i32_4 = arith.constant 0 : i32
    %8 = arith.cmpi ne, %7, %c0_i32_4 : i32
    scf.if %8 {
      %cst_204 = arith.constant 0.000000e+00 : bf16
      %211 = vector.broadcast %cst_204 : bf16 to vector<3x16x160xbf16>
      %c0_205 = arith.constant 0 : index
      %c0_206 = arith.constant 0 : index
      %c0_207 = arith.constant 0 : index
      %212 = vector.load %arg19[%c0_205, %c0_206, %c0_207] : memref<14x16x160xbf16, #tpu.memory_space<vmem>>, vector<3x16x160xbf16>
      tpu.vector_store %arg19[%c0_205, %c0_206, %c0_207], %211 {strides = array<i32>} : memref<14x16x160xbf16, #tpu.memory_space<vmem>>, vector<3x16x160xbf16>,
    } else {
    }
    %c0_i32_5 = arith.constant 0 : i32
    %9 = arith.cmpi sgt, %arg1, %c0_i32_5 : i32
    %10 = arith.extui %9 : i1 to i32
    %c0_i32_6 = arith.constant 0 : i32
    %11 = arith.cmpi ne, %10, %c0_i32_6 : i32
    scf.if %11 {
      %c3_i32 = arith.constant 3 : i32
      %211 = arith.subi %1, %c3_i32 : i32
      %c0_i32_204 = arith.constant 0 : i32
      %212 = arith.maxsi %211, %c0_i32_204 : i32
      %c0_205 = arith.constant 0 : index
      %213 = arith.index_cast %212 : i32 to index
      %c0_206 = arith.constant 0 : index
      %c0_207 = arith.constant 0 : index
      %214 = vector.load %arg2[%c0_205, %213, %c0_206, %c0_207] : memref<1x16x16x160xbf16, #tpu.memory_space<vmem>>, vector<1x3x16x160xbf16>
      %215 = vector.shape_cast %214 : vector<1x3x16x160xbf16> to vector<3x16x160xbf16>
      %c0_208 = arith.constant 0 : index
      %c0_209 = arith.constant 0 : index
      %c0_210 = arith.constant 0 : index
      %216 = vector.load %arg19[%c0_208, %c0_209, %c0_210] : memref<14x16x160xbf16, #tpu.memory_space<vmem>>, vector<3x16x160xbf16>
      tpu.vector_store %arg19[%c0_208, %c0_209, %c0_210], %215 {strides = array<i32>} : memref<14x16x160xbf16, #tpu.memory_space<vmem>>, vector<3x16x160xbf16>,
    } else {
    }
    %c1_i32 = arith.constant 1 : i32
    %12 = arith.cmpi eq, %arg1, %c1_i32 : i32
    %13 = arith.extui %12 : i1 to i32
    %c0_i32_7 = arith.constant 0 : i32
    %14 = arith.cmpi ne, %13, %c0_i32_7 : i32
    scf.if %14 {
      %cst_204 = arith.constant 0.000000e+00 : bf16
      %211 = vector.broadcast %cst_204 : bf16 to vector<3x16x160xbf16>
      %c11 = arith.constant 11 : index
      %c0_205 = arith.constant 0 : index
      %c0_206 = arith.constant 0 : index
      %212 = vector.load %arg19[%c11, %c0_205, %c0_206] : memref<14x16x160xbf16, #tpu.memory_space<vmem>>, vector<3x16x160xbf16>
      tpu.vector_store %arg19[%c11, %c0_205, %c0_206], %211 {strides = array<i32>} : memref<14x16x160xbf16, #tpu.memory_space<vmem>>, vector<3x16x160xbf16>,
    } else {
    }
    %c1_i32_8 = arith.constant 1 : i32
    %15 = arith.cmpi slt, %arg1, %c1_i32_8 : i32
    %16 = arith.extui %15 : i1 to i32
    %c0_i32_9 = arith.constant 0 : i32
    %17 = arith.cmpi ne, %16, %c0_i32_9 : i32
    scf.if %17 {
      %c8_i32_204 = arith.constant 8 : i32
      %211 = arith.addi %1, %c8_i32_204 : i32
      %c13_i32 = arith.constant 13 : i32
      %212 = arith.minsi %211, %c13_i32 : i32
      %c0_205 = arith.constant 0 : index
      %213 = arith.index_cast %212 : i32 to index
      %c0_206 = arith.constant 0 : index
      %c0_207 = arith.constant 0 : index
      %214 = vector.load %arg2[%c0_205, %213, %c0_206, %c0_207] : memref<1x16x16x160xbf16, #tpu.memory_space<vmem>>, vector<1x3x16x160xbf16>
      %215 = vector.shape_cast %214 : vector<1x3x16x160xbf16> to vector<3x16x160xbf16>
      %c11 = arith.constant 11 : index
      %c0_208 = arith.constant 0 : index
      %c0_209 = arith.constant 0 : index
      %216 = vector.load %arg19[%c11, %c0_208, %c0_209] : memref<14x16x160xbf16, #tpu.memory_space<vmem>>, vector<3x16x160xbf16>
      tpu.vector_store %arg19[%c11, %c0_208, %c0_209], %215 {strides = array<i32>} : memref<14x16x160xbf16, #tpu.memory_space<vmem>>, vector<3x16x160xbf16>,
    } else {
    }
    %c0_10 = arith.constant 0 : index
    %c0_11 = arith.constant 0 : index
    %c0_12 = arith.constant 0 : index
    %18 = vector.load %arg19[%c0_10, %c0_11, %c0_12] : memref<14x16x160xbf16, #tpu.memory_space<vmem>>, vector<14x16x160xbf16>
    %19 = vector.shape_cast %18 : vector<14x16x160xbf16> to vector<224x160xbf16>
    %c0_13 = arith.constant 0 : index
    %c0_14 = arith.constant 0 : index
    %20 = vector.load %arg3[%c0_13, %c0_14] : memref<160x128xbf16, #tpu.memory_space<vmem>>, vector<160x128xbf16>
    %cst = arith.constant dense<0.000000e+00> : vector<224x128xf32>
    %21 = tpu.matmul %19, %20, %cst {dimension_numbers = #tpu.dot_dimension_numbers<[1], [0], [0], [1], [0, 0, 1, 1], [], []>} : vector<224x160xbf16>, vector<160x128xbf16>, vector<224x128xf32> -> vector<224x128xf32>
    %c0_15 = arith.constant 0 : index
    %c0_16 = arith.constant 0 : index
    %22 = vector.load %arg4[%c0_15, %c0_16] : memref<1x128xf32, #tpu.memory_space<vmem>>, vector<1x128xf32>
    %23 = vector.broadcast %22 : vector<1x128xf32> to vector<224x128xf32>
    %24 = arith.mulf %21, %23 : vector<224x128xf32>
    %c0_17 = arith.constant 0 : index
    %c0_18 = arith.constant 0 : index
    %25 = vector.load %arg5[%c0_17, %c0_18] : memref<1x128xf32, #tpu.memory_space<vmem>>, vector<1x128xf32>
    %26 = vector.broadcast %25 : vector<1x128xf32> to vector<224x128xf32>
    %27 = arith.addf %24, %26 : vector<224x128xf32>
    %cst_19 = arith.constant 0.000000e+00 : f32
    %28 = vector.broadcast %cst_19 : f32 to vector<224x128xf32>
    %29 = arith.maximumf %27, %28 : vector<224x128xf32>
    %30 = vector.shape_cast %29 : vector<224x128xf32> to vector<14x16x128xf32>
    %31 = arith.truncf %30 : vector<14x16x128xf32> to vector<14x16x128xbf16>
    %c0_20 = arith.constant 0 : index
    %c0_21 = arith.constant 0 : index
    %c0_22 = arith.constant 0 : index
    %32 = vector.load %arg20[%c0_20, %c0_21, %c0_22] : memref<14x16x128xbf16, #tpu.memory_space<vmem>>, vector<14x16x128xbf16>
    tpu.vector_store %arg20[%c0_20, %c0_21, %c0_22], %31 {strides = array<i32>} : memref<14x16x128xbf16, #tpu.memory_space<vmem>>, vector<14x16x128xbf16>,
    %c0_i32_23 = arith.constant 0 : i32
    %33 = arith.cmpi eq, %arg1, %c0_i32_23 : i32
    %34 = arith.extui %33 : i1 to i32
    %c0_i32_24 = arith.constant 0 : i32
    %35 = arith.cmpi ne, %34, %c0_i32_24 : i32
    scf.if %35 {
      %cst_204 = arith.constant 0.000000e+00 : bf16
      %211 = vector.broadcast %cst_204 : bf16 to vector<3x16x128xbf16>
      %c0_205 = arith.constant 0 : index
      %c0_206 = arith.constant 0 : index
      %c0_207 = arith.constant 0 : index
      %212 = vector.load %arg20[%c0_205, %c0_206, %c0_207] : memref<14x16x128xbf16, #tpu.memory_space<vmem>>, vector<3x16x128xbf16>
      tpu.vector_store %arg20[%c0_205, %c0_206, %c0_207], %211 {strides = array<i32>} : memref<14x16x128xbf16, #tpu.memory_space<vmem>>, vector<3x16x128xbf16>,
    } else {
    }
    %c1_i32_25 = arith.constant 1 : i32
    %36 = arith.cmpi eq, %arg1, %c1_i32_25 : i32
    %37 = arith.extui %36 : i1 to i32
    %c0_i32_26 = arith.constant 0 : i32
    %38 = arith.cmpi ne, %37, %c0_i32_26 : i32
    scf.if %38 {
      %cst_204 = arith.constant 0.000000e+00 : bf16
      %211 = vector.broadcast %cst_204 : bf16 to vector<3x16x128xbf16>
      %c11 = arith.constant 11 : index
      %c0_205 = arith.constant 0 : index
      %c0_206 = arith.constant 0 : index
      %212 = vector.load %arg20[%c11, %c0_205, %c0_206] : memref<14x16x128xbf16, #tpu.memory_space<vmem>>, vector<3x16x128xbf16>
      tpu.vector_store %arg20[%c11, %c0_205, %c0_206], %211 {strides = array<i32>} : memref<14x16x128xbf16, #tpu.memory_space<vmem>>, vector<3x16x128xbf16>,
    } else {
    }
    %cst_27 = arith.constant 0.000000e+00 : bf16
    %39 = vector.broadcast %cst_27 : bf16 to vector<10x1x64xbf16>
    %c0_28 = arith.constant 0 : index
    %c0_29 = arith.constant 0 : index
    %c0_30 = arith.constant 0 : index
    %40 = vector.load %arg21[%c0_28, %c0_29, %c0_30] : memref<10x18x64xbf16, #tpu.memory_space<vmem>>, vector<10x1x64xbf16>
    tpu.vector_store %arg21[%c0_28, %c0_29, %c0_30], %39 {strides = array<i32>} : memref<10x18x64xbf16, #tpu.memory_space<vmem>>, vector<10x1x64xbf16>,
    %c0_31 = arith.constant 0 : index
    %c17 = arith.constant 17 : index
    %c0_32 = arith.constant 0 : index
    %41 = vector.load %arg21[%c0_31, %c17, %c0_32] : memref<10x18x64xbf16, #tpu.memory_space<vmem>>, vector<10x1x64xbf16>
    tpu.vector_store %arg21[%c0_31, %c17, %c0_32], %39 {strides = array<i32>} : memref<10x18x64xbf16, #tpu.memory_space<vmem>>, vector<10x1x64xbf16>,
    %c2 = arith.constant 2 : index
    %c0_33 = arith.constant 0 : index
    %c0_34 = arith.constant 0 : index
    %42 = vector.load %arg20[%c2, %c0_33, %c0_34] : memref<14x16x128xbf16, #tpu.memory_space<vmem>>, vector<10x16x64xbf16>
    %c0_35 = arith.constant 0 : index
    %c1 = arith.constant 1 : index
    %c0_36 = arith.constant 0 : index
    %43 = vector.load %arg21[%c0_35, %c1, %c0_36] : memref<10x18x64xbf16, #tpu.memory_space<vmem>>, vector<10x16x64xbf16>
    tpu.vector_store %arg21[%c0_35, %c1, %c0_36], %42 {strides = array<i32>} : memref<10x18x64xbf16, #tpu.memory_space<vmem>>, vector<10x16x64xbf16>,
    %c0_37 = arith.constant 0 : index
    %c0_38 = arith.constant 0 : index
    %c0_39 = arith.constant 0 : index
    %44 = vector.load %arg21[%c0_37, %c0_38, %c0_39] : memref<10x18x64xbf16, #tpu.memory_space<vmem>>, vector<8x16x64xbf16>
    %45 = vector.shape_cast %44 : vector<8x16x64xbf16> to vector<128x64xbf16>
    %c0_40 = arith.constant 0 : index
    %c1_41 = arith.constant 1 : index
    %c0_42 = arith.constant 0 : index
    %46 = vector.load %arg21[%c0_40, %c1_41, %c0_42] : memref<10x18x64xbf16, #tpu.memory_space<vmem>>, vector<8x16x64xbf16>
    %47 = vector.shape_cast %46 : vector<8x16x64xbf16> to vector<128x64xbf16>
    %c0_43 = arith.constant 0 : index
    %c2_44 = arith.constant 2 : index
    %c0_45 = arith.constant 0 : index
    %48 = vector.load %arg21[%c0_43, %c2_44, %c0_45] : memref<10x18x64xbf16, #tpu.memory_space<vmem>>, vector<8x16x64xbf16>
    %49 = vector.shape_cast %48 : vector<8x16x64xbf16> to vector<128x64xbf16>
    %50 = tpu.concatenate %45, %47, %49 in 1 : vector<128x64xbf16>, vector<128x64xbf16>, vector<128x64xbf16> -> vector<128x192xbf16>
    %c0_46 = arith.constant 0 : index
    %c0_47 = arith.constant 0 : index
    %c0_48 = arith.constant 0 : index
    %51 = vector.load %arg6[%c0_46, %c0_47, %c0_48] : memref<3x192x96xbf16, #tpu.memory_space<vmem>>, vector<1x192x96xbf16>
    %52 = vector.shape_cast %51 : vector<1x192x96xbf16> to vector<192x96xbf16>
    %cst_49 = arith.constant dense<0.000000e+00> : vector<128x96xf32>
    %53 = tpu.matmul %50, %52, %cst_49 {dimension_numbers = #tpu.dot_dimension_numbers<[1], [0], [0], [1], [0, 0, 1, 1], [], []>} : vector<128x192xbf16>, vector<192x96xbf16>, vector<128x96xf32> -> vector<128x96xf32>
    %c1_50 = arith.constant 1 : index
    %c0_51 = arith.constant 0 : index
    %c0_52 = arith.constant 0 : index
    %54 = vector.load %arg21[%c1_50, %c0_51, %c0_52] : memref<10x18x64xbf16, #tpu.memory_space<vmem>>, vector<8x16x64xbf16>
    %55 = vector.shape_cast %54 : vector<8x16x64xbf16> to vector<128x64xbf16>
    %c1_53 = arith.constant 1 : index
    %c1_54 = arith.constant 1 : index
    %c0_55 = arith.constant 0 : index
    %56 = vector.load %arg21[%c1_53, %c1_54, %c0_55] : memref<10x18x64xbf16, #tpu.memory_space<vmem>>, vector<8x16x64xbf16>
    %57 = vector.shape_cast %56 : vector<8x16x64xbf16> to vector<128x64xbf16>
    %c1_56 = arith.constant 1 : index
    %c2_57 = arith.constant 2 : index
    %c0_58 = arith.constant 0 : index
    %58 = vector.load %arg21[%c1_56, %c2_57, %c0_58] : memref<10x18x64xbf16, #tpu.memory_space<vmem>>, vector<8x16x64xbf16>
    %59 = vector.shape_cast %58 : vector<8x16x64xbf16> to vector<128x64xbf16>
    %60 = tpu.concatenate %55, %57, %59 in 1 : vector<128x64xbf16>, vector<128x64xbf16>, vector<128x64xbf16> -> vector<128x192xbf16>
    %c1_59 = arith.constant 1 : index
    %c0_60 = arith.constant 0 : index
    %c0_61 = arith.constant 0 : index
    %61 = vector.load %arg6[%c1_59, %c0_60, %c0_61] : memref<3x192x96xbf16, #tpu.memory_space<vmem>>, vector<1x192x96xbf16>
    %62 = vector.shape_cast %61 : vector<1x192x96xbf16> to vector<192x96xbf16>
    %cst_62 = arith.constant dense<0.000000e+00> : vector<128x96xf32>
    %63 = tpu.matmul %60, %62, %cst_62 {dimension_numbers = #tpu.dot_dimension_numbers<[1], [0], [0], [1], [0, 0, 1, 1], [], []>} : vector<128x192xbf16>, vector<192x96xbf16>, vector<128x96xf32> -> vector<128x96xf32>
    %64 = arith.addf %53, %63 : vector<128x96xf32>
    %c2_63 = arith.constant 2 : index
    %c0_64 = arith.constant 0 : index
    %c0_65 = arith.constant 0 : index
    %65 = vector.load %arg21[%c2_63, %c0_64, %c0_65] : memref<10x18x64xbf16, #tpu.memory_space<vmem>>, vector<8x16x64xbf16>
    %66 = vector.shape_cast %65 : vector<8x16x64xbf16> to vector<128x64xbf16>
    %c2_66 = arith.constant 2 : index
    %c1_67 = arith.constant 1 : index
    %c0_68 = arith.constant 0 : index
    %67 = vector.load %arg21[%c2_66, %c1_67, %c0_68] : memref<10x18x64xbf16, #tpu.memory_space<vmem>>, vector<8x16x64xbf16>
    %68 = vector.shape_cast %67 : vector<8x16x64xbf16> to vector<128x64xbf16>
    %c2_69 = arith.constant 2 : index
    %c2_70 = arith.constant 2 : index
    %c0_71 = arith.constant 0 : index
    %69 = vector.load %arg21[%c2_69, %c2_70, %c0_71] : memref<10x18x64xbf16, #tpu.memory_space<vmem>>, vector<8x16x64xbf16>
    %70 = vector.shape_cast %69 : vector<8x16x64xbf16> to vector<128x64xbf16>
    %71 = tpu.concatenate %66, %68, %70 in 1 : vector<128x64xbf16>, vector<128x64xbf16>, vector<128x64xbf16> -> vector<128x192xbf16>
    %c2_72 = arith.constant 2 : index
    %c0_73 = arith.constant 0 : index
    %c0_74 = arith.constant 0 : index
    %72 = vector.load %arg6[%c2_72, %c0_73, %c0_74] : memref<3x192x96xbf16, #tpu.memory_space<vmem>>, vector<1x192x96xbf16>
    %73 = vector.shape_cast %72 : vector<1x192x96xbf16> to vector<192x96xbf16>
    %cst_75 = arith.constant dense<0.000000e+00> : vector<128x96xf32>
    %74 = tpu.matmul %71, %73, %cst_75 {dimension_numbers = #tpu.dot_dimension_numbers<[1], [0], [0], [1], [0, 0, 1, 1], [], []>} : vector<128x192xbf16>, vector<192x96xbf16>, vector<128x96xf32> -> vector<128x96xf32>
    %75 = arith.addf %64, %74 : vector<128x96xf32>
    %c0_76 = arith.constant 0 : index
    %c0_77 = arith.constant 0 : index
    %76 = vector.load %arg7[%c0_76, %c0_77] : memref<1x96xf32, #tpu.memory_space<vmem>>, vector<1x96xf32>
    %77 = vector.broadcast %76 : vector<1x96xf32> to vector<128x96xf32>
    %78 = arith.mulf %75, %77 : vector<128x96xf32>
    %c0_78 = arith.constant 0 : index
    %c0_79 = arith.constant 0 : index
    %79 = vector.load %arg8[%c0_78, %c0_79] : memref<1x96xf32, #tpu.memory_space<vmem>>, vector<1x96xf32>
    %80 = vector.broadcast %79 : vector<1x96xf32> to vector<128x96xf32>
    %81 = arith.addf %78, %80 : vector<128x96xf32>
    %cst_80 = arith.constant 0.000000e+00 : f32
    %82 = vector.broadcast %cst_80 : f32 to vector<128x96xf32>
    %83 = arith.maximumf %81, %82 : vector<128x96xf32>
    %84 = vector.shape_cast %83 : vector<128x96xf32> to vector<8x16x96xf32>
    %85 = arith.truncf %84 : vector<8x16x96xf32> to vector<8x16x96xbf16>
    %c0_81 = arith.constant 0 : index
    %c0_82 = arith.constant 0 : index
    %c0_83 = arith.constant 0 : index
    %c0_84 = arith.constant 0 : index
    %86 = vector.load %arg18[%c0_81, %c0_82, %c0_83, %c0_84] : memref<1x8x16x192xbf16, #tpu.memory_space<vmem>>, vector<1x8x16x96xbf16>
    %87 = vector.shape_cast %86 : vector<1x8x16x96xbf16> to vector<8x16x96xbf16>
    %88 = vector.shape_cast %85 : vector<8x16x96xbf16> to vector<1x8x16x96xbf16>
    tpu.vector_store %arg18[%c0_81, %c0_82, %c0_83, %c0_84], %88 {strides = array<i32>} : memref<1x8x16x192xbf16, #tpu.memory_space<vmem>>, vector<1x8x16x96xbf16>,
    %c0_85 = arith.constant 0 : index
    %c0_86 = arith.constant 0 : index
    %c64 = arith.constant 64 : index
    %89 = vector.load %arg20[%c0_85, %c0_86, %c64] : memref<14x16x128xbf16, #tpu.memory_space<vmem>>, vector<14x16x64xbf16>
    %90 = vector.extract_strided_slice %89 {offsets = [0, 0, 0], sizes = [10, 16, 64], strides = [1, 1, 1]} : vector<14x16x64xbf16> to vector<10x16x64xbf16>
    %91 = vector.shape_cast %90 : vector<10x16x64xbf16> to vector<160x64xbf16>
    %c0_87 = arith.constant 0 : index
    %c0_88 = arith.constant 0 : index
    %c0_89 = arith.constant 0 : index
    %92 = vector.load %arg9[%c0_87, %c0_88, %c0_89] : memref<5x64x64xbf16, #tpu.memory_space<vmem>>, vector<1x64x64xbf16>
    %93 = vector.shape_cast %92 : vector<1x64x64xbf16> to vector<64x64xbf16>
    %cst_90 = arith.constant dense<0.000000e+00> : vector<160x64xf32>
    %94 = tpu.matmul %91, %93, %cst_90 {dimension_numbers = #tpu.dot_dimension_numbers<[1], [0], [0], [1], [0, 0, 1, 1], [], []>} : vector<160x64xbf16>, vector<64x64xbf16>, vector<160x64xf32> -> vector<160x64xf32>
    %95 = vector.extract_strided_slice %89 {offsets = [1, 0, 0], sizes = [10, 16, 64], strides = [1, 1, 1]} : vector<14x16x64xbf16> to vector<10x16x64xbf16>
    %96 = vector.shape_cast %95 : vector<10x16x64xbf16> to vector<160x64xbf16>
    %c1_91 = arith.constant 1 : index
    %c0_92 = arith.constant 0 : index
    %c0_93 = arith.constant 0 : index
    %97 = vector.load %arg9[%c1_91, %c0_92, %c0_93] : memref<5x64x64xbf16, #tpu.memory_space<vmem>>, vector<1x64x64xbf16>
    %98 = vector.shape_cast %97 : vector<1x64x64xbf16> to vector<64x64xbf16>
    %cst_94 = arith.constant dense<0.000000e+00> : vector<160x64xf32>
    %99 = tpu.matmul %96, %98, %cst_94 {dimension_numbers = #tpu.dot_dimension_numbers<[1], [0], [0], [1], [0, 0, 1, 1], [], []>} : vector<160x64xbf16>, vector<64x64xbf16>, vector<160x64xf32> -> vector<160x64xf32>
    %100 = arith.addf %94, %99 : vector<160x64xf32>
    %101 = vector.extract_strided_slice %89 {offsets = [2, 0, 0], sizes = [10, 16, 64], strides = [1, 1, 1]} : vector<14x16x64xbf16> to vector<10x16x64xbf16>
    %102 = vector.shape_cast %101 : vector<10x16x64xbf16> to vector<160x64xbf16>
    %c2_95 = arith.constant 2 : index
    %c0_96 = arith.constant 0 : index
    %c0_97 = arith.constant 0 : index
    %103 = vector.load %arg9[%c2_95, %c0_96, %c0_97] : memref<5x64x64xbf16, #tpu.memory_space<vmem>>, vector<1x64x64xbf16>
    %104 = vector.shape_cast %103 : vector<1x64x64xbf16> to vector<64x64xbf16>
    %cst_98 = arith.constant dense<0.000000e+00> : vector<160x64xf32>
    %105 = tpu.matmul %102, %104, %cst_98 {dimension_numbers = #tpu.dot_dimension_numbers<[1], [0], [0], [1], [0, 0, 1, 1], [], []>} : vector<160x64xbf16>, vector<64x64xbf16>, vector<160x64xf32> -> vector<160x64xf32>
    %106 = arith.addf %100, %105 : vector<160x64xf32>
    %107 = vector.extract_strided_slice %89 {offsets = [3, 0, 0], sizes = [10, 16, 64], strides = [1, 1, 1]} : vector<14x16x64xbf16> to vector<10x16x64xbf16>
    %108 = vector.shape_cast %107 : vector<10x16x64xbf16> to vector<160x64xbf16>
    %c3_99 = arith.constant 3 : index
    %c0_100 = arith.constant 0 : index
    %c0_101 = arith.constant 0 : index
    %109 = vector.load %arg9[%c3_99, %c0_100, %c0_101] : memref<5x64x64xbf16, #tpu.memory_space<vmem>>, vector<1x64x64xbf16>
    %110 = vector.shape_cast %109 : vector<1x64x64xbf16> to vector<64x64xbf16>
    %cst_102 = arith.constant dense<0.000000e+00> : vector<160x64xf32>
    %111 = tpu.matmul %108, %110, %cst_102 {dimension_numbers = #tpu.dot_dimension_numbers<[1], [0], [0], [1], [0, 0, 1, 1], [], []>} : vector<160x64xbf16>, vector<64x64xbf16>, vector<160x64xf32> -> vector<160x64xf32>
    %112 = arith.addf %106, %111 : vector<160x64xf32>
    %113 = vector.extract_strided_slice %89 {offsets = [4, 0, 0], sizes = [10, 16, 64], strides = [1, 1, 1]} : vector<14x16x64xbf16> to vector<10x16x64xbf16>
    %114 = vector.shape_cast %113 : vector<10x16x64xbf16> to vector<160x64xbf16>
    %c4 = arith.constant 4 : index
    %c0_103 = arith.constant 0 : index
    %c0_104 = arith.constant 0 : index
    %115 = vector.load %arg9[%c4, %c0_103, %c0_104] : memref<5x64x64xbf16, #tpu.memory_space<vmem>>, vector<1x64x64xbf16>
    %116 = vector.shape_cast %115 : vector<1x64x64xbf16> to vector<64x64xbf16>
    %cst_105 = arith.constant dense<0.000000e+00> : vector<160x64xf32>
    %117 = tpu.matmul %114, %116, %cst_105 {dimension_numbers = #tpu.dot_dimension_numbers<[1], [0], [0], [1], [0, 0, 1, 1], [], []>} : vector<160x64xbf16>, vector<64x64xbf16>, vector<160x64xf32> -> vector<160x64xf32>
    %118 = arith.addf %112, %117 : vector<160x64xf32>
    %c0_106 = arith.constant 0 : index
    %c0_107 = arith.constant 0 : index
    %119 = vector.load %arg10[%c0_106, %c0_107] : memref<1x64xf32, #tpu.memory_space<vmem>>, vector<1x64xf32>
    %120 = vector.broadcast %119 : vector<1x64xf32> to vector<160x64xf32>
    %121 = arith.mulf %118, %120 : vector<160x64xf32>
    %c0_108 = arith.constant 0 : index
    %c0_109 = arith.constant 0 : index
    %122 = vector.load %arg11[%c0_108, %c0_109] : memref<1x64xf32, #tpu.memory_space<vmem>>, vector<1x64xf32>
    %123 = vector.broadcast %122 : vector<1x64xf32> to vector<160x64xf32>
    %124 = arith.addf %121, %123 : vector<160x64xf32>
    %cst_110 = arith.constant 0.000000e+00 : f32
    %125 = vector.broadcast %cst_110 : f32 to vector<160x64xf32>
    %126 = arith.maximumf %124, %125 : vector<160x64xf32>
    %cst_111 = arith.constant 0.000000e+00 : bf16
    %127 = vector.broadcast %cst_111 : bf16 to vector<10x2x64xbf16>
    %c0_112 = arith.constant 0 : index
    %c0_113 = arith.constant 0 : index
    %c0_114 = arith.constant 0 : index
    %128 = vector.load %arg22[%c0_112, %c0_113, %c0_114] : memref<10x20x64xbf16, #tpu.memory_space<vmem>>, vector<10x2x64xbf16>
    tpu.vector_store %arg22[%c0_112, %c0_113, %c0_114], %127 {strides = array<i32>} : memref<10x20x64xbf16, #tpu.memory_space<vmem>>, vector<10x2x64xbf16>,
    %c0_115 = arith.constant 0 : index
    %c18 = arith.constant 18 : index
    %c0_116 = arith.constant 0 : index
    %129 = vector.load %arg22[%c0_115, %c18, %c0_116] : memref<10x20x64xbf16, #tpu.memory_space<vmem>>, vector<10x2x64xbf16>
    tpu.vector_store %arg22[%c0_115, %c18, %c0_116], %127 {strides = array<i32>} : memref<10x20x64xbf16, #tpu.memory_space<vmem>>, vector<10x2x64xbf16>,
    %130 = vector.shape_cast %126 : vector<160x64xf32> to vector<10x16x64xf32>
    %131 = arith.truncf %130 : vector<10x16x64xf32> to vector<10x16x64xbf16>
    %c0_117 = arith.constant 0 : index
    %c2_118 = arith.constant 2 : index
    %c0_119 = arith.constant 0 : index
    %132 = vector.load %arg22[%c0_117, %c2_118, %c0_119] : memref<10x20x64xbf16, #tpu.memory_space<vmem>>, vector<10x16x64xbf16>
    tpu.vector_store %arg22[%c0_117, %c2_118, %c0_119], %131 {strides = array<i32>} : memref<10x20x64xbf16, #tpu.memory_space<vmem>>, vector<10x16x64xbf16>,
    %c0_120 = arith.constant 0 : index
    %c0_121 = arith.constant 0 : index
    %c0_122 = arith.constant 0 : index
    %133 = vector.load %arg22[%c0_120, %c0_121, %c0_122] : memref<10x20x64xbf16, #tpu.memory_space<vmem>>, vector<10x16x64xbf16>
    %134 = vector.shape_cast %133 : vector<10x16x64xbf16> to vector<160x64xbf16>
    %c0_123 = arith.constant 0 : index
    %c1_124 = arith.constant 1 : index
    %c0_125 = arith.constant 0 : index
    %135 = vector.load %arg22[%c0_123, %c1_124, %c0_125] : memref<10x20x64xbf16, #tpu.memory_space<vmem>>, vector<10x16x64xbf16>
    %136 = vector.shape_cast %135 : vector<10x16x64xbf16> to vector<160x64xbf16>
    %c0_126 = arith.constant 0 : index
    %c2_127 = arith.constant 2 : index
    %c0_128 = arith.constant 0 : index
    %137 = vector.load %arg22[%c0_126, %c2_127, %c0_128] : memref<10x20x64xbf16, #tpu.memory_space<vmem>>, vector<10x16x64xbf16>
    %138 = vector.shape_cast %137 : vector<10x16x64xbf16> to vector<160x64xbf16>
    %c0_129 = arith.constant 0 : index
    %c3_130 = arith.constant 3 : index
    %c0_131 = arith.constant 0 : index
    %139 = vector.load %arg22[%c0_129, %c3_130, %c0_131] : memref<10x20x64xbf16, #tpu.memory_space<vmem>>, vector<10x16x64xbf16>
    %140 = vector.shape_cast %139 : vector<10x16x64xbf16> to vector<160x64xbf16>
    %c0_132 = arith.constant 0 : index
    %c4_133 = arith.constant 4 : index
    %c0_134 = arith.constant 0 : index
    %141 = vector.load %arg22[%c0_132, %c4_133, %c0_134] : memref<10x20x64xbf16, #tpu.memory_space<vmem>>, vector<10x16x64xbf16>
    %142 = vector.shape_cast %141 : vector<10x16x64xbf16> to vector<160x64xbf16>
    %143 = tpu.concatenate %134, %136, %138, %140, %142 in 1 : vector<160x64xbf16>, vector<160x64xbf16>, vector<160x64xbf16>, vector<160x64xbf16>, vector<160x64xbf16> -> vector<160x320xbf16>
    %c0_135 = arith.constant 0 : index
    %c0_136 = arith.constant 0 : index
    %c0_137 = arith.constant 0 : index
    %144 = vector.load %arg12[%c0_135, %c0_136, %c0_137] : memref<1x320x64xbf16, #tpu.memory_space<vmem>>, vector<1x320x64xbf16>
    %145 = vector.shape_cast %144 : vector<1x320x64xbf16> to vector<320x64xbf16>
    %cst_138 = arith.constant dense<0.000000e+00> : vector<160x64xf32>
    %146 = tpu.matmul %143, %145, %cst_138 {dimension_numbers = #tpu.dot_dimension_numbers<[1], [0], [0], [1], [0, 0, 1, 1], [], []>} : vector<160x320xbf16>, vector<320x64xbf16>, vector<160x64xf32> -> vector<160x64xf32>
    %c0_139 = arith.constant 0 : index
    %c0_140 = arith.constant 0 : index
    %147 = vector.load %arg13[%c0_139, %c0_140] : memref<1x64xf32, #tpu.memory_space<vmem>>, vector<1x64xf32>
    %148 = vector.broadcast %147 : vector<1x64xf32> to vector<160x64xf32>
    %149 = arith.mulf %146, %148 : vector<160x64xf32>
    %c0_141 = arith.constant 0 : index
    %c0_142 = arith.constant 0 : index
    %150 = vector.load %arg14[%c0_141, %c0_142] : memref<1x64xf32, #tpu.memory_space<vmem>>, vector<1x64xf32>
    %151 = vector.broadcast %150 : vector<1x64xf32> to vector<160x64xf32>
    %152 = arith.addf %149, %151 : vector<160x64xf32>
    %cst_143 = arith.constant 0.000000e+00 : f32
    %153 = vector.broadcast %cst_143 : f32 to vector<160x64xf32>
    %154 = arith.maximumf %152, %153 : vector<160x64xf32>
    %c0_144 = arith.constant 0 : index
    %c0_145 = arith.constant 0 : index
    %c0_146 = arith.constant 0 : index
    %155 = vector.load %arg23[%c0_144, %c0_145, %c0_146] : memref<10x18x64xbf16, #tpu.memory_space<vmem>>, vector<10x1x64xbf16>
    tpu.vector_store %arg23[%c0_144, %c0_145, %c0_146], %39 {strides = array<i32>} : memref<10x18x64xbf16, #tpu.memory_space<vmem>>, vector<10x1x64xbf16>,
    %c0_147 = arith.constant 0 : index
    %c17_148 = arith.constant 17 : index
    %c0_149 = arith.constant 0 : index
    %156 = vector.load %arg23[%c0_147, %c17_148, %c0_149] : memref<10x18x64xbf16, #tpu.memory_space<vmem>>, vector<10x1x64xbf16>
    tpu.vector_store %arg23[%c0_147, %c17_148, %c0_149], %39 {strides = array<i32>} : memref<10x18x64xbf16, #tpu.memory_space<vmem>>, vector<10x1x64xbf16>,
    %157 = vector.shape_cast %154 : vector<160x64xf32> to vector<10x16x64xf32>
    %158 = arith.truncf %157 : vector<10x16x64xf32> to vector<10x16x64xbf16>
    %c0_150 = arith.constant 0 : index
    %c1_151 = arith.constant 1 : index
    %c0_152 = arith.constant 0 : index
    %159 = vector.load %arg23[%c0_150, %c1_151, %c0_152] : memref<10x18x64xbf16, #tpu.memory_space<vmem>>, vector<10x16x64xbf16>
    tpu.vector_store %arg23[%c0_150, %c1_151, %c0_152], %158 {strides = array<i32>} : memref<10x18x64xbf16, #tpu.memory_space<vmem>>, vector<10x16x64xbf16>,
    %c0_i32_153 = arith.constant 0 : i32
    %160 = arith.cmpi eq, %arg1, %c0_i32_153 : i32
    %161 = arith.extui %160 : i1 to i32
    %c0_i32_154 = arith.constant 0 : i32
    %162 = arith.cmpi ne, %161, %c0_i32_154 : i32
    scf.if %162 {
      %cst_204 = arith.constant 0.000000e+00 : bf16
      %211 = vector.broadcast %cst_204 : bf16 to vector<1x18x64xbf16>
      %c0_205 = arith.constant 0 : index
      %c0_206 = arith.constant 0 : index
      %c0_207 = arith.constant 0 : index
      %212 = vector.load %arg23[%c0_205, %c0_206, %c0_207] : memref<10x18x64xbf16, #tpu.memory_space<vmem>>, vector<1x18x64xbf16>
      tpu.vector_store %arg23[%c0_205, %c0_206, %c0_207], %211 {strides = array<i32>} : memref<10x18x64xbf16, #tpu.memory_space<vmem>>, vector<1x18x64xbf16>,
    } else {
    }
    %c1_i32_155 = arith.constant 1 : i32
    %163 = arith.cmpi eq, %arg1, %c1_i32_155 : i32
    %164 = arith.extui %163 : i1 to i32
    %c0_i32_156 = arith.constant 0 : i32
    %165 = arith.cmpi ne, %164, %c0_i32_156 : i32
    scf.if %165 {
      %cst_204 = arith.constant 0.000000e+00 : bf16
      %211 = vector.broadcast %cst_204 : bf16 to vector<1x18x64xbf16>
      %c9 = arith.constant 9 : index
      %c0_205 = arith.constant 0 : index
      %c0_206 = arith.constant 0 : index
      %212 = vector.load %arg23[%c9, %c0_205, %c0_206] : memref<10x18x64xbf16, #tpu.memory_space<vmem>>, vector<1x18x64xbf16>
      tpu.vector_store %arg23[%c9, %c0_205, %c0_206], %211 {strides = array<i32>} : memref<10x18x64xbf16, #tpu.memory_space<vmem>>, vector<1x18x64xbf16>,
    } else {
    }
    %c0_157 = arith.constant 0 : index
    %c0_158 = arith.constant 0 : index
    %c0_159 = arith.constant 0 : index
    %166 = vector.load %arg23[%c0_157, %c0_158, %c0_159] : memref<10x18x64xbf16, #tpu.memory_space<vmem>>, vector<8x16x64xbf16>
    %167 = vector.shape_cast %166 : vector<8x16x64xbf16> to vector<128x64xbf16>
    %c0_160 = arith.constant 0 : index
    %c1_161 = arith.constant 1 : index
    %c0_162 = arith.constant 0 : index
    %168 = vector.load %arg23[%c0_160, %c1_161, %c0_162] : memref<10x18x64xbf16, #tpu.memory_space<vmem>>, vector<8x16x64xbf16>
    %169 = vector.shape_cast %168 : vector<8x16x64xbf16> to vector<128x64xbf16>
    %c0_163 = arith.constant 0 : index
    %c2_164 = arith.constant 2 : index
    %c0_165 = arith.constant 0 : index
    %170 = vector.load %arg23[%c0_163, %c2_164, %c0_165] : memref<10x18x64xbf16, #tpu.memory_space<vmem>>, vector<8x16x64xbf16>
    %171 = vector.shape_cast %170 : vector<8x16x64xbf16> to vector<128x64xbf16>
    %172 = tpu.concatenate %167, %169, %171 in 1 : vector<128x64xbf16>, vector<128x64xbf16>, vector<128x64xbf16> -> vector<128x192xbf16>
    %c0_166 = arith.constant 0 : index
    %c0_167 = arith.constant 0 : index
    %c0_168 = arith.constant 0 : index
    %173 = vector.load %arg15[%c0_166, %c0_167, %c0_168] : memref<3x192x96xbf16, #tpu.memory_space<vmem>>, vector<1x192x96xbf16>
    %174 = vector.shape_cast %173 : vector<1x192x96xbf16> to vector<192x96xbf16>
    %cst_169 = arith.constant dense<0.000000e+00> : vector<128x96xf32>
    %175 = tpu.matmul %172, %174, %cst_169 {dimension_numbers = #tpu.dot_dimension_numbers<[1], [0], [0], [1], [0, 0, 1, 1], [], []>} : vector<128x192xbf16>, vector<192x96xbf16>, vector<128x96xf32> -> vector<128x96xf32>
    %c1_170 = arith.constant 1 : index
    %c0_171 = arith.constant 0 : index
    %c0_172 = arith.constant 0 : index
    %176 = vector.load %arg23[%c1_170, %c0_171, %c0_172] : memref<10x18x64xbf16, #tpu.memory_space<vmem>>, vector<8x16x64xbf16>
    %177 = vector.shape_cast %176 : vector<8x16x64xbf16> to vector<128x64xbf16>
    %c1_173 = arith.constant 1 : index
    %c1_174 = arith.constant 1 : index
    %c0_175 = arith.constant 0 : index
    %178 = vector.load %arg23[%c1_173, %c1_174, %c0_175] : memref<10x18x64xbf16, #tpu.memory_space<vmem>>, vector<8x16x64xbf16>
    %179 = vector.shape_cast %178 : vector<8x16x64xbf16> to vector<128x64xbf16>
    %c1_176 = arith.constant 1 : index
    %c2_177 = arith.constant 2 : index
    %c0_178 = arith.constant 0 : index
    %180 = vector.load %arg23[%c1_176, %c2_177, %c0_178] : memref<10x18x64xbf16, #tpu.memory_space<vmem>>, vector<8x16x64xbf16>
    %181 = vector.shape_cast %180 : vector<8x16x64xbf16> to vector<128x64xbf16>
    %182 = tpu.concatenate %177, %179, %181 in 1 : vector<128x64xbf16>, vector<128x64xbf16>, vector<128x64xbf16> -> vector<128x192xbf16>
    %c1_179 = arith.constant 1 : index
    %c0_180 = arith.constant 0 : index
    %c0_181 = arith.constant 0 : index
    %183 = vector.load %arg15[%c1_179, %c0_180, %c0_181] : memref<3x192x96xbf16, #tpu.memory_space<vmem>>, vector<1x192x96xbf16>
    %184 = vector.shape_cast %183 : vector<1x192x96xbf16> to vector<192x96xbf16>
    %cst_182 = arith.constant dense<0.000000e+00> : vector<128x96xf32>
    %185 = tpu.matmul %182, %184, %cst_182 {dimension_numbers = #tpu.dot_dimension_numbers<[1], [0], [0], [1], [0, 0, 1, 1], [], []>} : vector<128x192xbf16>, vector<192x96xbf16>, vector<128x96xf32> -> vector<128x96xf32>
    %186 = arith.addf %175, %185 : vector<128x96xf32>
    %c2_183 = arith.constant 2 : index
    %c0_184 = arith.constant 0 : index
    %c0_185 = arith.constant 0 : index
    %187 = vector.load %arg23[%c2_183, %c0_184, %c0_185] : memref<10x18x64xbf16, #tpu.memory_space<vmem>>, vector<8x16x64xbf16>
    %188 = vector.shape_cast %187 : vector<8x16x64xbf16> to vector<128x64xbf16>
    %c2_186 = arith.constant 2 : index
    %c1_187 = arith.constant 1 : index
    %c0_188 = arith.constant 0 : index
    %189 = vector.load %arg23[%c2_186, %c1_187, %c0_188] : memref<10x18x64xbf16, #tpu.memory_space<vmem>>, vector<8x16x64xbf16>
    %190 = vector.shape_cast %189 : vector<8x16x64xbf16> to vector<128x64xbf16>
    %c2_189 = arith.constant 2 : index
    %c2_190 = arith.constant 2 : index
    %c0_191 = arith.constant 0 : index
    %191 = vector.load %arg23[%c2_189, %c2_190, %c0_191] : memref<10x18x64xbf16, #tpu.memory_space<vmem>>, vector<8x16x64xbf16>
    %192 = vector.shape_cast %191 : vector<8x16x64xbf16> to vector<128x64xbf16>
    %193 = tpu.concatenate %188, %190, %192 in 1 : vector<128x64xbf16>, vector<128x64xbf16>, vector<128x64xbf16> -> vector<128x192xbf16>
    %c2_192 = arith.constant 2 : index
    %c0_193 = arith.constant 0 : index
    %c0_194 = arith.constant 0 : index
    %194 = vector.load %arg15[%c2_192, %c0_193, %c0_194] : memref<3x192x96xbf16, #tpu.memory_space<vmem>>, vector<1x192x96xbf16>
    %195 = vector.shape_cast %194 : vector<1x192x96xbf16> to vector<192x96xbf16>
    %cst_195 = arith.constant dense<0.000000e+00> : vector<128x96xf32>
    %196 = tpu.matmul %193, %195, %cst_195 {dimension_numbers = #tpu.dot_dimension_numbers<[1], [0], [0], [1], [0, 0, 1, 1], [], []>} : vector<128x192xbf16>, vector<192x96xbf16>, vector<128x96xf32> -> vector<128x96xf32>
    %197 = arith.addf %186, %196 : vector<128x96xf32>
    %c0_196 = arith.constant 0 : index
    %c0_197 = arith.constant 0 : index
    %198 = vector.load %arg16[%c0_196, %c0_197] : memref<1x96xf32, #tpu.memory_space<vmem>>, vector<1x96xf32>
    %199 = vector.broadcast %198 : vector<1x96xf32> to vector<128x96xf32>
    %200 = arith.mulf %197, %199 : vector<128x96xf32>
    %c0_198 = arith.constant 0 : index
    %c0_199 = arith.constant 0 : index
    %201 = vector.load %arg17[%c0_198, %c0_199] : memref<1x96xf32, #tpu.memory_space<vmem>>, vector<1x96xf32>
    %202 = vector.broadcast %201 : vector<1x96xf32> to vector<128x96xf32>
    %203 = arith.addf %200, %202 : vector<128x96xf32>
    %cst_200 = arith.constant 0.000000e+00 : f32
    %204 = vector.broadcast %cst_200 : f32 to vector<128x96xf32>
    %205 = arith.maximumf %203, %204 : vector<128x96xf32>
    %206 = vector.shape_cast %205 : vector<128x96xf32> to vector<8x16x96xf32>
    %207 = arith.truncf %206 : vector<8x16x96xf32> to vector<8x16x96xbf16>
    %c0_201 = arith.constant 0 : index
    %c0_202 = arith.constant 0 : index
    %c0_203 = arith.constant 0 : index
    %c96 = arith.constant 96 : index
    %208 = vector.load %arg18[%c0_201, %c0_202, %c0_203, %c96] : memref<1x8x16x192xbf16, #tpu.memory_space<vmem>>, vector<1x8x16x96xbf16>
    %209 = vector.shape_cast %208 : vector<1x8x16x96xbf16> to vector<8x16x96xbf16>
    %210 = vector.shape_cast %207 : vector<8x16x96xbf16> to vector<1x8x16x96xbf16>
    tpu.vector_store %arg18[%c0_201, %c0_202, %c0_203, %c96], %210 {strides = array<i32>} : memref<1x8x16x192xbf16, #tpu.memory_space<vmem>>, vector<1x8x16x96xbf16>,
    return
  }
  func.func @transform_0(%arg0: i32, %arg1: i32) -> (i32, i32, i32, i32) {
    %c0_i32 = arith.constant 0 : i32
    %c0_i32_0 = arith.constant 0 : i32
    %c0_i32_1 = arith.constant 0 : i32
    %c0_i32_2 = arith.constant 0 : i32
    return %arg0, %c0_i32, %c0_i32_0, %c0_i32_1 : i32, i32, i32, i32
  }
  func.func @transform_1(%arg0: i32, %arg1: i32) -> (i32, i32) {
    %c0_i32 = arith.constant 0 : i32
    %c0_i32_0 = arith.constant 0 : i32
    %c0_i32_1 = arith.constant 0 : i32
    return %c0_i32, %c0_i32_0 : i32, i32
  }
  func.func @transform_2(%arg0: i32, %arg1: i32) -> (i32, i32) {
    %c0_i32 = arith.constant 0 : i32
    %c0_i32_0 = arith.constant 0 : i32
    %c0_i32_1 = arith.constant 0 : i32
    return %c0_i32, %c0_i32_0 : i32, i32
  }
  func.func @transform_3(%arg0: i32, %arg1: i32) -> (i32, i32) {
    %c0_i32 = arith.constant 0 : i32
    %c0_i32_0 = arith.constant 0 : i32
    %c0_i32_1 = arith.constant 0 : i32
    return %c0_i32, %c0_i32_0 : i32, i32
  }
  func.func @transform_4(%arg0: i32, %arg1: i32) -> (i32, i32, i32) {
    %c0_i32 = arith.constant 0 : i32
    %c0_i32_0 = arith.constant 0 : i32
    %c0_i32_1 = arith.constant 0 : i32
    %c0_i32_2 = arith.constant 0 : i32
    return %c0_i32, %c0_i32_0, %c0_i32_1 : i32, i32, i32
  }
  func.func @transform_5(%arg0: i32, %arg1: i32) -> (i32, i32) {
    %c0_i32 = arith.constant 0 : i32
    %c0_i32_0 = arith.constant 0 : i32
    %c0_i32_1 = arith.constant 0 : i32
    return %c0_i32, %c0_i32_0 : i32, i32
  }
  func.func @transform_6(%arg0: i32, %arg1: i32) -> (i32, i32) {
    %c0_i32 = arith.constant 0 : i32
    %c0_i32_0 = arith.constant 0 : i32
    %c0_i32_1 = arith.constant 0 : i32
    return %c0_i32, %c0_i32_0 : i32, i32
  }
  func.func @transform_7(%arg0: i32, %arg1: i32) -> (i32, i32, i32) {
    %c0_i32 = arith.constant 0 : i32
    %c0_i32_0 = arith.constant 0 : i32
    %c0_i32_1 = arith.constant 0 : i32
    %c0_i32_2 = arith.constant 0 : i32
    return %c0_i32, %c0_i32_0, %c0_i32_1 : i32, i32, i32
  }
  func.func @transform_8(%arg0: i32, %arg1: i32) -> (i32, i32) {
    %c0_i32 = arith.constant 0 : i32
    %c0_i32_0 = arith.constant 0 : i32
    %c0_i32_1 = arith.constant 0 : i32
    return %c0_i32, %c0_i32_0 : i32, i32
  }
  func.func @transform_9(%arg0: i32, %arg1: i32) -> (i32, i32) {
    %c0_i32 = arith.constant 0 : i32
    %c0_i32_0 = arith.constant 0 : i32
    %c0_i32_1 = arith.constant 0 : i32
    return %c0_i32, %c0_i32_0 : i32, i32
  }
  func.func @transform_10(%arg0: i32, %arg1: i32) -> (i32, i32, i32) {
    %c0_i32 = arith.constant 0 : i32
    %c0_i32_0 = arith.constant 0 : i32
    %c0_i32_1 = arith.constant 0 : i32
    %c0_i32_2 = arith.constant 0 : i32
    return %c0_i32, %c0_i32_0, %c0_i32_1 : i32, i32, i32
  }
  func.func @transform_11(%arg0: i32, %arg1: i32) -> (i32, i32) {
    %c0_i32 = arith.constant 0 : i32
    %c0_i32_0 = arith.constant 0 : i32
    %c0_i32_1 = arith.constant 0 : i32
    return %c0_i32, %c0_i32_0 : i32, i32
  }
  func.func @transform_12(%arg0: i32, %arg1: i32) -> (i32, i32) {
    %c0_i32 = arith.constant 0 : i32
    %c0_i32_0 = arith.constant 0 : i32
    %c0_i32_1 = arith.constant 0 : i32
    return %c0_i32, %c0_i32_0 : i32, i32
  }
  func.func @transform_13(%arg0: i32, %arg1: i32) -> (i32, i32, i32) {
    %c0_i32 = arith.constant 0 : i32
    %c0_i32_0 = arith.constant 0 : i32
    %c0_i32_1 = arith.constant 0 : i32
    %c0_i32_2 = arith.constant 0 : i32
    return %c0_i32, %c0_i32_0, %c0_i32_1 : i32, i32, i32
  }
  func.func @transform_14(%arg0: i32, %arg1: i32) -> (i32, i32) {
    %c0_i32 = arith.constant 0 : i32
    %c0_i32_0 = arith.constant 0 : i32
    %c0_i32_1 = arith.constant 0 : i32
    return %c0_i32, %c0_i32_0 : i32, i32
  }
  func.func @transform_15(%arg0: i32, %arg1: i32) -> (i32, i32) {
    %c0_i32 = arith.constant 0 : i32
    %c0_i32_0 = arith.constant 0 : i32
    %c0_i32_1 = arith.constant 0 : i32
    return %c0_i32, %c0_i32_0 : i32, i32
  }
  func.func @transform_16(%arg0: i32, %arg1: i32) -> (i32, i32, i32, i32) {
    %c0_i32 = arith.constant 0 : i32
    %c0_i32_0 = arith.constant 0 : i32
    %c0_i32_1 = arith.constant 0 : i32
    return %arg0, %arg1, %c0_i32, %c0_i32_0 : i32, i32, i32, i32
  }
}

</mosaic_0001>

<llo_original>
// kernel: _lambda_.1
$region0: #{_lambda_.1}
  #allocation0 [shape = 'u32[]', space=smem, size = 0x4, offset = 0x4, fixed_abs, tag = 'smem constant byte address 0x4 - core index']
  #allocation1 [shape = 'u32[72,128]{1,0:T(1,128)}', space=vmem, size = 0x9000, scoped, tag = 'internal scratch']
  #allocation2 [shape = 'bf16[14,16,160]{2,1,0:T(8,128)(2,1)}', space=vmem, size = 0x1c000, scoped, tag = 'scratch operand']
  #allocation3 [shape = 'bf16[14,16,128]{2,1,0:T(8,128)(2,1)}', space=vmem, size = 0xe000, scoped, tag = 'scratch operand']
  #allocation4 [shape = 'bf16[10,18,64]{2,1,0:T(8,128)(2,1)}', space=vmem, size = 0xf000, scoped, tag = 'scratch operand']
  #allocation5 [shape = 'bf16[10,20,64]{2,1,0:T(8,128)(2,1)}', space=vmem, size = 0xf000, scoped, tag = 'scratch operand']
  #allocation6 [shape = 'bf16[10,18,64]{2,1,0:T(8,128)(2,1)}', space=vmem, size = 0xf000, scoped, tag = 'scratch operand']
  %s0 = inlined_call_operand.vmem [shape: bf16[2,16,16,160], index: 0, kind: input, shape index: {}]
  %s1 = inlined_call_operand.vmem [shape: bf16[160,128], index: 1, kind: input, shape index: {}]
  %s2 = inlined_call_operand.vmem [shape: f32[1,128], index: 2, kind: input, shape index: {}]
  %s3 = inlined_call_operand.vmem [shape: f32[1,128], index: 3, kind: input, shape index: {}]
  %s4 = inlined_call_operand.vmem [shape: bf16[3,192,96], index: 4, kind: input, shape index: {}]
  %s5 = inlined_call_operand.vmem [shape: f32[1,96], index: 5, kind: input, shape index: {}]
  %s6 = inlined_call_operand.vmem [shape: f32[1,96], index: 6, kind: input, shape index: {}]
  %s7 = inlined_call_operand.vmem [shape: bf16[5,64,64], index: 7, kind: input, shape index: {}]
  %s8 = inlined_call_operand.vmem [shape: f32[1,64], index: 8, kind: input, shape index: {}]
  %s9 = inlined_call_operand.vmem [shape: f32[1,64], index: 9, kind: input, shape index: {}]
  %s10 = inlined_call_operand.vmem [shape: bf16[1,320,64], index: 10, kind: input, shape index: {}]
  %s11 = inlined_call_operand.vmem [shape: f32[1,64], index: 11, kind: input, shape index: {}]
  %s12 = inlined_call_operand.vmem [shape: f32[1,64], index: 12, kind: input, shape index: {}]
  %s13 = inlined_call_operand.vmem [shape: bf16[3,192,96], index: 13, kind: input, shape index: {}]
  %s14 = inlined_call_operand.vmem [shape: f32[1,96], index: 14, kind: input, shape index: {}]
  %s15 = inlined_call_operand.vmem [shape: f32[1,96], index: 15, kind: input, shape index: {}]
  %s16 = inlined_call_operand.hbm [shape: bf16[2,16,16,192], index: 16, kind: output, shape index: {}]
  %s17 = sld [smem:[#allocation0]]
  $region129: #{_lambda_.1} parent=0
    _
  %s19 = ssub.s32 1, %s17
  %s20 = scalar_select 0, %s19, %s17
  $region1: #{_lambda_.1} parent=0
    #allocation7 [shape = 'u8[131072]{0}', space=vmem, size = 0x20000, scoped, tag = 'output window, operand 0']
    #allocation8 [shape = 's32[2]{0}', space=sflag, size = 0x8, scoped, tag = 'scoped memory for _lambda_.1']
    %21 = vsyncpa [#allocation8], 0
    %s22 = scalar_lea.sflag [#allocation8], 1
    %23 = vsyncpa %s22, 0
    loop: start=0, step=1, limit=6
    $region2: #{_lambda_.1} parent=1 // loop_pre_header
      _
    $region3: #{_lambda_.1} parent=1 // loop_header
      %s25 = sphi 0, %s29
      %p26 = scmp.ge.s32.totalorder %s25, 6
      %s32 = sphi 0, %s44
      %s33 = sphi 0, %s40
      %s34 = sphi 0, %s32
      %s35 = sphi 0, %s33
      %s36 = sphi 0, %s34
      %s37 = sphi 0, %s35
      %s47 = sphi 0, %s49
      %s50 = sphi 0, %s47
      %s51 = sphi 0, %s50
      %s67 = sphi 0, %s51
      %s71 = sphi 0, %s71
      %s73 = sphi 0, %s71
      %s74 = sphi 0, %s73
      %s88 = sphi 0, %s74
      %s92 = sphi 0, %s92
      %s94 = sphi 0, %s92
      %s95 = sphi 0, %s94
      %s109 = sphi 0, %s95
      %s113 = sphi 0, %s113
      %s115 = sphi 0, %s113
      %s116 = sphi 0, %s115
      %s130 = sphi 0, %s116
      %s134 = sphi 0, %s134
      %s136 = sphi 0, %s134
      %s137 = sphi 0, %s136
      %s151 = sphi 0, %s137
      %s155 = sphi 0, %s155
      %s157 = sphi 0, %s155
      %s158 = sphi 0, %s157
      %s172 = sphi 0, %s158
      %s176 = sphi 0, %s176
      %s178 = sphi 0, %s176
      %s179 = sphi 0, %s178
      %s193 = sphi 0, %s179
      %s197 = sphi 0, %s197
      %s199 = sphi 0, %s197
      %s200 = sphi 0, %s199
      %s214 = sphi 0, %s200
      %s218 = sphi 0, %s218
      %s220 = sphi 0, %s218
      %s221 = sphi 0, %s220
      %s235 = sphi 0, %s221
      %s239 = sphi 0, %s239
      %s241 = sphi 0, %s239
      %s242 = sphi 0, %s241
      %s256 = sphi 0, %s242
      %s260 = sphi 0, %s260
      %s262 = sphi 0, %s260
      %s263 = sphi 0, %s262
      %s277 = sphi 0, %s263
      %s281 = sphi 0, %s281
      %s283 = sphi 0, %s281
      %s284 = sphi 0, %s283
      %s298 = sphi 0, %s284
      %s302 = sphi 0, %s302
      %s304 = sphi 0, %s302
      %s305 = sphi 0, %s304
      %s319 = sphi 0, %s305
      %s323 = sphi 0, %s323
      %s325 = sphi 0, %s323
      %s326 = sphi 0, %s325
      %s340 = sphi 0, %s326
      %s344 = sphi 0, %s344
      %s346 = sphi 0, %s344
      %s347 = sphi 0, %s346
      %s361 = sphi 0, %s347
      %s365 = sphi 0, %s365
      %s367 = sphi 0, %s365
      %s368 = sphi 0, %s367
      %s382 = sphi 0, %s368
      %s390 = sphi 0, %s392
      %s393 = sphi 0, %s390
      %s394 = sphi 0, %s393
      %s410 = sphi 0, %s394
    $region4: #{_lambda_.1} parent=1 // loop_header_branch
      %28 = sbr.rel (%p26) target = $region8
    $region5: #{_lambda_.1} parent=1 // loop_body
      %s30 = ssub.s32 %s25, 1
      %s31 = ssub.s32 %s25, 2
      %s38 = sadd.s32 1, %s33
      %p39 = scmp.ge.s32.totalorder %s38, 2
      %s40 = scalar_select %p39, 0, %s38
      %s41 = sadd.s32 1, %s32
      %s42 = scalar_select %p39, %s41, %s32
      %p43 = scmp.ge.s32.totalorder %s42, 2
      %s44 = scalar_select %p43, 0, %s42
      %s45 = ssub.s32 %s32, %s44
      %p46 = scmp.eq.s32.totalorder %s45, 0
      %s48 = sadd.s32 %s47, 1
      %s49 = scalar_select %p46, %s47, %s48
      %p52 = pneg %p46
      %p53 = scmp.eq.s32.totalorder %s25, 3
      %p54 = por %p52, %p53
      %p55 = scmp.ne.s32.totalorder %s47, %s50
      %p56 = scmp.eq.s32.totalorder %s25, 0
      %p57 = por %p55, %p56
      %p58 = scmp.ne.s32.totalorder %s47, %s50
      %p59 = scmp.eq.s32.totalorder %s30, 3
      %p60 = por %p58, %p59
      %p61 = scmp.ne.s32.totalorder %s50, %s51
      %p62 = scmp.eq.s32.totalorder %s30, 0
      %p63 = por %p61, %p62
      %p64 = scmp.ne.s32.totalorder %s50, %s51
      %p65 = scmp.eq.s32.totalorder %s31, 3
      %p66 = por %p64, %p65
      %p68 = scmp.ne.s32.totalorder %s51, %s67
      %p69 = scmp.eq.s32.totalorder %s31, 0
      %p70 = por %p68, %p69
      %s72 = sadd.s32 %s71, 1
      %p75 = scmp.eq.s32.totalorder %s25, 3
      %p76 = scmp.ne.s32.totalorder %s71, %s73
      %p77 = scmp.eq.s32.totalorder %s25, 0
      %p78 = por %p76, %p77
      %p79 = scmp.ne.s32.totalorder %s71, %s73
      %p80 = scmp.eq.s32.totalorder %s30, 3
      %p81 = por %p79, %p80
      %p82 = scmp.ne.s32.totalorder %s73, %s74
      %p83 = scmp.eq.s32.totalorder %s30, 0
      %p84 = por %p82, %p83
      %p85 = scmp.ne.s32.totalorder %s73, %s74
      %p86 = scmp.eq.s32.totalorder %s31, 3
      %p87 = por %p85, %p86
      %p89 = scmp.ne.s32.totalorder %s74, %s88
      %p90 = scmp.eq.s32.totalorder %s31, 0
      %p91 = por %p89, %p90
      %s93 = sadd.s32 %s92, 1
      %p96 = scmp.eq.s32.totalorder %s25, 3
      %p97 = scmp.ne.s32.totalorder %s92, %s94
      %p98 = scmp.eq.s32.totalorder %s25, 0
      %p99 = por %p97, %p98
      %p100 = scmp.ne.s32.totalorder %s92, %s94
      %p101 = scmp.eq.s32.totalorder %s30, 3
      %p102 = por %p100, %p101
      %p103 = scmp.ne.s32.totalorder %s94, %s95
      %p104 = scmp.eq.s32.totalorder %s30, 0
      %p105 = por %p103, %p104
      %p106 = scmp.ne.s32.totalorder %s94, %s95
      %p107 = scmp.eq.s32.totalorder %s31, 3
      %p108 = por %p106, %p107
      %p110 = scmp.ne.s32.totalorder %s95, %s109
      %p111 = scmp.eq.s32.totalorder %s31, 0
      %p112 = por %p110, %p111
      %s114 = sadd.s32 %s113, 1
      %p117 = scmp.eq.s32.totalorder %s25, 3
      %p118 = scmp.ne.s32.totalorder %s113, %s115
      %p119 = scmp.eq.s32.totalorder %s25, 0
      %p120 = por %p118, %p119
      %p121 = scmp.ne.s32.totalorder %s113, %s115
      %p122 = scmp.eq.s32.totalorder %s30, 3
      %p123 = por %p121, %p122
      %p124 = scmp.ne.s32.totalorder %s115, %s116
      %p125 = scmp.eq.s32.totalorder %s30, 0
      %p126 = por %p124, %p125
      %p127 = scmp.ne.s32.totalorder %s115, %s116
      %p128 = scmp.eq.s32.totalorder %s31, 3
      %p129 = por %p127, %p128
      %p131 = scmp.ne.s32.totalorder %s116, %s130
      %p132 = scmp.eq.s32.totalorder %s31, 0
      %p133 = por %p131, %p132
      %s135 = sadd.s32 %s134, 1
      %p138 = scmp.eq.s32.totalorder %s25, 3
      %p139 = scmp.ne.s32.totalorder %s134, %s136
      %p140 = scmp.eq.s32.totalorder %s25, 0
      %p141 = por %p139, %p140
      %p142 = scmp.ne.s32.totalorder %s134, %s136
      %p143 = scmp.eq.s32.totalorder %s30, 3
      %p144 = por %p142, %p143
      %p145 = scmp.ne.s32.totalorder %s136, %s137
      %p146 = scmp.eq.s32.totalorder %s30, 0
      %p147 = por %p145, %p146
      %p148 = scmp.ne.s32.totalorder %s136, %s137
      %p149 = scmp.eq.s32.totalorder %s31, 3
      %p150 = por %p148, %p149
      %p152 = scmp.ne.s32.totalorder %s137, %s151
      %p153 = scmp.eq.s32.totalorder %s31, 0
      %p154 = por %p152, %p153
      %s156 = sadd.s32 %s155, 1
      %p159 = scmp.eq.s32.totalorder %s25, 3
      %p160 = scmp.ne.s32.totalorder %s155, %s157
      %p161 = scmp.eq.s32.totalorder %s25, 0
      %p162 = por %p160, %p161
      %p163 = scmp.ne.s32.totalorder %s155, %s157
      %p164 = scmp.eq.s32.totalorder %s30, 3
      %p165 = por %p163, %p164
      %p166 = scmp.ne.s32.totalorder %s157, %s158
      %p167 = scmp.eq.s32.totalorder %s30, 0
      %p168 = por %p166, %p167
      %p169 = scmp.ne.s32.totalorder %s157, %s158
      %p170 = scmp.eq.s32.totalorder %s31, 3
      %p171 = por %p169, %p170
      %p173 = scmp.ne.s32.totalorder %s158, %s172
      %p174 = scmp.eq.s32.totalorder %s31, 0
      %p175 = por %p173, %p174
      %s177 = sadd.s32 %s176, 1
      %p180 = scmp.eq.s32.totalorder %s25, 3
      %p181 = scmp.ne.s32.totalorder %s176, %s178
      %p182 = scmp.eq.s32.totalorder %s25, 0
      %p183 = por %p181, %p182
      %p184 = scmp.ne.s32.totalorder %s176, %s178
      %p185 = scmp.eq.s32.totalorder %s30, 3
      %p186 = por %p184, %p185
      %p187 = scmp.ne.s32.totalorder %s178, %s179
      %p188 = scmp.eq.s32.totalorder %s30, 0
      %p189 = por %p187, %p188
      %p190 = scmp.ne.s32.totalorder %s178, %s179
      %p191 = scmp.eq.s32.totalorder %s31, 3
      %p192 = por %p190, %p191
      %p194 = scmp.ne.s32.totalorder %s179, %s193
      %p195 = scmp.eq.s32.totalorder %s31, 0
      %p196 = por %p194, %p195
      %s198 = sadd.s32 %s197, 1
      %p201 = scmp.eq.s32.totalorder %s25, 3
      %p202 = scmp.ne.s32.totalorder %s197, %s199
      %p203 = scmp.eq.s32.totalorder %s25, 0
      %p204 = por %p202, %p203
      %p205 = scmp.ne.s32.totalorder %s197, %s199
      %p206 = scmp.eq.s32.totalorder %s30, 3
      %p207 = por %p205, %p206
      %p208 = scmp.ne.s32.totalorder %s199, %s200
      %p209 = scmp.eq.s32.totalorder %s30, 0
      %p210 = por %p208, %p209
      %p211 = scmp.ne.s32.totalorder %s199, %s200
      %p212 = scmp.eq.s32.totalorder %s31, 3
      %p213 = por %p211, %p212
      %p215 = scmp.ne.s32.totalorder %s200, %s214
      %p216 = scmp.eq.s32.totalorder %s31, 0
      %p217 = por %p215, %p216
      %s219 = sadd.s32 %s218, 1
      %p222 = scmp.eq.s32.totalorder %s25, 3
      %p223 = scmp.ne.s32.totalorder %s218, %s220
      %p224 = scmp.eq.s32.totalorder %s25, 0
      %p225 = por %p223, %p224
      %p226 = scmp.ne.s32.totalorder %s218, %s220
      %p227 = scmp.eq.s32.totalorder %s30, 3
      %p228 = por %p226, %p227
      %p229 = scmp.ne.s32.totalorder %s220, %s221
      %p230 = scmp.eq.s32.totalorder %s30, 0
      %p231 = por %p229, %p230
      %p232 = scmp.ne.s32.totalorder %s220, %s221
      %p233 = scmp.eq.s32.totalorder %s31, 3
      %p234 = por %p232, %p233
      %p236 = scmp.ne.s32.totalorder %s221, %s235
      %p237 = scmp.eq.s32.totalorder %s31, 0
      %p238 = por %p236, %p237
      %s240 = sadd.s32 %s239, 1
      %p243 = scmp.eq.s32.totalorder %s25, 3
      %p244 = scmp.ne.s32.totalorder %s239, %s241
      %p245 = scmp.eq.s32.totalorder %s25, 0
      %p246 = por %p244, %p245
      %p247 = scmp.ne.s32.totalorder %s239, %s241
      %p248 = scmp.eq.s32.totalorder %s30, 3
      %p249 = por %p247, %p248
      %p250 = scmp.ne.s32.totalorder %s241, %s242
      %p251 = scmp.eq.s32.totalorder %s30, 0
      %p252 = por %p250, %p251
      %p253 = scmp.ne.s32.totalorder %s241, %s242
      %p254 = scmp.eq.s32.totalorder %s31, 3
      %p255 = por %p253, %p254
      %p257 = scmp.ne.s32.totalorder %s242, %s256
      %p258 = scmp.eq.s32.totalorder %s31, 0
      %p259 = por %p257, %p258
      %s261 = sadd.s32 %s260, 1
      %p264 = scmp.eq.s32.totalorder %s25, 3
      %p265 = scmp.ne.s32.totalorder %s260, %s262
      %p266 = scmp.eq.s32.totalorder %s25, 0
      %p267 = por %p265, %p266
      %p268 = scmp.ne.s32.totalorder %s260, %s262
      %p269 = scmp.eq.s32.totalorder %s30, 3
      %p270 = por %p268, %p269
      %p271 = scmp.ne.s32.totalorder %s262, %s263
      %p272 = scmp.eq.s32.totalorder %s30, 0
      %p273 = por %p271, %p272
      %p274 = scmp.ne.s32.totalorder %s262, %s263
      %p275 = scmp.eq.s32.totalorder %s31, 3
      %p276 = por %p274, %p275
      %p278 = scmp.ne.s32.totalorder %s263, %s277
      %p279 = scmp.eq.s32.totalorder %s31, 0
      %p280 = por %p278, %p279
      %s282 = sadd.s32 %s281, 1
      %p285 = scmp.eq.s32.totalorder %s25, 3
      %p286 = scmp.ne.s32.totalorder %s281, %s283
      %p287 = scmp.eq.s32.totalorder %s25, 0
      %p288 = por %p286, %p287
      %p289 = scmp.ne.s32.totalorder %s281, %s283
      %p290 = scmp.eq.s32.totalorder %s30, 3
      %p291 = por %p289, %p290
      %p292 = scmp.ne.s32.totalorder %s283, %s284
      %p293 = scmp.eq.s32.totalorder %s30, 0
      %p294 = por %p292, %p293
      %p295 = scmp.ne.s32.totalorder %s283, %s284
      %p296 = scmp.eq.s32.totalorder %s31, 3
      %p297 = por %p295, %p296
      %p299 = scmp.ne.s32.totalorder %s284, %s298
      %p300 = scmp.eq.s32.totalorder %s31, 0
      %p301 = por %p299, %p300
      %s303 = sadd.s32 %s302, 1
      %p306 = scmp.eq.s32.totalorder %s25, 3
      %p307 = scmp.ne.s32.totalorder %s302, %s304
      %p308 = scmp.eq.s32.totalorder %s25, 0
      %p309 = por %p307, %p308
      %p310 = scmp.ne.s32.totalorder %s302, %s304
      %p311 = scmp.eq.s32.totalorder %s30, 3
      %p312 = por %p310, %p311
      %p313 = scmp.ne.s32.totalorder %s304, %s305
      %p314 = scmp.eq.s32.totalorder %s30, 0
      %p315 = por %p313, %p314
      %p316 = scmp.ne.s32.totalorder %s304, %s305
      %p317 = scmp.eq.s32.totalorder %s31, 3
      %p318 = por %p316, %p317
      %p320 = scmp.ne.s32.totalorder %s305, %s319
      %p321 = scmp.eq.s32.totalorder %s31, 0
      %p322 = por %p320, %p321
      %s324 = sadd.s32 %s323, 1
      %p327 = scmp.eq.s32.totalorder %s25, 3
      %p328 = scmp.ne.s32.totalorder %s323, %s325
      %p329 = scmp.eq.s32.totalorder %s25, 0
      %p330 = por %p328, %p329
      %p331 = scmp.ne.s32.totalorder %s323, %s325
      %p332 = scmp.eq.s32.totalorder %s30, 3
      %p333 = por %p331, %p332
      %p334 = scmp.ne.s32.totalorder %s325, %s326
      %p335 = scmp.eq.s32.totalorder %s30, 0
      %p336 = por %p334, %p335
      %p337 = scmp.ne.s32.totalorder %s325, %s326
      %p338 = scmp.eq.s32.totalorder %s31, 3
      %p339 = por %p337, %p338
      %p341 = scmp.ne.s32.totalorder %s326, %s340
      %p342 = scmp.eq.s32.totalorder %s31, 0
      %p343 = por %p341, %p342
      %s345 = sadd.s32 %s344, 1
      %p348 = scmp.eq.s32.totalorder %s25, 3
      %p349 = scmp.ne.s32.totalorder %s344, %s346
      %p350 = scmp.eq.s32.totalorder %s25, 0
      %p351 = por %p349, %p350
      %p352 = scmp.ne.s32.totalorder %s344, %s346
      %p353 = scmp.eq.s32.totalorder %s30, 3
      %p354 = por %p352, %p353
      %p355 = scmp.ne.s32.totalorder %s346, %s347
      %p356 = scmp.eq.s32.totalorder %s30, 0
      %p357 = por %p355, %p356
      %p358 = scmp.ne.s32.totalorder %s346, %s347
      %p359 = scmp.eq.s32.totalorder %s31, 3
      %p360 = por %p358, %p359
      %p362 = scmp.ne.s32.totalorder %s347, %s361
      %p363 = scmp.eq.s32.totalorder %s31, 0
      %p364 = por %p362, %p363
      %s366 = sadd.s32 %s365, 1
      %p369 = scmp.eq.s32.totalorder %s25, 3
      %p370 = scmp.ne.s32.totalorder %s365, %s367
      %p371 = scmp.eq.s32.totalorder %s25, 0
      %p372 = por %p370, %p371
      %p373 = scmp.ne.s32.totalorder %s365, %s367
      %p374 = scmp.eq.s32.totalorder %s30, 3
      %p375 = por %p373, %p374
      %p376 = scmp.ne.s32.totalorder %s367, %s368
      %p377 = scmp.eq.s32.totalorder %s30, 0
      %p378 = por %p376, %p377
      %p379 = scmp.ne.s32.totalorder %s367, %s368
      %p380 = scmp.eq.s32.totalorder %s31, 3
      %p381 = por %p379, %p380
      %p383 = scmp.ne.s32.totalorder %s368, %s382
      %p384 = scmp.eq.s32.totalorder %s31, 0
      %p385 = por %p383, %p384
      %s386 = ssub.s32 %s32, %s44
      %s387 = ssub.s32 %s33, %s40
      %s388 = sor.u32 %s386, %s387
      %p389 = scmp.eq.s32.totalorder %s388, 0
      %s391 = sadd.s32 %s390, 1
      %s392 = scalar_select %p389, %s390, %s391
      %p395 = pneg %p389
      %p396 = scmp.eq.s32.totalorder %s25, 3
      %p397 = por %p395, %p396
      %p398 = scmp.ne.s32.totalorder %s390, %s393
      %p399 = scmp.eq.s32.totalorder %s25, 0
      %p400 = por %p398, %p399
      %p401 = scmp.ne.s32.totalorder %s390, %s393
      %p402 = scmp.eq.s32.totalorder %s30, 3
      %p403 = por %p401, %p402
      %p404 = scmp.ne.s32.totalorder %s393, %s394
      %p405 = scmp.eq.s32.totalorder %s30, 0
      %p406 = por %p404, %p405
      %p407 = scmp.ne.s32.totalorder %s393, %s394
      %p408 = scmp.eq.s32.totalorder %s31, 3
      %p409 = por %p407, %p408
      %p411 = scmp.ne.s32.totalorder %s394, %s410
      %p412 = scmp.eq.s32.totalorder %s31, 0
      %p413 = por %p411, %p412
      %p414 = scmp.le.s32.totalorder 1, %s25
      %p415 = scmp.lt.s32.totalorder %s25, 5
      %p416 = pnand %p414, %p415
      %p417 = pneg %p416
      // Predicated region
      $region9: #{_lambda_.1} parent=5 // pred_check
        _
      $region10: #{_lambda_.1} parent=5 // pred_check_branch
        %419 = sbr.rel (%p416) target = $region12
      $region11: #{_lambda_.1} parent=5 // pred_region
        %s420 = ssub.s32 %s25, 1
        // Predicated region
        $region13: #{_lambda_.1} parent=11 // pred_check
          %p421 = pneg %p84
        $region14: #{_lambda_.1} parent=11 // pred_check_branch
          %423 = sbr.rel (%p421) target = $region16
        $region15: #{_lambda_.1} parent=11 // pred_region
          _
        $region16: #{_lambda_.1} parent=11 // pred_fallthru
          _
        // Predicated region
        $region17: #{_lambda_.1} parent=11 // pred_check
          %p424 = pneg %p105
        $region18: #{_lambda_.1} parent=11 // pred_check_branch
          %426 = sbr.rel (%p424) target = $region20
        $region19: #{_lambda_.1} parent=11 // pred_region
          _
        $region20: #{_lambda_.1} parent=11 // pred_fallthru
          _
        // Predicated region
        $region21: #{_lambda_.1} parent=11 // pred_check
          %p427 = pneg %p126
        $region22: #{_lambda_.1} parent=11 // pred_check_branch
          %429 = sbr.rel (%p427) target = $region24
        $region23: #{_lambda_.1} parent=11 // pred_region
          _
        $region24: #{_lambda_.1} parent=11 // pred_fallthru
          _
        // Predicated region
        $region25: #{_lambda_.1} parent=11 // pred_check
          %p430 = pneg %p147
        $region26: #{_lambda_.1} parent=11 // pred_check_branch
          %432 = sbr.rel (%p430) target = $region28
        $region27: #{_lambda_.1} parent=11 // pred_region
          _
        $region28: #{_lambda_.1} parent=11 // pred_fallthru
          _
        // Predicated region
        $region29: #{_lambda_.1} parent=11 // pred_check
          %p433 = pneg %p168
        $region30: #{_lambda_.1} parent=11 // pred_check_branch
          %435 = sbr.rel (%p433) target = $region32
        $region31: #{_lambda_.1} parent=11 // pred_region
          _
        $region32: #{_lambda_.1} parent=11 // pred_fallthru
          _
        // Predicated region
        $region33: #{_lambda_.1} parent=11 // pred_check
          %p436 = pneg %p189
        $region34: #{_lambda_.1} parent=11 // pred_check_branch
          %438 = sbr.rel (%p436) target = $region36
        $region35: #{_lambda_.1} parent=11 // pred_region
          _
        $region36: #{_lambda_.1} parent=11 // pred_fallthru
          _
        // Predicated region
        $region37: #{_lambda_.1} parent=11 // pred_check
          %p439 = pneg %p210
        $region38: #{_lambda_.1} parent=11 // pred_check_branch
          %441 = sbr.rel (%p439) target = $region40
        $region39: #{_lambda_.1} parent=11 // pred_region
          _
        $region40: #{_lambda_.1} parent=11 // pred_fallthru
          _
        // Predicated region
        $region41: #{_lambda_.1} parent=11 // pred_check
          %p442 = pneg %p231
        $region42: #{_lambda_.1} parent=11 // pred_check_branch
          %444 = sbr.rel (%p442) target = $region44
        $region43: #{_lambda_.1} parent=11 // pred_region
          _
        $region44: #{_lambda_.1} parent=11 // pred_fallthru
          _
        // Predicated region
        $region45: #{_lambda_.1} parent=11 // pred_check
          %p445 = pneg %p252
        $region46: #{_lambda_.1} parent=11 // pred_check_branch
          %447 = sbr.rel (%p445) target = $region48
        $region47: #{_lambda_.1} parent=11 // pred_region
          _
        $region48: #{_lambda_.1} parent=11 // pred_fallthru
          _
        // Predicated region
        $region49: #{_lambda_.1} parent=11 // pred_check
          %p448 = pneg %p273
        $region50: #{_lambda_.1} parent=11 // pred_check_branch
          %450 = sbr.rel (%p448) target = $region52
        $region51: #{_lambda_.1} parent=11 // pred_region
          _
        $region52: #{_lambda_.1} parent=11 // pred_fallthru
          _
        // Predicated region
        $region53: #{_lambda_.1} parent=11 // pred_check
          %p451 = pneg %p294
        $region54: #{_lambda_.1} parent=11 // pred_check_branch
          %453 = sbr.rel (%p451) target = $region56
        $region55: #{_lambda_.1} parent=11 // pred_region
          _
        $region56: #{_lambda_.1} parent=11 // pred_fallthru
          _
        // Predicated region
        $region57: #{_lambda_.1} parent=11 // pred_check
          %p454 = pneg %p315
        $region58: #{_lambda_.1} parent=11 // pred_check_branch
          %456 = sbr.rel (%p454) target = $region60
        $region59: #{_lambda_.1} parent=11 // pred_region
          _
        $region60: #{_lambda_.1} parent=11 // pred_fallthru
          _
        // Predicated region
        $region61: #{_lambda_.1} parent=11 // pred_check
          %p457 = pneg %p336
        $region62: #{_lambda_.1} parent=11 // pred_check_branch
          %459 = sbr.rel (%p457) target = $region64
        $region63: #{_lambda_.1} parent=11 // pred_region
          _
        $region64: #{_lambda_.1} parent=11 // pred_fallthru
          _
        // Predicated region
        $region65: #{_lambda_.1} parent=11 // pred_check
          %p460 = pneg %p357
        $region66: #{_lambda_.1} parent=11 // pred_check_branch
          %462 = sbr.rel (%p460) target = $region68
        $region67: #{_lambda_.1} parent=11 // pred_region
          _
        $region68: #{_lambda_.1} parent=11 // pred_fallthru
          _
        // Predicated region
        $region69: #{_lambda_.1} parent=11 // pred_check
          %p463 = pneg %p378
        $region70: #{_lambda_.1} parent=11 // pred_check_branch
          %465 = sbr.rel (%p463) target = $region72
        $region71: #{_lambda_.1} parent=11 // pred_region
          _
        $region72: #{_lambda_.1} parent=11 // pred_fallthru
          _
      $region12: #{_lambda_.1} parent=5 // pred_fallthru
        _
      %p466 = scmp.lt.s32.totalorder %s25, 4
      // Predicated region
      $region73: #{_lambda_.1} parent=5 // pred_check
        %p467 = pneg %p466
      $region74: #{_lambda_.1} parent=5 // pred_check_branch
        %469 = sbr.rel (%p467) target = $region76
      $region75: #{_lambda_.1} parent=5 // pred_region
        // Predicated region
        $region77: #{_lambda_.1} parent=75 // pred_check
          %p470 = pneg %p57
        $region78: #{_lambda_.1} parent=75 // pred_check_branch
          %472 = sbr.rel (%p470) target = $region80
        $region79: #{_lambda_.1} parent=75 // pred_region
          %p473 = scmp.lt.s32.totalorder %s32, 1
          %s474 = scalar_select %p473, %s32, 1
          %s475 = smul.addr %s474, 64
          %s476 = smul.addr %s475, 4
          %s477 = scalar_lea.vmem %s0, %s476
        $region80: #{_lambda_.1} parent=75 // pred_fallthru
          _
      $region76: #{_lambda_.1} parent=5 // pred_fallthru
        _
      %p478 = scmp.le.s32.totalorder 1, %s25
      %p479 = scmp.lt.s32.totalorder %s25, 5
      %p480 = pnand %p478, %p479
      %p481 = pneg %p480
      // Predicated region
      $region81: #{_lambda_.1} parent=5 // pred_check
        _
      $region82: #{_lambda_.1} parent=5 // pred_check_branch
        %483 = sbr.rel (%p480) target = $region84
      $region83: #{_lambda_.1} parent=5 // pred_region
        %s484 = ssub.s32 %s25, 1
        %p485 = scmp.lt.s32.totalorder %s34, 1
        %s486 = scalar_select %p485, %s34, 1
        %s487 = smul.addr %s486, 64
        %s488 = smul.addr %s487, 4
        %s489 = scalar_lea.vmem %s0, %s488
        %p490 = pneg %p63
        %p491 = pneg %p60
        %p492 = pneg %p84
        %p493 = pneg %p81
        %p494 = pneg %p105
        %p495 = pneg %p102
        %p496 = pneg %p126
        %p497 = pneg %p123
        %p498 = pneg %p147
        %p499 = pneg %p144
        %p500 = pneg %p168
        %p501 = pneg %p165
        %p502 = pneg %p189
        %p503 = pneg %p186
        %p504 = pneg %p210
        %p505 = pneg %p207
        %p506 = pneg %p231
        %p507 = pneg %p228
        %p508 = pneg %p252
        %p509 = pneg %p249
        %p510 = pneg %p273
        %p511 = pneg %p270
        %p512 = pneg %p294
        %p513 = pneg %p291
        %p514 = pneg %p315
        %p515 = pneg %p312
        %p516 = pneg %p336
        %p517 = pneg %p333
        %p518 = pneg %p357
        %p519 = pneg %p354
        %p520 = pneg %p378
        %p521 = pneg %p375
        %p522 = pneg %p406
        %p523 = pneg %p403
        %s524 = sand.u32 %s393, 1
        %s525 = scalar_lea.sflag [#allocation8], %s524
        %s526 = sand.u32 %s393, 1
        %s527 = smul.addr %s526, 128
        %s528 = scalar_lea.vmem [#allocation7], %s527
        %p529 = scmp.lt.s32.totalorder %s34, 1
        %s530 = scalar_select %p529, %s34, 1
        %s531 = smul.addr %s530, 64
        %s532 = smul.addr %s531, 4
        %s533 = scalar_lea.vmem %s0, %s532
        %s534 = smul.u32 8, %s35
        %s536 = smul.u32 %s35, 8
        %s537 = smul.u32 %s536, 4
        %s538 = smul.addr %s537, 4
        %s539 = scalar_lea.vmem %s533, %s538
        %v540 = vld [vmem:[%s539] sm:$0xff]
        %v541 = vld [vmem:[%s539 + $0x8] sm:$0xff]
        %v542 = vld [vmem:[%s539 + $0x10] sm:$0xff]
        %v543 = vld [vmem:[%s539 + $0x18] sm:$0xff]
        %v544 = vld [vmem:[%s539 + $0x20] sm:$0xff]
        %v545 = vld [vmem:[%s539 + $0x28] sm:$0xff]
        %v546 = vld [vmem:[%s539 + $0x30] sm:$0xff]
        %v547 = vld [vmem:[%s539 + $0x38] sm:$0xff]
        %v548 = vld [vmem:[%s539 + $0x40] sm:$0xff]
        %v549 = vld [vmem:[%s539 + $0x48] sm:$0xff]
        %v550 = vld [vmem:[%s539 + $0x50] sm:$0xff]
        %v551 = vld [vmem:[%s539 + $0x58] sm:$0xff]
        %v552 = vld [vmem:[%s539 + $0x60] sm:$0xff]
        %v553 = vld [vmem:[%s539 + $0x68] sm:$0xff]
        %v554 = vld [vmem:[%s539 + $0x70] sm:$0xff]
        %v555 = vld [vmem:[%s539 + $0x78] sm:$0xff]
        %s556 = scalar_lea.vmem [#allocation2], 48
        %vm557 = vcmask 1043456
        %vm558 = vcmask 261124
        %vm559 = vmor %vm558, %vm557
        %560 = vst.msk [vmem:[%s556] sm:$0xff] %vm559, %v540
        %561 = vst.msk [vmem:[%s556 + $0x8] sm:$0xff] %vm559, %v541
        %562 = vst.msk [vmem:[%s556 + $0x10] sm:$0xff] %vm559, %v542
        %563 = vst.msk [vmem:[%s556 + $0x18] sm:$0xff] %vm559, %v543
        %564 = vst.msk [vmem:[%s556 + $0x20] sm:$0xff] %vm559, %v544
        %565 = vst.msk [vmem:[%s556 + $0x28] sm:$0xff] %vm559, %v545
        %566 = vst.msk [vmem:[%s556 + $0x30] sm:$0xff] %vm559, %v546
        %567 = vst.msk [vmem:[%s556 + $0x38] sm:$0xff] %vm559, %v547
        %568 = vst.msk [vmem:[%s556 + $0x40] sm:$0xff] %vm559, %v548
        %569 = vst.msk [vmem:[%s556 + $0x48] sm:$0xff] %vm559, %v549
        %570 = vst.msk [vmem:[%s556 + $0x50] sm:$0xff] %vm559, %v550
        %571 = vst.msk [vmem:[%s556 + $0x58] sm:$0xff] %vm559, %v551
        %572 = vst.msk [vmem:[%s556 + $0x60] sm:$0xff] %vm559, %v552
        %573 = vst.msk [vmem:[%s556 + $0x68] sm:$0xff] %vm559, %v553
        %574 = vst.msk [vmem:[%s556 + $0x70] sm:$0xff] %vm559, %v554
        %575 = vst.msk [vmem:[%s556 + $0x78] sm:$0xff] %vm559, %v555
        %p576 = scmp.eq.s32.totalorder %s35, 0
        // Predicated region
        $region85: #{_lambda_.1} parent=83 // pred_check
          %p577 = pneg %p576
        $region86: #{_lambda_.1} parent=83 // pred_check_branch
          %579 = sbr.rel (%p577) target = $region88
        $region87: #{_lambda_.1} parent=83 // pred_region
          %580 = vst.msk [vmem:[#allocation2] sm:$0xff] %vm559, 0
          %581 = vst.msk [vmem:[#allocation2 + $0x8] sm:$0xff] %vm559, 0
          %582 = vst.msk [vmem:[#allocation2 + $0x10] sm:$0xff] %vm559, 0
          %583 = vst.msk [vmem:[#allocation2 + $0x18] sm:$0xff] %vm559, 0
          %584 = vst.msk [vmem:[#allocation2 + $0x20] sm:$0xff] %vm559, 0
          %585 = vst.msk [vmem:[#allocation2 + $0x28] sm:$0xff] %vm559, 0
        $region88: #{_lambda_.1} parent=83 // pred_fallthru
          _
        %p586 = scmp.gt.s32.totalorder %s35, 0
        // Predicated region
        $region89: #{_lambda_.1} parent=83 // pred_check
          %p587 = pneg %p586
        $region90: #{_lambda_.1} parent=83 // pred_check_branch
          %589 = sbr.rel (%p587) target = $region92
        $region91: #{_lambda_.1} parent=83 // pred_region
          %s590 = ssub.s32 %s536, 3
          %p591 = scmp.gt.s32.totalorder %s590, 0
          %s592 = scalar_select %p591, %s590, 0
          %s593 = smul.u32 %s592, 4
          %s594 = smul.addr %s593, 4
          %s595 = scalar_lea.vmem %s533, %s594
          %v596 = vld [vmem:[%s595] sm:$0xff]
          %v597 = vld [vmem:[%s595 + $0x8] sm:$0xff]
          %v598 = vld [vmem:[%s595 + $0x10] sm:$0xff]
          %v599 = vld [vmem:[%s595 + $0x18] sm:$0xff]
          %v600 = vld [vmem:[%s595 + $0x20] sm:$0xff]
          %v601 = vld [vmem:[%s595 + $0x28] sm:$0xff]
          %602 = vst.msk [vmem:[#allocation2] sm:$0xff] %vm559, %v596
          %603 = vst.msk [vmem:[#allocation2 + $0x8] sm:$0xff] %vm559, %v597
          %604 = vst.msk [vmem:[#allocation2 + $0x10] sm:$0xff] %vm559, %v598
          %605 = vst.msk [vmem:[#allocation2 + $0x18] sm:$0xff] %vm559, %v599
          %606 = vst.msk [vmem:[#allocation2 + $0x20] sm:$0xff] %vm559, %v600
          %607 = vst.msk [vmem:[#allocation2 + $0x28] sm:$0xff] %vm559, %v601
        $region92: #{_lambda_.1} parent=83 // pred_fallthru
          _
        %p608 = scmp.eq.s32.totalorder %s35, 1
        // Predicated region
        $region93: #{_lambda_.1} parent=83 // pred_check
          %p609 = pneg %p608
        $region94: #{_lambda_.1} parent=83 // pred_check_branch
          %611 = sbr.rel (%p609) target = $region96
        $region95: #{_lambda_.1} parent=83 // pred_region
          %s612 = scalar_lea.vmem [#allocation2], 176
          %613 = vst.msk [vmem:[%s612] sm:$0xff] %vm559, 0
          %614 = vst.msk [vmem:[%s612 + $0x8] sm:$0xff] %vm559, 0
          %615 = vst.msk [vmem:[%s612 + $0x10] sm:$0xff] %vm559, 0
          %616 = vst.msk [vmem:[%s612 + $0x18] sm:$0xff] %vm559, 0
          %617 = vst.msk [vmem:[%s612 + $0x20] sm:$0xff] %vm559, 0
          %618 = vst.msk [vmem:[%s612 + $0x28] sm:$0xff] %vm559, 0
        $region96: #{_lambda_.1} parent=83 // pred_fallthru
          _
        %p619 = scmp.lt.s32.totalorder %s35, 1
        // Predicated region
        $region97: #{_lambda_.1} parent=83 // pred_check
          %p620 = pneg %p619
        $region98: #{_lambda_.1} parent=83 // pred_check_branch
          %622 = sbr.rel (%p620) target = $region100
        $region99: #{_lambda_.1} parent=83 // pred_region
          %s623 = sadd.s32 %s536, 8
          %p624 = scmp.lt.s32.totalorder %s623, 13
          %s625 = scalar_select %p624, %s623, 13
          %s626 = smul.u32 %s625, 4
          %s627 = smul.addr %s626, 4
          %s628 = scalar_lea.vmem %s533, %s627
          %v629 = vld [vmem:[%s628] sm:$0xff]
          %v630 = vld [vmem:[%s628 + $0x8] sm:$0xff]
          %v631 = vld [vmem:[%s628 + $0x10] sm:$0xff]
          %v632 = vld [vmem:[%s628 + $0x18] sm:$0xff]
          %v633 = vld [vmem:[%s628 + $0x20] sm:$0xff]
          %v634 = vld [vmem:[%s628 + $0x28] sm:$0xff]
          %s635 = scalar_lea.vmem [#allocation2], 176
          %636 = vst.msk [vmem:[%s635] sm:$0xff] %vm559, %v629
          %637 = vst.msk [vmem:[%s635 + $0x8] sm:$0xff] %vm559, %v630
          %638 = vst.msk [vmem:[%s635 + $0x10] sm:$0xff] %vm559, %v631
          %639 = vst.msk [vmem:[%s635 + $0x18] sm:$0xff] %vm559, %v632
          %640 = vst.msk [vmem:[%s635 + $0x20] sm:$0xff] %vm559, %v633
          %641 = vst.msk [vmem:[%s635 + $0x28] sm:$0xff] %vm559, %v634
        $region100: #{_lambda_.1} parent=83 // pred_fallthru
          _
        %v642 = vld [vmem:[#allocation2] sm:$0xff]
        %v643 = vld [vmem:[#allocation2 + $0x8] sm:$0xff]
        %v644 = vld [vmem:[#allocation2 + $0x10] sm:$0xff]
        %v645 = vld [vmem:[#allocation2 + $0x18] sm:$0xff]
        %v646 = vld [vmem:[#allocation2 + $0x20] sm:$0xff]
        %v647 = vld [vmem:[#allocation2 + $0x28] sm:$0xff]
        %v648 = vld [vmem:[#allocation2 + $0x30] sm:$0xff]
        %v649 = vld [vmem:[#allocation2 + $0x38] sm:$0xff]
        %v650 = vld [vmem:[#allocation2 + $0x40] sm:$0xff]
        %v651 = vld [vmem:[#allocation2 + $0x48] sm:$0xff]
        %v652 = vld [vmem:[#allocation2 + $0x50] sm:$0xff]
        %v653 = vld [vmem:[#allocation2 + $0x58] sm:$0xff]
        %v654 = vld [vmem:[#allocation2 + $0x60] sm:$0xff]
        %v655 = vld [vmem:[#allocation2 + $0x68] sm:$0xff]
        %v656 = vld [vmem:[#allocation2 + $0x70] sm:$0xff]
        %v657 = vld [vmem:[#allocation2 + $0x78] sm:$0xff]
        %v658 = vld [vmem:[#allocation2 + $0x80] sm:$0xff]
        %v659 = vld [vmem:[#allocation2 + $0x88] sm:$0xff]
        %v660 = vld [vmem:[#allocation2 + $0x90] sm:$0xff]
        %v661 = vld [vmem:[#allocation2 + $0x98] sm:$0xff]
        %v662 = vld [vmem:[#allocation2 + $0xa0] sm:$0xff]
        %v663 = vld [vmem:[#allocation2 + $0xa8] sm:$0xff]
        %v664 = vld [vmem:[#allocation2 + $0xb0] sm:$0xff]
        %v665 = vld [vmem:[#allocation2 + $0xb8] sm:$0xff]
        %v666 = vld [vmem:[#allocation2 + $0xc0] sm:$0xff]
        %v667 = vld [vmem:[#allocation2 + $0xc8] sm:$0xff]
        %v668 = vld [vmem:[#allocation2 + $0xd0] sm:$0xff]
        %v669 = vld [vmem:[#allocation2 + $0xd8] sm:$0xff]
        %v670 = vld [vmem:[%s1] sm:$0xf]
        %v671 = vld [vmem:[%s1 + $0x4] sm:$0xf]
        %v672 = vld [vmem:[%s1 + $0x8] sm:$0xf]
        %v673 = vld [vmem:[%s1 + $0xc] sm:$0xf]
        %v674 = vld [vmem:[%s1 + $0x10] sm:$0xf]
        %v675 = vld [vmem:[%s1 + $0x14] sm:$0xf]
        %v676 = vld [vmem:[%s1 + $0x18] sm:$0xf]
        %v677 = vld [vmem:[%s1 + $0x1c] sm:$0xf]
        %v678 = vld [vmem:[%s1 + $0x20] sm:$0xf]
        %v679 = vld [vmem:[%s1 + $0x24] sm:$0xf]
        %v680 = vld [vmem:[%s1 + $0x28] sm:$0xf]
        %v681 = vld [vmem:[%s1 + $0x2c] sm:$0xf]
        %v682 = vld [vmem:[%s1 + $0x30] sm:$0xf]
        %v683 = vld [vmem:[%s1 + $0x34] sm:$0xf]
        %v684 = vld [vmem:[%s1 + $0x38] sm:$0xf]
        %v685 = vld [vmem:[%s1 + $0x3c] sm:$0xf]
        %v686 = vld [vmem:[%s1 + $0x40] sm:$0xf]
        %v687 = vld [vmem:[%s1 + $0x44] sm:$0xf]
        %v688 = vld [vmem:[%s1 + $0x48] sm:$0xf]
        %v689 = vld [vmem:[%s1 + $0x4c] sm:$0xf]
        %v718 = vunpack.c.l.b16 %v642
        %v719 = vunpack.c.h.b16 %v642
        %v720 = vunpack.c.l.b16 %v643
        %v721 = vunpack.c.h.b16 %v643
        %v722 = vunpack.c.l.b16 %v644
        %v723 = vunpack.c.h.b16 %v644
        %v724 = vunpack.c.l.b16 %v645
        %v725 = vunpack.c.h.b16 %v645
        %v726 = vunpack.c.l.b16 %v646
        %v727 = vunpack.c.h.b16 %v646
        %v728 = vunpack.c.l.b16 %v647
        %v729 = vunpack.c.h.b16 %v647
        %v730 = vunpack.c.l.b16 %v648
        %v731 = vunpack.c.h.b16 %v648
        %v732 = vunpack.c.l.b16 %v649
        %v733 = vunpack.c.h.b16 %v649
        %v734 = vunpack.c.l.b16 %v650
        %v735 = vunpack.c.h.b16 %v650
        %v736 = vunpack.c.l.b16 %v651
        %v737 = vunpack.c.h.b16 %v651
        %v738 = vunpack.c.l.b16 %v652
        %v739 = vunpack.c.h.b16 %v652
        %v740 = vunpack.c.l.b16 %v653
        %v741 = vunpack.c.h.b16 %v653
        %v742 = vunpack.c.l.b16 %v654
        %v743 = vunpack.c.h.b16 %v654
        %v744 = vunpack.c.l.b16 %v655
        %v745 = vunpack.c.h.b16 %v655
        %v746 = vunpack.c.l.b16 %v656
        %v747 = vunpack.c.h.b16 %v656
        %v748 = vunpack.c.l.b16 %v657
        %v749 = vunpack.c.h.b16 %v657
        %v750 = vunpack.c.l.b16 %v658
        %v751 = vunpack.c.h.b16 %v658
        %v752 = vunpack.c.l.b16 %v659
        %v753 = vunpack.c.h.b16 %v659
        %v754 = vunpack.c.l.b16 %v660
        %v755 = vunpack.c.h.b16 %v660
        %v756 = vunpack.c.l.b16 %v661
        %v757 = vunpack.c.h.b16 %v661
        %v758 = vunpack.c.l.b16 %v662
        %v759 = vunpack.c.h.b16 %v662
        %v760 = vunpack.c.l.b16 %v663
        %v761 = vunpack.c.h.b16 %v663
        %v762 = vunpack.c.l.b16 %v664
        %v763 = vunpack.c.h.b16 %v664
        %v764 = vunpack.c.l.b16 %v665
        %v765 = vunpack.c.h.b16 %v665
        %v766 = vunpack.c.l.b16 %v666
        %v767 = vunpack.c.h.b16 %v666
        %v768 = vunpack.c.l.b16 %v667
        %v769 = vunpack.c.h.b16 %v667
        %v770 = vunpack.c.l.b16 %v668
        %v771 = vunpack.c.h.b16 %v668
        %v772 = vunpack.c.l.b16 %v669
        %v773 = vunpack.c.h.b16 %v669
        %v774 = vpack.c.b16 %v720, %v718
        %v775 = vpack.c.b16 %v721, %v719
        %v776 = vpack.c.b16 %v724, %v722
        %v777 = vpack.c.b16 %v725, %v723
        %v778 = vpack.c.b16 %v728, %v726
        %v779 = vpack.c.b16 %v729, %v727
        %v780 = vpack.c.b16 %v732, %v730
        %v781 = vpack.c.b16 %v733, %v731
        %v782 = vpack.c.b16 %v736, %v734
        %v783 = vpack.c.b16 %v737, %v735
        %v784 = vpack.c.b16 %v740, %v738
        %v785 = vpack.c.b16 %v741, %v739
        %v786 = vpack.c.b16 %v744, %v742
        %v787 = vpack.c.b16 %v745, %v743
        %v788 = vpack.c.b16 %v748, %v746
        %v789 = vpack.c.b16 %v749, %v747
        %v790 = vpack.c.b16 %v752, %v750
        %v791 = vpack.c.b16 %v753, %v751
        %v792 = vpack.c.b16 %v756, %v754
        %v793 = vpack.c.b16 %v757, %v755
        %v794 = vpack.c.b16 %v760, %v758
        %v795 = vpack.c.b16 %v761, %v759
        %v796 = vpack.c.b16 %v764, %v762
        %v797 = vpack.c.b16 %v765, %v763
        %v798 = vpack.c.b16 %v768, %v766
        %v799 = vpack.c.b16 %v769, %v767
        %v800 = vpack.c.b16 %v772, %v770
        %v801 = vpack.c.b16 %v773, %v771
        %v836 = vunpack.c.l.b16 %v670
        %v837 = vunpack.c.l.b16 %v671
        %v838 = vunpack.c.l.b16 %v672
        %v839 = vunpack.c.l.b16 %v673
        %v840 = vunpack.c.l.b16 %v674
        %v841 = vunpack.c.l.b16 %v675
        %v842 = vunpack.c.l.b16 %v676
        %v843 = vunpack.c.l.b16 %v677
        %v844 = vunpack.c.l.b16 %v678
        %v845 = vunpack.c.l.b16 %v679
        %v846 = vunpack.c.l.b16 %v680
        %v847 = vunpack.c.l.b16 %v681
        %v848 = vunpack.c.l.b16 %v682
        %v849 = vunpack.c.l.b16 %v683
        %v850 = vunpack.c.l.b16 %v684
        %v851 = vunpack.c.l.b16 %v685
        %v852 = vunpack.c.l.b16 %v686
        %v853 = vunpack.c.l.b16 %v687
        %v854 = vunpack.c.l.b16 %v688
        %v855 = vunpack.c.l.b16 %v689
        %v856 = vpack.c.b16 %v837, %v836
        %v857 = vpack.c.b16 %v839, %v838
        %v858 = vpack.c.b16 %v841, %v840
        %v859 = vpack.c.b16 %v843, %v842
        %v860 = vpack.c.b16 %v845, %v844
        %v861 = vpack.c.b16 %v847, %v846
        %v862 = vpack.c.b16 %v849, %v848
        %v863 = vpack.c.b16 %v851, %v850
        %v864 = vpack.c.b16 %v853, %v852
        %v865 = vpack.c.b16 %v855, %v854
        %vm876 = vcmask 261120
        %v878 = vsel %vm876, %v775, 0
        %v881 = vsel %vm876, %v777, 0
        %v884 = vsel %vm876, %v779, 0
        %v887 = vsel %vm876, %v781, 0
        %v890 = vsel %vm876, %v783, 0
        %v893 = vsel %vm876, %v785, 0
        %v896 = vsel %vm876, %v787, 0
        %v899 = vsel %vm876, %v789, 0
        %v902 = vsel %vm876, %v791, 0
        %v905 = vsel %vm876, %v793, 0
        %v908 = vsel %vm876, %v795, 0
        %v911 = vsel %vm876, %v797, 0
        %v914 = vsel %vm876, %v799, 0
        %v917 = vsel %vm876, %v801, 0
        %919 = vmatpush.bf16.msra.mxu0 %v863
        %920 = vmatpush.bf16.msra.mxu0 %v862
        %921 = vmatpush.bf16.msra.mxu0 %v861
        %922 = vmatpush.bf16.msra.mxu0 %v860
        %923 = vmatpush.bf16.msra.mxu0 %v859
        %924 = vmatpush.bf16.msra.mxu0 %v858
        %925 = vmatpush.bf16.msra.mxu0 %v857
        %926 = vmatpush.bf16.msra.mxu0 %v856
        %927 = vmatmul.bf16.gmra.mxu0 %v774
        %v928 = vpop.f32.mrf.mxu0
        %v929 = vadd.f32 0.0, %v928
        %v930 = vpop.f32.mrf.mxu0
        %v931 = vadd.f32 0.0, %v930
        %932 = vmatmul.bf16.gmra.mxu0 %v776
        %v933 = vpop.f32.mrf.mxu0
        %v934 = vadd.f32 0.0, %v933
        %v935 = vpop.f32.mrf.mxu0
        %v936 = vadd.f32 0.0, %v935
        %937 = vmatmul.bf16.gmra.mxu0 %v778
        %v938 = vpop.f32.mrf.mxu0
        %v939 = vadd.f32 0.0, %v938
        %v940 = vpop.f32.mrf.mxu0
        %v941 = vadd.f32 0.0, %v940
        %942 = vmatmul.bf16.gmra.mxu0 %v780
        %v943 = vpop.f32.mrf.mxu0
        %v944 = vadd.f32 0.0, %v943
        %v945 = vpop.f32.mrf.mxu0
        %v946 = vadd.f32 0.0, %v945
        %947 = vmatmul.bf16.gmra.mxu0 %v782
        %v948 = vpop.f32.mrf.mxu0
        %v949 = vadd.f32 0.0, %v948
        %v950 = vpop.f32.mrf.mxu0
        %v951 = vadd.f32 0.0, %v950
        %952 = vmatmul.bf16.gmra.mxu0 %v784
        %v953 = vpop.f32.mrf.mxu0
        %v954 = vadd.f32 0.0, %v953
        %v955 = vpop.f32.mrf.mxu0
        %v956 = vadd.f32 0.0, %v955
        %957 = vmatmul.bf16.gmra.mxu0 %v786
        %v958 = vpop.f32.mrf.mxu0
        %v959 = vadd.f32 0.0, %v958
        %v960 = vpop.f32.mrf.mxu0
        %v961 = vadd.f32 0.0, %v960
        %962 = vmatmul.bf16.gmra.mxu0 %v788
        %v963 = vpop.f32.mrf.mxu0
        %v964 = vadd.f32 0.0, %v963
        %v965 = vpop.f32.mrf.mxu0
        %v966 = vadd.f32 0.0, %v965
        %967 = vmatmul.bf16.gmra.mxu0 %v790
        %v968 = vpop.f32.mrf.mxu0
        %v969 = vadd.f32 0.0, %v968
        %v970 = vpop.f32.mrf.mxu0
        %v971 = vadd.f32 0.0, %v970
        %972 = vmatmul.bf16.gmra.mxu0 %v792
        %v973 = vpop.f32.mrf.mxu0
        %v974 = vadd.f32 0.0, %v973
        %v975 = vpop.f32.mrf.mxu0
        %v976 = vadd.f32 0.0, %v975
        %977 = vmatmul.bf16.gmra.mxu0 %v794
        %v978 = vpop.f32.mrf.mxu0
        %v979 = vadd.f32 0.0, %v978
        %v980 = vpop.f32.mrf.mxu0
        %v981 = vadd.f32 0.0, %v980
        %982 = vmatmul.bf16.gmra.mxu0 %v796
        %v983 = vpop.f32.mrf.mxu0
        %v984 = vadd.f32 0.0, %v983
        %v985 = vpop.f32.mrf.mxu0
        %v986 = vadd.f32 0.0, %v985
        %987 = vmatmul.bf16.gmra.mxu0 %v798
        %v988 = vpop.f32.mrf.mxu0
        %v989 = vadd.f32 0.0, %v988
        %v990 = vpop.f32.mrf.mxu0
        %v991 = vadd.f32 0.0, %v990
        %992 = vmatmul.bf16.gmra.mxu0 %v800
        %v993 = vpop.f32.mrf.mxu0
        %v994 = vadd.f32 0.0, %v993
        %v995 = vpop.f32.mrf.mxu0
        %v996 = vadd.f32 0.0, %v995
        %997 = vdwg.mxu0
        %998 = vmatpush.bf16.msra.mxu0 0
        %999 = vmatpush.bf16.msra.mxu0 0
        %1000 = vmatpush.bf16.msra.mxu0 0
        %1001 = vmatpush.bf16.msra.mxu0 0
        %1002 = vmatpush.bf16.msra.mxu0 0
        %1003 = vmatpush.bf16.msra.mxu0 0
        %1004 = vmatpush.bf16.msra.mxu0 %v865
        %1005 = vmatpush.bf16.msra.mxu0 %v864
        %1006 = vmatmul.bf16.gmra.mxu0 %v878
        %v1007 = vpop.f32.mrf.mxu0
        %v1008 = vadd.f32 %v929, %v1007
        %v1009 = vpop.f32.mrf.mxu0
        %v1010 = vadd.f32 %v931, %v1009
        %1011 = vmatmul.bf16.gmra.mxu0 %v881
        %v1012 = vpop.f32.mrf.mxu0
        %v1013 = vadd.f32 %v934, %v1012
        %v1014 = vpop.f32.mrf.mxu0
        %v1015 = vadd.f32 %v936, %v1014
        %1016 = vmatmul.bf16.gmra.mxu0 %v884
        %v1017 = vpop.f32.mrf.mxu0
        %v1018 = vadd.f32 %v939, %v1017
        %v1019 = vpop.f32.mrf.mxu0
        %v1020 = vadd.f32 %v941, %v1019
        %1021 = vmatmul.bf16.gmra.mxu0 %v887
        %v1022 = vpop.f32.mrf.mxu0
        %v1023 = vadd.f32 %v944, %v1022
        %v1024 = vpop.f32.mrf.mxu0
        %v1025 = vadd.f32 %v946, %v1024
        %1026 = vmatmul.bf16.gmra.mxu0 %v890
        %v1027 = vpop.f32.mrf.mxu0
        %v1028 = vadd.f32 %v949, %v1027
        %v1029 = vpop.f32.mrf.mxu0
        %v1030 = vadd.f32 %v951, %v1029
        %1031 = vmatmul.bf16.gmra.mxu0 %v893
        %v1032 = vpop.f32.mrf.mxu0
        %v1033 = vadd.f32 %v954, %v1032
        %v1034 = vpop.f32.mrf.mxu0
        %v1035 = vadd.f32 %v956, %v1034
        %1036 = vmatmul.bf16.gmra.mxu0 %v896
        %v1037 = vpop.f32.mrf.mxu0
        %v1038 = vadd.f32 %v959, %v1037
        %v1039 = vpop.f32.mrf.mxu0
        %v1040 = vadd.f32 %v961, %v1039
        %1041 = vmatmul.bf16.gmra.mxu0 %v899
        %v1042 = vpop.f32.mrf.mxu0
        %v1043 = vadd.f32 %v964, %v1042
        %v1044 = vpop.f32.mrf.mxu0
        %v1045 = vadd.f32 %v966, %v1044
        %1046 = vmatmul.bf16.gmra.mxu0 %v902
        %v1047 = vpop.f32.mrf.mxu0
        %v1048 = vadd.f32 %v969, %v1047
        %v1049 = vpop.f32.mrf.mxu0
        %v1050 = vadd.f32 %v971, %v1049
        %1051 = vmatmul.bf16.gmra.mxu0 %v905
        %v1052 = vpop.f32.mrf.mxu0
        %v1053 = vadd.f32 %v974, %v1052
        %v1054 = vpop.f32.mrf.mxu0
        %v1055 = vadd.f32 %v976, %v1054
        %1056 = vmatmul.bf16.gmra.mxu0 %v908
        %v1057 = vpop.f32.mrf.mxu0
        %v1058 = vadd.f32 %v979, %v1057
        %v1059 = vpop.f32.mrf.mxu0
        %v1060 = vadd.f32 %v981, %v1059
        %1061 = vmatmul.bf16.gmra.mxu0 %v911
        %v1062 = vpop.f32.mrf.mxu0
        %v1063 = vadd.f32 %v984, %v1062
        %v1064 = vpop.f32.mrf.mxu0
        %v1065 = vadd.f32 %v986, %v1064
        %1066 = vmatmul.bf16.gmra.mxu0 %v914
        %v1067 = vpop.f32.mrf.mxu0
        %v1068 = vadd.f32 %v989, %v1067
        %v1069 = vpop.f32.mrf.mxu0
        %v1070 = vadd.f32 %v991, %v1069
        %1071 = vmatmul.bf16.gmra.mxu0 %v917
        %v1072 = vpop.f32.mrf.mxu0
        %v1073 = vadd.f32 %v994, %v1072
        %v1074 = vpop.f32.mrf.mxu0
        %v1075 = vadd.f32 %v996, %v1074
        %1076 = vdwg.mxu0
        %v1077 = vld [vmem:[%s2] sm:$0x1]
        %v1079 = vperm.slane %v1077, 0
        %v1081 = vmul.f32 %v1008, %v1079
        %v1082 = vmul.f32 %v1010, %v1079
        %v1083 = vmul.f32 %v1013, %v1079
        %v1084 = vmul.f32 %v1015, %v1079
        %v1085 = vmul.f32 %v1018, %v1079
        %v1086 = vmul.f32 %v1020, %v1079
        %v1087 = vmul.f32 %v1023, %v1079
        %v1088 = vmul.f32 %v1025, %v1079
        %v1089 = vmul.f32 %v1028, %v1079
        %v1090 = vmul.f32 %v1030, %v1079
        %v1091 = vmul.f32 %v1033, %v1079
        %v1092 = vmul.f32 %v1035, %v1079
        %v1093 = vmul.f32 %v1038, %v1079
        %v1094 = vmul.f32 %v1040, %v1079
        %v1095 = vmul.f32 %v1043, %v1079
        %v1096 = vmul.f32 %v1045, %v1079
        %v1097 = vmul.f32 %v1048, %v1079
        %v1098 = vmul.f32 %v1050, %v1079
        %v1099 = vmul.f32 %v1053, %v1079
        %v1100 = vmul.f32 %v1055, %v1079
        %v1101 = vmul.f32 %v1058, %v1079
        %v1102 = vmul.f32 %v1060, %v1079
        %v1103 = vmul.f32 %v1063, %v1079
        %v1104 = vmul.f32 %v1065, %v1079
        %v1105 = vmul.f32 %v1068, %v1079
        %v1106 = vmul.f32 %v1070, %v1079
        %v1107 = vmul.f32 %v1073, %v1079
        %v1108 = vmul.f32 %v1075, %v1079
        %v1109 = vld [vmem:[%s3] sm:$0x1]
        %v1111 = vperm.slane %v1109, 0
        %v1113 = vadd.f32 %v1081, %v1111
        %v1114 = vadd.f32 %v1082, %v1111
        %v1115 = vadd.f32 %v1083, %v1111
        %v1116 = vadd.f32 %v1084, %v1111
        %v1117 = vadd.f32 %v1085, %v1111
        %v1118 = vadd.f32 %v1086, %v1111
        %v1119 = vadd.f32 %v1087, %v1111
        %v1120 = vadd.f32 %v1088, %v1111
        %v1121 = vadd.f32 %v1089, %v1111
        %v1122 = vadd.f32 %v1090, %v1111
        %v1123 = vadd.f32 %v1091, %v1111
        %v1124 = vadd.f32 %v1092, %v1111
        %v1125 = vadd.f32 %v1093, %v1111
        %v1126 = vadd.f32 %v1094, %v1111
        %v1127 = vadd.f32 %v1095, %v1111
        %v1128 = vadd.f32 %v1096, %v1111
        %v1129 = vadd.f32 %v1097, %v1111
        %v1130 = vadd.f32 %v1098, %v1111
        %v1131 = vadd.f32 %v1099, %v1111
        %v1132 = vadd.f32 %v1100, %v1111
        %v1133 = vadd.f32 %v1101, %v1111
        %v1134 = vadd.f32 %v1102, %v1111
        %v1135 = vadd.f32 %v1103, %v1111
        %v1136 = vadd.f32 %v1104, %v1111
        %v1137 = vadd.f32 %v1105, %v1111
        %v1138 = vadd.f32 %v1106, %v1111
        %v1139 = vadd.f32 %v1107, %v1111
        %v1140 = vadd.f32 %v1108, %v1111
        %v1141 = vmax.f32 %v1113, 0.0
        %v1142 = vmax.f32 %v1114, 0.0
        %v1143 = vmax.f32 %v1115, 0.0
        %v1144 = vmax.f32 %v1116, 0.0
        %v1145 = vmax.f32 %v1117, 0.0
        %v1146 = vmax.f32 %v1118, 0.0
        %v1147 = vmax.f32 %v1119, 0.0
        %v1148 = vmax.f32 %v1120, 0.0
        %v1149 = vmax.f32 %v1121, 0.0
        %v1150 = vmax.f32 %v1122, 0.0
        %v1151 = vmax.f32 %v1123, 0.0
        %v1152 = vmax.f32 %v1124, 0.0
        %v1153 = vmax.f32 %v1125, 0.0
        %v1154 = vmax.f32 %v1126, 0.0
        %v1155 = vmax.f32 %v1127, 0.0
        %v1156 = vmax.f32 %v1128, 0.0
        %v1157 = vmax.f32 %v1129, 0.0
        %v1158 = vmax.f32 %v1130, 0.0
        %v1159 = vmax.f32 %v1131, 0.0
        %v1160 = vmax.f32 %v1132, 0.0
        %v1161 = vmax.f32 %v1133, 0.0
        %v1162 = vmax.f32 %v1134, 0.0
        %v1163 = vmax.f32 %v1135, 0.0
        %v1164 = vmax.f32 %v1136, 0.0
        %v1165 = vmax.f32 %v1137, 0.0
        %v1166 = vmax.f32 %v1138, 0.0
        %v1167 = vmax.f32 %v1139, 0.0
        %v1168 = vmax.f32 %v1140, 0.0
        %v1169 = vpack.c.bf16 %v1141, %v1141
        %v1170 = vpack.c.bf16 %v1142, %v1142
        %v1171 = vpack.c.bf16 %v1143, %v1143
        %v1172 = vpack.c.bf16 %v1144, %v1144
        %v1173 = vpack.c.bf16 %v1145, %v1145
        %v1174 = vpack.c.bf16 %v1146, %v1146
        %v1175 = vpack.c.bf16 %v1147, %v1147
        %v1176 = vpack.c.bf16 %v1148, %v1148
        %v1177 = vpack.c.bf16 %v1149, %v1149
        %v1178 = vpack.c.bf16 %v1150, %v1150
        %v1179 = vpack.c.bf16 %v1151, %v1151
        %v1180 = vpack.c.bf16 %v1152, %v1152
        %v1181 = vpack.c.bf16 %v1153, %v1153
        %v1182 = vpack.c.bf16 %v1154, %v1154
        %v1183 = vpack.c.bf16 %v1155, %v1155
        %v1184 = vpack.c.bf16 %v1156, %v1156
        %v1185 = vpack.c.bf16 %v1157, %v1157
        %v1186 = vpack.c.bf16 %v1158, %v1158
        %v1187 = vpack.c.bf16 %v1159, %v1159
        %v1188 = vpack.c.bf16 %v1160, %v1160
        %v1189 = vpack.c.bf16 %v1161, %v1161
        %v1190 = vpack.c.bf16 %v1162, %v1162
        %v1191 = vpack.c.bf16 %v1163, %v1163
        %v1192 = vpack.c.bf16 %v1164, %v1164
        %v1193 = vpack.c.bf16 %v1165, %v1165
        %v1194 = vpack.c.bf16 %v1166, %v1166
        %v1195 = vpack.c.bf16 %v1167, %v1167
        %v1196 = vpack.c.bf16 %v1168, %v1168
        %1197 = vst [vmem:[#allocation3] sm:$0xf] %v1169
        %1198 = vst [vmem:[#allocation3 + $0x4] sm:$0xf] %v1170
        %1199 = vst [vmem:[#allocation3 + $0x8] sm:$0xf] %v1171
        %1200 = vst [vmem:[#allocation3 + $0xc] sm:$0xf] %v1172
        %1201 = vst [vmem:[#allocation3 + $0x10] sm:$0xf] %v1173
        %1202 = vst [vmem:[#allocation3 + $0x14] sm:$0xf] %v1174
        %1203 = vst [vmem:[#allocation3 + $0x18] sm:$0xf] %v1175
        %1204 = vst [vmem:[#allocation3 + $0x1c] sm:$0xf] %v1176
        %1205 = vst [vmem:[#allocation3 + $0x20] sm:$0xf] %v1177
        %1206 = vst [vmem:[#allocation3 + $0x24] sm:$0xf] %v1178
        %1207 = vst [vmem:[#allocation3 + $0x28] sm:$0xf] %v1179
        %1208 = vst [vmem:[#allocation3 + $0x2c] sm:$0xf] %v1180
        %1209 = vst [vmem:[#allocation3 + $0x30] sm:$0xf] %v1181
        %1210 = vst [vmem:[#allocation3 + $0x34] sm:$0xf] %v1182
        %1211 = vst [vmem:[#allocation3 + $0x38] sm:$0xf] %v1183
        %1212 = vst [vmem:[#allocation3 + $0x3c] sm:$0xf] %v1184
        %1213 = vst [vmem:[#allocation3 + $0x40] sm:$0xf] %v1185
        %1214 = vst [vmem:[#allocation3 + $0x44] sm:$0xf] %v1186
        %1215 = vst [vmem:[#allocation3 + $0x48] sm:$0xf] %v1187
        %1216 = vst [vmem:[#allocation3 + $0x4c] sm:$0xf] %v1188
        %1217 = vst [vmem:[#allocation3 + $0x50] sm:$0xf] %v1189
        %1218 = vst [vmem:[#allocation3 + $0x54] sm:$0xf] %v1190
        %1219 = vst [vmem:[#allocation3 + $0x58] sm:$0xf] %v1191
        %1220 = vst [vmem:[#allocation3 + $0x5c] sm:$0xf] %v1192
        %1221 = vst [vmem:[#allocation3 + $0x60] sm:$0xf] %v1193
        %1222 = vst [vmem:[#allocation3 + $0x64] sm:$0xf] %v1194
        %1223 = vst [vmem:[#allocation3 + $0x68] sm:$0xf] %v1195
        %1224 = vst [vmem:[#allocation3 + $0x6c] sm:$0xf] %v1196
        // Predicated region
        $region101: #{_lambda_.1} parent=83 // pred_check
          %p1225 = pneg %p576
        $region102: #{_lambda_.1} parent=83 // pred_check_branch
          %1227 = sbr.rel (%p1225) target = $region104
        $region103: #{_lambda_.1} parent=83 // pred_region
          %1228 = vst [vmem:[#allocation3] sm:$0xf] 0
          %1229 = vst [vmem:[#allocation3 + $0x4] sm:$0xf] 0
          %1230 = vst [vmem:[#allocation3 + $0x8] sm:$0xf] 0
          %1231 = vst [vmem:[#allocation3 + $0xc] sm:$0xf] 0
          %1232 = vst [vmem:[#allocation3 + $0x10] sm:$0xf] 0
          %1233 = vst [vmem:[#allocation3 + $0x14] sm:$0xf] 0
        $region104: #{_lambda_.1} parent=83 // pred_fallthru
          _
        // Predicated region
        $region105: #{_lambda_.1} parent=83 // pred_check
          %p1234 = pneg %p608
        $region106: #{_lambda_.1} parent=83 // pred_check_branch
          %1236 = sbr.rel (%p1234) target = $region108
        $region107: #{_lambda_.1} parent=83 // pred_region
          %s1237 = scalar_lea.vmem [#allocation3], 88
          %1238 = vst [vmem:[%s1237] sm:$0xf] 0
          %1239 = vst [vmem:[%s1237 + $0x4] sm:$0xf] 0
          %1240 = vst [vmem:[%s1237 + $0x8] sm:$0xf] 0
          %1241 = vst [vmem:[%s1237 + $0xc] sm:$0xf] 0
          %1242 = vst [vmem:[%s1237 + $0x10] sm:$0xf] 0
          %1243 = vst [vmem:[%s1237 + $0x14] sm:$0xf] 0
        $region108: #{_lambda_.1} parent=83 // pred_fallthru
          _
        %vm1244 = vcmask 516096
        %vm1245 = vsmask.f32 256
        %vm1246 = vmand %vm1244, %vm1245
        %v1247 = vld [vmem:[#allocation4] sm:$0x1]
        %v1248 = vsel %vm1246, 0, %v1247
        %1249 = vst [vmem:[#allocation4] sm:$0x1] %v1248
        %v1250 = vld [vmem:[#allocation4 + $0xc] sm:$0x1]
        %v1251 = vsel %vm1246, 0, %v1250
        %1252 = vst [vmem:[#allocation4 + $0xc] sm:$0x1] %v1251
        %v1253 = vld [vmem:[#allocation4 + $0x18] sm:$0x1]
        %v1254 = vsel %vm1246, 0, %v1253
        %1255 = vst [vmem:[#allocation4 + $0x18] sm:$0x1] %v1254
        %v1256 = vld [vmem:[#allocation4 + $0x24] sm:$0x1]
        %v1257 = vsel %vm1246, 0, %v1256
        %1258 = vst [vmem:[#allocation4 + $0x24] sm:$0x1] %v1257
        %v1259 = vld [vmem:[#allocation4 + $0x30] sm:$0x1]
        %v1260 = vsel %vm1246, 0, %v1259
        %1261 = vst [vmem:[#allocation4 + $0x30] sm:$0x1] %v1260
        %v1262 = vld [vmem:[#allocation4 + $0x3c] sm:$0x1]
        %v1263 = vsel %vm1246, 0, %v1262
        %1264 = vst [vmem:[#allocation4 + $0x3c] sm:$0x1] %v1263
        %v1265 = vld [vmem:[#allocation4 + $0x48] sm:$0x1]
        %v1266 = vsel %vm1246, 0, %v1265
        %1267 = vst [vmem:[#allocation4 + $0x48] sm:$0x1] %v1266
        %v1268 = vld [vmem:[#allocation4 + $0x54] sm:$0x1]
        %v1269 = vsel %vm1246, 0, %v1268
        %1270 = vst [vmem:[#allocation4 + $0x54] sm:$0x1] %v1269
        %v1271 = vld [vmem:[#allocation4 + $0x60] sm:$0x1]
        %v1272 = vsel %vm1246, 0, %v1271
        %1273 = vst [vmem:[#allocation4 + $0x60] sm:$0x1] %v1272
        %v1274 = vld [vmem:[#allocation4 + $0x6c] sm:$0x1]
        %v1275 = vsel %vm1246, 0, %v1274
        %1276 = vst [vmem:[#allocation4 + $0x6c] sm:$0x1] %v1275
        %vm1277 = vsmask.f32 7938
        %vm1278 = vmand %vm1244, %vm1277
        %v1279 = vld [vmem:[#allocation4 + $0x8] sm:$0x1]
        %v1280 = vsel %vm1278, 0, %v1279
        %1281 = vst [vmem:[#allocation4 + $0x8] sm:$0x1] %v1280
        %v1282 = vld [vmem:[#allocation4 + $0x14] sm:$0x1]
        %v1283 = vsel %vm1278, 0, %v1282
        %1284 = vst [vmem:[#allocation4 + $0x14] sm:$0x1] %v1283
        %v1285 = vld [vmem:[#allocation4 + $0x20] sm:$0x1]
        %v1286 = vsel %vm1278, 0, %v1285
        %1287 = vst [vmem:[#allocation4 + $0x20] sm:$0x1] %v1286
        %v1288 = vld [vmem:[#allocation4 + $0x2c] sm:$0x1]
        %v1289 = vsel %vm1278, 0, %v1288
        %1290 = vst [vmem:[#allocation4 + $0x2c] sm:$0x1] %v1289
        %v1291 = vld [vmem:[#allocation4 + $0x38] sm:$0x1]
        %v1292 = vsel %vm1278, 0, %v1291
        %1293 = vst [vmem:[#allocation4 + $0x38] sm:$0x1] %v1292
        %v1294 = vld [vmem:[#allocation4 + $0x44] sm:$0x1]
        %v1295 = vsel %vm1278, 0, %v1294
        %1296 = vst [vmem:[#allocation4 + $0x44] sm:$0x1] %v1295
        %v1297 = vld [vmem:[#allocation4 + $0x50] sm:$0x1]
        %v1298 = vsel %vm1278, 0, %v1297
        %1299 = vst [vmem:[#allocation4 + $0x50] sm:$0x1] %v1298
        %v1300 = vld [vmem:[#allocation4 + $0x5c] sm:$0x1]
        %v1301 = vsel %vm1278, 0, %v1300
        %1302 = vst [vmem:[#allocation4 + $0x5c] sm:$0x1] %v1301
        %v1303 = vld [vmem:[#allocation4 + $0x68] sm:$0x1]
        %v1304 = vsel %vm1278, 0, %v1303
        %1305 = vst [vmem:[#allocation4 + $0x68] sm:$0x1] %v1304
        %v1306 = vld [vmem:[#allocation4 + $0x74] sm:$0x1]
        %v1307 = vsel %vm1278, 0, %v1306
        %1308 = vst [vmem:[#allocation4 + $0x74] sm:$0x1] %v1307
        %s1309 = scalar_lea.vmem [#allocation3], 16
        %v1310 = vld [vmem:[%s1309] sm:$0xf]
        %v1311 = vld [vmem:[%s1309 + $0x4] sm:$0xf]
        %v1312 = vld [vmem:[%s1309 + $0x8] sm:$0xf]
        %v1313 = vld [vmem:[%s1309 + $0xc] sm:$0xf]
        %v1314 = vld [vmem:[%s1309 + $0x10] sm:$0xf]
        %v1315 = vld [vmem:[%s1309 + $0x14] sm:$0xf]
        %v1316 = vld [vmem:[%s1309 + $0x18] sm:$0xf]
        %v1317 = vld [vmem:[%s1309 + $0x1c] sm:$0xf]
        %v1318 = vld [vmem:[%s1309 + $0x20] sm:$0xf]
        %v1319 = vld [vmem:[%s1309 + $0x24] sm:$0xf]
        %v1320 = vld [vmem:[%s1309 + $0x28] sm:$0xf]
        %v1321 = vld [vmem:[%s1309 + $0x2c] sm:$0xf]
        %v1322 = vld [vmem:[%s1309 + $0x30] sm:$0xf]
        %v1323 = vld [vmem:[%s1309 + $0x34] sm:$0xf]
        %v1324 = vld [vmem:[%s1309 + $0x38] sm:$0xf]
        %v1325 = vld [vmem:[%s1309 + $0x3c] sm:$0xf]
        %v1326 = vld [vmem:[%s1309 + $0x40] sm:$0xf]
        %v1327 = vld [vmem:[%s1309 + $0x44] sm:$0xf]
        %v1328 = vld [vmem:[%s1309 + $0x48] sm:$0xf]
        %v1329 = vld [vmem:[%s1309 + $0x4c] sm:$0xf]
        %vm1330 = vsmask.f32 4368
        %vm1331 = vmor %vm1245, %vm1330
        %v1333 = vshrl.u32 %v1310, 16
        %v1335 = vrot.slane %v1333, 7
        %v1336 = vshll.u32 %v1310, 16
        %v1338 = vor.u32 %v1335, %v1336
        %v1339 = vrot.slane %v1335, 4
        %v1341 = vshrl.u32 %v1311, 16
        %v1343 = vrot.slane %v1341, 7
        %v1344 = vshll.u32 %v1311, 16
        %v1346 = vor.u32 %v1343, %v1344
        %v1347 = vsel %vm1331, %v1339, %v1346
        %v1348 = vrot.slane %v1343, 4
        %v1350 = vshrl.u32 %v1312, 16
        %v1352 = vrot.slane %v1350, 7
        %v1353 = vshll.u32 %v1312, 16
        %v1355 = vor.u32 %v1352, %v1353
        %v1356 = vrot.slane %v1352, 4
        %v1358 = vshrl.u32 %v1313, 16
        %v1360 = vrot.slane %v1358, 7
        %v1361 = vshll.u32 %v1313, 16
        %v1363 = vor.u32 %v1360, %v1361
        %v1364 = vsel %vm1331, %v1356, %v1363
        %v1365 = vrot.slane %v1360, 4
        %v1367 = vshrl.u32 %v1314, 16
        %v1369 = vrot.slane %v1367, 7
        %v1370 = vshll.u32 %v1314, 16
        %v1372 = vor.u32 %v1369, %v1370
        %v1373 = vrot.slane %v1369, 4
        %v1375 = vshrl.u32 %v1315, 16
        %v1377 = vrot.slane %v1375, 7
        %v1378 = vshll.u32 %v1315, 16
        %v1380 = vor.u32 %v1377, %v1378
        %v1381 = vsel %vm1331, %v1373, %v1380
        %v1382 = vrot.slane %v1377, 4
        %v1384 = vshrl.u32 %v1316, 16
        %v1386 = vrot.slane %v1384, 7
        %v1387 = vshll.u32 %v1316, 16
        %v1389 = vor.u32 %v1386, %v1387
        %v1390 = vrot.slane %v1386, 4
        %v1392 = vshrl.u32 %v1317, 16
        %v1394 = vrot.slane %v1392, 7
        %v1395 = vshll.u32 %v1317, 16
        %v1397 = vor.u32 %v1394, %v1395
        %v1398 = vsel %vm1331, %v1390, %v1397
        %v1399 = vrot.slane %v1394, 4
        %v1401 = vshrl.u32 %v1318, 16
        %v1403 = vrot.slane %v1401, 7
        %v1404 = vshll.u32 %v1318, 16
        %v1406 = vor.u32 %v1403, %v1404
        %v1407 = vrot.slane %v1403, 4
        %v1409 = vshrl.u32 %v1319, 16
        %v1411 = vrot.slane %v1409, 7
        %v1412 = vshll.u32 %v1319, 16
        %v1414 = vor.u32 %v1411, %v1412
        %v1415 = vsel %vm1331, %v1407, %v1414
        %v1416 = vrot.slane %v1411, 4
        %v1418 = vshrl.u32 %v1320, 16
        %v1420 = vrot.slane %v1418, 7
        %v1421 = vshll.u32 %v1320, 16
        %v1423 = vor.u32 %v1420, %v1421
        %v1424 = vrot.slane %v1420, 4
        %v1426 = vshrl.u32 %v1321, 16
        %v1428 = vrot.slane %v1426, 7
        %v1429 = vshll.u32 %v1321, 16
        %v1431 = vor.u32 %v1428, %v1429
        %v1432 = vsel %vm1331, %v1424, %v1431
        %v1433 = vrot.slane %v1428, 4
        %v1435 = vshrl.u32 %v1322, 16
        %v1437 = vrot.slane %v1435, 7
        %v1438 = vshll.u32 %v1322, 16
        %v1440 = vor.u32 %v1437, %v1438
        %v1441 = vrot.slane %v1437, 4
        %v1443 = vshrl.u32 %v1323, 16
        %v1445 = vrot.slane %v1443, 7
        %v1446 = vshll.u32 %v1323, 16
        %v1448 = vor.u32 %v1445, %v1446
        %v1449 = vsel %vm1331, %v1441, %v1448
        %v1450 = vrot.slane %v1445, 4
        %v1452 = vshrl.u32 %v1324, 16
        %v1454 = vrot.slane %v1452, 7
        %v1455 = vshll.u32 %v1324, 16
        %v1457 = vor.u32 %v1454, %v1455
        %v1458 = vrot.slane %v1454, 4
        %v1460 = vshrl.u32 %v1325, 16
        %v1462 = vrot.slane %v1460, 7
        %v1463 = vshll.u32 %v1325, 16
        %v1465 = vor.u32 %v1462, %v1463
        %v1466 = vsel %vm1331, %v1458, %v1465
        %v1467 = vrot.slane %v1462, 4
        %v1469 = vshrl.u32 %v1326, 16
        %v1471 = vrot.slane %v1469, 7
        %v1472 = vshll.u32 %v1326, 16
        %v1474 = vor.u32 %v1471, %v1472
        %v1475 = vrot.slane %v1471, 4
        %v1477 = vshrl.u32 %v1327, 16
        %v1479 = vrot.slane %v1477, 7
        %v1480 = vshll.u32 %v1327, 16
        %v1482 = vor.u32 %v1479, %v1480
        %v1483 = vsel %vm1331, %v1475, %v1482
        %v1484 = vrot.slane %v1479, 4
        %v1486 = vshrl.u32 %v1328, 16
        %v1488 = vrot.slane %v1486, 7
        %v1489 = vshll.u32 %v1328, 16
        %v1491 = vor.u32 %v1488, %v1489
        %v1492 = vrot.slane %v1488, 4
        %v1494 = vshrl.u32 %v1329, 16
        %v1496 = vrot.slane %v1494, 7
        %v1497 = vshll.u32 %v1329, 16
        %v1499 = vor.u32 %v1496, %v1497
        %v1500 = vsel %vm1331, %v1492, %v1499
        %v1501 = vrot.slane %v1496, 4
        %vm1532 = vcmask 519168
        %vm1533 = vmand %vm1532, %vm1277
        %v1534 = vld [vmem:[#allocation4] sm:$0xf]
        %v1535 = vsel %vm1533, %v1338, %v1534
        %1536 = vst [vmem:[#allocation4] sm:$0xf] %v1535
        %vm1537 = vcmask 519168
        %1538 = vst.msk [vmem:[#allocation4 + $0x4] sm:$0xf] %vm1537, %v1347
        %v1539 = vld [vmem:[#allocation4 + $0x8] sm:$0x1]
        %v1540 = vsel %vm1246, %v1348, %v1539
        %1541 = vst [vmem:[#allocation4 + $0x8] sm:$0x1] %v1540
        %v1542 = vld [vmem:[#allocation4 + $0xc] sm:$0xf]
        %v1543 = vsel %vm1533, %v1355, %v1542
        %1544 = vst [vmem:[#allocation4 + $0xc] sm:$0xf] %v1543
        %1545 = vst.msk [vmem:[#allocation4 + $0x10] sm:$0xf] %vm1537, %v1364
        %v1546 = vld [vmem:[#allocation4 + $0x14] sm:$0x1]
        %v1547 = vsel %vm1246, %v1365, %v1546
        %1548 = vst [vmem:[#allocation4 + $0x14] sm:$0x1] %v1547
        %v1549 = vld [vmem:[#allocation4 + $0x18] sm:$0xf]
        %v1550 = vsel %vm1533, %v1372, %v1549
        %1551 = vst [vmem:[#allocation4 + $0x18] sm:$0xf] %v1550
        %1552 = vst.msk [vmem:[#allocation4 + $0x1c] sm:$0xf] %vm1537, %v1381
        %v1553 = vld [vmem:[#allocation4 + $0x20] sm:$0x1]
        %v1554 = vsel %vm1246, %v1382, %v1553
        %1555 = vst [vmem:[#allocation4 + $0x20] sm:$0x1] %v1554
        %v1556 = vld [vmem:[#allocation4 + $0x24] sm:$0xf]
        %v1557 = vsel %vm1533, %v1389, %v1556
        %1558 = vst [vmem:[#allocation4 + $0x24] sm:$0xf] %v1557
        %1559 = vst.msk [vmem:[#allocation4 + $0x28] sm:$0xf] %vm1537, %v1398
        %v1560 = vld [vmem:[#allocation4 + $0x2c] sm:$0x1]
        %v1561 = vsel %vm1246, %v1399, %v1560
        %1562 = vst [vmem:[#allocation4 + $0x2c] sm:$0x1] %v1561
        %v1563 = vld [vmem:[#allocation4 + $0x30] sm:$0xf]
        %v1564 = vsel %vm1533, %v1406, %v1563
        %1565 = vst [vmem:[#allocation4 + $0x30] sm:$0xf] %v1564
        %1566 = vst.msk [vmem:[#allocation4 + $0x34] sm:$0xf] %vm1537, %v1415
        %v1567 = vld [vmem:[#allocation4 + $0x38] sm:$0x1]
        %v1568 = vsel %vm1246, %v1416, %v1567
        %1569 = vst [vmem:[#allocation4 + $0x38] sm:$0x1] %v1568
        %v1570 = vld [vmem:[#allocation4 + $0x3c] sm:$0xf]
        %v1571 = vsel %vm1533, %v1423, %v1570
        %1572 = vst [vmem:[#allocation4 + $0x3c] sm:$0xf] %v1571
        %1573 = vst.msk [vmem:[#allocation4 + $0x40] sm:$0xf] %vm1537, %v1432
        %v1574 = vld [vmem:[#allocation4 + $0x44] sm:$0x1]
        %v1575 = vsel %vm1246, %v1433, %v1574
        %1576 = vst [vmem:[#allocation4 + $0x44] sm:$0x1] %v1575
        %v1577 = vld [vmem:[#allocation4 + $0x48] sm:$0xf]
        %v1578 = vsel %vm1533, %v1440, %v1577
        %1579 = vst [vmem:[#allocation4 + $0x48] sm:$0xf] %v1578
        %1580 = vst.msk [vmem:[#allocation4 + $0x4c] sm:$0xf] %vm1537, %v1449
        %v1581 = vld [vmem:[#allocation4 + $0x50] sm:$0x1]
        %v1582 = vsel %vm1246, %v1450, %v1581
        %1583 = vst [vmem:[#allocation4 + $0x50] sm:$0x1] %v1582
        %v1584 = vld [vmem:[#allocation4 + $0x54] sm:$0xf]
        %v1585 = vsel %vm1533, %v1457, %v1584
        %1586 = vst [vmem:[#allocation4 + $0x54] sm:$0xf] %v1585
        %1587 = vst.msk [vmem:[#allocation4 + $0x58] sm:$0xf] %vm1537, %v1466
        %v1588 = vld [vmem:[#allocation4 + $0x5c] sm:$0x1]
        %v1589 = vsel %vm1246, %v1467, %v1588
        %1590 = vst [vmem:[#allocation4 + $0x5c] sm:$0x1] %v1589
        %v1591 = vld [vmem:[#allocation4 + $0x60] sm:$0xf]
        %v1592 = vsel %vm1533, %v1474, %v1591
        %1593 = vst [vmem:[#allocation4 + $0x60] sm:$0xf] %v1592
        %1594 = vst.msk [vmem:[#allocation4 + $0x64] sm:$0xf] %vm1537, %v1483
        %v1595 = vld [vmem:[#allocation4 + $0x68] sm:$0x1]
        %v1596 = vsel %vm1246, %v1484, %v1595
        %1597 = vst [vmem:[#allocation4 + $0x68] sm:$0x1] %v1596
        %v1598 = vld [vmem:[#allocation4 + $0x6c] sm:$0xf]
        %v1599 = vsel %vm1533, %v1491, %v1598
        %1600 = vst [vmem:[#allocation4 + $0x6c] sm:$0xf] %v1599
        %1601 = vst.msk [vmem:[#allocation4 + $0x70] sm:$0xf] %vm1537, %v1500
        %v1602 = vld [vmem:[#allocation4 + $0x74] sm:$0x1]
        %v1603 = vsel %vm1246, %v1501, %v1602
        %1604 = vst [vmem:[#allocation4 + $0x74] sm:$0x1] %v1603
        %v1605 = vld [vmem:[#allocation4] sm:$0xf]
        %v1606 = vld [vmem:[#allocation4 + $0x4] sm:$0xf]
        %v1607 = vld [vmem:[#allocation4 + $0xc] sm:$0xf]
        %v1608 = vld [vmem:[#allocation4 + $0x10] sm:$0xf]
        %v1609 = vld [vmem:[#allocation4 + $0x18] sm:$0xf]
        %v1610 = vld [vmem:[#allocation4 + $0x1c] sm:$0xf]
        %v1611 = vld [vmem:[#allocation4 + $0x24] sm:$0xf]
        %v1612 = vld [vmem:[#allocation4 + $0x28] sm:$0xf]
        %v1613 = vld [vmem:[#allocation4 + $0x30] sm:$0xf]
        %v1614 = vld [vmem:[#allocation4 + $0x34] sm:$0xf]
        %v1615 = vld [vmem:[#allocation4 + $0x3c] sm:$0xf]
        %v1616 = vld [vmem:[#allocation4 + $0x40] sm:$0xf]
        %v1617 = vld [vmem:[#allocation4 + $0x48] sm:$0xf]
        %v1618 = vld [vmem:[#allocation4 + $0x4c] sm:$0xf]
        %v1619 = vld [vmem:[#allocation4 + $0x54] sm:$0xf]
        %v1620 = vld [vmem:[#allocation4 + $0x58] sm:$0xf]
        %v1621 = vld [vmem:[#allocation4 + $0x8] sm:$0x1]
        %v1622 = vld [vmem:[#allocation4 + $0x14] sm:$0x1]
        %v1623 = vld [vmem:[#allocation4 + $0x20] sm:$0x1]
        %v1624 = vld [vmem:[#allocation4 + $0x2c] sm:$0x1]
        %v1625 = vld [vmem:[#allocation4 + $0x38] sm:$0x1]
        %v1626 = vld [vmem:[#allocation4 + $0x44] sm:$0x1]
        %v1627 = vld [vmem:[#allocation4 + $0x50] sm:$0x1]
        %v1628 = vld [vmem:[#allocation4 + $0x5c] sm:$0x1]
        %vm1629 = vsmask.f32 3328
        %vm1630 = vsmask.f32 7440
        %vm1631 = vmor %vm1629, %vm1630
        %v1633 = vshrl.u32 %v1605, 16
        %v1635 = vrot.slane %v1633, 4
        %v1636 = vshll.u32 %v1605, 16
        %v1638 = vrot.slane %v1636, 5
        %v1639 = vor.u32 %v1635, %v1638
        %v1640 = vrot.slane %v1639, 4
        %v1642 = vshll.u32 %v1606, 16
        %v1644 = vrot.slane %v1642, 5
        %v1645 = vsel %vm1631, %v1640, %v1644
        %v1646 = vshrl.u32 %v1606, 16
        %v1648 = vrot.slane %v1646, 4
        %v1649 = vor.u32 %v1648, %v1644
        %v1650 = vrot.slane %v1649, 4
        %v1652 = vshll.u32 %v1621, 16
        %v1654 = vrot.slane %v1652, 5
        %v1655 = vsel %vm1631, %v1650, %v1654
        %v1657 = vshrl.u32 %v1607, 16
        %v1659 = vrot.slane %v1657, 4
        %v1660 = vshll.u32 %v1607, 16
        %v1662 = vrot.slane %v1660, 5
        %v1663 = vor.u32 %v1659, %v1662
        %v1664 = vrot.slane %v1663, 4
        %v1666 = vshll.u32 %v1608, 16
        %v1668 = vrot.slane %v1666, 5
        %v1669 = vsel %vm1631, %v1664, %v1668
        %v1670 = vshrl.u32 %v1608, 16
        %v1672 = vrot.slane %v1670, 4
        %v1673 = vor.u32 %v1672, %v1668
        %v1674 = vrot.slane %v1673, 4
        %v1676 = vshll.u32 %v1622, 16
        %v1678 = vrot.slane %v1676, 5
        %v1679 = vsel %vm1631, %v1674, %v1678
        %v1681 = vshrl.u32 %v1609, 16
        %v1683 = vrot.slane %v1681, 4
        %v1684 = vshll.u32 %v1609, 16
        %v1686 = vrot.slane %v1684, 5
        %v1687 = vor.u32 %v1683, %v1686
        %v1688 = vrot.slane %v1687, 4
        %v1690 = vshll.u32 %v1610, 16
        %v1692 = vrot.slane %v1690, 5
        %v1693 = vsel %vm1631, %v1688, %v1692
        %v1694 = vshrl.u32 %v1610, 16
        %v1696 = vrot.slane %v1694, 4
        %v1697 = vor.u32 %v1696, %v1692
        %v1698 = vrot.slane %v1697, 4
        %v1700 = vshll.u32 %v1623, 16
        %v1702 = vrot.slane %v1700, 5
        %v1703 = vsel %vm1631, %v1698, %v1702
        %v1705 = vshrl.u32 %v1611, 16
        %v1707 = vrot.slane %v1705, 4
        %v1708 = vshll.u32 %v1611, 16
        %v1710 = vrot.slane %v1708, 5
        %v1711 = vor.u32 %v1707, %v1710
        %v1712 = vrot.slane %v1711, 4
        %v1714 = vshll.u32 %v1612, 16
        %v1716 = vrot.slane %v1714, 5
        %v1717 = vsel %vm1631, %v1712, %v1716
        %v1718 = vshrl.u32 %v1612, 16
        %v1720 = vrot.slane %v1718, 4
        %v1721 = vor.u32 %v1720, %v1716
        %v1722 = vrot.slane %v1721, 4
        %v1724 = vshll.u32 %v1624, 16
        %v1726 = vrot.slane %v1724, 5
        %v1727 = vsel %vm1631, %v1722, %v1726
        %v1729 = vshrl.u32 %v1613, 16
        %v1731 = vrot.slane %v1729, 4
        %v1732 = vshll.u32 %v1613, 16
        %v1734 = vrot.slane %v1732, 5
        %v1735 = vor.u32 %v1731, %v1734
        %v1736 = vrot.slane %v1735, 4
        %v1738 = vshll.u32 %v1614, 16
        %v1740 = vrot.slane %v1738, 5
        %v1741 = vsel %vm1631, %v1736, %v1740
        %v1742 = vshrl.u32 %v1614, 16
        %v1744 = vrot.slane %v1742, 4
        %v1745 = vor.u32 %v1744, %v1740
        %v1746 = vrot.slane %v1745, 4
        %v1748 = vshll.u32 %v1625, 16
        %v1750 = vrot.slane %v1748, 5
        %v1751 = vsel %vm1631, %v1746, %v1750
        %v1753 = vshrl.u32 %v1615, 16
        %v1755 = vrot.slane %v1753, 4
        %v1756 = vshll.u32 %v1615, 16
        %v1758 = vrot.slane %v1756, 5
        %v1759 = vor.u32 %v1755, %v1758
        %v1760 = vrot.slane %v1759, 4
        %v1762 = vshll.u32 %v1616, 16
        %v1764 = vrot.slane %v1762, 5
        %v1765 = vsel %vm1631, %v1760, %v1764
        %v1766 = vshrl.u32 %v1616, 16
        %v1768 = vrot.slane %v1766, 4
        %v1769 = vor.u32 %v1768, %v1764
        %v1770 = vrot.slane %v1769, 4
        %v1772 = vshll.u32 %v1626, 16
        %v1774 = vrot.slane %v1772, 5
        %v1775 = vsel %vm1631, %v1770, %v1774
        %v1777 = vshrl.u32 %v1617, 16
        %v1779 = vrot.slane %v1777, 4
        %v1780 = vshll.u32 %v1617, 16
        %v1782 = vrot.slane %v1780, 5
        %v1783 = vor.u32 %v1779, %v1782
        %v1784 = vrot.slane %v1783, 4
        %v1786 = vshll.u32 %v1618, 16
        %v1788 = vrot.slane %v1786, 5
        %v1789 = vsel %vm1631, %v1784, %v1788
        %v1790 = vshrl.u32 %v1618, 16
        %v1792 = vrot.slane %v1790, 4
        %v1793 = vor.u32 %v1792, %v1788
        %v1794 = vrot.slane %v1793, 4
        %v1796 = vshll.u32 %v1627, 16
        %v1798 = vrot.slane %v1796, 5
        %v1799 = vsel %vm1631, %v1794, %v1798
        %v1801 = vshrl.u32 %v1619, 16
        %v1803 = vrot.slane %v1801, 4
        %v1804 = vshll.u32 %v1619, 16
        %v1806 = vrot.slane %v1804, 5
        %v1807 = vor.u32 %v1803, %v1806
        %v1808 = vrot.slane %v1807, 4
        %v1810 = vshll.u32 %v1620, 16
        %v1812 = vrot.slane %v1810, 5
        %v1813 = vsel %vm1631, %v1808, %v1812
        %v1814 = vshrl.u32 %v1620, 16
        %v1816 = vrot.slane %v1814, 4
        %v1817 = vor.u32 %v1816, %v1812
        %v1818 = vrot.slane %v1817, 4
        %v1820 = vshll.u32 %v1628, 16
        %v1822 = vrot.slane %v1820, 5
        %v1823 = vsel %vm1631, %v1818, %v1822
        %v1824 = vld [vmem:[#allocation4] sm:$0xe]
        %v1825 = vld [vmem:[#allocation4 + $0xc] sm:$0xe]
        %v1826 = vld [vmem:[#allocation4 + $0x18] sm:$0xe]
        %v1827 = vld [vmem:[#allocation4 + $0x24] sm:$0xe]
        %v1828 = vld [vmem:[#allocation4 + $0x30] sm:$0xe]
        %v1829 = vld [vmem:[#allocation4 + $0x3c] sm:$0xe]
        %v1830 = vld [vmem:[#allocation4 + $0x48] sm:$0xe]
        %v1831 = vld [vmem:[#allocation4 + $0x54] sm:$0xe]
        %vm1856 = vcmask 1042432
        %vm1857 = vcmask 1046532
        %vm1858 = vmor %vm1856, %vm1857
        %v1859 = vrot.slane %v1824, 5
        %v1860 = vrot.slane %v1859, 4
        %v1861 = vrot.slane %v1606, 5
        %v1862 = vsel %vm1858, %v1860, %v1861
        %v1863 = vrot.slane %v1861, 4
        %v1864 = vrot.slane %v1621, 5
        %v1865 = vsel %vm1858, %v1863, %v1864
        %v1866 = vrot.slane %v1825, 5
        %v1867 = vrot.slane %v1866, 4
        %v1868 = vrot.slane %v1608, 5
        %v1869 = vsel %vm1858, %v1867, %v1868
        %v1870 = vrot.slane %v1868, 4
        %v1871 = vrot.slane %v1622, 5
        %v1872 = vsel %vm1858, %v1870, %v1871
        %v1873 = vrot.slane %v1826, 5
        %v1874 = vrot.slane %v1873, 4
        %v1875 = vrot.slane %v1610, 5
        %v1876 = vsel %vm1858, %v1874, %v1875
        %v1877 = vrot.slane %v1875, 4
        %v1878 = vrot.slane %v1623, 5
        %v1879 = vsel %vm1858, %v1877, %v1878
        %v1880 = vrot.slane %v1827, 5
        %v1881 = vrot.slane %v1880, 4
        %v1882 = vrot.slane %v1612, 5
        %v1883 = vsel %vm1858, %v1881, %v1882
        %v1884 = vrot.slane %v1882, 4
        %v1885 = vrot.slane %v1624, 5
        %v1886 = vsel %vm1858, %v1884, %v1885
        %v1887 = vrot.slane %v1828, 5
        %v1888 = vrot.slane %v1887, 4
        %v1889 = vrot.slane %v1614, 5
        %v1890 = vsel %vm1858, %v1888, %v1889
        %v1891 = vrot.slane %v1889, 4
        %v1892 = vrot.slane %v1625, 5
        %v1893 = vsel %vm1858, %v1891, %v1892
        %v1894 = vrot.slane %v1829, 5
        %v1895 = vrot.slane %v1894, 4
        %v1896 = vrot.slane %v1616, 5
        %v1897 = vsel %vm1858, %v1895, %v1896
        %v1898 = vrot.slane %v1896, 4
        %v1899 = vrot.slane %v1626, 5
        %v1900 = vsel %vm1858, %v1898, %v1899
        %v1901 = vrot.slane %v1830, 5
        %v1902 = vrot.slane %v1901, 4
        %v1903 = vrot.slane %v1618, 5
        %v1904 = vsel %vm1858, %v1902, %v1903
        %v1905 = vrot.slane %v1903, 4
        %v1906 = vrot.slane %v1627, 5
        %v1907 = vsel %vm1858, %v1905, %v1906
        %v1908 = vrot.slane %v1831, 5
        %v1909 = vrot.slane %v1908, 4
        %v1910 = vrot.slane %v1620, 5
        %v1911 = vsel %vm1858, %v1909, %v1910
        %v1912 = vrot.slane %v1910, 4
        %v1913 = vrot.slane %v1628, 5
        %v1914 = vsel %vm1858, %v1912, %v1913
        %v1923 = vunpack.c.l.b16 %v1605
        %v1924 = vunpack.c.l.b16 %v1606
        %v1925 = vunpack.c.l.b16 %v1607
        %v1926 = vunpack.c.l.b16 %v1608
        %v1927 = vunpack.c.l.b16 %v1609
        %v1928 = vunpack.c.l.b16 %v1610
        %v1929 = vunpack.c.l.b16 %v1611
        %v1930 = vunpack.c.l.b16 %v1612
        %v1931 = vunpack.c.l.b16 %v1613
        %v1932 = vunpack.c.l.b16 %v1614
        %v1933 = vunpack.c.l.b16 %v1615
        %v1934 = vunpack.c.l.b16 %v1616
        %v1935 = vunpack.c.l.b16 %v1617
        %v1936 = vunpack.c.l.b16 %v1618
        %v1937 = vunpack.c.l.b16 %v1619
        %v1938 = vunpack.c.l.b16 %v1620
        %v1939 = vpack.c.b16 %v1924, %v1923
        %v1940 = vpack.c.b16 %v1926, %v1925
        %v1941 = vpack.c.b16 %v1928, %v1927
        %v1942 = vpack.c.b16 %v1930, %v1929
        %v1943 = vpack.c.b16 %v1932, %v1931
        %v1944 = vpack.c.b16 %v1934, %v1933
        %v1945 = vpack.c.b16 %v1936, %v1935
        %v1946 = vpack.c.b16 %v1938, %v1937
        %v1947 = vunpack.c.l.b16 %v1645
        %v1948 = vunpack.c.l.b16 %v1655
        %v1949 = vunpack.c.l.b16 %v1669
        %v1950 = vunpack.c.l.b16 %v1679
        %v1951 = vunpack.c.l.b16 %v1693
        %v1952 = vunpack.c.l.b16 %v1703
        %v1953 = vunpack.c.l.b16 %v1717
        %v1954 = vunpack.c.l.b16 %v1727
        %v1955 = vunpack.c.l.b16 %v1741
        %v1956 = vunpack.c.l.b16 %v1751
        %v1957 = vunpack.c.l.b16 %v1765
        %v1958 = vunpack.c.l.b16 %v1775
        %v1959 = vunpack.c.l.b16 %v1789
        %v1960 = vunpack.c.l.b16 %v1799
        %v1961 = vunpack.c.l.b16 %v1813
        %v1962 = vunpack.c.l.b16 %v1823
        %v1963 = vpack.c.b16 %v1948, %v1947
        %v1964 = vpack.c.b16 %v1950, %v1949
        %v1965 = vpack.c.b16 %v1952, %v1951
        %v1966 = vpack.c.b16 %v1954, %v1953
        %v1967 = vpack.c.b16 %v1956, %v1955
        %v1968 = vpack.c.b16 %v1958, %v1957
        %v1969 = vpack.c.b16 %v1960, %v1959
        %v1970 = vpack.c.b16 %v1962, %v1961
        %1971 = vrot.lane.b32.xlu0 %v1963, 64
        %v1972 = vpop.permute.xlu0 %1971
        %1973 = vrot.lane.b32.xlu0 %v1964, 64
        %v1974 = vpop.permute.xlu0 %1973
        %1975 = vrot.lane.b32.xlu0 %v1965, 64
        %v1976 = vpop.permute.xlu0 %1975
        %1977 = vrot.lane.b32.xlu0 %v1966, 64
        %v1978 = vpop.permute.xlu0 %1977
        %1979 = vrot.lane.b32.xlu0 %v1967, 64
        %v1980 = vpop.permute.xlu0 %1979
        %1981 = vrot.lane.b32.xlu0 %v1968, 64
        %v1982 = vpop.permute.xlu0 %1981
        %1983 = vrot.lane.b32.xlu0 %v1969, 64
        %v1984 = vpop.permute.xlu0 %1983
        %1985 = vrot.lane.b32.xlu0 %v1970, 64
        %v1986 = vpop.permute.xlu0 %1985
        %v1987 = vunpack.c.l.b16 %v1862
        %v1988 = vunpack.c.l.b16 %v1865
        %v1989 = vunpack.c.l.b16 %v1869
        %v1990 = vunpack.c.l.b16 %v1872
        %v1991 = vunpack.c.l.b16 %v1876
        %v1992 = vunpack.c.l.b16 %v1879
        %v1993 = vunpack.c.l.b16 %v1883
        %v1994 = vunpack.c.l.b16 %v1886
        %v1995 = vunpack.c.l.b16 %v1890
        %v1996 = vunpack.c.l.b16 %v1893
        %v1997 = vunpack.c.l.b16 %v1897
        %v1998 = vunpack.c.l.b16 %v1900
        %v1999 = vunpack.c.l.b16 %v1904
        %v2000 = vunpack.c.l.b16 %v1907
        %v2001 = vunpack.c.l.b16 %v1911
        %v2002 = vunpack.c.l.b16 %v1914
        %v2003 = vpack.c.b16 %v1988, %v1987
        %v2004 = vpack.c.b16 %v1990, %v1989
        %v2005 = vpack.c.b16 %v1992, %v1991
        %v2006 = vpack.c.b16 %v1994, %v1993
        %v2007 = vpack.c.b16 %v1996, %v1995
        %v2008 = vpack.c.b16 %v1998, %v1997
        %v2009 = vpack.c.b16 %v2000, %v1999
        %v2010 = vpack.c.b16 %v2002, %v2001
        %vm2011 = vcmask 523264
        %v2014 = vsel %vm2011, %v1939, %v1972
        %v2018 = vsel %vm2011, %v1940, %v1974
        %v2022 = vsel %vm2011, %v1941, %v1976
        %v2026 = vsel %vm2011, %v1942, %v1978
        %v2030 = vsel %vm2011, %v1943, %v1980
        %v2034 = vsel %vm2011, %v1944, %v1982
        %v2038 = vsel %vm2011, %v1945, %v1984
        %v2042 = vsel %vm2011, %v1946, %v1986
        %v2044 = vld [vmem:[%s4] sm:$0xf]
        %v2045 = vld [vmem:[%s4 + $0x4] sm:$0xf]
        %v2046 = vld [vmem:[%s4 + $0x8] sm:$0xf]
        %v2047 = vld [vmem:[%s4 + $0xc] sm:$0xf]
        %v2048 = vld [vmem:[%s4 + $0x10] sm:$0xf]
        %v2049 = vld [vmem:[%s4 + $0x14] sm:$0xf]
        %v2050 = vld [vmem:[%s4 + $0x18] sm:$0xf]
        %v2051 = vld [vmem:[%s4 + $0x1c] sm:$0xf]
        %v2052 = vld [vmem:[%s4 + $0x20] sm:$0xf]
        %v2053 = vld [vmem:[%s4 + $0x24] sm:$0xf]
        %v2054 = vld [vmem:[%s4 + $0x28] sm:$0xf]
        %v2055 = vld [vmem:[%s4 + $0x2c] sm:$0xf]
        %v2056 = vld [vmem:[%s4 + $0x30] sm:$0xf]
        %v2057 = vld [vmem:[%s4 + $0x34] sm:$0xf]
        %v2058 = vld [vmem:[%s4 + $0x38] sm:$0xf]
        %v2059 = vld [vmem:[%s4 + $0x3c] sm:$0xf]
        %v2060 = vld [vmem:[%s4 + $0x40] sm:$0xf]
        %v2061 = vld [vmem:[%s4 + $0x44] sm:$0xf]
        %v2062 = vld [vmem:[%s4 + $0x48] sm:$0xf]
        %v2063 = vld [vmem:[%s4 + $0x4c] sm:$0xf]
        %v2064 = vld [vmem:[%s4 + $0x50] sm:$0xf]
        %v2065 = vld [vmem:[%s4 + $0x54] sm:$0xf]
        %v2066 = vld [vmem:[%s4 + $0x58] sm:$0xf]
        %v2067 = vld [vmem:[%s4 + $0x5c] sm:$0xf]
        %s2068 = scalar_lea.vmem [#allocation4], 12
        %v2069 = vld [vmem:[%s2068] sm:$0xf]
        %v2070 = vld [vmem:[%s2068 + $0x4] sm:$0xf]
        %v2071 = vld [vmem:[%s2068 + $0xc] sm:$0xf]
        %v2072 = vld [vmem:[%s2068 + $0x10] sm:$0xf]
        %v2073 = vld [vmem:[%s2068 + $0x18] sm:$0xf]
        %v2074 = vld [vmem:[%s2068 + $0x1c] sm:$0xf]
        %v2075 = vld [vmem:[%s2068 + $0x24] sm:$0xf]
        %v2076 = vld [vmem:[%s2068 + $0x28] sm:$0xf]
        %v2077 = vld [vmem:[%s2068 + $0x30] sm:$0xf]
        %v2078 = vld [vmem:[%s2068 + $0x34] sm:$0xf]
        %v2079 = vld [vmem:[%s2068 + $0x3c] sm:$0xf]
        %v2080 = vld [vmem:[%s2068 + $0x40] sm:$0xf]
        %v2081 = vld [vmem:[%s2068 + $0x48] sm:$0xf]
        %v2082 = vld [vmem:[%s2068 + $0x4c] sm:$0xf]
        %v2083 = vld [vmem:[%s2068 + $0x54] sm:$0xf]
        %v2084 = vld [vmem:[%s2068 + $0x58] sm:$0xf]
        %v2085 = vld [vmem:[%s2068 + $0x8] sm:$0x1]
        %v2086 = vld [vmem:[%s2068 + $0x14] sm:$0x1]
        %v2087 = vld [vmem:[%s2068 + $0x20] sm:$0x1]
        %v2088 = vld [vmem:[%s2068 + $0x2c] sm:$0x1]
        %v2089 = vld [vmem:[%s2068 + $0x38] sm:$0x1]
        %v2090 = vld [vmem:[%s2068 + $0x44] sm:$0x1]
        %v2091 = vld [vmem:[%s2068 + $0x50] sm:$0x1]
        %v2092 = vld [vmem:[%s2068 + $0x5c] sm:$0x1]
        %v2094 = vshrl.u32 %v2069, 16
        %v2096 = vrot.slane %v2094, 4
        %v2097 = vshll.u32 %v2069, 16
        %v2099 = vrot.slane %v2097, 5
        %v2100 = vor.u32 %v2096, %v2099
        %v2101 = vrot.slane %v2100, 4
        %v2103 = vshll.u32 %v2070, 16
        %v2105 = vrot.slane %v2103, 5
        %v2106 = vsel %vm1631, %v2101, %v2105
        %v2107 = vshrl.u32 %v2070, 16
        %v2109 = vrot.slane %v2107, 4
        %v2110 = vor.u32 %v2109, %v2105
        %v2111 = vrot.slane %v2110, 4
        %v2113 = vshll.u32 %v2085, 16
        %v2115 = vrot.slane %v2113, 5
        %v2116 = vsel %vm1631, %v2111, %v2115
        %v2118 = vshrl.u32 %v2071, 16
        %v2120 = vrot.slane %v2118, 4
        %v2121 = vshll.u32 %v2071, 16
        %v2123 = vrot.slane %v2121, 5
        %v2124 = vor.u32 %v2120, %v2123
        %v2125 = vrot.slane %v2124, 4
        %v2127 = vshll.u32 %v2072, 16
        %v2129 = vrot.slane %v2127, 5
        %v2130 = vsel %vm1631, %v2125, %v2129
        %v2131 = vshrl.u32 %v2072, 16
        %v2133 = vrot.slane %v2131, 4
        %v2134 = vor.u32 %v2133, %v2129
        %v2135 = vrot.slane %v2134, 4
        %v2137 = vshll.u32 %v2086, 16
        %v2139 = vrot.slane %v2137, 5
        %v2140 = vsel %vm1631, %v2135, %v2139
        %v2142 = vshrl.u32 %v2073, 16
        %v2144 = vrot.slane %v2142, 4
        %v2145 = vshll.u32 %v2073, 16
        %v2147 = vrot.slane %v2145, 5
        %v2148 = vor.u32 %v2144, %v2147
        %v2149 = vrot.slane %v2148, 4
        %v2151 = vshll.u32 %v2074, 16
        %v2153 = vrot.slane %v2151, 5
        %v2154 = vsel %vm1631, %v2149, %v2153
        %v2155 = vshrl.u32 %v2074, 16
        %v2157 = vrot.slane %v2155, 4
        %v2158 = vor.u32 %v2157, %v2153
        %v2159 = vrot.slane %v2158, 4
        %v2161 = vshll.u32 %v2087, 16
        %v2163 = vrot.slane %v2161, 5
        %v2164 = vsel %vm1631, %v2159, %v2163
        %v2166 = vshrl.u32 %v2075, 16
        %v2168 = vrot.slane %v2166, 4
        %v2169 = vshll.u32 %v2075, 16
        %v2171 = vrot.slane %v2169, 5
        %v2172 = vor.u32 %v2168, %v2171
        %v2173 = vrot.slane %v2172, 4
        %v2175 = vshll.u32 %v2076, 16
        %v2177 = vrot.slane %v2175, 5
        %v2178 = vsel %vm1631, %v2173, %v2177
        %v2179 = vshrl.u32 %v2076, 16
        %v2181 = vrot.slane %v2179, 4
        %v2182 = vor.u32 %v2181, %v2177
        %v2183 = vrot.slane %v2182, 4
        %v2185 = vshll.u32 %v2088, 16
        %v2187 = vrot.slane %v2185, 5
        %v2188 = vsel %vm1631, %v2183, %v2187
        %v2190 = vshrl.u32 %v2077, 16
        %v2192 = vrot.slane %v2190, 4
        %v2193 = vshll.u32 %v2077, 16
        %v2195 = vrot.slane %v2193, 5
        %v2196 = vor.u32 %v2192, %v2195
        %v2197 = vrot.slane %v2196, 4
        %v2199 = vshll.u32 %v2078, 16
        %v2201 = vrot.slane %v2199, 5
        %v2202 = vsel %vm1631, %v2197, %v2201
        %v2203 = vshrl.u32 %v2078, 16
        %v2205 = vrot.slane %v2203, 4
        %v2206 = vor.u32 %v2205, %v2201
        %v2207 = vrot.slane %v2206, 4
        %v2209 = vshll.u32 %v2089, 16
        %v2211 = vrot.slane %v2209, 5
        %v2212 = vsel %vm1631, %v2207, %v2211
        %v2214 = vshrl.u32 %v2079, 16
        %v2216 = vrot.slane %v2214, 4
        %v2217 = vshll.u32 %v2079, 16
        %v2219 = vrot.slane %v2217, 5
        %v2220 = vor.u32 %v2216, %v2219
        %v2221 = vrot.slane %v2220, 4
        %v2223 = vshll.u32 %v2080, 16
        %v2225 = vrot.slane %v2223, 5
        %v2226 = vsel %vm1631, %v2221, %v2225
        %v2227 = vshrl.u32 %v2080, 16
        %v2229 = vrot.slane %v2227, 4
        %v2230 = vor.u32 %v2229, %v2225
        %v2231 = vrot.slane %v2230, 4
        %v2233 = vshll.u32 %v2090, 16
        %v2235 = vrot.slane %v2233, 5
        %v2236 = vsel %vm1631, %v2231, %v2235
        %v2238 = vshrl.u32 %v2081, 16
        %v2240 = vrot.slane %v2238, 4
        %v2241 = vshll.u32 %v2081, 16
        %v2243 = vrot.slane %v2241, 5
        %v2244 = vor.u32 %v2240, %v2243
        %v2245 = vrot.slane %v2244, 4
        %v2247 = vshll.u32 %v2082, 16
        %v2249 = vrot.slane %v2247, 5
        %v2250 = vsel %vm1631, %v2245, %v2249
        %v2251 = vshrl.u32 %v2082, 16
        %v2253 = vrot.slane %v2251, 4
        %v2254 = vor.u32 %v2253, %v2249
        %v2255 = vrot.slane %v2254, 4
        %v2257 = vshll.u32 %v2091, 16
        %v2259 = vrot.slane %v2257, 5
        %v2260 = vsel %vm1631, %v2255, %v2259
        %v2262 = vshrl.u32 %v2083, 16
        %v2264 = vrot.slane %v2262, 4
        %v2265 = vshll.u32 %v2083, 16
        %v2267 = vrot.slane %v2265, 5
        %v2268 = vor.u32 %v2264, %v2267
        %v2269 = vrot.slane %v2268, 4
        %v2271 = vshll.u32 %v2084, 16
        %v2273 = vrot.slane %v2271, 5
        %v2274 = vsel %vm1631, %v2269, %v2273
        %v2275 = vshrl.u32 %v2084, 16
        %v2277 = vrot.slane %v2275, 4
        %v2278 = vor.u32 %v2277, %v2273
        %v2279 = vrot.slane %v2278, 4
        %v2281 = vshll.u32 %v2092, 16
        %v2283 = vrot.slane %v2281, 5
        %v2284 = vsel %vm1631, %v2279, %v2283
        %v2285 = vld [vmem:[%s2068] sm:$0xe]
        %v2286 = vld [vmem:[%s2068 + $0xc] sm:$0xe]
        %v2287 = vld [vmem:[%s2068 + $0x18] sm:$0xe]
        %v2288 = vld [vmem:[%s2068 + $0x24] sm:$0xe]
        %v2289 = vld [vmem:[%s2068 + $0x30] sm:$0xe]
        %v2290 = vld [vmem:[%s2068 + $0x3c] sm:$0xe]
        %v2291 = vld [vmem:[%s2068 + $0x48] sm:$0xe]
        %v2292 = vld [vmem:[%s2068 + $0x54] sm:$0xe]
        %v2317 = vrot.slane %v2285, 5
        %v2318 = vrot.slane %v2317, 4
        %v2319 = vrot.slane %v2070, 5
        %v2320 = vsel %vm1858, %v2318, %v2319
        %v2321 = vrot.slane %v2319, 4
        %v2322 = vrot.slane %v2085, 5
        %v2323 = vsel %vm1858, %v2321, %v2322
        %v2324 = vrot.slane %v2286, 5
        %v2325 = vrot.slane %v2324, 4
        %v2326 = vrot.slane %v2072, 5
        %v2327 = vsel %vm1858, %v2325, %v2326
        %v2328 = vrot.slane %v2326, 4
        %v2329 = vrot.slane %v2086, 5
        %v2330 = vsel %vm1858, %v2328, %v2329
        %v2331 = vrot.slane %v2287, 5
        %v2332 = vrot.slane %v2331, 4
        %v2333 = vrot.slane %v2074, 5
        %v2334 = vsel %vm1858, %v2332, %v2333
        %v2335 = vrot.slane %v2333, 4
        %v2336 = vrot.slane %v2087, 5
        %v2337 = vsel %vm1858, %v2335, %v2336
        %v2338 = vrot.slane %v2288, 5
        %v2339 = vrot.slane %v2338, 4
        %v2340 = vrot.slane %v2076, 5
        %v2341 = vsel %vm1858, %v2339, %v2340
        %v2342 = vrot.slane %v2340, 4
        %v2343 = vrot.slane %v2088, 5
        %v2344 = vsel %vm1858, %v2342, %v2343
        %v2345 = vrot.slane %v2289, 5
        %v2346 = vrot.slane %v2345, 4
        %v2347 = vrot.slane %v2078, 5
        %v2348 = vsel %vm1858, %v2346, %v2347
        %v2349 = vrot.slane %v2347, 4
        %v2350 = vrot.slane %v2089, 5
        %v2351 = vsel %vm1858, %v2349, %v2350
        %v2352 = vrot.slane %v2290, 5
        %v2353 = vrot.slane %v2352, 4
        %v2354 = vrot.slane %v2080, 5
        %v2355 = vsel %vm1858, %v2353, %v2354
        %v2356 = vrot.slane %v2354, 4
        %v2357 = vrot.slane %v2090, 5
        %v2358 = vsel %vm1858, %v2356, %v2357
        %v2359 = vrot.slane %v2291, 5
        %v2360 = vrot.slane %v2359, 4
        %v2361 = vrot.slane %v2082, 5
        %v2362 = vsel %vm1858, %v2360, %v2361
        %v2363 = vrot.slane %v2361, 4
        %v2364 = vrot.slane %v2091, 5
        %v2365 = vsel %vm1858, %v2363, %v2364
        %v2366 = vrot.slane %v2292, 5
        %v2367 = vrot.slane %v2366, 4
        %v2368 = vrot.slane %v2084, 5
        %v2369 = vsel %vm1858, %v2367, %v2368
        %v2370 = vrot.slane %v2368, 4
        %v2371 = vrot.slane %v2092, 5
        %v2372 = vsel %vm1858, %v2370, %v2371
        %v2381 = vunpack.c.l.b16 %v2069
        %v2382 = vunpack.c.l.b16 %v2070
        %v2383 = vunpack.c.l.b16 %v2071
        %v2384 = vunpack.c.l.b16 %v2072
        %v2385 = vunpack.c.l.b16 %v2073
        %v2386 = vunpack.c.l.b16 %v2074
        %v2387 = vunpack.c.l.b16 %v2075
        %v2388 = vunpack.c.l.b16 %v2076
        %v2389 = vunpack.c.l.b16 %v2077
        %v2390 = vunpack.c.l.b16 %v2078
        %v2391 = vunpack.c.l.b16 %v2079
        %v2392 = vunpack.c.l.b16 %v2080
        %v2393 = vunpack.c.l.b16 %v2081
        %v2394 = vunpack.c.l.b16 %v2082
        %v2395 = vunpack.c.l.b16 %v2083
        %v2396 = vunpack.c.l.b16 %v2084
        %v2397 = vpack.c.b16 %v2382, %v2381
        %v2398 = vpack.c.b16 %v2384, %v2383
        %v2399 = vpack.c.b16 %v2386, %v2385
        %v2400 = vpack.c.b16 %v2388, %v2387
        %v2401 = vpack.c.b16 %v2390, %v2389
        %v2402 = vpack.c.b16 %v2392, %v2391
        %v2403 = vpack.c.b16 %v2394, %v2393
        %v2404 = vpack.c.b16 %v2396, %v2395
        %v2405 = vunpack.c.l.b16 %v2106
        %v2406 = vunpack.c.l.b16 %v2116
        %v2407 = vunpack.c.l.b16 %v2130
        %v2408 = vunpack.c.l.b16 %v2140
        %v2409 = vunpack.c.l.b16 %v2154
        %v2410 = vunpack.c.l.b16 %v2164
        %v2411 = vunpack.c.l.b16 %v2178
        %v2412 = vunpack.c.l.b16 %v2188
        %v2413 = vunpack.c.l.b16 %v2202
        %v2414 = vunpack.c.l.b16 %v2212
        %v2415 = vunpack.c.l.b16 %v2226
        %v2416 = vunpack.c.l.b16 %v2236
        %v2417 = vunpack.c.l.b16 %v2250
        %v2418 = vunpack.c.l.b16 %v2260
        %v2419 = vunpack.c.l.b16 %v2274
        %v2420 = vunpack.c.l.b16 %v2284
        %v2421 = vpack.c.b16 %v2406, %v2405
        %v2422 = vpack.c.b16 %v2408, %v2407
        %v2423 = vpack.c.b16 %v2410, %v2409
        %v2424 = vpack.c.b16 %v2412, %v2411
        %v2425 = vpack.c.b16 %v2414, %v2413
        %v2426 = vpack.c.b16 %v2416, %v2415
        %v2427 = vpack.c.b16 %v2418, %v2417
        %v2428 = vpack.c.b16 %v2420, %v2419
        %2429 = vrot.lane.b32.xlu0 %v2421, 64
        %v2430 = vpop.permute.xlu0 %2429
        %2431 = vrot.lane.b32.xlu0 %v2422, 64
        %v2432 = vpop.permute.xlu0 %2431
        %2433 = vrot.lane.b32.xlu0 %v2423, 64
        %v2434 = vpop.permute.xlu0 %2433
        %2435 = vrot.lane.b32.xlu0 %v2424, 64
        %v2436 = vpop.permute.xlu0 %2435
        %2437 = vrot.lane.b32.xlu0 %v2425, 64
        %v2438 = vpop.permute.xlu0 %2437
        %2439 = vrot.lane.b32.xlu0 %v2426, 64
        %v2440 = vpop.permute.xlu0 %2439
        %2441 = vrot.lane.b32.xlu0 %v2427, 64
        %v2442 = vpop.permute.xlu0 %2441
        %2443 = vrot.lane.b32.xlu0 %v2428, 64
        %v2444 = vpop.permute.xlu0 %2443
        %v2445 = vunpack.c.l.b16 %v2320
        %v2446 = vunpack.c.l.b16 %v2323
        %v2447 = vunpack.c.l.b16 %v2327
        %v2448 = vunpack.c.l.b16 %v2330
        %v2449 = vunpack.c.l.b16 %v2334
        %v2450 = vunpack.c.l.b16 %v2337
        %v2451 = vunpack.c.l.b16 %v2341
        %v2452 = vunpack.c.l.b16 %v2344
        %v2453 = vunpack.c.l.b16 %v2348
        %v2454 = vunpack.c.l.b16 %v2351
        %v2455 = vunpack.c.l.b16 %v2355
        %v2456 = vunpack.c.l.b16 %v2358
        %v2457 = vunpack.c.l.b16 %v2362
        %v2458 = vunpack.c.l.b16 %v2365
        %v2459 = vunpack.c.l.b16 %v2369
        %v2460 = vunpack.c.l.b16 %v2372
        %v2461 = vpack.c.b16 %v2446, %v2445
        %v2462 = vpack.c.b16 %v2448, %v2447
        %v2463 = vpack.c.b16 %v2450, %v2449
        %v2464 = vpack.c.b16 %v2452, %v2451
        %v2465 = vpack.c.b16 %v2454, %v2453
        %v2466 = vpack.c.b16 %v2456, %v2455
        %v2467 = vpack.c.b16 %v2458, %v2457
        %v2468 = vpack.c.b16 %v2460, %v2459
        %v2471 = vsel %vm2011, %v2397, %v2430
        %v2475 = vsel %vm2011, %v2398, %v2432
        %v2479 = vsel %vm2011, %v2399, %v2434
        %v2483 = vsel %vm2011, %v2400, %v2436
        %v2487 = vsel %vm2011, %v2401, %v2438
        %v2491 = vsel %vm2011, %v2402, %v2440
        %v2495 = vsel %vm2011, %v2403, %v2442
        %v2499 = vsel %vm2011, %v2404, %v2444
        %s2501 = scalar_lea.vmem %s4, 96
        %v2502 = vld [vmem:[%s2501] sm:$0xf]
        %v2503 = vld [vmem:[%s2501 + $0x4] sm:$0xf]
        %v2504 = vld [vmem:[%s2501 + $0x8] sm:$0xf]
        %v2505 = vld [vmem:[%s2501 + $0xc] sm:$0xf]
        %v2506 = vld [vmem:[%s2501 + $0x10] sm:$0xf]
        %v2507 = vld [vmem:[%s2501 + $0x14] sm:$0xf]
        %v2508 = vld [vmem:[%s2501 + $0x18] sm:$0xf]
        %v2509 = vld [vmem:[%s2501 + $0x1c] sm:$0xf]
        %v2510 = vld [vmem:[%s2501 + $0x20] sm:$0xf]
        %v2511 = vld [vmem:[%s2501 + $0x24] sm:$0xf]
        %v2512 = vld [vmem:[%s2501 + $0x28] sm:$0xf]
        %v2513 = vld [vmem:[%s2501 + $0x2c] sm:$0xf]
        %v2514 = vld [vmem:[%s2501 + $0x30] sm:$0xf]
        %v2515 = vld [vmem:[%s2501 + $0x34] sm:$0xf]
        %v2516 = vld [vmem:[%s2501 + $0x38] sm:$0xf]
        %v2517 = vld [vmem:[%s2501 + $0x3c] sm:$0xf]
        %v2518 = vld [vmem:[%s2501 + $0x40] sm:$0xf]
        %v2519 = vld [vmem:[%s2501 + $0x44] sm:$0xf]
        %v2520 = vld [vmem:[%s2501 + $0x48] sm:$0xf]
        %v2521 = vld [vmem:[%s2501 + $0x4c] sm:$0xf]
        %v2522 = vld [vmem:[%s2501 + $0x50] sm:$0xf]
        %v2523 = vld [vmem:[%s2501 + $0x54] sm:$0xf]
        %v2524 = vld [vmem:[%s2501 + $0x58] sm:$0xf]
        %v2525 = vld [vmem:[%s2501 + $0x5c] sm:$0xf]
        %v2550 = vunpack.c.l.b16 %v2502
        %v2551 = vunpack.c.l.b16 %v2503
        %v2552 = vunpack.c.l.b16 %v2504
        %v2553 = vunpack.c.l.b16 %v2505
        %v2554 = vunpack.c.l.b16 %v2506
        %v2555 = vunpack.c.l.b16 %v2507
        %v2556 = vunpack.c.l.b16 %v2508
        %v2557 = vunpack.c.l.b16 %v2509
        %v2558 = vunpack.c.l.b16 %v2510
        %v2559 = vunpack.c.l.b16 %v2511
        %v2560 = vunpack.c.l.b16 %v2512
        %v2561 = vunpack.c.l.b16 %v2513
        %v2562 = vunpack.c.l.b16 %v2514
        %v2563 = vunpack.c.l.b16 %v2515
        %v2564 = vunpack.c.l.b16 %v2516
        %v2565 = vunpack.c.l.b16 %v2517
        %v2566 = vunpack.c.l.b16 %v2518
        %v2567 = vunpack.c.l.b16 %v2519
        %v2568 = vunpack.c.l.b16 %v2520
        %v2569 = vunpack.c.l.b16 %v2521
        %v2570 = vunpack.c.l.b16 %v2522
        %v2571 = vunpack.c.l.b16 %v2523
        %v2572 = vunpack.c.l.b16 %v2524
        %v2573 = vunpack.c.l.b16 %v2525
        %v2574 = vpack.c.b16 %v2551, %v2550
        %v2575 = vpack.c.b16 %v2553, %v2552
        %v2576 = vpack.c.b16 %v2555, %v2554
        %v2577 = vpack.c.b16 %v2557, %v2556
        %v2578 = vpack.c.b16 %v2559, %v2558
        %v2579 = vpack.c.b16 %v2561, %v2560
        %v2580 = vpack.c.b16 %v2563, %v2562
        %v2581 = vpack.c.b16 %v2565, %v2564
        %v2582 = vpack.c.b16 %v2567, %v2566
        %v2583 = vpack.c.b16 %v2569, %v2568
        %v2584 = vpack.c.b16 %v2571, %v2570
        %v2585 = vpack.c.b16 %v2573, %v2572
        %v2599 = vsel %vm2011, %v2461, 0
        %v2602 = vsel %vm2011, %v2462, 0
        %v2605 = vsel %vm2011, %v2463, 0
        %v2608 = vsel %vm2011, %v2464, 0
        %v2611 = vsel %vm2011, %v2465, 0
        %v2614 = vsel %vm2011, %v2466, 0
        %v2617 = vsel %vm2011, %v2467, 0
        %v2620 = vsel %vm2011, %v2468, 0
        %2622 = vmatpush.bf16.msra.mxu0 %v2581
        %2623 = vmatpush.bf16.msra.mxu0 %v2580
        %2624 = vmatpush.bf16.msra.mxu0 %v2579
        %2625 = vmatpush.bf16.msra.mxu0 %v2578
        %2626 = vmatpush.bf16.msra.mxu0 %v2577
        %2627 = vmatpush.bf16.msra.mxu0 %v2576
        %2628 = vmatpush.bf16.msra.mxu0 %v2575
        %2629 = vmatpush.bf16.msra.mxu0 %v2574
        %2630 = vmatmul.bf16.gmra.mxu0 %v2471
        %v2631 = vpop.f32.mrf.mxu0
        %v2632 = vadd.f32 0.0, %v2631
        %v2633 = vpop.f32.mrf.mxu0
        %v2634 = vadd.f32 0.0, %v2633
        %2635 = vmatmul.bf16.gmra.mxu0 %v2475
        %v2636 = vpop.f32.mrf.mxu0
        %v2637 = vadd.f32 0.0, %v2636
        %v2638 = vpop.f32.mrf.mxu0
        %v2639 = vadd.f32 0.0, %v2638
        %2640 = vmatmul.bf16.gmra.mxu0 %v2479
        %v2641 = vpop.f32.mrf.mxu0
        %v2642 = vadd.f32 0.0, %v2641
        %v2643 = vpop.f32.mrf.mxu0
        %v2644 = vadd.f32 0.0, %v2643
        %2645 = vmatmul.bf16.gmra.mxu0 %v2483
        %v2646 = vpop.f32.mrf.mxu0
        %v2647 = vadd.f32 0.0, %v2646
        %v2648 = vpop.f32.mrf.mxu0
        %v2649 = vadd.f32 0.0, %v2648
        %2650 = vmatmul.bf16.gmra.mxu0 %v2487
        %v2651 = vpop.f32.mrf.mxu0
        %v2652 = vadd.f32 0.0, %v2651
        %v2653 = vpop.f32.mrf.mxu0
        %v2654 = vadd.f32 0.0, %v2653
        %2655 = vmatmul.bf16.gmra.mxu0 %v2491
        %v2656 = vpop.f32.mrf.mxu0
        %v2657 = vadd.f32 0.0, %v2656
        %v2658 = vpop.f32.mrf.mxu0
        %v2659 = vadd.f32 0.0, %v2658
        %2660 = vmatmul.bf16.gmra.mxu0 %v2495
        %v2661 = vpop.f32.mrf.mxu0
        %v2662 = vadd.f32 0.0, %v2661
        %v2663 = vpop.f32.mrf.mxu0
        %v2664 = vadd.f32 0.0, %v2663
        %2665 = vmatmul.bf16.gmra.mxu0 %v2499
        %v2666 = vpop.f32.mrf.mxu0
        %v2667 = vadd.f32 0.0, %v2666
        %v2668 = vpop.f32.mrf.mxu0
        %v2669 = vadd.f32 0.0, %v2668
        %2670 = vdwg.mxu0
        %2671 = vmatpush.bf16.msra.mxu0 0
        %2672 = vmatpush.bf16.msra.mxu0 0
        %2673 = vmatpush.bf16.msra.mxu0 0
        %2674 = vmatpush.bf16.msra.mxu0 0
        %2675 = vmatpush.bf16.msra.mxu0 %v2585
        %2676 = vmatpush.bf16.msra.mxu0 %v2584
        %2677 = vmatpush.bf16.msra.mxu0 %v2583
        %2678 = vmatpush.bf16.msra.mxu0 %v2582
        %2679 = vmatmul.bf16.gmra.mxu0 %v2599
        %v2680 = vpop.f32.mrf.mxu0
        %v2681 = vadd.f32 %v2632, %v2680
        %v2682 = vpop.f32.mrf.mxu0
        %v2683 = vadd.f32 %v2634, %v2682
        %2684 = vmatmul.bf16.gmra.mxu0 %v2602
        %v2685 = vpop.f32.mrf.mxu0
        %v2686 = vadd.f32 %v2637, %v2685
        %v2687 = vpop.f32.mrf.mxu0
        %v2688 = vadd.f32 %v2639, %v2687
        %2689 = vmatmul.bf16.gmra.mxu0 %v2605
        %v2690 = vpop.f32.mrf.mxu0
        %v2691 = vadd.f32 %v2642, %v2690
        %v2692 = vpop.f32.mrf.mxu0
        %v2693 = vadd.f32 %v2644, %v2692
        %2694 = vmatmul.bf16.gmra.mxu0 %v2608
        %v2695 = vpop.f32.mrf.mxu0
        %v2696 = vadd.f32 %v2647, %v2695
        %v2697 = vpop.f32.mrf.mxu0
        %v2698 = vadd.f32 %v2649, %v2697
        %2699 = vmatmul.bf16.gmra.mxu0 %v2611
        %v2700 = vpop.f32.mrf.mxu0
        %v2701 = vadd.f32 %v2652, %v2700
        %v2702 = vpop.f32.mrf.mxu0
        %v2703 = vadd.f32 %v2654, %v2702
        %2704 = vmatmul.bf16.gmra.mxu0 %v2614
        %v2705 = vpop.f32.mrf.mxu0
        %v2706 = vadd.f32 %v2657, %v2705
        %v2707 = vpop.f32.mrf.mxu0
        %v2708 = vadd.f32 %v2659, %v2707
        %2709 = vmatmul.bf16.gmra.mxu0 %v2617
        %v2710 = vpop.f32.mrf.mxu0
        %v2711 = vadd.f32 %v2662, %v2710
        %v2712 = vpop.f32.mrf.mxu0
        %v2713 = vadd.f32 %v2664, %v2712
        %2714 = vmatmul.bf16.gmra.mxu0 %v2620
        %v2715 = vpop.f32.mrf.mxu0
        %v2716 = vadd.f32 %v2667, %v2715
        %v2717 = vpop.f32.mrf.mxu0
        %v2718 = vadd.f32 %v2669, %v2717
        %2719 = vdwg.mxu0
        %v2744 = vunpack.c.l.b16 %v2044
        %v2745 = vunpack.c.l.b16 %v2045
        %v2746 = vunpack.c.l.b16 %v2046
        %v2747 = vunpack.c.l.b16 %v2047
        %v2748 = vunpack.c.l.b16 %v2048
        %v2749 = vunpack.c.l.b16 %v2049
        %v2750 = vunpack.c.l.b16 %v2050
        %v2751 = vunpack.c.l.b16 %v2051
        %v2752 = vunpack.c.l.b16 %v2052
        %v2753 = vunpack.c.l.b16 %v2053
        %v2754 = vunpack.c.l.b16 %v2054
        %v2755 = vunpack.c.l.b16 %v2055
        %v2756 = vunpack.c.l.b16 %v2056
        %v2757 = vunpack.c.l.b16 %v2057
        %v2758 = vunpack.c.l.b16 %v2058
        %v2759 = vunpack.c.l.b16 %v2059
        %v2760 = vunpack.c.l.b16 %v2060
        %v2761 = vunpack.c.l.b16 %v2061
        %v2762 = vunpack.c.l.b16 %v2062
        %v2763 = vunpack.c.l.b16 %v2063
        %v2764 = vunpack.c.l.b16 %v2064
        %v2765 = vunpack.c.l.b16 %v2065
        %v2766 = vunpack.c.l.b16 %v2066
        %v2767 = vunpack.c.l.b16 %v2067
        %v2768 = vpack.c.b16 %v2745, %v2744
        %v2769 = vpack.c.b16 %v2747, %v2746
        %v2770 = vpack.c.b16 %v2749, %v2748
        %v2771 = vpack.c.b16 %v2751, %v2750
        %v2772 = vpack.c.b16 %v2753, %v2752
        %v2773 = vpack.c.b16 %v2755, %v2754
        %v2774 = vpack.c.b16 %v2757, %v2756
        %v2775 = vpack.c.b16 %v2759, %v2758
        %v2776 = vpack.c.b16 %v2761, %v2760
        %v2777 = vpack.c.b16 %v2763, %v2762
        %v2778 = vpack.c.b16 %v2765, %v2764
        %v2779 = vpack.c.b16 %v2767, %v2766
        %v2793 = vsel %vm2011, %v2003, 0
        %v2796 = vsel %vm2011, %v2004, 0
        %v2799 = vsel %vm2011, %v2005, 0
        %v2802 = vsel %vm2011, %v2006, 0
        %v2805 = vsel %vm2011, %v2007, 0
        %v2808 = vsel %vm2011, %v2008, 0
        %v2811 = vsel %vm2011, %v2009, 0
        %v2814 = vsel %vm2011, %v2010, 0
        %2816 = vmatpush.bf16.msra.mxu0 %v2775
        %2817 = vmatpush.bf16.msra.mxu0 %v2774
        %2818 = vmatpush.bf16.msra.mxu0 %v2773
        %2819 = vmatpush.bf16.msra.mxu0 %v2772
        %2820 = vmatpush.bf16.msra.mxu0 %v2771
        %2821 = vmatpush.bf16.msra.mxu0 %v2770
        %2822 = vmatpush.bf16.msra.mxu0 %v2769
        %2823 = vmatpush.bf16.msra.mxu0 %v2768
        %2824 = vmatmul.bf16.gmra.mxu0 %v2014
        %v2825 = vpop.f32.mrf.mxu0
        %v2826 = vadd.f32 %v2681, %v2825
        %v2827 = vpop.f32.mrf.mxu0
        %v2828 = vadd.f32 %v2683, %v2827
        %2829 = vmatmul.bf16.gmra.mxu0 %v2018
        %v2830 = vpop.f32.mrf.mxu0
        %v2831 = vadd.f32 %v2686, %v2830
        %v2832 = vpop.f32.mrf.mxu0
        %v2833 = vadd.f32 %v2688, %v2832
        %2834 = vmatmul.bf16.gmra.mxu0 %v2022
        %v2835 = vpop.f32.mrf.mxu0
        %v2836 = vadd.f32 %v2691, %v2835
        %v2837 = vpop.f32.mrf.mxu0
        %v2838 = vadd.f32 %v2693, %v2837
        %2839 = vmatmul.bf16.gmra.mxu0 %v2026
        %v2840 = vpop.f32.mrf.mxu0
        %v2841 = vadd.f32 %v2696, %v2840
        %v2842 = vpop.f32.mrf.mxu0
        %v2843 = vadd.f32 %v2698, %v2842
        %2844 = vmatmul.bf16.gmra.mxu0 %v2030
        %v2845 = vpop.f32.mrf.mxu0
        %v2846 = vadd.f32 %v2701, %v2845
        %v2847 = vpop.f32.mrf.mxu0
        %v2848 = vadd.f32 %v2703, %v2847
        %2849 = vmatmul.bf16.gmra.mxu0 %v2034
        %v2850 = vpop.f32.mrf.mxu0
        %v2851 = vadd.f32 %v2706, %v2850
        %v2852 = vpop.f32.mrf.mxu0
        %v2853 = vadd.f32 %v2708, %v2852
        %2854 = vmatmul.bf16.gmra.mxu0 %v2038
        %v2855 = vpop.f32.mrf.mxu0
        %v2856 = vadd.f32 %v2711, %v2855
        %v2857 = vpop.f32.mrf.mxu0
        %v2858 = vadd.f32 %v2713, %v2857
        %2859 = vmatmul.bf16.gmra.mxu0 %v2042
        %v2860 = vpop.f32.mrf.mxu0
        %v2861 = vadd.f32 %v2716, %v2860
        %v2862 = vpop.f32.mrf.mxu0
        %v2863 = vadd.f32 %v2718, %v2862
        %2864 = vdwg.mxu0
        %2865 = vmatpush.bf16.msra.mxu0 0
        %2866 = vmatpush.bf16.msra.mxu0 0
        %2867 = vmatpush.bf16.msra.mxu0 0
        %2868 = vmatpush.bf16.msra.mxu0 0
        %2869 = vmatpush.bf16.msra.mxu0 %v2779
        %2870 = vmatpush.bf16.msra.mxu0 %v2778
        %2871 = vmatpush.bf16.msra.mxu0 %v2777
        %2872 = vmatpush.bf16.msra.mxu0 %v2776
        %2873 = vmatmul.bf16.gmra.mxu0 %v2793
        %v2874 = vpop.f32.mrf.mxu0
        %v2875 = vadd.f32 %v2826, %v2874
        %v2876 = vpop.f32.mrf.mxu0
        %v2877 = vadd.f32 %v2828, %v2876
        %2878 = vmatmul.bf16.gmra.mxu0 %v2796
        %v2879 = vpop.f32.mrf.mxu0
        %v2880 = vadd.f32 %v2831, %v2879
        %v2881 = vpop.f32.mrf.mxu0
        %v2882 = vadd.f32 %v2833, %v2881
        %2883 = vmatmul.bf16.gmra.mxu0 %v2799
        %v2884 = vpop.f32.mrf.mxu0
        %v2885 = vadd.f32 %v2836, %v2884
        %v2886 = vpop.f32.mrf.mxu0
        %v2887 = vadd.f32 %v2838, %v2886
        %2888 = vmatmul.bf16.gmra.mxu0 %v2802
        %v2889 = vpop.f32.mrf.mxu0
        %v2890 = vadd.f32 %v2841, %v2889
        %v2891 = vpop.f32.mrf.mxu0
        %v2892 = vadd.f32 %v2843, %v2891
        %2893 = vmatmul.bf16.gmra.mxu0 %v2805
        %v2894 = vpop.f32.mrf.mxu0
        %v2895 = vadd.f32 %v2846, %v2894
        %v2896 = vpop.f32.mrf.mxu0
        %v2897 = vadd.f32 %v2848, %v2896
        %2898 = vmatmul.bf16.gmra.mxu0 %v2808
        %v2899 = vpop.f32.mrf.mxu0
        %v2900 = vadd.f32 %v2851, %v2899
        %v2901 = vpop.f32.mrf.mxu0
        %v2902 = vadd.f32 %v2853, %v2901
        %2903 = vmatmul.bf16.gmra.mxu0 %v2811
        %v2904 = vpop.f32.mrf.mxu0
        %v2905 = vadd.f32 %v2856, %v2904
        %v2906 = vpop.f32.mrf.mxu0
        %v2907 = vadd.f32 %v2858, %v2906
        %2908 = vmatmul.bf16.gmra.mxu0 %v2814
        %v2909 = vpop.f32.mrf.mxu0
        %v2910 = vadd.f32 %v2861, %v2909
        %v2911 = vpop.f32.mrf.mxu0
        %v2912 = vadd.f32 %v2863, %v2911
        %2913 = vdwg.mxu0
        %s2914 = scalar_lea.vmem [#allocation4], 24
        %v2915 = vld [vmem:[%s2914] sm:$0xf]
        %v2916 = vld [vmem:[%s2914 + $0x4] sm:$0xf]
        %v2917 = vld [vmem:[%s2914 + $0xc] sm:$0xf]
        %v2918 = vld [vmem:[%s2914 + $0x10] sm:$0xf]
        %v2919 = vld [vmem:[%s2914 + $0x18] sm:$0xf]
        %v2920 = vld [vmem:[%s2914 + $0x1c] sm:$0xf]
        %v2921 = vld [vmem:[%s2914 + $0x24] sm:$0xf]
        %v2922 = vld [vmem:[%s2914 + $0x28] sm:$0xf]
        %v2923 = vld [vmem:[%s2914 + $0x30] sm:$0xf]
        %v2924 = vld [vmem:[%s2914 + $0x34] sm:$0xf]
        %v2925 = vld [vmem:[%s2914 + $0x3c] sm:$0xf]
        %v2926 = vld [vmem:[%s2914 + $0x40] sm:$0xf]
        %v2927 = vld [vmem:[%s2914 + $0x48] sm:$0xf]
        %v2928 = vld [vmem:[%s2914 + $0x4c] sm:$0xf]
        %v2929 = vld [vmem:[%s2914 + $0x54] sm:$0xf]
        %v2930 = vld [vmem:[%s2914 + $0x58] sm:$0xf]
        %v2931 = vld [vmem:[%s2914 + $0x8] sm:$0x1]
        %v2932 = vld [vmem:[%s2914 + $0x14] sm:$0x1]
        %v2933 = vld [vmem:[%s2914 + $0x20] sm:$0x1]
        %v2934 = vld [vmem:[%s2914 + $0x2c] sm:$0x1]
        %v2935 = vld [vmem:[%s2914 + $0x38] sm:$0x1]
        %v2936 = vld [vmem:[%s2914 + $0x44] sm:$0x1]
        %v2937 = vld [vmem:[%s2914 + $0x50] sm:$0x1]
        %v2938 = vld [vmem:[%s2914 + $0x5c] sm:$0x1]
        %v2940 = vshrl.u32 %v2915, 16
        %v2942 = vrot.slane %v2940, 4
        %v2943 = vshll.u32 %v2915, 16
        %v2945 = vrot.slane %v2943, 5
        %v2946 = vor.u32 %v2942, %v2945
        %v2947 = vrot.slane %v2946, 4
        %v2949 = vshll.u32 %v2916, 16
        %v2951 = vrot.slane %v2949, 5
        %v2952 = vsel %vm1631, %v2947, %v2951
        %v2953 = vshrl.u32 %v2916, 16
        %v2955 = vrot.slane %v2953, 4
        %v2956 = vor.u32 %v2955, %v2951
        %v2957 = vrot.slane %v2956, 4
        %v2959 = vshll.u32 %v2931, 16
        %v2961 = vrot.slane %v2959, 5
        %v2962 = vsel %vm1631, %v2957, %v2961
        %v2964 = vshrl.u32 %v2917, 16
        %v2966 = vrot.slane %v2964, 4
        %v2967 = vshll.u32 %v2917, 16
        %v2969 = vrot.slane %v2967, 5
        %v2970 = vor.u32 %v2966, %v2969
        %v2971 = vrot.slane %v2970, 4
        %v2973 = vshll.u32 %v2918, 16
        %v2975 = vrot.slane %v2973, 5
        %v2976 = vsel %vm1631, %v2971, %v2975
        %v2977 = vshrl.u32 %v2918, 16
        %v2979 = vrot.slane %v2977, 4
        %v2980 = vor.u32 %v2979, %v2975
        %v2981 = vrot.slane %v2980, 4
        %v2983 = vshll.u32 %v2932, 16
        %v2985 = vrot.slane %v2983, 5
        %v2986 = vsel %vm1631, %v2981, %v2985
        %v2988 = vshrl.u32 %v2919, 16
        %v2990 = vrot.slane %v2988, 4
        %v2991 = vshll.u32 %v2919, 16
        %v2993 = vrot.slane %v2991, 5
        %v2994 = vor.u32 %v2990, %v2993
        %v2995 = vrot.slane %v2994, 4
        %v2997 = vshll.u32 %v2920, 16
        %v2999 = vrot.slane %v2997, 5
        %v3000 = vsel %vm1631, %v2995, %v2999
        %v3001 = vshrl.u32 %v2920, 16
        %v3003 = vrot.slane %v3001, 4
        %v3004 = vor.u32 %v3003, %v2999
        %v3005 = vrot.slane %v3004, 4
        %v3007 = vshll.u32 %v2933, 16
        %v3009 = vrot.slane %v3007, 5
        %v3010 = vsel %vm1631, %v3005, %v3009
        %v3012 = vshrl.u32 %v2921, 16
        %v3014 = vrot.slane %v3012, 4
        %v3015 = vshll.u32 %v2921, 16
        %v3017 = vrot.slane %v3015, 5
        %v3018 = vor.u32 %v3014, %v3017
        %v3019 = vrot.slane %v3018, 4
        %v3021 = vshll.u32 %v2922, 16
        %v3023 = vrot.slane %v3021, 5
        %v3024 = vsel %vm1631, %v3019, %v3023
        %v3025 = vshrl.u32 %v2922, 16
        %v3027 = vrot.slane %v3025, 4
        %v3028 = vor.u32 %v3027, %v3023
        %v3029 = vrot.slane %v3028, 4
        %v3031 = vshll.u32 %v2934, 16
        %v3033 = vrot.slane %v3031, 5
        %v3034 = vsel %vm1631, %v3029, %v3033
        %v3036 = vshrl.u32 %v2923, 16
        %v3038 = vrot.slane %v3036, 4
        %v3039 = vshll.u32 %v2923, 16
        %v3041 = vrot.slane %v3039, 5
        %v3042 = vor.u32 %v3038, %v3041
        %v3043 = vrot.slane %v3042, 4
        %v3045 = vshll.u32 %v2924, 16
        %v3047 = vrot.slane %v3045, 5
        %v3048 = vsel %vm1631, %v3043, %v3047
        %v3049 = vshrl.u32 %v2924, 16
        %v3051 = vrot.slane %v3049, 4
        %v3052 = vor.u32 %v3051, %v3047
        %v3053 = vrot.slane %v3052, 4
        %v3055 = vshll.u32 %v2935, 16
        %v3057 = vrot.slane %v3055, 5
        %v3058 = vsel %vm1631, %v3053, %v3057
        %v3060 = vshrl.u32 %v2925, 16
        %v3062 = vrot.slane %v3060, 4
        %v3063 = vshll.u32 %v2925, 16
        %v3065 = vrot.slane %v3063, 5
        %v3066 = vor.u32 %v3062, %v3065
        %v3067 = vrot.slane %v3066, 4
        %v3069 = vshll.u32 %v2926, 16
        %v3071 = vrot.slane %v3069, 5
        %v3072 = vsel %vm1631, %v3067, %v3071
        %v3073 = vshrl.u32 %v2926, 16
        %v3075 = vrot.slane %v3073, 4
        %v3076 = vor.u32 %v3075, %v3071
        %v3077 = vrot.slane %v3076, 4
        %v3079 = vshll.u32 %v2936, 16
        %v3081 = vrot.slane %v3079, 5
        %v3082 = vsel %vm1631, %v3077, %v3081
        %v3084 = vshrl.u32 %v2927, 16
        %v3086 = vrot.slane %v3084, 4
        %v3087 = vshll.u32 %v2927, 16
        %v3089 = vrot.slane %v3087, 5
        %v3090 = vor.u32 %v3086, %v3089
        %v3091 = vrot.slane %v3090, 4
        %v3093 = vshll.u32 %v2928, 16
        %v3095 = vrot.slane %v3093, 5
        %v3096 = vsel %vm1631, %v3091, %v3095
        %v3097 = vshrl.u32 %v2928, 16
        %v3099 = vrot.slane %v3097, 4
        %v3100 = vor.u32 %v3099, %v3095
        %v3101 = vrot.slane %v3100, 4
        %v3103 = vshll.u32 %v2937, 16
        %v3105 = vrot.slane %v3103, 5
        %v3106 = vsel %vm1631, %v3101, %v3105
        %v3108 = vshrl.u32 %v2929, 16
        %v3110 = vrot.slane %v3108, 4
        %v3111 = vshll.u32 %v2929, 16
        %v3113 = vrot.slane %v3111, 5
        %v3114 = vor.u32 %v3110, %v3113
        %v3115 = vrot.slane %v3114, 4
        %v3117 = vshll.u32 %v2930, 16
        %v3119 = vrot.slane %v3117, 5
        %v3120 = vsel %vm1631, %v3115, %v3119
        %v3121 = vshrl.u32 %v2930, 16
        %v3123 = vrot.slane %v3121, 4
        %v3124 = vor.u32 %v3123, %v3119
        %v3125 = vrot.slane %v3124, 4
        %v3127 = vshll.u32 %v2938, 16
        %v3129 = vrot.slane %v3127, 5
        %v3130 = vsel %vm1631, %v3125, %v3129
        %v3131 = vld [vmem:[%s2914] sm:$0xe]
        %v3132 = vld [vmem:[%s2914 + $0xc] sm:$0xe]
        %v3133 = vld [vmem:[%s2914 + $0x18] sm:$0xe]
        %v3134 = vld [vmem:[%s2914 + $0x24] sm:$0xe]
        %v3135 = vld [vmem:[%s2914 + $0x30] sm:$0xe]
        %v3136 = vld [vmem:[%s2914 + $0x3c] sm:$0xe]
        %v3137 = vld [vmem:[%s2914 + $0x48] sm:$0xe]
        %v3138 = vld [vmem:[%s2914 + $0x54] sm:$0xe]
        %v3163 = vrot.slane %v3131, 5
        %v3164 = vrot.slane %v3163, 4
        %v3165 = vrot.slane %v2916, 5
        %v3166 = vsel %vm1858, %v3164, %v3165
        %v3167 = vrot.slane %v3165, 4
        %v3168 = vrot.slane %v2931, 5
        %v3169 = vsel %vm1858, %v3167, %v3168
        %v3170 = vrot.slane %v3132, 5
        %v3171 = vrot.slane %v3170, 4
        %v3172 = vrot.slane %v2918, 5
        %v3173 = vsel %vm1858, %v3171, %v3172
        %v3174 = vrot.slane %v3172, 4
        %v3175 = vrot.slane %v2932, 5
        %v3176 = vsel %vm1858, %v3174, %v3175
        %v3177 = vrot.slane %v3133, 5
        %v3178 = vrot.slane %v3177, 4
        %v3179 = vrot.slane %v2920, 5
        %v3180 = vsel %vm1858, %v3178, %v3179
        %v3181 = vrot.slane %v3179, 4
        %v3182 = vrot.slane %v2933, 5
        %v3183 = vsel %vm1858, %v3181, %v3182
        %v3184 = vrot.slane %v3134, 5
        %v3185 = vrot.slane %v3184, 4
        %v3186 = vrot.slane %v2922, 5
        %v3187 = vsel %vm1858, %v3185, %v3186
        %v3188 = vrot.slane %v3186, 4
        %v3189 = vrot.slane %v2934, 5
        %v3190 = vsel %vm1858, %v3188, %v3189
        %v3191 = vrot.slane %v3135, 5
        %v3192 = vrot.slane %v3191, 4
        %v3193 = vrot.slane %v2924, 5
        %v3194 = vsel %vm1858, %v3192, %v3193
        %v3195 = vrot.slane %v3193, 4
        %v3196 = vrot.slane %v2935, 5
        %v3197 = vsel %vm1858, %v3195, %v3196
        %v3198 = vrot.slane %v3136, 5
        %v3199 = vrot.slane %v3198, 4
        %v3200 = vrot.slane %v2926, 5
        %v3201 = vsel %vm1858, %v3199, %v3200
        %v3202 = vrot.slane %v3200, 4
        %v3203 = vrot.slane %v2936, 5
        %v3204 = vsel %vm1858, %v3202, %v3203
        %v3205 = vrot.slane %v3137, 5
        %v3206 = vrot.slane %v3205, 4
        %v3207 = vrot.slane %v2928, 5
        %v3208 = vsel %vm1858, %v3206, %v3207
        %v3209 = vrot.slane %v3207, 4
        %v3210 = vrot.slane %v2937, 5
        %v3211 = vsel %vm1858, %v3209, %v3210
        %v3212 = vrot.slane %v3138, 5
        %v3213 = vrot.slane %v3212, 4
        %v3214 = vrot.slane %v2930, 5
        %v3215 = vsel %vm1858, %v3213, %v3214
        %v3216 = vrot.slane %v3214, 4
        %v3217 = vrot.slane %v2938, 5
        %v3218 = vsel %vm1858, %v3216, %v3217
        %v3227 = vunpack.c.l.b16 %v2915
        %v3228 = vunpack.c.l.b16 %v2916
        %v3229 = vunpack.c.l.b16 %v2917
        %v3230 = vunpack.c.l.b16 %v2918
        %v3231 = vunpack.c.l.b16 %v2919
        %v3232 = vunpack.c.l.b16 %v2920
        %v3233 = vunpack.c.l.b16 %v2921
        %v3234 = vunpack.c.l.b16 %v2922
        %v3235 = vunpack.c.l.b16 %v2923
        %v3236 = vunpack.c.l.b16 %v2924
        %v3237 = vunpack.c.l.b16 %v2925
        %v3238 = vunpack.c.l.b16 %v2926
        %v3239 = vunpack.c.l.b16 %v2927
        %v3240 = vunpack.c.l.b16 %v2928
        %v3241 = vunpack.c.l.b16 %v2929
        %v3242 = vunpack.c.l.b16 %v2930
        %v3243 = vpack.c.b16 %v3228, %v3227
        %v3244 = vpack.c.b16 %v3230, %v3229
        %v3245 = vpack.c.b16 %v3232, %v3231
        %v3246 = vpack.c.b16 %v3234, %v3233
        %v3247 = vpack.c.b16 %v3236, %v3235
        %v3248 = vpack.c.b16 %v3238, %v3237
        %v3249 = vpack.c.b16 %v3240, %v3239
        %v3250 = vpack.c.b16 %v3242, %v3241
        %v3251 = vunpack.c.l.b16 %v2952
        %v3252 = vunpack.c.l.b16 %v2962
        %v3253 = vunpack.c.l.b16 %v2976
        %v3254 = vunpack.c.l.b16 %v2986
        %v3255 = vunpack.c.l.b16 %v3000
        %v3256 = vunpack.c.l.b16 %v3010
        %v3257 = vunpack.c.l.b16 %v3024
        %v3258 = vunpack.c.l.b16 %v3034
        %v3259 = vunpack.c.l.b16 %v3048
        %v3260 = vunpack.c.l.b16 %v3058
        %v3261 = vunpack.c.l.b16 %v3072
        %v3262 = vunpack.c.l.b16 %v3082
        %v3263 = vunpack.c.l.b16 %v3096
        %v3264 = vunpack.c.l.b16 %v3106
        %v3265 = vunpack.c.l.b16 %v3120
        %v3266 = vunpack.c.l.b16 %v3130
        %v3267 = vpack.c.b16 %v3252, %v3251
        %v3268 = vpack.c.b16 %v3254, %v3253
        %v3269 = vpack.c.b16 %v3256, %v3255
        %v3270 = vpack.c.b16 %v3258, %v3257
        %v3271 = vpack.c.b16 %v3260, %v3259
        %v3272 = vpack.c.b16 %v3262, %v3261
        %v3273 = vpack.c.b16 %v3264, %v3263
        %v3274 = vpack.c.b16 %v3266, %v3265
        %3275 = vrot.lane.b32.xlu0 %v3267, 64
        %v3276 = vpop.permute.xlu0 %3275
        %3277 = vrot.lane.b32.xlu0 %v3268, 64
        %v3278 = vpop.permute.xlu0 %3277
        %3279 = vrot.lane.b32.xlu0 %v3269, 64
        %v3280 = vpop.permute.xlu0 %3279
        %3281 = vrot.lane.b32.xlu0 %v3270, 64
        %v3282 = vpop.permute.xlu0 %3281
        %3283 = vrot.lane.b32.xlu0 %v3271, 64
        %v3284 = vpop.permute.xlu0 %3283
        %3285 = vrot.lane.b32.xlu0 %v3272, 64
        %v3286 = vpop.permute.xlu0 %3285
        %3287 = vrot.lane.b32.xlu0 %v3273, 64
        %v3288 = vpop.permute.xlu0 %3287
        %3289 = vrot.lane.b32.xlu0 %v3274, 64
        %v3290 = vpop.permute.xlu0 %3289
        %v3291 = vunpack.c.l.b16 %v3166
        %v3292 = vunpack.c.l.b16 %v3169
        %v3293 = vunpack.c.l.b16 %v3173
        %v3294 = vunpack.c.l.b16 %v3176
        %v3295 = vunpack.c.l.b16 %v3180
        %v3296 = vunpack.c.l.b16 %v3183
        %v3297 = vunpack.c.l.b16 %v3187
        %v3298 = vunpack.c.l.b16 %v3190
        %v3299 = vunpack.c.l.b16 %v3194
        %v3300 = vunpack.c.l.b16 %v3197
        %v3301 = vunpack.c.l.b16 %v3201
        %v3302 = vunpack.c.l.b16 %v3204
        %v3303 = vunpack.c.l.b16 %v3208
        %v3304 = vunpack.c.l.b16 %v3211
        %v3305 = vunpack.c.l.b16 %v3215
        %v3306 = vunpack.c.l.b16 %v3218
        %v3307 = vpack.c.b16 %v3292, %v3291
        %v3308 = vpack.c.b16 %v3294, %v3293
        %v3309 = vpack.c.b16 %v3296, %v3295
        %v3310 = vpack.c.b16 %v3298, %v3297
        %v3311 = vpack.c.b16 %v3300, %v3299
        %v3312 = vpack.c.b16 %v3302, %v3301
        %v3313 = vpack.c.b16 %v3304, %v3303
        %v3314 = vpack.c.b16 %v3306, %v3305
        %v3317 = vsel %vm2011, %v3243, %v3276
        %v3321 = vsel %vm2011, %v3244, %v3278
        %v3325 = vsel %vm2011, %v3245, %v3280
        %v3329 = vsel %vm2011, %v3246, %v3282
        %v3333 = vsel %vm2011, %v3247, %v3284
        %v3337 = vsel %vm2011, %v3248, %v3286
        %v3341 = vsel %vm2011, %v3249, %v3288
        %v3345 = vsel %vm2011, %v3250, %v3290
        %s3347 = scalar_lea.vmem %s4, 192
        %v3348 = vld [vmem:[%s3347] sm:$0xf]
        %v3349 = vld [vmem:[%s3347 + $0x4] sm:$0xf]
        %v3350 = vld [vmem:[%s3347 + $0x8] sm:$0xf]
        %v3351 = vld [vmem:[%s3347 + $0xc] sm:$0xf]
        %v3352 = vld [vmem:[%s3347 + $0x10] sm:$0xf]
        %v3353 = vld [vmem:[%s3347 + $0x14] sm:$0xf]
        %v3354 = vld [vmem:[%s3347 + $0x18] sm:$0xf]
        %v3355 = vld [vmem:[%s3347 + $0x1c] sm:$0xf]
        %v3356 = vld [vmem:[%s3347 + $0x20] sm:$0xf]
        %v3357 = vld [vmem:[%s3347 + $0x24] sm:$0xf]
        %v3358 = vld [vmem:[%s3347 + $0x28] sm:$0xf]
        %v3359 = vld [vmem:[%s3347 + $0x2c] sm:$0xf]
        %v3360 = vld [vmem:[%s3347 + $0x30] sm:$0xf]
        %v3361 = vld [vmem:[%s3347 + $0x34] sm:$0xf]
        %v3362 = vld [vmem:[%s3347 + $0x38] sm:$0xf]
        %v3363 = vld [vmem:[%s3347 + $0x3c] sm:$0xf]
        %v3364 = vld [vmem:[%s3347 + $0x40] sm:$0xf]
        %v3365 = vld [vmem:[%s3347 + $0x44] sm:$0xf]
        %v3366 = vld [vmem:[%s3347 + $0x48] sm:$0xf]
        %v3367 = vld [vmem:[%s3347 + $0x4c] sm:$0xf]
        %v3368 = vld [vmem:[%s3347 + $0x50] sm:$0xf]
        %v3369 = vld [vmem:[%s3347 + $0x54] sm:$0xf]
        %v3370 = vld [vmem:[%s3347 + $0x58] sm:$0xf]
        %v3371 = vld [vmem:[%s3347 + $0x5c] sm:$0xf]
        %v3396 = vunpack.c.l.b16 %v3348
        %v3397 = vunpack.c.l.b16 %v3349
        %v3398 = vunpack.c.l.b16 %v3350
        %v3399 = vunpack.c.l.b16 %v3351
        %v3400 = vunpack.c.l.b16 %v3352
        %v3401 = vunpack.c.l.b16 %v3353
        %v3402 = vunpack.c.l.b16 %v3354
        %v3403 = vunpack.c.l.b16 %v3355
        %v3404 = vunpack.c.l.b16 %v3356
        %v3405 = vunpack.c.l.b16 %v3357
        %v3406 = vunpack.c.l.b16 %v3358
        %v3407 = vunpack.c.l.b16 %v3359
        %v3408 = vunpack.c.l.b16 %v3360
        %v3409 = vunpack.c.l.b16 %v3361
        %v3410 = vunpack.c.l.b16 %v3362
        %v3411 = vunpack.c.l.b16 %v3363
        %v3412 = vunpack.c.l.b16 %v3364
        %v3413 = vunpack.c.l.b16 %v3365
        %v3414 = vunpack.c.l.b16 %v3366
        %v3415 = vunpack.c.l.b16 %v3367
        %v3416 = vunpack.c.l.b16 %v3368
        %v3417 = vunpack.c.l.b16 %v3369
        %v3418 = vunpack.c.l.b16 %v3370
        %v3419 = vunpack.c.l.b16 %v3371
        %v3420 = vpack.c.b16 %v3397, %v3396
        %v3421 = vpack.c.b16 %v3399, %v3398
        %v3422 = vpack.c.b16 %v3401, %v3400
        %v3423 = vpack.c.b16 %v3403, %v3402
        %v3424 = vpack.c.b16 %v3405, %v3404
        %v3425 = vpack.c.b16 %v3407, %v3406
        %v3426 = vpack.c.b16 %v3409, %v3408
        %v3427 = vpack.c.b16 %v3411, %v3410
        %v3428 = vpack.c.b16 %v3413, %v3412
        %v3429 = vpack.c.b16 %v3415, %v3414
        %v3430 = vpack.c.b16 %v3417, %v3416
        %v3431 = vpack.c.b16 %v3419, %v3418
        %v3445 = vsel %vm2011, %v3307, 0
        %v3448 = vsel %vm2011, %v3308, 0
        %v3451 = vsel %vm2011, %v3309, 0
        %v3454 = vsel %vm2011, %v3310, 0
        %v3457 = vsel %vm2011, %v3311, 0
        %v3460 = vsel %vm2011, %v3312, 0
        %v3463 = vsel %vm2011, %v3313, 0
        %v3466 = vsel %vm2011, %v3314, 0
        %3468 = vmatpush.bf16.msra.mxu0 %v3427
        %3469 = vmatpush.bf16.msra.mxu0 %v3426
        %3470 = vmatpush.bf16.msra.mxu0 %v3425
        %3471 = vmatpush.bf16.msra.mxu0 %v3424
        %3472 = vmatpush.bf16.msra.mxu0 %v3423
        %3473 = vmatpush.bf16.msra.mxu0 %v3422
        %3474 = vmatpush.bf16.msra.mxu0 %v3421
        %3475 = vmatpush.bf16.msra.mxu0 %v3420
        %3476 = vmatmul.bf16.gmra.mxu0 %v3317
        %v3477 = vpop.f32.mrf.mxu0
        %v3478 = vadd.f32 0.0, %v3477
        %v3479 = vpop.f32.mrf.mxu0
        %v3480 = vadd.f32 0.0, %v3479
        %3481 = vmatmul.bf16.gmra.mxu0 %v3321
        %v3482 = vpop.f32.mrf.mxu0
        %v3483 = vadd.f32 0.0, %v3482
        %v3484 = vpop.f32.mrf.mxu0
        %v3485 = vadd.f32 0.0, %v3484
        %3486 = vmatmul.bf16.gmra.mxu0 %v3325
        %v3487 = vpop.f32.mrf.mxu0
        %v3488 = vadd.f32 0.0, %v3487
        %v3489 = vpop.f32.mrf.mxu0
        %v3490 = vadd.f32 0.0, %v3489
        %3491 = vmatmul.bf16.gmra.mxu0 %v3329
        %v3492 = vpop.f32.mrf.mxu0
        %v3493 = vadd.f32 0.0, %v3492
        %v3494 = vpop.f32.mrf.mxu0
        %v3495 = vadd.f32 0.0, %v3494
        %3496 = vmatmul.bf16.gmra.mxu0 %v3333
        %v3497 = vpop.f32.mrf.mxu0
        %v3498 = vadd.f32 0.0, %v3497
        %v3499 = vpop.f32.mrf.mxu0
        %v3500 = vadd.f32 0.0, %v3499
        %3501 = vmatmul.bf16.gmra.mxu0 %v3337
        %v3502 = vpop.f32.mrf.mxu0
        %v3503 = vadd.f32 0.0, %v3502
        %v3504 = vpop.f32.mrf.mxu0
        %v3505 = vadd.f32 0.0, %v3504
        %3506 = vmatmul.bf16.gmra.mxu0 %v3341
        %v3507 = vpop.f32.mrf.mxu0
        %v3508 = vadd.f32 0.0, %v3507
        %v3509 = vpop.f32.mrf.mxu0
        %v3510 = vadd.f32 0.0, %v3509
        %3511 = vmatmul.bf16.gmra.mxu0 %v3345
        %v3512 = vpop.f32.mrf.mxu0
        %v3513 = vadd.f32 0.0, %v3512
        %v3514 = vpop.f32.mrf.mxu0
        %v3515 = vadd.f32 0.0, %v3514
        %3516 = vdwg.mxu0
        %3517 = vmatpush.bf16.msra.mxu0 0
        %3518 = vmatpush.bf16.msra.mxu0 0
        %3519 = vmatpush.bf16.msra.mxu0 0
        %3520 = vmatpush.bf16.msra.mxu0 0
        %3521 = vmatpush.bf16.msra.mxu0 %v3431
        %3522 = vmatpush.bf16.msra.mxu0 %v3430
        %3523 = vmatpush.bf16.msra.mxu0 %v3429
        %3524 = vmatpush.bf16.msra.mxu0 %v3428
        %3525 = vmatmul.bf16.gmra.mxu0 %v3445
        %v3526 = vpop.f32.mrf.mxu0
        %v3527 = vadd.f32 %v3478, %v3526
        %v3528 = vpop.f32.mrf.mxu0
        %v3529 = vadd.f32 %v3480, %v3528
        %3530 = vmatmul.bf16.gmra.mxu0 %v3448
        %v3531 = vpop.f32.mrf.mxu0
        %v3532 = vadd.f32 %v3483, %v3531
        %v3533 = vpop.f32.mrf.mxu0
        %v3534 = vadd.f32 %v3485, %v3533
        %3535 = vmatmul.bf16.gmra.mxu0 %v3451
        %v3536 = vpop.f32.mrf.mxu0
        %v3537 = vadd.f32 %v3488, %v3536
        %v3538 = vpop.f32.mrf.mxu0
        %v3539 = vadd.f32 %v3490, %v3538
        %3540 = vmatmul.bf16.gmra.mxu0 %v3454
        %v3541 = vpop.f32.mrf.mxu0
        %v3542 = vadd.f32 %v3493, %v3541
        %v3543 = vpop.f32.mrf.mxu0
        %v3544 = vadd.f32 %v3495, %v3543
        %3545 = vmatmul.bf16.gmra.mxu0 %v3457
        %v3546 = vpop.f32.mrf.mxu0
        %v3547 = vadd.f32 %v3498, %v3546
        %v3548 = vpop.f32.mrf.mxu0
        %v3549 = vadd.f32 %v3500, %v3548
        %3550 = vmatmul.bf16.gmra.mxu0 %v3460
        %v3551 = vpop.f32.mrf.mxu0
        %v3552 = vadd.f32 %v3503, %v3551
        %v3553 = vpop.f32.mrf.mxu0
        %v3554 = vadd.f32 %v3505, %v3553
        %3555 = vmatmul.bf16.gmra.mxu0 %v3463
        %v3556 = vpop.f32.mrf.mxu0
        %v3557 = vadd.f32 %v3508, %v3556
        %v3558 = vpop.f32.mrf.mxu0
        %v3559 = vadd.f32 %v3510, %v3558
        %3560 = vmatmul.bf16.gmra.mxu0 %v3466
        %v3561 = vpop.f32.mrf.mxu0
        %v3562 = vadd.f32 %v3513, %v3561
        %v3563 = vpop.f32.mrf.mxu0
        %v3564 = vadd.f32 %v3515, %v3563
        %3565 = vdwg.mxu0
        %v3566 = vadd.f32 %v2875, %v3527
        %v3567 = vadd.f32 %v2877, %v3529
        %v3568 = vadd.f32 %v2880, %v3532
        %v3569 = vadd.f32 %v2882, %v3534
        %v3570 = vadd.f32 %v2885, %v3537
        %v3571 = vadd.f32 %v2887, %v3539
        %v3572 = vadd.f32 %v2890, %v3542
        %v3573 = vadd.f32 %v2892, %v3544
        %v3574 = vadd.f32 %v2895, %v3547
        %v3575 = vadd.f32 %v2897, %v3549
        %v3576 = vadd.f32 %v2900, %v3552
        %v3577 = vadd.f32 %v2902, %v3554
        %v3578 = vadd.f32 %v2905, %v3557
        %v3579 = vadd.f32 %v2907, %v3559
        %v3580 = vadd.f32 %v2910, %v3562
        %v3581 = vadd.f32 %v2912, %v3564
        %v3582 = vld [vmem:[%s5] sm:$0x1]
        %v3584 = vperm.slane %v3582, 0
        %v3586 = vmul.f32 %v3566, %v3584
        %v3587 = vmul.f32 %v3567, %v3584
        %v3588 = vmul.f32 %v3568, %v3584
        %v3589 = vmul.f32 %v3569, %v3584
        %v3590 = vmul.f32 %v3570, %v3584
        %v3591 = vmul.f32 %v3571, %v3584
        %v3592 = vmul.f32 %v3572, %v3584
        %v3593 = vmul.f32 %v3573, %v3584
        %v3594 = vmul.f32 %v3574, %v3584
        %v3595 = vmul.f32 %v3575, %v3584
        %v3596 = vmul.f32 %v3576, %v3584
        %v3597 = vmul.f32 %v3577, %v3584
        %v3598 = vmul.f32 %v3578, %v3584
        %v3599 = vmul.f32 %v3579, %v3584
        %v3600 = vmul.f32 %v3580, %v3584
        %v3601 = vmul.f32 %v3581, %v3584
        %v3602 = vld [vmem:[%s6] sm:$0x1]
        %v3604 = vperm.slane %v3602, 0
        %v3606 = vadd.f32 %v3586, %v3604
        %v3607 = vadd.f32 %v3587, %v3604
        %v3608 = vadd.f32 %v3588, %v3604
        %v3609 = vadd.f32 %v3589, %v3604
        %v3610 = vadd.f32 %v3590, %v3604
        %v3611 = vadd.f32 %v3591, %v3604
        %v3612 = vadd.f32 %v3592, %v3604
        %v3613 = vadd.f32 %v3593, %v3604
        %v3614 = vadd.f32 %v3594, %v3604
        %v3615 = vadd.f32 %v3595, %v3604
        %v3616 = vadd.f32 %v3596, %v3604
        %v3617 = vadd.f32 %v3597, %v3604
        %v3618 = vadd.f32 %v3598, %v3604
        %v3619 = vadd.f32 %v3599, %v3604
        %v3620 = vadd.f32 %v3600, %v3604
        %v3621 = vadd.f32 %v3601, %v3604
        %v3622 = vmax.f32 %v3606, 0.0
        %v3623 = vmax.f32 %v3607, 0.0
        %v3624 = vmax.f32 %v3608, 0.0
        %v3625 = vmax.f32 %v3609, 0.0
        %v3626 = vmax.f32 %v3610, 0.0
        %v3627 = vmax.f32 %v3611, 0.0
        %v3628 = vmax.f32 %v3612, 0.0
        %v3629 = vmax.f32 %v3613, 0.0
        %v3630 = vmax.f32 %v3614, 0.0
        %v3631 = vmax.f32 %v3615, 0.0
        %v3632 = vmax.f32 %v3616, 0.0
        %v3633 = vmax.f32 %v3617, 0.0
        %v3634 = vmax.f32 %v3618, 0.0
        %v3635 = vmax.f32 %v3619, 0.0
        %v3636 = vmax.f32 %v3620, 0.0
        %v3637 = vmax.f32 %v3621, 0.0
        %v3638 = vpack.c.bf16 %v3622, %v3622
        %v3639 = vpack.c.bf16 %v3623, %v3623
        %v3640 = vpack.c.bf16 %v3624, %v3624
        %v3641 = vpack.c.bf16 %v3625, %v3625
        %v3642 = vpack.c.bf16 %v3626, %v3626
        %v3643 = vpack.c.bf16 %v3627, %v3627
        %v3644 = vpack.c.bf16 %v3628, %v3628
        %v3645 = vpack.c.bf16 %v3629, %v3629
        %v3646 = vpack.c.bf16 %v3630, %v3630
        %v3647 = vpack.c.bf16 %v3631, %v3631
        %v3648 = vpack.c.bf16 %v3632, %v3632
        %v3649 = vpack.c.bf16 %v3633, %v3633
        %v3650 = vpack.c.bf16 %v3634, %v3634
        %v3651 = vpack.c.bf16 %v3635, %v3635
        %v3652 = vpack.c.bf16 %v3636, %v3636
        %v3653 = vpack.c.bf16 %v3637, %v3637
        %vm3654 = vcmask 781312
        %3655 = vst.msk [vmem:[%s528] sm:$0xf] %vm3654, %v3638
        %3656 = vst.msk [vmem:[%s528 + $0x8] sm:$0xf] %vm3654, %v3639
        %3657 = vst.msk [vmem:[%s528 + $0x10] sm:$0xf] %vm3654, %v3640
        %3658 = vst.msk [vmem:[%s528 + $0x18] sm:$0xf] %vm3654, %v3641
        %3659 = vst.msk [vmem:[%s528 + $0x20] sm:$0xf] %vm3654, %v3642
        %3660 = vst.msk [vmem:[%s528 + $0x28] sm:$0xf] %vm3654, %v3643
        %3661 = vst.msk [vmem:[%s528 + $0x30] sm:$0xf] %vm3654, %v3644
        %3662 = vst.msk [vmem:[%s528 + $0x38] sm:$0xf] %vm3654, %v3645
        %3663 = vst.msk [vmem:[%s528 + $0x40] sm:$0xf] %vm3654, %v3646
        %3664 = vst.msk [vmem:[%s528 + $0x48] sm:$0xf] %vm3654, %v3647
        %3665 = vst.msk [vmem:[%s528 + $0x50] sm:$0xf] %vm3654, %v3648
        %3666 = vst.msk [vmem:[%s528 + $0x58] sm:$0xf] %vm3654, %v3649
        %3667 = vst.msk [vmem:[%s528 + $0x60] sm:$0xf] %vm3654, %v3650
        %3668 = vst.msk [vmem:[%s528 + $0x68] sm:$0xf] %vm3654, %v3651
        %3669 = vst.msk [vmem:[%s528 + $0x70] sm:$0xf] %vm3654, %v3652
        %3670 = vst.msk [vmem:[%s528 + $0x78] sm:$0xf] %vm3654, %v3653
        %v3671 = vld [vmem:[#allocation3] sm:$0xf]
        %v3672 = vld [vmem:[#allocation3 + $0x4] sm:$0xf]
        %v3673 = vld [vmem:[#allocation3 + $0x8] sm:$0xf]
        %v3674 = vld [vmem:[#allocation3 + $0xc] sm:$0xf]
        %v3675 = vld [vmem:[#allocation3 + $0x10] sm:$0xf]
        %v3676 = vld [vmem:[#allocation3 + $0x14] sm:$0xf]
        %v3677 = vld [vmem:[#allocation3 + $0x18] sm:$0xf]
        %v3678 = vld [vmem:[#allocation3 + $0x1c] sm:$0xf]
        %v3679 = vld [vmem:[#allocation3 + $0x20] sm:$0xf]
        %v3680 = vld [vmem:[#allocation3 + $0x24] sm:$0xf]
        %v3681 = vld [vmem:[#allocation3 + $0x28] sm:$0xf]
        %v3682 = vld [vmem:[#allocation3 + $0x2c] sm:$0xf]
        %v3683 = vld [vmem:[#allocation3 + $0x30] sm:$0xf]
        %v3684 = vld [vmem:[#allocation3 + $0x34] sm:$0xf]
        %v3685 = vld [vmem:[#allocation3 + $0x38] sm:$0xf]
        %v3686 = vld [vmem:[#allocation3 + $0x3c] sm:$0xf]
        %v3687 = vld [vmem:[#allocation3 + $0x40] sm:$0xf]
        %v3688 = vld [vmem:[#allocation3 + $0x44] sm:$0xf]
        %v3689 = vld [vmem:[#allocation3 + $0x48] sm:$0xf]
        %v3690 = vld [vmem:[#allocation3 + $0x4c] sm:$0xf]
        %v3691 = vld [vmem:[#allocation3 + $0x50] sm:$0xf]
        %v3692 = vld [vmem:[#allocation3 + $0x54] sm:$0xf]
        %v3693 = vld [vmem:[#allocation3 + $0x58] sm:$0xf]
        %v3694 = vld [vmem:[#allocation3 + $0x5c] sm:$0xf]
        %v3695 = vld [vmem:[#allocation3 + $0x60] sm:$0xf]
        %v3696 = vld [vmem:[#allocation3 + $0x64] sm:$0xf]
        %v3697 = vld [vmem:[#allocation3 + $0x68] sm:$0xf]
        %v3698 = vld [vmem:[#allocation3 + $0x6c] sm:$0xf]
        %v3699 = vld [vmem:[%s7] sm:$0xf]
        %v3700 = vld [vmem:[%s7 + $0x4] sm:$0xf]
        %v3701 = vld [vmem:[%s7 + $0x8] sm:$0xf]
        %v3702 = vld [vmem:[%s7 + $0xc] sm:$0xf]
        %v3703 = vld [vmem:[%s7 + $0x10] sm:$0xf]
        %v3704 = vld [vmem:[%s7 + $0x14] sm:$0xf]
        %v3705 = vld [vmem:[%s7 + $0x18] sm:$0xf]
        %v3706 = vld [vmem:[%s7 + $0x1c] sm:$0xf]
        %s3707 = scalar_lea.vmem %s7, 32
        %v3708 = vld [vmem:[%s3707] sm:$0xf]
        %v3709 = vld [vmem:[%s3707 + $0x4] sm:$0xf]
        %v3710 = vld [vmem:[%s3707 + $0x8] sm:$0xf]
        %v3711 = vld [vmem:[%s3707 + $0xc] sm:$0xf]
        %v3712 = vld [vmem:[%s3707 + $0x10] sm:$0xf]
        %v3713 = vld [vmem:[%s3707 + $0x14] sm:$0xf]
        %v3714 = vld [vmem:[%s3707 + $0x18] sm:$0xf]
        %v3715 = vld [vmem:[%s3707 + $0x1c] sm:$0xf]
        %v3736 = vunpack.c.l.b16 %v3673
        %v3737 = vunpack.c.l.b16 %v3674
        %v3738 = vunpack.c.l.b16 %v3675
        %v3739 = vunpack.c.l.b16 %v3676
        %v3740 = vunpack.c.l.b16 %v3677
        %v3741 = vunpack.c.l.b16 %v3678
        %v3742 = vunpack.c.l.b16 %v3679
        %v3743 = vunpack.c.l.b16 %v3680
        %v3744 = vunpack.c.l.b16 %v3681
        %v3745 = vunpack.c.l.b16 %v3682
        %v3746 = vunpack.c.l.b16 %v3683
        %v3747 = vunpack.c.l.b16 %v3684
        %v3748 = vunpack.c.l.b16 %v3685
        %v3749 = vunpack.c.l.b16 %v3686
        %v3750 = vunpack.c.l.b16 %v3687
        %v3751 = vunpack.c.l.b16 %v3688
        %v3752 = vunpack.c.l.b16 %v3689
        %v3753 = vunpack.c.l.b16 %v3690
        %v3754 = vunpack.c.l.b16 %v3691
        %v3755 = vunpack.c.l.b16 %v3692
        %v3756 = vpack.c.b16 %v3737, %v3736
        %v3757 = vpack.c.b16 %v3739, %v3738
        %v3758 = vpack.c.b16 %v3741, %v3740
        %v3759 = vpack.c.b16 %v3743, %v3742
        %v3760 = vpack.c.b16 %v3745, %v3744
        %v3761 = vpack.c.b16 %v3747, %v3746
        %v3762 = vpack.c.b16 %v3749, %v3748
        %v3763 = vpack.c.b16 %v3751, %v3750
        %v3764 = vpack.c.b16 %v3753, %v3752
        %v3765 = vpack.c.b16 %v3755, %v3754
        %3766 = vrot.lane.b32.xlu0 %v3756, 64
        %v3767 = vpop.permute.xlu0 %3766
        %3768 = vrot.lane.b32.xlu0 %v3757, 64
        %v3769 = vpop.permute.xlu0 %3768
        %3770 = vrot.lane.b32.xlu0 %v3758, 64
        %v3771 = vpop.permute.xlu0 %3770
        %3772 = vrot.lane.b32.xlu0 %v3759, 64
        %v3773 = vpop.permute.xlu0 %3772
        %3774 = vrot.lane.b32.xlu0 %v3760, 64
        %v3775 = vpop.permute.xlu0 %3774
        %3776 = vrot.lane.b32.xlu0 %v3761, 64
        %v3777 = vpop.permute.xlu0 %3776
        %3778 = vrot.lane.b32.xlu0 %v3762, 64
        %v3779 = vpop.permute.xlu0 %3778
        %3780 = vrot.lane.b32.xlu0 %v3763, 64
        %v3781 = vpop.permute.xlu0 %3780
        %3782 = vrot.lane.b32.xlu0 %v3764, 64
        %v3783 = vpop.permute.xlu0 %3782
        %3784 = vrot.lane.b32.xlu0 %v3765, 64
        %v3785 = vpop.permute.xlu0 %3784
        %v3794 = vunpack.c.l.b16 %v3708
        %v3795 = vunpack.c.l.b16 %v3709
        %v3796 = vunpack.c.l.b16 %v3710
        %v3797 = vunpack.c.l.b16 %v3711
        %v3798 = vunpack.c.l.b16 %v3712
        %v3799 = vunpack.c.l.b16 %v3713
        %v3800 = vunpack.c.l.b16 %v3714
        %v3801 = vunpack.c.l.b16 %v3715
        %v3802 = vpack.c.b16 %v3795, %v3794
        %v3803 = vpack.c.b16 %v3797, %v3796
        %v3804 = vpack.c.b16 %v3799, %v3798
        %v3805 = vpack.c.b16 %v3801, %v3800
        %v3811 = vsel %vm2011, %v3767, 0
        %v3814 = vsel %vm2011, %v3769, 0
        %v3817 = vsel %vm2011, %v3771, 0
        %v3820 = vsel %vm2011, %v3773, 0
        %v3823 = vsel %vm2011, %v3775, 0
        %v3826 = vsel %vm2011, %v3777, 0
        %v3829 = vsel %vm2011, %v3779, 0
        %v3832 = vsel %vm2011, %v3781, 0
        %v3835 = vsel %vm2011, %v3783, 0
        %v3838 = vsel %vm2011, %v3785, 0
        %3840 = vmatpush.bf16.msra.mxu0 0
        %3841 = vmatpush.bf16.msra.mxu0 0
        %3842 = vmatpush.bf16.msra.mxu0 0
        %3843 = vmatpush.bf16.msra.mxu0 0
        %3844 = vmatpush.bf16.msra.mxu0 %v3805
        %3845 = vmatpush.bf16.msra.mxu0 %v3804
        %3846 = vmatpush.bf16.msra.mxu0 %v3803
        %3847 = vmatpush.bf16.msra.mxu0 %v3802
        %3848 = vmatmul.bf16.gmra.mxu0 %v3811
        %v3849 = vpop.f32.mrf.mxu0
        %v3850 = vadd.f32 0.0, %v3849
        %v3851 = vpop.f32.mrf.mxu0
        %v3852 = vadd.f32 0.0, %v3851
        %3853 = vmatmul.bf16.gmra.mxu0 %v3814
        %v3854 = vpop.f32.mrf.mxu0
        %v3855 = vadd.f32 0.0, %v3854
        %v3856 = vpop.f32.mrf.mxu0
        %v3857 = vadd.f32 0.0, %v3856
        %3858 = vmatmul.bf16.gmra.mxu0 %v3817
        %v3859 = vpop.f32.mrf.mxu0
        %v3860 = vadd.f32 0.0, %v3859
        %v3861 = vpop.f32.mrf.mxu0
        %v3862 = vadd.f32 0.0, %v3861
        %3863 = vmatmul.bf16.gmra.mxu0 %v3820
        %v3864 = vpop.f32.mrf.mxu0
        %v3865 = vadd.f32 0.0, %v3864
        %v3866 = vpop.f32.mrf.mxu0
        %v3867 = vadd.f32 0.0, %v3866
        %3868 = vmatmul.bf16.gmra.mxu0 %v3823
        %v3869 = vpop.f32.mrf.mxu0
        %v3870 = vadd.f32 0.0, %v3869
        %v3871 = vpop.f32.mrf.mxu0
        %v3872 = vadd.f32 0.0, %v3871
        %3873 = vmatmul.bf16.gmra.mxu0 %v3826
        %v3874 = vpop.f32.mrf.mxu0
        %v3875 = vadd.f32 0.0, %v3874
        %v3876 = vpop.f32.mrf.mxu0
        %v3877 = vadd.f32 0.0, %v3876
        %3878 = vmatmul.bf16.gmra.mxu0 %v3829
        %v3879 = vpop.f32.mrf.mxu0
        %v3880 = vadd.f32 0.0, %v3879
        %v3881 = vpop.f32.mrf.mxu0
        %v3882 = vadd.f32 0.0, %v3881
        %3883 = vmatmul.bf16.gmra.mxu0 %v3832
        %v3884 = vpop.f32.mrf.mxu0
        %v3885 = vadd.f32 0.0, %v3884
        %v3886 = vpop.f32.mrf.mxu0
        %v3887 = vadd.f32 0.0, %v3886
        %3888 = vmatmul.bf16.gmra.mxu0 %v3835
        %v3889 = vpop.f32.mrf.mxu0
        %v3890 = vadd.f32 0.0, %v3889
        %v3891 = vpop.f32.mrf.mxu0
        %v3892 = vadd.f32 0.0, %v3891
        %3893 = vmatmul.bf16.gmra.mxu0 %v3838
        %v3894 = vpop.f32.mrf.mxu0
        %v3895 = vadd.f32 0.0, %v3894
        %v3896 = vpop.f32.mrf.mxu0
        %v3897 = vadd.f32 0.0, %v3896
        %3898 = vdwg.mxu0
        %v3901 = vunpack.c.l.b16 %v3671
        %v3902 = vunpack.c.l.b16 %v3672
        %v3903 = vpack.c.b16 %v3902, %v3901
        %3904 = vrot.lane.b32.xlu0 %v3903, 64
        %v3905 = vpop.permute.xlu0 %3904
        %v3914 = vunpack.c.l.b16 %v3699
        %v3915 = vunpack.c.l.b16 %v3700
        %v3916 = vunpack.c.l.b16 %v3701
        %v3917 = vunpack.c.l.b16 %v3702
        %v3918 = vunpack.c.l.b16 %v3703
        %v3919 = vunpack.c.l.b16 %v3704
        %v3920 = vunpack.c.l.b16 %v3705
        %v3921 = vunpack.c.l.b16 %v3706
        %v3922 = vpack.c.b16 %v3915, %v3914
        %v3923 = vpack.c.b16 %v3917, %v3916
        %v3924 = vpack.c.b16 %v3919, %v3918
        %v3925 = vpack.c.b16 %v3921, %v3920
        %v3931 = vsel %vm2011, %v3905, 0
        %3933 = vmatpush.bf16.msra.mxu0 0
        %3934 = vmatpush.bf16.msra.mxu0 0
        %3935 = vmatpush.bf16.msra.mxu0 0
        %3936 = vmatpush.bf16.msra.mxu0 0
        %3937 = vmatpush.bf16.msra.mxu0 %v3925
        %3938 = vmatpush.bf16.msra.mxu0 %v3924
        %3939 = vmatpush.bf16.msra.mxu0 %v3923
        %3940 = vmatpush.bf16.msra.mxu0 %v3922
        %3941 = vmatmul.bf16.gmra.mxu0 %v3931
        %v3942 = vpop.f32.mrf.mxu0
        %v3943 = vadd.f32 %v3850, %v3942
        %v3944 = vpop.f32.mrf.mxu0
        %v3945 = vadd.f32 %v3852, %v3944
        %3946 = vmatmul.bf16.gmra.mxu0 %v3811
        %v3947 = vpop.f32.mrf.mxu0
        %v3948 = vadd.f32 %v3855, %v3947
        %v3949 = vpop.f32.mrf.mxu0
        %v3950 = vadd.f32 %v3857, %v3949
        %3951 = vmatmul.bf16.gmra.mxu0 %v3814
        %v3952 = vpop.f32.mrf.mxu0
        %v3953 = vadd.f32 %v3860, %v3952
        %v3954 = vpop.f32.mrf.mxu0
        %v3955 = vadd.f32 %v3862, %v3954
        %3956 = vmatmul.bf16.gmra.mxu0 %v3817
        %v3957 = vpop.f32.mrf.mxu0
        %v3958 = vadd.f32 %v3865, %v3957
        %v3959 = vpop.f32.mrf.mxu0
        %v3960 = vadd.f32 %v3867, %v3959
        %3961 = vmatmul.bf16.gmra.mxu0 %v3820
        %v3962 = vpop.f32.mrf.mxu0
        %v3963 = vadd.f32 %v3870, %v3962
        %v3964 = vpop.f32.mrf.mxu0
        %v3965 = vadd.f32 %v3872, %v3964
        %3966 = vmatmul.bf16.gmra.mxu0 %v3823
        %v3967 = vpop.f32.mrf.mxu0
        %v3968 = vadd.f32 %v3875, %v3967
        %v3969 = vpop.f32.mrf.mxu0
        %v3970 = vadd.f32 %v3877, %v3969
        %3971 = vmatmul.bf16.gmra.mxu0 %v3826
        %v3972 = vpop.f32.mrf.mxu0
        %v3973 = vadd.f32 %v3880, %v3972
        %v3974 = vpop.f32.mrf.mxu0
        %v3975 = vadd.f32 %v3882, %v3974
        %3976 = vmatmul.bf16.gmra.mxu0 %v3829
        %v3977 = vpop.f32.mrf.mxu0
        %v3978 = vadd.f32 %v3885, %v3977
        %v3979 = vpop.f32.mrf.mxu0
        %v3980 = vadd.f32 %v3887, %v3979
        %3981 = vmatmul.bf16.gmra.mxu0 %v3832
        %v3982 = vpop.f32.mrf.mxu0
        %v3983 = vadd.f32 %v3890, %v3982
        %v3984 = vpop.f32.mrf.mxu0
        %v3985 = vadd.f32 %v3892, %v3984
        %3986 = vmatmul.bf16.gmra.mxu0 %v3835
        %v3987 = vpop.f32.mrf.mxu0
        %v3988 = vadd.f32 %v3895, %v3987
        %v3989 = vpop.f32.mrf.mxu0
        %v3990 = vadd.f32 %v3897, %v3989
        %3991 = vdwg.mxu0
        %s3992 = scalar_lea.vmem %s7, 64
        %v3993 = vld [vmem:[%s3992] sm:$0xf]
        %v3994 = vld [vmem:[%s3992 + $0x4] sm:$0xf]
        %v3995 = vld [vmem:[%s3992 + $0x8] sm:$0xf]
        %v3996 = vld [vmem:[%s3992 + $0xc] sm:$0xf]
        %v3997 = vld [vmem:[%s3992 + $0x10] sm:$0xf]
        %v3998 = vld [vmem:[%s3992 + $0x14] sm:$0xf]
        %v3999 = vld [vmem:[%s3992 + $0x18] sm:$0xf]
        %v4000 = vld [vmem:[%s3992 + $0x1c] sm:$0xf]
        %v4003 = vunpack.c.l.b16 %v3693
        %v4004 = vunpack.c.l.b16 %v3694
        %v4005 = vpack.c.b16 %v4004, %v4003
        %4006 = vrot.lane.b32.xlu0 %v4005, 64
        %v4007 = vpop.permute.xlu0 %4006
        %v4016 = vunpack.c.l.b16 %v3993
        %v4017 = vunpack.c.l.b16 %v3994
        %v4018 = vunpack.c.l.b16 %v3995
        %v4019 = vunpack.c.l.b16 %v3996
        %v4020 = vunpack.c.l.b16 %v3997
        %v4021 = vunpack.c.l.b16 %v3998
        %v4022 = vunpack.c.l.b16 %v3999
        %v4023 = vunpack.c.l.b16 %v4000
        %v4024 = vpack.c.b16 %v4017, %v4016
        %v4025 = vpack.c.b16 %v4019, %v4018
        %v4026 = vpack.c.b16 %v4021, %v4020
        %v4027 = vpack.c.b16 %v4023, %v4022
        %v4033 = vsel %vm2011, %v4007, 0
        %4035 = vmatpush.bf16.msra.mxu0 0
        %4036 = vmatpush.bf16.msra.mxu0 0
        %4037 = vmatpush.bf16.msra.mxu0 0
        %4038 = vmatpush.bf16.msra.mxu0 0
        %4039 = vmatpush.bf16.msra.mxu0 %v4027
        %4040 = vmatpush.bf16.msra.mxu0 %v4026
        %4041 = vmatpush.bf16.msra.mxu0 %v4025
        %4042 = vmatpush.bf16.msra.mxu0 %v4024
        %4043 = vmatmul.bf16.gmra.mxu0 %v3814
        %v4044 = vpop.f32.mrf.mxu0
        %v4045 = vadd.f32 0.0, %v4044
        %v4046 = vpop.f32.mrf.mxu0
        %v4047 = vadd.f32 0.0, %v4046
        %4048 = vmatmul.bf16.gmra.mxu0 %v3817
        %v4049 = vpop.f32.mrf.mxu0
        %v4050 = vadd.f32 0.0, %v4049
        %v4051 = vpop.f32.mrf.mxu0
        %v4052 = vadd.f32 0.0, %v4051
        %4053 = vmatmul.bf16.gmra.mxu0 %v3820
        %v4054 = vpop.f32.mrf.mxu0
        %v4055 = vadd.f32 0.0, %v4054
        %v4056 = vpop.f32.mrf.mxu0
        %v4057 = vadd.f32 0.0, %v4056
        %4058 = vmatmul.bf16.gmra.mxu0 %v3823
        %v4059 = vpop.f32.mrf.mxu0
        %v4060 = vadd.f32 0.0, %v4059
        %v4061 = vpop.f32.mrf.mxu0
        %v4062 = vadd.f32 0.0, %v4061
        %4063 = vmatmul.bf16.gmra.mxu0 %v3826
        %v4064 = vpop.f32.mrf.mxu0
        %v4065 = vadd.f32 0.0, %v4064
        %v4066 = vpop.f32.mrf.mxu0
        %v4067 = vadd.f32 0.0, %v4066
        %4068 = vmatmul.bf16.gmra.mxu0 %v3829
        %v4069 = vpop.f32.mrf.mxu0
        %v4070 = vadd.f32 0.0, %v4069
        %v4071 = vpop.f32.mrf.mxu0
        %v4072 = vadd.f32 0.0, %v4071
        %4073 = vmatmul.bf16.gmra.mxu0 %v3832
        %v4074 = vpop.f32.mrf.mxu0
        %v4075 = vadd.f32 0.0, %v4074
        %v4076 = vpop.f32.mrf.mxu0
        %v4077 = vadd.f32 0.0, %v4076
        %4078 = vmatmul.bf16.gmra.mxu0 %v3835
        %v4079 = vpop.f32.mrf.mxu0
        %v4080 = vadd.f32 0.0, %v4079
        %v4081 = vpop.f32.mrf.mxu0
        %v4082 = vadd.f32 0.0, %v4081
        %4083 = vmatmul.bf16.gmra.mxu0 %v3838
        %v4084 = vpop.f32.mrf.mxu0
        %v4085 = vadd.f32 0.0, %v4084
        %v4086 = vpop.f32.mrf.mxu0
        %v4087 = vadd.f32 0.0, %v4086
        %4088 = vmatmul.bf16.gmra.mxu0 %v4033
        %v4089 = vpop.f32.mrf.mxu0
        %v4090 = vadd.f32 0.0, %v4089
        %v4091 = vpop.f32.mrf.mxu0
        %v4092 = vadd.f32 0.0, %v4091
        %4093 = vdwg.mxu0
        %v4094 = vadd.f32 %v3943, %v4045
        %v4095 = vadd.f32 %v3945, %v4047
        %v4096 = vadd.f32 %v3948, %v4050
        %v4097 = vadd.f32 %v3950, %v4052
        %v4098 = vadd.f32 %v3953, %v4055
        %v4099 = vadd.f32 %v3955, %v4057
        %v4100 = vadd.f32 %v3958, %v4060
        %v4101 = vadd.f32 %v3960, %v4062
        %v4102 = vadd.f32 %v3963, %v4065
        %v4103 = vadd.f32 %v3965, %v4067
        %v4104 = vadd.f32 %v3968, %v4070
        %v4105 = vadd.f32 %v3970, %v4072
        %v4106 = vadd.f32 %v3973, %v4075
        %v4107 = vadd.f32 %v3975, %v4077
        %v4108 = vadd.f32 %v3978, %v4080
        %v4109 = vadd.f32 %v3980, %v4082
        %v4110 = vadd.f32 %v3983, %v4085
        %v4111 = vadd.f32 %v3985, %v4087
        %v4112 = vadd.f32 %v3988, %v4090
        %v4113 = vadd.f32 %v3990, %v4092
        %s4114 = scalar_lea.vmem %s7, 96
        %v4115 = vld [vmem:[%s4114] sm:$0xf]
        %v4116 = vld [vmem:[%s4114 + $0x4] sm:$0xf]
        %v4117 = vld [vmem:[%s4114 + $0x8] sm:$0xf]
        %v4118 = vld [vmem:[%s4114 + $0xc] sm:$0xf]
        %v4119 = vld [vmem:[%s4114 + $0x10] sm:$0xf]
        %v4120 = vld [vmem:[%s4114 + $0x14] sm:$0xf]
        %v4121 = vld [vmem:[%s4114 + $0x18] sm:$0xf]
        %v4122 = vld [vmem:[%s4114 + $0x1c] sm:$0xf]
        %v4125 = vunpack.c.l.b16 %v3695
        %v4126 = vunpack.c.l.b16 %v3696
        %v4127 = vpack.c.b16 %v4126, %v4125
        %4128 = vrot.lane.b32.xlu0 %v4127, 64
        %v4129 = vpop.permute.xlu0 %4128
        %v4138 = vunpack.c.l.b16 %v4115
        %v4139 = vunpack.c.l.b16 %v4116
        %v4140 = vunpack.c.l.b16 %v4117
        %v4141 = vunpack.c.l.b16 %v4118
        %v4142 = vunpack.c.l.b16 %v4119
        %v4143 = vunpack.c.l.b16 %v4120
        %v4144 = vunpack.c.l.b16 %v4121
        %v4145 = vunpack.c.l.b16 %v4122
        %v4146 = vpack.c.b16 %v4139, %v4138
        %v4147 = vpack.c.b16 %v4141, %v4140
        %v4148 = vpack.c.b16 %v4143, %v4142
        %v4149 = vpack.c.b16 %v4145, %v4144
        %v4155 = vsel %vm2011, %v4129, 0
        %4157 = vmatpush.bf16.msra.mxu0 0
        %4158 = vmatpush.bf16.msra.mxu0 0
        %4159 = vmatpush.bf16.msra.mxu0 0
        %4160 = vmatpush.bf16.msra.mxu0 0
        %4161 = vmatpush.bf16.msra.mxu0 %v4149
        %4162 = vmatpush.bf16.msra.mxu0 %v4148
        %4163 = vmatpush.bf16.msra.mxu0 %v4147
        %4164 = vmatpush.bf16.msra.mxu0 %v4146
        %4165 = vmatmul.bf16.gmra.mxu0 %v3817
        %v4166 = vpop.f32.mrf.mxu0
        %v4167 = vadd.f32 0.0, %v4166
        %v4168 = vpop.f32.mrf.mxu0
        %v4169 = vadd.f32 0.0, %v4168
        %4170 = vmatmul.bf16.gmra.mxu0 %v3820
        %v4171 = vpop.f32.mrf.mxu0
        %v4172 = vadd.f32 0.0, %v4171
        %v4173 = vpop.f32.mrf.mxu0
        %v4174 = vadd.f32 0.0, %v4173
        %4175 = vmatmul.bf16.gmra.mxu0 %v3823
        %v4176 = vpop.f32.mrf.mxu0
        %v4177 = vadd.f32 0.0, %v4176
        %v4178 = vpop.f32.mrf.mxu0
        %v4179 = vadd.f32 0.0, %v4178
        %4180 = vmatmul.bf16.gmra.mxu0 %v3826
        %v4181 = vpop.f32.mrf.mxu0
        %v4182 = vadd.f32 0.0, %v4181
        %v4183 = vpop.f32.mrf.mxu0
        %v4184 = vadd.f32 0.0, %v4183
        %4185 = vmatmul.bf16.gmra.mxu0 %v3829
        %v4186 = vpop.f32.mrf.mxu0
        %v4187 = vadd.f32 0.0, %v4186
        %v4188 = vpop.f32.mrf.mxu0
        %v4189 = vadd.f32 0.0, %v4188
        %4190 = vmatmul.bf16.gmra.mxu0 %v3832
        %v4191 = vpop.f32.mrf.mxu0
        %v4192 = vadd.f32 0.0, %v4191
        %v4193 = vpop.f32.mrf.mxu0
        %v4194 = vadd.f32 0.0, %v4193
        %4195 = vmatmul.bf16.gmra.mxu0 %v3835
        %v4196 = vpop.f32.mrf.mxu0
        %v4197 = vadd.f32 0.0, %v4196
        %v4198 = vpop.f32.mrf.mxu0
        %v4199 = vadd.f32 0.0, %v4198
        %4200 = vmatmul.bf16.gmra.mxu0 %v3838
        %v4201 = vpop.f32.mrf.mxu0
        %v4202 = vadd.f32 0.0, %v4201
        %v4203 = vpop.f32.mrf.mxu0
        %v4204 = vadd.f32 0.0, %v4203
        %4205 = vmatmul.bf16.gmra.mxu0 %v4033
        %v4206 = vpop.f32.mrf.mxu0
        %v4207 = vadd.f32 0.0, %v4206
        %v4208 = vpop.f32.mrf.mxu0
        %v4209 = vadd.f32 0.0, %v4208
        %4210 = vmatmul.bf16.gmra.mxu0 %v4155
        %v4211 = vpop.f32.mrf.mxu0
        %v4212 = vadd.f32 0.0, %v4211
        %v4213 = vpop.f32.mrf.mxu0
        %v4214 = vadd.f32 0.0, %v4213
        %4215 = vdwg.mxu0
        %v4216 = vadd.f32 %v4094, %v4167
        %v4217 = vadd.f32 %v4095, %v4169
        %v4218 = vadd.f32 %v4096, %v4172
        %v4219 = vadd.f32 %v4097, %v4174
        %v4220 = vadd.f32 %v4098, %v4177
        %v4221 = vadd.f32 %v4099, %v4179
        %v4222 = vadd.f32 %v4100, %v4182
        %v4223 = vadd.f32 %v4101, %v4184
        %v4224 = vadd.f32 %v4102, %v4187
        %v4225 = vadd.f32 %v4103, %v4189
        %v4226 = vadd.f32 %v4104, %v4192
        %v4227 = vadd.f32 %v4105, %v4194
        %v4228 = vadd.f32 %v4106, %v4197
        %v4229 = vadd.f32 %v4107, %v4199
        %v4230 = vadd.f32 %v4108, %v4202
        %v4231 = vadd.f32 %v4109, %v4204
        %v4232 = vadd.f32 %v4110, %v4207
        %v4233 = vadd.f32 %v4111, %v4209
        %v4234 = vadd.f32 %v4112, %v4212
        %v4235 = vadd.f32 %v4113, %v4214
        %s4236 = scalar_lea.vmem %s7, 128
        %v4237 = vld [vmem:[%s4236] sm:$0xf]
        %v4238 = vld [vmem:[%s4236 + $0x4] sm:$0xf]
        %v4239 = vld [vmem:[%s4236 + $0x8] sm:$0xf]
        %v4240 = vld [vmem:[%s4236 + $0xc] sm:$0xf]
        %v4241 = vld [vmem:[%s4236 + $0x10] sm:$0xf]
        %v4242 = vld [vmem:[%s4236 + $0x14] sm:$0xf]
        %v4243 = vld [vmem:[%s4236 + $0x18] sm:$0xf]
        %v4244 = vld [vmem:[%s4236 + $0x1c] sm:$0xf]
        %v4247 = vunpack.c.l.b16 %v3697
        %v4248 = vunpack.c.l.b16 %v3698
        %v4249 = vpack.c.b16 %v4248, %v4247
        %4250 = vrot.lane.b32.xlu0 %v4249, 64
        %v4251 = vpop.permute.xlu0 %4250
        %v4260 = vunpack.c.l.b16 %v4237
        %v4261 = vunpack.c.l.b16 %v4238
        %v4262 = vunpack.c.l.b16 %v4239
        %v4263 = vunpack.c.l.b16 %v4240
        %v4264 = vunpack.c.l.b16 %v4241
        %v4265 = vunpack.c.l.b16 %v4242
        %v4266 = vunpack.c.l.b16 %v4243
        %v4267 = vunpack.c.l.b16 %v4244
        %v4268 = vpack.c.b16 %v4261, %v4260
        %v4269 = vpack.c.b16 %v4263, %v4262
        %v4270 = vpack.c.b16 %v4265, %v4264
        %v4271 = vpack.c.b16 %v4267, %v4266
        %v4277 = vsel %vm2011, %v4251, 0
        %4279 = vmatpush.bf16.msra.mxu0 0
        %4280 = vmatpush.bf16.msra.mxu0 0
        %4281 = vmatpush.bf16.msra.mxu0 0
        %4282 = vmatpush.bf16.msra.mxu0 0
        %4283 = vmatpush.bf16.msra.mxu0 %v4271
        %4284 = vmatpush.bf16.msra.mxu0 %v4270
        %4285 = vmatpush.bf16.msra.mxu0 %v4269
        %4286 = vmatpush.bf16.msra.mxu0 %v4268
        %4287 = vmatmul.bf16.gmra.mxu0 %v3820
        %v4288 = vpop.f32.mrf.mxu0
        %v4289 = vadd.f32 0.0, %v4288
        %v4290 = vpop.f32.mrf.mxu0
        %v4291 = vadd.f32 0.0, %v4290
        %4292 = vmatmul.bf16.gmra.mxu0 %v3823
        %v4293 = vpop.f32.mrf.mxu0
        %v4294 = vadd.f32 0.0, %v4293
        %v4295 = vpop.f32.mrf.mxu0
        %v4296 = vadd.f32 0.0, %v4295
        %4297 = vmatmul.bf16.gmra.mxu0 %v3826
        %v4298 = vpop.f32.mrf.mxu0
        %v4299 = vadd.f32 0.0, %v4298
        %v4300 = vpop.f32.mrf.mxu0
        %v4301 = vadd.f32 0.0, %v4300
        %4302 = vmatmul.bf16.gmra.mxu0 %v3829
        %v4303 = vpop.f32.mrf.mxu0
        %v4304 = vadd.f32 0.0, %v4303
        %v4305 = vpop.f32.mrf.mxu0
        %v4306 = vadd.f32 0.0, %v4305
        %4307 = vmatmul.bf16.gmra.mxu0 %v3832
        %v4308 = vpop.f32.mrf.mxu0
        %v4309 = vadd.f32 0.0, %v4308
        %v4310 = vpop.f32.mrf.mxu0
        %v4311 = vadd.f32 0.0, %v4310
        %4312 = vmatmul.bf16.gmra.mxu0 %v3835
        %v4313 = vpop.f32.mrf.mxu0
        %v4314 = vadd.f32 0.0, %v4313
        %v4315 = vpop.f32.mrf.mxu0
        %v4316 = vadd.f32 0.0, %v4315
        %4317 = vmatmul.bf16.gmra.mxu0 %v3838
        %v4318 = vpop.f32.mrf.mxu0
        %v4319 = vadd.f32 0.0, %v4318
        %v4320 = vpop.f32.mrf.mxu0
        %v4321 = vadd.f32 0.0, %v4320
        %4322 = vmatmul.bf16.gmra.mxu0 %v4033
        %v4323 = vpop.f32.mrf.mxu0
        %v4324 = vadd.f32 0.0, %v4323
        %v4325 = vpop.f32.mrf.mxu0
        %v4326 = vadd.f32 0.0, %v4325
        %4327 = vmatmul.bf16.gmra.mxu0 %v4155
        %v4328 = vpop.f32.mrf.mxu0
        %v4329 = vadd.f32 0.0, %v4328
        %v4330 = vpop.f32.mrf.mxu0
        %v4331 = vadd.f32 0.0, %v4330
        %4332 = vmatmul.bf16.gmra.mxu0 %v4277
        %v4333 = vpop.f32.mrf.mxu0
        %v4334 = vadd.f32 0.0, %v4333
        %v4335 = vpop.f32.mrf.mxu0
        %v4336 = vadd.f32 0.0, %v4335
        %4337 = vdwg.mxu0
        %v4338 = vadd.f32 %v4216, %v4289
        %v4339 = vadd.f32 %v4217, %v4291
        %v4340 = vadd.f32 %v4218, %v4294
        %v4341 = vadd.f32 %v4219, %v4296
        %v4342 = vadd.f32 %v4220, %v4299
        %v4343 = vadd.f32 %v4221, %v4301
        %v4344 = vadd.f32 %v4222, %v4304
        %v4345 = vadd.f32 %v4223, %v4306
        %v4346 = vadd.f32 %v4224, %v4309
        %v4347 = vadd.f32 %v4225, %v4311
        %v4348 = vadd.f32 %v4226, %v4314
        %v4349 = vadd.f32 %v4227, %v4316
        %v4350 = vadd.f32 %v4228, %v4319
        %v4351 = vadd.f32 %v4229, %v4321
        %v4352 = vadd.f32 %v4230, %v4324
        %v4353 = vadd.f32 %v4231, %v4326
        %v4354 = vadd.f32 %v4232, %v4329
        %v4355 = vadd.f32 %v4233, %v4331
        %v4356 = vadd.f32 %v4234, %v4334
        %v4357 = vadd.f32 %v4235, %v4336
        %v4358 = vld [vmem:[%s8] sm:$0x1]
        %v4360 = vperm.slane %v4358, 0
        %v4362 = vmul.f32 %v4338, %v4360
        %v4363 = vmul.f32 %v4339, %v4360
        %v4364 = vmul.f32 %v4340, %v4360
        %v4365 = vmul.f32 %v4341, %v4360
        %v4366 = vmul.f32 %v4342, %v4360
        %v4367 = vmul.f32 %v4343, %v4360
        %v4368 = vmul.f32 %v4344, %v4360
        %v4369 = vmul.f32 %v4345, %v4360
        %v4370 = vmul.f32 %v4346, %v4360
        %v4371 = vmul.f32 %v4347, %v4360
        %v4372 = vmul.f32 %v4348, %v4360
        %v4373 = vmul.f32 %v4349, %v4360
        %v4374 = vmul.f32 %v4350, %v4360
        %v4375 = vmul.f32 %v4351, %v4360
        %v4376 = vmul.f32 %v4352, %v4360
        %v4377 = vmul.f32 %v4353, %v4360
        %v4378 = vmul.f32 %v4354, %v4360
        %v4379 = vmul.f32 %v4355, %v4360
        %v4380 = vmul.f32 %v4356, %v4360
        %v4381 = vmul.f32 %v4357, %v4360
        %v4382 = vld [vmem:[%s9] sm:$0x1]
        %v4384 = vperm.slane %v4382, 0
        %v4386 = vadd.f32 %v4362, %v4384
        %v4387 = vadd.f32 %v4363, %v4384
        %v4388 = vadd.f32 %v4364, %v4384
        %v4389 = vadd.f32 %v4365, %v4384
        %v4390 = vadd.f32 %v4366, %v4384
        %v4391 = vadd.f32 %v4367, %v4384
        %v4392 = vadd.f32 %v4368, %v4384
        %v4393 = vadd.f32 %v4369, %v4384
        %v4394 = vadd.f32 %v4370, %v4384
        %v4395 = vadd.f32 %v4371, %v4384
        %v4396 = vadd.f32 %v4372, %v4384
        %v4397 = vadd.f32 %v4373, %v4384
        %v4398 = vadd.f32 %v4374, %v4384
        %v4399 = vadd.f32 %v4375, %v4384
        %v4400 = vadd.f32 %v4376, %v4384
        %v4401 = vadd.f32 %v4377, %v4384
        %v4402 = vadd.f32 %v4378, %v4384
        %v4403 = vadd.f32 %v4379, %v4384
        %v4404 = vadd.f32 %v4380, %v4384
        %v4405 = vadd.f32 %v4381, %v4384
        %v4406 = vmax.f32 %v4386, 0.0
        %v4407 = vmax.f32 %v4387, 0.0
        %v4408 = vmax.f32 %v4388, 0.0
        %v4409 = vmax.f32 %v4389, 0.0
        %v4410 = vmax.f32 %v4390, 0.0
        %v4411 = vmax.f32 %v4391, 0.0
        %v4412 = vmax.f32 %v4392, 0.0
        %v4413 = vmax.f32 %v4393, 0.0
        %v4414 = vmax.f32 %v4394, 0.0
        %v4415 = vmax.f32 %v4395, 0.0
        %v4416 = vmax.f32 %v4396, 0.0
        %v4417 = vmax.f32 %v4397, 0.0
        %v4418 = vmax.f32 %v4398, 0.0
        %v4419 = vmax.f32 %v4399, 0.0
        %v4420 = vmax.f32 %v4400, 0.0
        %v4421 = vmax.f32 %v4401, 0.0
        %v4422 = vmax.f32 %v4402, 0.0
        %v4423 = vmax.f32 %v4403, 0.0
        %v4424 = vmax.f32 %v4404, 0.0
        %v4425 = vmax.f32 %v4405, 0.0
        %vm4426 = vcmask 516096
        %4427 = vst.msk [vmem:[#allocation5] sm:$0x1] %vm4426, 0
        %4428 = vst.msk [vmem:[#allocation5 + $0xc] sm:$0x1] %vm4426, 0
        %4429 = vst.msk [vmem:[#allocation5 + $0x18] sm:$0x1] %vm4426, 0
        %4430 = vst.msk [vmem:[#allocation5 + $0x24] sm:$0x1] %vm4426, 0
        %4431 = vst.msk [vmem:[#allocation5 + $0x30] sm:$0x1] %vm4426, 0
        %4432 = vst.msk [vmem:[#allocation5 + $0x3c] sm:$0x1] %vm4426, 0
        %4433 = vst.msk [vmem:[#allocation5 + $0x48] sm:$0x1] %vm4426, 0
        %4434 = vst.msk [vmem:[#allocation5 + $0x54] sm:$0x1] %vm4426, 0
        %4435 = vst.msk [vmem:[#allocation5 + $0x60] sm:$0x1] %vm4426, 0
        %4436 = vst.msk [vmem:[#allocation5 + $0x6c] sm:$0x1] %vm4426, 0
        %vm4437 = vcmask 517121
        %4438 = vst.msk [vmem:[#allocation5 + $0x8] sm:$0x2] %vm4437, 0
        %4439 = vst.msk [vmem:[#allocation5 + $0x14] sm:$0x2] %vm4437, 0
        %4440 = vst.msk [vmem:[#allocation5 + $0x20] sm:$0x2] %vm4437, 0
        %4441 = vst.msk [vmem:[#allocation5 + $0x2c] sm:$0x2] %vm4437, 0
        %4442 = vst.msk [vmem:[#allocation5 + $0x38] sm:$0x2] %vm4437, 0
        %4443 = vst.msk [vmem:[#allocation5 + $0x44] sm:$0x2] %vm4437, 0
        %4444 = vst.msk [vmem:[#allocation5 + $0x50] sm:$0x2] %vm4437, 0
        %4445 = vst.msk [vmem:[#allocation5 + $0x5c] sm:$0x2] %vm4437, 0
        %4446 = vst.msk [vmem:[#allocation5 + $0x68] sm:$0x2] %vm4437, 0
        %4447 = vst.msk [vmem:[#allocation5 + $0x74] sm:$0x2] %vm4437, 0
        %v4448 = vpack.c.bf16 %v4406, %v4406
        %v4449 = vpack.c.bf16 %v4407, %v4407
        %v4450 = vpack.c.bf16 %v4408, %v4408
        %v4451 = vpack.c.bf16 %v4409, %v4409
        %v4452 = vpack.c.bf16 %v4410, %v4410
        %v4453 = vpack.c.bf16 %v4411, %v4411
        %v4454 = vpack.c.bf16 %v4412, %v4412
        %v4455 = vpack.c.bf16 %v4413, %v4413
        %v4456 = vpack.c.bf16 %v4414, %v4414
        %v4457 = vpack.c.bf16 %v4415, %v4415
        %v4458 = vpack.c.bf16 %v4416, %v4416
        %v4459 = vpack.c.bf16 %v4417, %v4417
        %v4460 = vpack.c.bf16 %v4418, %v4418
        %v4461 = vpack.c.bf16 %v4419, %v4419
        %v4462 = vpack.c.bf16 %v4420, %v4420
        %v4463 = vpack.c.bf16 %v4421, %v4421
        %v4464 = vpack.c.bf16 %v4422, %v4422
        %v4465 = vpack.c.bf16 %v4423, %v4423
        %v4466 = vpack.c.bf16 %v4424, %v4424
        %v4467 = vpack.c.bf16 %v4425, %v4425
        %vm4488 = vcmask 1040384
        %vm4489 = vcmask 1044484
        %vm4490 = vmor %vm4488, %vm4489
        %v4491 = vrot.slane %v4448, 7
        %v4492 = vrot.slane %v4491, 4
        %v4493 = vrot.slane %v4449, 7
        %v4494 = vsel %vm4490, %v4492, %v4493
        %v4495 = vrot.slane %v4493, 4
        %v4496 = vrot.slane %v4450, 7
        %v4497 = vrot.slane %v4496, 4
        %v4498 = vrot.slane %v4451, 7
        %v4499 = vsel %vm4490, %v4497, %v4498
        %v4500 = vrot.slane %v4498, 4
        %v4501 = vrot.slane %v4452, 7
        %v4502 = vrot.slane %v4501, 4
        %v4503 = vrot.slane %v4453, 7
        %v4504 = vsel %vm4490, %v4502, %v4503
        %v4505 = vrot.slane %v4503, 4
        %v4506 = vrot.slane %v4454, 7
        %v4507 = vrot.slane %v4506, 4
        %v4508 = vrot.slane %v4455, 7
        %v4509 = vsel %vm4490, %v4507, %v4508
        %v4510 = vrot.slane %v4508, 4
        %v4511 = vrot.slane %v4456, 7
        %v4512 = vrot.slane %v4511, 4
        %v4513 = vrot.slane %v4457, 7
        %v4514 = vsel %vm4490, %v4512, %v4513
        %v4515 = vrot.slane %v4513, 4
        %v4516 = vrot.slane %v4458, 7
        %v4517 = vrot.slane %v4516, 4
        %v4518 = vrot.slane %v4459, 7
        %v4519 = vsel %vm4490, %v4517, %v4518
        %v4520 = vrot.slane %v4518, 4
        %v4521 = vrot.slane %v4460, 7
        %v4522 = vrot.slane %v4521, 4
        %v4523 = vrot.slane %v4461, 7
        %v4524 = vsel %vm4490, %v4522, %v4523
        %v4525 = vrot.slane %v4523, 4
        %v4526 = vrot.slane %v4462, 7
        %v4527 = vrot.slane %v4526, 4
        %v4528 = vrot.slane %v4463, 7
        %v4529 = vsel %vm4490, %v4527, %v4528
        %v4530 = vrot.slane %v4528, 4
        %v4531 = vrot.slane %v4464, 7
        %v4532 = vrot.slane %v4531, 4
        %v4533 = vrot.slane %v4465, 7
        %v4534 = vsel %vm4490, %v4532, %v4533
        %v4535 = vrot.slane %v4533, 4
        %v4536 = vrot.slane %v4466, 7
        %v4537 = vrot.slane %v4536, 4
        %v4538 = vrot.slane %v4467, 7
        %v4539 = vsel %vm4490, %v4537, %v4538
        %v4540 = vrot.slane %v4538, 4
        %vm4571 = vcmask 519169
        %4572 = vst.msk [vmem:[#allocation5] sm:$0xe] %vm4571, %v4491
        %4573 = vst.msk [vmem:[#allocation5 + $0x4] sm:$0xf] %vm1537, %v4494
        %4574 = vst.msk [vmem:[#allocation5 + $0x8] sm:$0x1] %vm4426, %v4495
        %4575 = vst.msk [vmem:[#allocation5 + $0xc] sm:$0xe] %vm4571, %v4496
        %4576 = vst.msk [vmem:[#allocation5 + $0x10] sm:$0xf] %vm1537, %v4499
        %4577 = vst.msk [vmem:[#allocation5 + $0x14] sm:$0x1] %vm4426, %v4500
        %4578 = vst.msk [vmem:[#allocation5 + $0x18] sm:$0xe] %vm4571, %v4501
        %4579 = vst.msk [vmem:[#allocation5 + $0x1c] sm:$0xf] %vm1537, %v4504
        %4580 = vst.msk [vmem:[#allocation5 + $0x20] sm:$0x1] %vm4426, %v4505
        %4581 = vst.msk [vmem:[#allocation5 + $0x24] sm:$0xe] %vm4571, %v4506
        %4582 = vst.msk [vmem:[#allocation5 + $0x28] sm:$0xf] %vm1537, %v4509
        %4583 = vst.msk [vmem:[#allocation5 + $0x2c] sm:$0x1] %vm4426, %v4510
        %4584 = vst.msk [vmem:[#allocation5 + $0x30] sm:$0xe] %vm4571, %v4511
        %4585 = vst.msk [vmem:[#allocation5 + $0x34] sm:$0xf] %vm1537, %v4514
        %4586 = vst.msk [vmem:[#allocation5 + $0x38] sm:$0x1] %vm4426, %v4515
        %4587 = vst.msk [vmem:[#allocation5 + $0x3c] sm:$0xe] %vm4571, %v4516
        %4588 = vst.msk [vmem:[#allocation5 + $0x40] sm:$0xf] %vm1537, %v4519
        %4589 = vst.msk [vmem:[#allocation5 + $0x44] sm:$0x1] %vm4426, %v4520
        %4590 = vst.msk [vmem:[#allocation5 + $0x48] sm:$0xe] %vm4571, %v4521
        %4591 = vst.msk [vmem:[#allocation5 + $0x4c] sm:$0xf] %vm1537, %v4524
        %4592 = vst.msk [vmem:[#allocation5 + $0x50] sm:$0x1] %vm4426, %v4525
        %4593 = vst.msk [vmem:[#allocation5 + $0x54] sm:$0xe] %vm4571, %v4526
        %4594 = vst.msk [vmem:[#allocation5 + $0x58] sm:$0xf] %vm1537, %v4529
        %4595 = vst.msk [vmem:[#allocation5 + $0x5c] sm:$0x1] %vm4426, %v4530
        %4596 = vst.msk [vmem:[#allocation5 + $0x60] sm:$0xe] %vm4571, %v4531
        %4597 = vst.msk [vmem:[#allocation5 + $0x64] sm:$0xf] %vm1537, %v4534
        %4598 = vst.msk [vmem:[#allocation5 + $0x68] sm:$0x1] %vm4426, %v4535
        %4599 = vst.msk [vmem:[#allocation5 + $0x6c] sm:$0xe] %vm4571, %v4536
        %4600 = vst.msk [vmem:[#allocation5 + $0x70] sm:$0xf] %vm1537, %v4539
        %4601 = vst.msk [vmem:[#allocation5 + $0x74] sm:$0x1] %vm4426, %v4540
        %v4602 = vld [vmem:[#allocation5] sm:$0xf]
        %v4603 = vld [vmem:[#allocation5 + $0x4] sm:$0xf]
        %v4604 = vld [vmem:[#allocation5 + $0xc] sm:$0xf]
        %v4605 = vld [vmem:[#allocation5 + $0x10] sm:$0xf]
        %v4606 = vld [vmem:[#allocation5 + $0x18] sm:$0xf]
        %v4607 = vld [vmem:[#allocation5 + $0x1c] sm:$0xf]
        %v4608 = vld [vmem:[#allocation5 + $0x24] sm:$0xf]
        %v4609 = vld [vmem:[#allocation5 + $0x28] sm:$0xf]
        %v4610 = vld [vmem:[#allocation5 + $0x30] sm:$0xf]
        %v4611 = vld [vmem:[#allocation5 + $0x34] sm:$0xf]
        %v4612 = vld [vmem:[#allocation5 + $0x3c] sm:$0xf]
        %v4613 = vld [vmem:[#allocation5 + $0x40] sm:$0xf]
        %v4614 = vld [vmem:[#allocation5 + $0x48] sm:$0xf]
        %v4615 = vld [vmem:[#allocation5 + $0x4c] sm:$0xf]
        %v4616 = vld [vmem:[#allocation5 + $0x54] sm:$0xf]
        %v4617 = vld [vmem:[#allocation5 + $0x58] sm:$0xf]
        %v4618 = vld [vmem:[#allocation5 + $0x60] sm:$0xf]
        %v4619 = vld [vmem:[#allocation5 + $0x64] sm:$0xf]
        %v4620 = vld [vmem:[#allocation5 + $0x6c] sm:$0xf]
        %v4621 = vld [vmem:[#allocation5 + $0x70] sm:$0xf]
        %v4622 = vld [vmem:[#allocation5 + $0x8] sm:$0x1]
        %v4623 = vld [vmem:[#allocation5 + $0x14] sm:$0x1]
        %v4624 = vld [vmem:[#allocation5 + $0x20] sm:$0x1]
        %v4625 = vld [vmem:[#allocation5 + $0x2c] sm:$0x1]
        %v4626 = vld [vmem:[#allocation5 + $0x38] sm:$0x1]
        %v4627 = vld [vmem:[#allocation5 + $0x44] sm:$0x1]
        %v4628 = vld [vmem:[#allocation5 + $0x50] sm:$0x1]
        %v4629 = vld [vmem:[#allocation5 + $0x5c] sm:$0x1]
        %v4630 = vld [vmem:[#allocation5 + $0x68] sm:$0x1]
        %v4631 = vld [vmem:[#allocation5 + $0x74] sm:$0x1]
        %v4633 = vshrl.u32 %v4602, 16
        %v4635 = vrot.slane %v4633, 4
        %v4636 = vshll.u32 %v4602, 16
        %v4638 = vrot.slane %v4636, 5
        %v4639 = vor.u32 %v4635, %v4638
        %v4640 = vrot.slane %v4639, 4
        %v4642 = vshll.u32 %v4603, 16
        %v4644 = vrot.slane %v4642, 5
        %v4645 = vsel %vm1631, %v4640, %v4644
        %v4646 = vshrl.u32 %v4603, 16
        %v4648 = vrot.slane %v4646, 4
        %v4649 = vor.u32 %v4648, %v4644
        %v4650 = vrot.slane %v4649, 4
        %v4652 = vshll.u32 %v4622, 16
        %v4654 = vrot.slane %v4652, 5
        %v4655 = vsel %vm1631, %v4650, %v4654
        %v4657 = vshrl.u32 %v4604, 16
        %v4659 = vrot.slane %v4657, 4
        %v4660 = vshll.u32 %v4604, 16
        %v4662 = vrot.slane %v4660, 5
        %v4663 = vor.u32 %v4659, %v4662
        %v4664 = vrot.slane %v4663, 4
        %v4666 = vshll.u32 %v4605, 16
        %v4668 = vrot.slane %v4666, 5
        %v4669 = vsel %vm1631, %v4664, %v4668
        %v4670 = vshrl.u32 %v4605, 16
        %v4672 = vrot.slane %v4670, 4
        %v4673 = vor.u32 %v4672, %v4668
        %v4674 = vrot.slane %v4673, 4
        %v4676 = vshll.u32 %v4623, 16
        %v4678 = vrot.slane %v4676, 5
        %v4679 = vsel %vm1631, %v4674, %v4678
        %v4681 = vshrl.u32 %v4606, 16
        %v4683 = vrot.slane %v4681, 4
        %v4684 = vshll.u32 %v4606, 16
        %v4686 = vrot.slane %v4684, 5
        %v4687 = vor.u32 %v4683, %v4686
        %v4688 = vrot.slane %v4687, 4
        %v4690 = vshll.u32 %v4607, 16
        %v4692 = vrot.slane %v4690, 5
        %v4693 = vsel %vm1631, %v4688, %v4692
        %v4694 = vshrl.u32 %v4607, 16
        %v4696 = vrot.slane %v4694, 4
        %v4697 = vor.u32 %v4696, %v4692
        %v4698 = vrot.slane %v4697, 4
        %v4700 = vshll.u32 %v4624, 16
        %v4702 = vrot.slane %v4700, 5
        %v4703 = vsel %vm1631, %v4698, %v4702
        %v4705 = vshrl.u32 %v4608, 16
        %v4707 = vrot.slane %v4705, 4
        %v4708 = vshll.u32 %v4608, 16
        %v4710 = vrot.slane %v4708, 5
        %v4711 = vor.u32 %v4707, %v4710
        %v4712 = vrot.slane %v4711, 4
        %v4714 = vshll.u32 %v4609, 16
        %v4716 = vrot.slane %v4714, 5
        %v4717 = vsel %vm1631, %v4712, %v4716
        %v4718 = vshrl.u32 %v4609, 16
        %v4720 = vrot.slane %v4718, 4
        %v4721 = vor.u32 %v4720, %v4716
        %v4722 = vrot.slane %v4721, 4
        %v4724 = vshll.u32 %v4625, 16
        %v4726 = vrot.slane %v4724, 5
        %v4727 = vsel %vm1631, %v4722, %v4726
        %v4729 = vshrl.u32 %v4610, 16
        %v4731 = vrot.slane %v4729, 4
        %v4732 = vshll.u32 %v4610, 16
        %v4734 = vrot.slane %v4732, 5
        %v4735 = vor.u32 %v4731, %v4734
        %v4736 = vrot.slane %v4735, 4
        %v4738 = vshll.u32 %v4611, 16
        %v4740 = vrot.slane %v4738, 5
        %v4741 = vsel %vm1631, %v4736, %v4740
        %v4742 = vshrl.u32 %v4611, 16
        %v4744 = vrot.slane %v4742, 4
        %v4745 = vor.u32 %v4744, %v4740
        %v4746 = vrot.slane %v4745, 4
        %v4748 = vshll.u32 %v4626, 16
        %v4750 = vrot.slane %v4748, 5
        %v4751 = vsel %vm1631, %v4746, %v4750
        %v4753 = vshrl.u32 %v4612, 16
        %v4755 = vrot.slane %v4753, 4
        %v4756 = vshll.u32 %v4612, 16
        %v4758 = vrot.slane %v4756, 5
        %v4759 = vor.u32 %v4755, %v4758
        %v4760 = vrot.slane %v4759, 4
        %v4762 = vshll.u32 %v4613, 16
        %v4764 = vrot.slane %v4762, 5
        %v4765 = vsel %vm1631, %v4760, %v4764
        %v4766 = vshrl.u32 %v4613, 16
        %v4768 = vrot.slane %v4766, 4
        %v4769 = vor.u32 %v4768, %v4764
        %v4770 = vrot.slane %v4769, 4
        %v4772 = vshll.u32 %v4627, 16
        %v4774 = vrot.slane %v4772, 5
        %v4775 = vsel %vm1631, %v4770, %v4774
        %v4777 = vshrl.u32 %v4614, 16
        %v4779 = vrot.slane %v4777, 4
        %v4780 = vshll.u32 %v4614, 16
        %v4782 = vrot.slane %v4780, 5
        %v4783 = vor.u32 %v4779, %v4782
        %v4784 = vrot.slane %v4783, 4
        %v4786 = vshll.u32 %v4615, 16
        %v4788 = vrot.slane %v4786, 5
        %v4789 = vsel %vm1631, %v4784, %v4788
        %v4790 = vshrl.u32 %v4615, 16
        %v4792 = vrot.slane %v4790, 4
        %v4793 = vor.u32 %v4792, %v4788
        %v4794 = vrot.slane %v4793, 4
        %v4796 = vshll.u32 %v4628, 16
        %v4798 = vrot.slane %v4796, 5
        %v4799 = vsel %vm1631, %v4794, %v4798
        %v4801 = vshrl.u32 %v4616, 16
        %v4803 = vrot.slane %v4801, 4
        %v4804 = vshll.u32 %v4616, 16
        %v4806 = vrot.slane %v4804, 5
        %v4807 = vor.u32 %v4803, %v4806
        %v4808 = vrot.slane %v4807, 4
        %v4810 = vshll.u32 %v4617, 16
        %v4812 = vrot.slane %v4810, 5
        %v4813 = vsel %vm1631, %v4808, %v4812
        %v4814 = vshrl.u32 %v4617, 16
        %v4816 = vrot.slane %v4814, 4
        %v4817 = vor.u32 %v4816, %v4812
        %v4818 = vrot.slane %v4817, 4
        %v4820 = vshll.u32 %v4629, 16
        %v4822 = vrot.slane %v4820, 5
        %v4823 = vsel %vm1631, %v4818, %v4822
        %v4825 = vshrl.u32 %v4618, 16
        %v4827 = vrot.slane %v4825, 4
        %v4828 = vshll.u32 %v4618, 16
        %v4830 = vrot.slane %v4828, 5
        %v4831 = vor.u32 %v4827, %v4830
        %v4832 = vrot.slane %v4831, 4
        %v4834 = vshll.u32 %v4619, 16
        %v4836 = vrot.slane %v4834, 5
        %v4837 = vsel %vm1631, %v4832, %v4836
        %v4838 = vshrl.u32 %v4619, 16
        %v4840 = vrot.slane %v4838, 4
        %v4841 = vor.u32 %v4840, %v4836
        %v4842 = vrot.slane %v4841, 4
        %v4844 = vshll.u32 %v4630, 16
        %v4846 = vrot.slane %v4844, 5
        %v4847 = vsel %vm1631, %v4842, %v4846
        %v4849 = vshrl.u32 %v4620, 16
        %v4851 = vrot.slane %v4849, 4
        %v4852 = vshll.u32 %v4620, 16
        %v4854 = vrot.slane %v4852, 5
        %v4855 = vor.u32 %v4851, %v4854
        %v4856 = vrot.slane %v4855, 4
        %v4858 = vshll.u32 %v4621, 16
        %v4860 = vrot.slane %v4858, 5
        %v4861 = vsel %vm1631, %v4856, %v4860
        %v4862 = vshrl.u32 %v4621, 16
        %v4864 = vrot.slane %v4862, 4
        %v4865 = vor.u32 %v4864, %v4860
        %v4866 = vrot.slane %v4865, 4
        %v4868 = vshll.u32 %v4631, 16
        %v4870 = vrot.slane %v4868, 5
        %v4871 = vsel %vm1631, %v4866, %v4870
        %v4872 = vld [vmem:[#allocation5] sm:$0xe]
        %v4873 = vld [vmem:[#allocation5 + $0xc] sm:$0xe]
        %v4874 = vld [vmem:[#allocation5 + $0x18] sm:$0xe]
        %v4875 = vld [vmem:[#allocation5 + $0x24] sm:$0xe]
        %v4876 = vld [vmem:[#allocation5 + $0x30] sm:$0xe]
        %v4877 = vld [vmem:[#allocation5 + $0x3c] sm:$0xe]
        %v4878 = vld [vmem:[#allocation5 + $0x48] sm:$0xe]
        %v4879 = vld [vmem:[#allocation5 + $0x54] sm:$0xe]
        %v4880 = vld [vmem:[#allocation5 + $0x60] sm:$0xe]
        %v4881 = vld [vmem:[#allocation5 + $0x6c] sm:$0xe]
        %v4912 = vrot.slane %v4872, 5
        %v4913 = vrot.slane %v4912, 4
        %v4914 = vrot.slane %v4603, 5
        %v4915 = vsel %vm1858, %v4913, %v4914
        %v4916 = vrot.slane %v4914, 4
        %v4917 = vrot.slane %v4622, 5
        %v4918 = vsel %vm1858, %v4916, %v4917
        %v4919 = vrot.slane %v4873, 5
        %v4920 = vrot.slane %v4919, 4
        %v4921 = vrot.slane %v4605, 5
        %v4922 = vsel %vm1858, %v4920, %v4921
        %v4923 = vrot.slane %v4921, 4
        %v4924 = vrot.slane %v4623, 5
        %v4925 = vsel %vm1858, %v4923, %v4924
        %v4926 = vrot.slane %v4874, 5
        %v4927 = vrot.slane %v4926, 4
        %v4928 = vrot.slane %v4607, 5
        %v4929 = vsel %vm1858, %v4927, %v4928
        %v4930 = vrot.slane %v4928, 4
        %v4931 = vrot.slane %v4624, 5
        %v4932 = vsel %vm1858, %v4930, %v4931
        %v4933 = vrot.slane %v4875, 5
        %v4934 = vrot.slane %v4933, 4
        %v4935 = vrot.slane %v4609, 5
        %v4936 = vsel %vm1858, %v4934, %v4935
        %v4937 = vrot.slane %v4935, 4
        %v4938 = vrot.slane %v4625, 5
        %v4939 = vsel %vm1858, %v4937, %v4938
        %v4940 = vrot.slane %v4876, 5
        %v4941 = vrot.slane %v4940, 4
        %v4942 = vrot.slane %v4611, 5
        %v4943 = vsel %vm1858, %v4941, %v4942
        %v4944 = vrot.slane %v4942, 4
        %v4945 = vrot.slane %v4626, 5
        %v4946 = vsel %vm1858, %v4944, %v4945
        %v4947 = vrot.slane %v4877, 5
        %v4948 = vrot.slane %v4947, 4
        %v4949 = vrot.slane %v4613, 5
        %v4950 = vsel %vm1858, %v4948, %v4949
        %v4951 = vrot.slane %v4949, 4
        %v4952 = vrot.slane %v4627, 5
        %v4953 = vsel %vm1858, %v4951, %v4952
        %v4954 = vrot.slane %v4878, 5
        %v4955 = vrot.slane %v4954, 4
        %v4956 = vrot.slane %v4615, 5
        %v4957 = vsel %vm1858, %v4955, %v4956
        %v4958 = vrot.slane %v4956, 4
        %v4959 = vrot.slane %v4628, 5
        %v4960 = vsel %vm1858, %v4958, %v4959
        %v4961 = vrot.slane %v4879, 5
        %v4962 = vrot.slane %v4961, 4
        %v4963 = vrot.slane %v4617, 5
        %v4964 = vsel %vm1858, %v4962, %v4963
        %v4965 = vrot.slane %v4963, 4
        %v4966 = vrot.slane %v4629, 5
        %v4967 = vsel %vm1858, %v4965, %v4966
        %v4968 = vrot.slane %v4880, 5
        %v4969 = vrot.slane %v4968, 4
        %v4970 = vrot.slane %v4619, 5
        %v4971 = vsel %vm1858, %v4969, %v4970
        %v4972 = vrot.slane %v4970, 4
        %v4973 = vrot.slane %v4630, 5
        %v4974 = vsel %vm1858, %v4972, %v4973
        %v4975 = vrot.slane %v4881, 5
        %v4976 = vrot.slane %v4975, 4
        %v4977 = vrot.slane %v4621, 5
        %v4978 = vsel %vm1858, %v4976, %v4977
        %v4979 = vrot.slane %v4977, 4
        %v4980 = vrot.slane %v4631, 5
        %v4981 = vsel %vm1858, %v4979, %v4980
        %v4982 = vld [vmem:[#allocation5 + $0x8] sm:$0x3]
        %v4983 = vld [vmem:[#allocation5 + $0x14] sm:$0x3]
        %v4984 = vld [vmem:[#allocation5 + $0x20] sm:$0x3]
        %v4985 = vld [vmem:[#allocation5 + $0x2c] sm:$0x3]
        %v4986 = vld [vmem:[#allocation5 + $0x38] sm:$0x3]
        %v4987 = vld [vmem:[#allocation5 + $0x44] sm:$0x3]
        %v4988 = vld [vmem:[#allocation5 + $0x50] sm:$0x3]
        %v4989 = vld [vmem:[#allocation5 + $0x5c] sm:$0x3]
        %v4990 = vld [vmem:[#allocation5 + $0x68] sm:$0x3]
        %v4991 = vld [vmem:[#allocation5 + $0x74] sm:$0x3]
        %vm4992 = vsmask.f32 2304
        %vm4993 = vsmask.f32 6416
        %vm4994 = vmor %vm4992, %vm4993
        %v4996 = vshrl.u32 %v4872, 16
        %v4998 = vrot.slane %v4996, 5
        %v4999 = vshll.u32 %v4872, 16
        %v5001 = vrot.slane %v4999, 6
        %v5002 = vor.u32 %v4998, %v5001
        %v5003 = vrot.slane %v5002, 4
        %v5004 = vrot.slane %v4646, 5
        %v5005 = vrot.slane %v4642, 6
        %v5006 = vor.u32 %v5004, %v5005
        %v5007 = vsel %vm4994, %v5003, %v5006
        %v5008 = vrot.slane %v5006, 4
        %v5010 = vshrl.u32 %v4982, 16
        %v5012 = vrot.slane %v5010, 5
        %v5013 = vshll.u32 %v4982, 16
        %v5015 = vrot.slane %v5013, 6
        %v5016 = vor.u32 %v5012, %v5015
        %v5017 = vsel %vm4994, %v5008, %v5016
        %v5019 = vshrl.u32 %v4873, 16
        %v5021 = vrot.slane %v5019, 5
        %v5022 = vshll.u32 %v4873, 16
        %v5024 = vrot.slane %v5022, 6
        %v5025 = vor.u32 %v5021, %v5024
        %v5026 = vrot.slane %v5025, 4
        %v5027 = vrot.slane %v4670, 5
        %v5028 = vrot.slane %v4666, 6
        %v5029 = vor.u32 %v5027, %v5028
        %v5030 = vsel %vm4994, %v5026, %v5029
        %v5031 = vrot.slane %v5029, 4
        %v5033 = vshrl.u32 %v4983, 16
        %v5035 = vrot.slane %v5033, 5
        %v5036 = vshll.u32 %v4983, 16
        %v5038 = vrot.slane %v5036, 6
        %v5039 = vor.u32 %v5035, %v5038
        %v5040 = vsel %vm4994, %v5031, %v5039
        %v5042 = vshrl.u32 %v4874, 16
        %v5044 = vrot.slane %v5042, 5
        %v5045 = vshll.u32 %v4874, 16
        %v5047 = vrot.slane %v5045, 6
        %v5048 = vor.u32 %v5044, %v5047
        %v5049 = vrot.slane %v5048, 4
        %v5050 = vrot.slane %v4694, 5
        %v5051 = vrot.slane %v4690, 6
        %v5052 = vor.u32 %v5050, %v5051
        %v5053 = vsel %vm4994, %v5049, %v5052
        %v5054 = vrot.slane %v5052, 4
        %v5056 = vshrl.u32 %v4984, 16
        %v5058 = vrot.slane %v5056, 5
        %v5059 = vshll.u32 %v4984, 16
        %v5061 = vrot.slane %v5059, 6
        %v5062 = vor.u32 %v5058, %v5061
        %v5063 = vsel %vm4994, %v5054, %v5062
        %v5065 = vshrl.u32 %v4875, 16
        %v5067 = vrot.slane %v5065, 5
        %v5068 = vshll.u32 %v4875, 16
        %v5070 = vrot.slane %v5068, 6
        %v5071 = vor.u32 %v5067, %v5070
        %v5072 = vrot.slane %v5071, 4
        %v5073 = vrot.slane %v4718, 5
        %v5074 = vrot.slane %v4714, 6
        %v5075 = vor.u32 %v5073, %v5074
        %v5076 = vsel %vm4994, %v5072, %v5075
        %v5077 = vrot.slane %v5075, 4
        %v5079 = vshrl.u32 %v4985, 16
        %v5081 = vrot.slane %v5079, 5
        %v5082 = vshll.u32 %v4985, 16
        %v5084 = vrot.slane %v5082, 6
        %v5085 = vor.u32 %v5081, %v5084
        %v5086 = vsel %vm4994, %v5077, %v5085
        %v5088 = vshrl.u32 %v4876, 16
        %v5090 = vrot.slane %v5088, 5
        %v5091 = vshll.u32 %v4876, 16
        %v5093 = vrot.slane %v5091, 6
        %v5094 = vor.u32 %v5090, %v5093
        %v5095 = vrot.slane %v5094, 4
        %v5096 = vrot.slane %v4742, 5
        %v5097 = vrot.slane %v4738, 6
        %v5098 = vor.u32 %v5096, %v5097
        %v5099 = vsel %vm4994, %v5095, %v5098
        %v5100 = vrot.slane %v5098, 4
        %v5102 = vshrl.u32 %v4986, 16
        %v5104 = vrot.slane %v5102, 5
        %v5105 = vshll.u32 %v4986, 16
        %v5107 = vrot.slane %v5105, 6
        %v5108 = vor.u32 %v5104, %v5107
        %v5109 = vsel %vm4994, %v5100, %v5108
        %v5111 = vshrl.u32 %v4877, 16
        %v5113 = vrot.slane %v5111, 5
        %v5114 = vshll.u32 %v4877, 16
        %v5116 = vrot.slane %v5114, 6
        %v5117 = vor.u32 %v5113, %v5116
        %v5118 = vrot.slane %v5117, 4
        %v5119 = vrot.slane %v4766, 5
        %v5120 = vrot.slane %v4762, 6
        %v5121 = vor.u32 %v5119, %v5120
        %v5122 = vsel %vm4994, %v5118, %v5121
        %v5123 = vrot.slane %v5121, 4
        %v5125 = vshrl.u32 %v4987, 16
        %v5127 = vrot.slane %v5125, 5
        %v5128 = vshll.u32 %v4987, 16
        %v5130 = vrot.slane %v5128, 6
        %v5131 = vor.u32 %v5127, %v5130
        %v5132 = vsel %vm4994, %v5123, %v5131
        %v5134 = vshrl.u32 %v4878, 16
        %v5136 = vrot.slane %v5134, 5
        %v5137 = vshll.u32 %v4878, 16
        %v5139 = vrot.slane %v5137, 6
        %v5140 = vor.u32 %v5136, %v5139
        %v5141 = vrot.slane %v5140, 4
        %v5142 = vrot.slane %v4790, 5
        %v5143 = vrot.slane %v4786, 6
        %v5144 = vor.u32 %v5142, %v5143
        %v5145 = vsel %vm4994, %v5141, %v5144
        %v5146 = vrot.slane %v5144, 4
        %v5148 = vshrl.u32 %v4988, 16
        %v5150 = vrot.slane %v5148, 5
        %v5151 = vshll.u32 %v4988, 16
        %v5153 = vrot.slane %v5151, 6
        %v5154 = vor.u32 %v5150, %v5153
        %v5155 = vsel %vm4994, %v5146, %v5154
        %v5157 = vshrl.u32 %v4879, 16
        %v5159 = vrot.slane %v5157, 5
        %v5160 = vshll.u32 %v4879, 16
        %v5162 = vrot.slane %v5160, 6
        %v5163 = vor.u32 %v5159, %v5162
        %v5164 = vrot.slane %v5163, 4
        %v5165 = vrot.slane %v4814, 5
        %v5166 = vrot.slane %v4810, 6
        %v5167 = vor.u32 %v5165, %v5166
        %v5168 = vsel %vm4994, %v5164, %v5167
        %v5169 = vrot.slane %v5167, 4
        %v5171 = vshrl.u32 %v4989, 16
        %v5173 = vrot.slane %v5171, 5
        %v5174 = vshll.u32 %v4989, 16
        %v5176 = vrot.slane %v5174, 6
        %v5177 = vor.u32 %v5173, %v5176
        %v5178 = vsel %vm4994, %v5169, %v5177
        %v5180 = vshrl.u32 %v4880, 16
        %v5182 = vrot.slane %v5180, 5
        %v5183 = vshll.u32 %v4880, 16
        %v5185 = vrot.slane %v5183, 6
        %v5186 = vor.u32 %v5182, %v5185
        %v5187 = vrot.slane %v5186, 4
        %v5188 = vrot.slane %v4838, 5
        %v5189 = vrot.slane %v4834, 6
        %v5190 = vor.u32 %v5188, %v5189
        %v5191 = vsel %vm4994, %v5187, %v5190
        %v5192 = vrot.slane %v5190, 4
        %v5194 = vshrl.u32 %v4990, 16
        %v5196 = vrot.slane %v5194, 5
        %v5197 = vshll.u32 %v4990, 16
        %v5199 = vrot.slane %v5197, 6
        %v5200 = vor.u32 %v5196, %v5199
        %v5201 = vsel %vm4994, %v5192, %v5200
        %v5203 = vshrl.u32 %v4881, 16
        %v5205 = vrot.slane %v5203, 5
        %v5206 = vshll.u32 %v4881, 16
        %v5208 = vrot.slane %v5206, 6
        %v5209 = vor.u32 %v5205, %v5208
        %v5210 = vrot.slane %v5209, 4
        %v5211 = vrot.slane %v4862, 5
        %v5212 = vrot.slane %v4858, 6
        %v5213 = vor.u32 %v5211, %v5212
        %v5214 = vsel %vm4994, %v5210, %v5213
        %v5215 = vrot.slane %v5213, 4
        %v5217 = vshrl.u32 %v4991, 16
        %v5219 = vrot.slane %v5217, 5
        %v5220 = vshll.u32 %v4991, 16
        %v5222 = vrot.slane %v5220, 6
        %v5223 = vor.u32 %v5219, %v5222
        %v5224 = vsel %vm4994, %v5215, %v5223
        %v5225 = vld [vmem:[#allocation5] sm:$0xc]
        %v5226 = vld [vmem:[#allocation5 + $0xc] sm:$0xc]
        %v5227 = vld [vmem:[#allocation5 + $0x18] sm:$0xc]
        %v5228 = vld [vmem:[#allocation5 + $0x24] sm:$0xc]
        %v5229 = vld [vmem:[#allocation5 + $0x30] sm:$0xc]
        %v5230 = vld [vmem:[#allocation5 + $0x3c] sm:$0xc]
        %v5231 = vld [vmem:[#allocation5 + $0x48] sm:$0xc]
        %v5232 = vld [vmem:[#allocation5 + $0x54] sm:$0xc]
        %v5233 = vld [vmem:[#allocation5 + $0x60] sm:$0xc]
        %v5234 = vld [vmem:[#allocation5 + $0x6c] sm:$0xc]
        %vm5255 = vcmask 1041408
        %vm5256 = vcmask 1045508
        %vm5257 = vmor %vm5255, %vm5256
        %v5258 = vrot.slane %v5225, 6
        %v5259 = vrot.slane %v5258, 4
        %v5260 = vrot.slane %v4603, 6
        %v5261 = vsel %vm5257, %v5259, %v5260
        %v5262 = vrot.slane %v5260, 4
        %v5263 = vrot.slane %v4982, 6
        %v5264 = vsel %vm5257, %v5262, %v5263
        %v5265 = vrot.slane %v5226, 6
        %v5266 = vrot.slane %v5265, 4
        %v5267 = vrot.slane %v4605, 6
        %v5268 = vsel %vm5257, %v5266, %v5267
        %v5269 = vrot.slane %v5267, 4
        %v5270 = vrot.slane %v4983, 6
        %v5271 = vsel %vm5257, %v5269, %v5270
        %v5272 = vrot.slane %v5227, 6
        %v5273 = vrot.slane %v5272, 4
        %v5274 = vrot.slane %v4607, 6
        %v5275 = vsel %vm5257, %v5273, %v5274
        %v5276 = vrot.slane %v5274, 4
        %v5277 = vrot.slane %v4984, 6
        %v5278 = vsel %vm5257, %v5276, %v5277
        %v5279 = vrot.slane %v5228, 6
        %v5280 = vrot.slane %v5279, 4
        %v5281 = vrot.slane %v4609, 6
        %v5282 = vsel %vm5257, %v5280, %v5281
        %v5283 = vrot.slane %v5281, 4
        %v5284 = vrot.slane %v4985, 6
        %v5285 = vsel %vm5257, %v5283, %v5284
        %v5286 = vrot.slane %v5229, 6
        %v5287 = vrot.slane %v5286, 4
        %v5288 = vrot.slane %v4611, 6
        %v5289 = vsel %vm5257, %v5287, %v5288
        %v5290 = vrot.slane %v5288, 4
        %v5291 = vrot.slane %v4986, 6
        %v5292 = vsel %vm5257, %v5290, %v5291
        %v5293 = vrot.slane %v5230, 6
        %v5294 = vrot.slane %v5293, 4
        %v5295 = vrot.slane %v4613, 6
        %v5296 = vsel %vm5257, %v5294, %v5295
        %v5297 = vrot.slane %v5295, 4
        %v5298 = vrot.slane %v4987, 6
        %v5299 = vsel %vm5257, %v5297, %v5298
        %v5300 = vrot.slane %v5231, 6
        %v5301 = vrot.slane %v5300, 4
        %v5302 = vrot.slane %v4615, 6
        %v5303 = vsel %vm5257, %v5301, %v5302
        %v5304 = vrot.slane %v5302, 4
        %v5305 = vrot.slane %v4988, 6
        %v5306 = vsel %vm5257, %v5304, %v5305
        %v5307 = vrot.slane %v5232, 6
        %v5308 = vrot.slane %v5307, 4
        %v5309 = vrot.slane %v4617, 6
        %v5310 = vsel %vm5257, %v5308, %v5309
        %v5311 = vrot.slane %v5309, 4
        %v5312 = vrot.slane %v4989, 6
        %v5313 = vsel %vm5257, %v5311, %v5312
        %v5314 = vrot.slane %v5233, 6
        %v5315 = vrot.slane %v5314, 4
        %v5316 = vrot.slane %v4619, 6
        %v5317 = vsel %vm5257, %v5315, %v5316
        %v5318 = vrot.slane %v5316, 4
        %v5319 = vrot.slane %v4990, 6
        %v5320 = vsel %vm5257, %v5318, %v5319
        %v5321 = vrot.slane %v5234, 6
        %v5322 = vrot.slane %v5321, 4
        %v5323 = vrot.slane %v4621, 6
        %v5324 = vsel %vm5257, %v5322, %v5323
        %v5325 = vrot.slane %v5323, 4
        %v5326 = vrot.slane %v4991, 6
        %v5327 = vsel %vm5257, %v5325, %v5326
        %v5338 = vunpack.c.l.b16 %v4602
        %v5339 = vunpack.c.l.b16 %v4603
        %v5340 = vunpack.c.l.b16 %v4604
        %v5341 = vunpack.c.l.b16 %v4605
        %v5342 = vunpack.c.l.b16 %v4606
        %v5343 = vunpack.c.l.b16 %v4607
        %v5344 = vunpack.c.l.b16 %v4608
        %v5345 = vunpack.c.l.b16 %v4609
        %v5346 = vunpack.c.l.b16 %v4610
        %v5347 = vunpack.c.l.b16 %v4611
        %v5348 = vunpack.c.l.b16 %v4612
        %v5349 = vunpack.c.l.b16 %v4613
        %v5350 = vunpack.c.l.b16 %v4614
        %v5351 = vunpack.c.l.b16 %v4615
        %v5352 = vunpack.c.l.b16 %v4616
        %v5353 = vunpack.c.l.b16 %v4617
        %v5354 = vunpack.c.l.b16 %v4618
        %v5355 = vunpack.c.l.b16 %v4619
        %v5356 = vunpack.c.l.b16 %v4620
        %v5357 = vunpack.c.l.b16 %v4621
        %v5358 = vpack.c.b16 %v5339, %v5338
        %v5359 = vpack.c.b16 %v5341, %v5340
        %v5360 = vpack.c.b16 %v5343, %v5342
        %v5361 = vpack.c.b16 %v5345, %v5344
        %v5362 = vpack.c.b16 %v5347, %v5346
        %v5363 = vpack.c.b16 %v5349, %v5348
        %v5364 = vpack.c.b16 %v5351, %v5350
        %v5365 = vpack.c.b16 %v5353, %v5352
        %v5366 = vpack.c.b16 %v5355, %v5354
        %v5367 = vpack.c.b16 %v5357, %v5356
        %v5368 = vunpack.c.l.b16 %v4645
        %v5369 = vunpack.c.l.b16 %v4655
        %v5370 = vunpack.c.l.b16 %v4669
        %v5371 = vunpack.c.l.b16 %v4679
        %v5372 = vunpack.c.l.b16 %v4693
        %v5373 = vunpack.c.l.b16 %v4703
        %v5374 = vunpack.c.l.b16 %v4717
        %v5375 = vunpack.c.l.b16 %v4727
        %v5376 = vunpack.c.l.b16 %v4741
        %v5377 = vunpack.c.l.b16 %v4751
        %v5378 = vunpack.c.l.b16 %v4765
        %v5379 = vunpack.c.l.b16 %v4775
        %v5380 = vunpack.c.l.b16 %v4789
        %v5381 = vunpack.c.l.b16 %v4799
        %v5382 = vunpack.c.l.b16 %v4813
        %v5383 = vunpack.c.l.b16 %v4823
        %v5384 = vunpack.c.l.b16 %v4837
        %v5385 = vunpack.c.l.b16 %v4847
        %v5386 = vunpack.c.l.b16 %v4861
        %v5387 = vunpack.c.l.b16 %v4871
        %v5388 = vpack.c.b16 %v5369, %v5368
        %v5389 = vpack.c.b16 %v5371, %v5370
        %v5390 = vpack.c.b16 %v5373, %v5372
        %v5391 = vpack.c.b16 %v5375, %v5374
        %v5392 = vpack.c.b16 %v5377, %v5376
        %v5393 = vpack.c.b16 %v5379, %v5378
        %v5394 = vpack.c.b16 %v5381, %v5380
        %v5395 = vpack.c.b16 %v5383, %v5382
        %v5396 = vpack.c.b16 %v5385, %v5384
        %v5397 = vpack.c.b16 %v5387, %v5386
        %5398 = vrot.lane.b32.xlu0 %v5388, 64
        %v5399 = vpop.permute.xlu0 %5398
        %5400 = vrot.lane.b32.xlu0 %v5389, 64
        %v5401 = vpop.permute.xlu0 %5400
        %5402 = vrot.lane.b32.xlu0 %v5390, 64
        %v5403 = vpop.permute.xlu0 %5402
        %5404 = vrot.lane.b32.xlu0 %v5391, 64
        %v5405 = vpop.permute.xlu0 %5404
        %5406 = vrot.lane.b32.xlu0 %v5392, 64
        %v5407 = vpop.permute.xlu0 %5406
        %5408 = vrot.lane.b32.xlu0 %v5393, 64
        %v5409 = vpop.permute.xlu0 %5408
        %5410 = vrot.lane.b32.xlu0 %v5394, 64
        %v5411 = vpop.permute.xlu0 %5410
        %5412 = vrot.lane.b32.xlu0 %v5395, 64
        %v5413 = vpop.permute.xlu0 %5412
        %5414 = vrot.lane.b32.xlu0 %v5396, 64
        %v5415 = vpop.permute.xlu0 %5414
        %5416 = vrot.lane.b32.xlu0 %v5397, 64
        %v5417 = vpop.permute.xlu0 %5416
        %v5418 = vunpack.c.l.b16 %v4915
        %v5419 = vunpack.c.l.b16 %v4918
        %v5420 = vunpack.c.l.b16 %v4922
        %v5421 = vunpack.c.l.b16 %v4925
        %v5422 = vunpack.c.l.b16 %v4929
        %v5423 = vunpack.c.l.b16 %v4932
        %v5424 = vunpack.c.l.b16 %v4936
        %v5425 = vunpack.c.l.b16 %v4939
        %v5426 = vunpack.c.l.b16 %v4943
        %v5427 = vunpack.c.l.b16 %v4946
        %v5428 = vunpack.c.l.b16 %v4950
        %v5429 = vunpack.c.l.b16 %v4953
        %v5430 = vunpack.c.l.b16 %v4957
        %v5431 = vunpack.c.l.b16 %v4960
        %v5432 = vunpack.c.l.b16 %v4964
        %v5433 = vunpack.c.l.b16 %v4967
        %v5434 = vunpack.c.l.b16 %v4971
        %v5435 = vunpack.c.l.b16 %v4974
        %v5436 = vunpack.c.l.b16 %v4978
        %v5437 = vunpack.c.l.b16 %v4981
        %v5438 = vpack.c.b16 %v5419, %v5418
        %v5439 = vpack.c.b16 %v5421, %v5420
        %v5440 = vpack.c.b16 %v5423, %v5422
        %v5441 = vpack.c.b16 %v5425, %v5424
        %v5442 = vpack.c.b16 %v5427, %v5426
        %v5443 = vpack.c.b16 %v5429, %v5428
        %v5444 = vpack.c.b16 %v5431, %v5430
        %v5445 = vpack.c.b16 %v5433, %v5432
        %v5446 = vpack.c.b16 %v5435, %v5434
        %v5447 = vpack.c.b16 %v5437, %v5436
        %v5448 = vunpack.c.l.b16 %v5007
        %v5449 = vunpack.c.l.b16 %v5017
        %v5450 = vunpack.c.l.b16 %v5030
        %v5451 = vunpack.c.l.b16 %v5040
        %v5452 = vunpack.c.l.b16 %v5053
        %v5453 = vunpack.c.l.b16 %v5063
        %v5454 = vunpack.c.l.b16 %v5076
        %v5455 = vunpack.c.l.b16 %v5086
        %v5456 = vunpack.c.l.b16 %v5099
        %v5457 = vunpack.c.l.b16 %v5109
        %v5458 = vunpack.c.l.b16 %v5122
        %v5459 = vunpack.c.l.b16 %v5132
        %v5460 = vunpack.c.l.b16 %v5145
        %v5461 = vunpack.c.l.b16 %v5155
        %v5462 = vunpack.c.l.b16 %v5168
        %v5463 = vunpack.c.l.b16 %v5178
        %v5464 = vunpack.c.l.b16 %v5191
        %v5465 = vunpack.c.l.b16 %v5201
        %v5466 = vunpack.c.l.b16 %v5214
        %v5467 = vunpack.c.l.b16 %v5224
        %v5468 = vpack.c.b16 %v5449, %v5448
        %v5469 = vpack.c.b16 %v5451, %v5450
        %v5470 = vpack.c.b16 %v5453, %v5452
        %v5471 = vpack.c.b16 %v5455, %v5454
        %v5472 = vpack.c.b16 %v5457, %v5456
        %v5473 = vpack.c.b16 %v5459, %v5458
        %v5474 = vpack.c.b16 %v5461, %v5460
        %v5475 = vpack.c.b16 %v5463, %v5462
        %v5476 = vpack.c.b16 %v5465, %v5464
        %v5477 = vpack.c.b16 %v5467, %v5466
        %5478 = vrot.lane.b32.xlu0 %v5468, 64
        %v5479 = vpop.permute.xlu0 %5478
        %5480 = vrot.lane.b32.xlu0 %v5469, 64
        %v5481 = vpop.permute.xlu0 %5480
        %5482 = vrot.lane.b32.xlu0 %v5470, 64
        %v5483 = vpop.permute.xlu0 %5482
        %5484 = vrot.lane.b32.xlu0 %v5471, 64
        %v5485 = vpop.permute.xlu0 %5484
        %5486 = vrot.lane.b32.xlu0 %v5472, 64
        %v5487 = vpop.permute.xlu0 %5486
        %5488 = vrot.lane.b32.xlu0 %v5473, 64
        %v5489 = vpop.permute.xlu0 %5488
        %5490 = vrot.lane.b32.xlu0 %v5474, 64
        %v5491 = vpop.permute.xlu0 %5490
        %5492 = vrot.lane.b32.xlu0 %v5475, 64
        %v5493 = vpop.permute.xlu0 %5492
        %5494 = vrot.lane.b32.xlu0 %v5476, 64
        %v5495 = vpop.permute.xlu0 %5494
        %5496 = vrot.lane.b32.xlu0 %v5477, 64
        %v5497 = vpop.permute.xlu0 %5496
        %v5498 = vunpack.c.l.b16 %v5261
        %v5499 = vunpack.c.l.b16 %v5264
        %v5500 = vunpack.c.l.b16 %v5268
        %v5501 = vunpack.c.l.b16 %v5271
        %v5502 = vunpack.c.l.b16 %v5275
        %v5503 = vunpack.c.l.b16 %v5278
        %v5504 = vunpack.c.l.b16 %v5282
        %v5505 = vunpack.c.l.b16 %v5285
        %v5506 = vunpack.c.l.b16 %v5289
        %v5507 = vunpack.c.l.b16 %v5292
        %v5508 = vunpack.c.l.b16 %v5296
        %v5509 = vunpack.c.l.b16 %v5299
        %v5510 = vunpack.c.l.b16 %v5303
        %v5511 = vunpack.c.l.b16 %v5306
        %v5512 = vunpack.c.l.b16 %v5310
        %v5513 = vunpack.c.l.b16 %v5313
        %v5514 = vunpack.c.l.b16 %v5317
        %v5515 = vunpack.c.l.b16 %v5320
        %v5516 = vunpack.c.l.b16 %v5324
        %v5517 = vunpack.c.l.b16 %v5327
        %v5518 = vpack.c.b16 %v5499, %v5498
        %v5519 = vpack.c.b16 %v5501, %v5500
        %v5520 = vpack.c.b16 %v5503, %v5502
        %v5521 = vpack.c.b16 %v5505, %v5504
        %v5522 = vpack.c.b16 %v5507, %v5506
        %v5523 = vpack.c.b16 %v5509, %v5508
        %v5524 = vpack.c.b16 %v5511, %v5510
        %v5525 = vpack.c.b16 %v5513, %v5512
        %v5526 = vpack.c.b16 %v5515, %v5514
        %v5527 = vpack.c.b16 %v5517, %v5516
        %v5530 = vsel %vm2011, %v5358, %v5399
        %v5534 = vsel %vm2011, %v5359, %v5401
        %v5538 = vsel %vm2011, %v5360, %v5403
        %v5542 = vsel %vm2011, %v5361, %v5405
        %v5546 = vsel %vm2011, %v5362, %v5407
        %v5550 = vsel %vm2011, %v5363, %v5409
        %v5554 = vsel %vm2011, %v5364, %v5411
        %v5558 = vsel %vm2011, %v5365, %v5413
        %v5562 = vsel %vm2011, %v5366, %v5415
        %v5566 = vsel %vm2011, %v5367, %v5417
        %v5570 = vsel %vm2011, %v5438, %v5479
        %v5574 = vsel %vm2011, %v5439, %v5481
        %v5578 = vsel %vm2011, %v5440, %v5483
        %v5582 = vsel %vm2011, %v5441, %v5485
        %v5586 = vsel %vm2011, %v5442, %v5487
        %v5590 = vsel %vm2011, %v5443, %v5489
        %v5594 = vsel %vm2011, %v5444, %v5491
        %v5598 = vsel %vm2011, %v5445, %v5493
        %v5602 = vsel %vm2011, %v5446, %v5495
        %v5606 = vsel %vm2011, %v5447, %v5497
        %v5608 = vld [vmem:[%s10] sm:$0xf]
        %v5609 = vld [vmem:[%s10 + $0x4] sm:$0xf]
        %v5610 = vld [vmem:[%s10 + $0x8] sm:$0xf]
        %v5611 = vld [vmem:[%s10 + $0xc] sm:$0xf]
        %v5612 = vld [vmem:[%s10 + $0x10] sm:$0xf]
        %v5613 = vld [vmem:[%s10 + $0x14] sm:$0xf]
        %v5614 = vld [vmem:[%s10 + $0x18] sm:$0xf]
        %v5615 = vld [vmem:[%s10 + $0x1c] sm:$0xf]
        %v5616 = vld [vmem:[%s10 + $0x20] sm:$0xf]
        %v5617 = vld [vmem:[%s10 + $0x24] sm:$0xf]
        %v5618 = vld [vmem:[%s10 + $0x28] sm:$0xf]
        %v5619 = vld [vmem:[%s10 + $0x2c] sm:$0xf]
        %v5620 = vld [vmem:[%s10 + $0x30] sm:$0xf]
        %v5621 = vld [vmem:[%s10 + $0x34] sm:$0xf]
        %v5622 = vld [vmem:[%s10 + $0x38] sm:$0xf]
        %v5623 = vld [vmem:[%s10 + $0x3c] sm:$0xf]
        %v5624 = vld [vmem:[%s10 + $0x40] sm:$0xf]
        %v5625 = vld [vmem:[%s10 + $0x44] sm:$0xf]
        %v5626 = vld [vmem:[%s10 + $0x48] sm:$0xf]
        %v5627 = vld [vmem:[%s10 + $0x4c] sm:$0xf]
        %v5628 = vld [vmem:[%s10 + $0x50] sm:$0xf]
        %v5629 = vld [vmem:[%s10 + $0x54] sm:$0xf]
        %v5630 = vld [vmem:[%s10 + $0x58] sm:$0xf]
        %v5631 = vld [vmem:[%s10 + $0x5c] sm:$0xf]
        %v5632 = vld [vmem:[%s10 + $0x60] sm:$0xf]
        %v5633 = vld [vmem:[%s10 + $0x64] sm:$0xf]
        %v5634 = vld [vmem:[%s10 + $0x68] sm:$0xf]
        %v5635 = vld [vmem:[%s10 + $0x6c] sm:$0xf]
        %v5636 = vld [vmem:[%s10 + $0x70] sm:$0xf]
        %v5637 = vld [vmem:[%s10 + $0x74] sm:$0xf]
        %v5638 = vld [vmem:[%s10 + $0x78] sm:$0xf]
        %v5639 = vld [vmem:[%s10 + $0x7c] sm:$0xf]
        %v5640 = vld [vmem:[%s10 + $0x80] sm:$0xf]
        %v5641 = vld [vmem:[%s10 + $0x84] sm:$0xf]
        %v5642 = vld [vmem:[%s10 + $0x88] sm:$0xf]
        %v5643 = vld [vmem:[%s10 + $0x8c] sm:$0xf]
        %v5644 = vld [vmem:[%s10 + $0x90] sm:$0xf]
        %v5645 = vld [vmem:[%s10 + $0x94] sm:$0xf]
        %v5646 = vld [vmem:[%s10 + $0x98] sm:$0xf]
        %v5647 = vld [vmem:[%s10 + $0x9c] sm:$0xf]
        %v5688 = vunpack.c.l.b16 %v5608
        %v5689 = vunpack.c.l.b16 %v5609
        %v5690 = vunpack.c.l.b16 %v5610
        %v5691 = vunpack.c.l.b16 %v5611
        %v5692 = vunpack.c.l.b16 %v5612
        %v5693 = vunpack.c.l.b16 %v5613
        %v5694 = vunpack.c.l.b16 %v5614
        %v5695 = vunpack.c.l.b16 %v5615
        %v5696 = vunpack.c.l.b16 %v5616
        %v5697 = vunpack.c.l.b16 %v5617
        %v5698 = vunpack.c.l.b16 %v5618
        %v5699 = vunpack.c.l.b16 %v5619
        %v5700 = vunpack.c.l.b16 %v5620
        %v5701 = vunpack.c.l.b16 %v5621
        %v5702 = vunpack.c.l.b16 %v5622
        %v5703 = vunpack.c.l.b16 %v5623
        %v5704 = vunpack.c.l.b16 %v5624
        %v5705 = vunpack.c.l.b16 %v5625
        %v5706 = vunpack.c.l.b16 %v5626
        %v5707 = vunpack.c.l.b16 %v5627
        %v5708 = vunpack.c.l.b16 %v5628
        %v5709 = vunpack.c.l.b16 %v5629
        %v5710 = vunpack.c.l.b16 %v5630
        %v5711 = vunpack.c.l.b16 %v5631
        %v5712 = vunpack.c.l.b16 %v5632
        %v5713 = vunpack.c.l.b16 %v5633
        %v5714 = vunpack.c.l.b16 %v5634
        %v5715 = vunpack.c.l.b16 %v5635
        %v5716 = vunpack.c.l.b16 %v5636
        %v5717 = vunpack.c.l.b16 %v5637
        %v5718 = vunpack.c.l.b16 %v5638
        %v5719 = vunpack.c.l.b16 %v5639
        %v5720 = vunpack.c.l.b16 %v5640
        %v5721 = vunpack.c.l.b16 %v5641
        %v5722 = vunpack.c.l.b16 %v5642
        %v5723 = vunpack.c.l.b16 %v5643
        %v5724 = vunpack.c.l.b16 %v5644
        %v5725 = vunpack.c.l.b16 %v5645
        %v5726 = vunpack.c.l.b16 %v5646
        %v5727 = vunpack.c.l.b16 %v5647
        %v5728 = vpack.c.b16 %v5689, %v5688
        %v5729 = vpack.c.b16 %v5691, %v5690
        %v5730 = vpack.c.b16 %v5693, %v5692
        %v5731 = vpack.c.b16 %v5695, %v5694
        %v5732 = vpack.c.b16 %v5697, %v5696
        %v5733 = vpack.c.b16 %v5699, %v5698
        %v5734 = vpack.c.b16 %v5701, %v5700
        %v5735 = vpack.c.b16 %v5703, %v5702
        %v5736 = vpack.c.b16 %v5705, %v5704
        %v5737 = vpack.c.b16 %v5707, %v5706
        %v5738 = vpack.c.b16 %v5709, %v5708
        %v5739 = vpack.c.b16 %v5711, %v5710
        %v5740 = vpack.c.b16 %v5713, %v5712
        %v5741 = vpack.c.b16 %v5715, %v5714
        %v5742 = vpack.c.b16 %v5717, %v5716
        %v5743 = vpack.c.b16 %v5719, %v5718
        %v5744 = vpack.c.b16 %v5721, %v5720
        %v5745 = vpack.c.b16 %v5723, %v5722
        %v5746 = vpack.c.b16 %v5725, %v5724
        %v5747 = vpack.c.b16 %v5727, %v5726
        %v5769 = vsel %vm2011, %v5518, 0
        %v5772 = vsel %vm2011, %v5519, 0
        %v5775 = vsel %vm2011, %v5520, 0
        %v5778 = vsel %vm2011, %v5521, 0
        %v5781 = vsel %vm2011, %v5522, 0
        %v5784 = vsel %vm2011, %v5523, 0
        %v5787 = vsel %vm2011, %v5524, 0
        %v5790 = vsel %vm2011, %v5525, 0
        %v5793 = vsel %vm2011, %v5526, 0
        %v5796 = vsel %vm2011, %v5527, 0
        %5798 = vmatpush.bf16.msra.mxu0 %v5735
        %5799 = vmatpush.bf16.msra.mxu0 %v5734
        %5800 = vmatpush.bf16.msra.mxu0 %v5733
        %5801 = vmatpush.bf16.msra.mxu0 %v5732
        %5802 = vmatpush.bf16.msra.mxu0 %v5731
        %5803 = vmatpush.bf16.msra.mxu0 %v5730
        %5804 = vmatpush.bf16.msra.mxu0 %v5729
        %5805 = vmatpush.bf16.msra.mxu0 %v5728
        %5806 = vmatmul.bf16.gmra.mxu0 %v5530
        %v5807 = vpop.f32.mrf.mxu0
        %v5808 = vadd.f32 0.0, %v5807
        %v5809 = vpop.f32.mrf.mxu0
        %v5810 = vadd.f32 0.0, %v5809
        %5811 = vmatmul.bf16.gmra.mxu0 %v5534
        %v5812 = vpop.f32.mrf.mxu0
        %v5813 = vadd.f32 0.0, %v5812
        %v5814 = vpop.f32.mrf.mxu0
        %v5815 = vadd.f32 0.0, %v5814
        %5816 = vmatmul.bf16.gmra.mxu0 %v5538
        %v5817 = vpop.f32.mrf.mxu0
        %v5818 = vadd.f32 0.0, %v5817
        %v5819 = vpop.f32.mrf.mxu0
        %v5820 = vadd.f32 0.0, %v5819
        %5821 = vmatmul.bf16.gmra.mxu0 %v5542
        %v5822 = vpop.f32.mrf.mxu0
        %v5823 = vadd.f32 0.0, %v5822
        %v5824 = vpop.f32.mrf.mxu0
        %v5825 = vadd.f32 0.0, %v5824
        %5826 = vmatmul.bf16.gmra.mxu0 %v5546
        %v5827 = vpop.f32.mrf.mxu0
        %v5828 = vadd.f32 0.0, %v5827
        %v5829 = vpop.f32.mrf.mxu0
        %v5830 = vadd.f32 0.0, %v5829
        %5831 = vmatmul.bf16.gmra.mxu0 %v5550
        %v5832 = vpop.f32.mrf.mxu0
        %v5833 = vadd.f32 0.0, %v5832
        %v5834 = vpop.f32.mrf.mxu0
        %v5835 = vadd.f32 0.0, %v5834
        %5836 = vmatmul.bf16.gmra.mxu0 %v5554
        %v5837 = vpop.f32.mrf.mxu0
        %v5838 = vadd.f32 0.0, %v5837
        %v5839 = vpop.f32.mrf.mxu0
        %v5840 = vadd.f32 0.0, %v5839
        %5841 = vmatmul.bf16.gmra.mxu0 %v5558
        %v5842 = vpop.f32.mrf.mxu0
        %v5843 = vadd.f32 0.0, %v5842
        %v5844 = vpop.f32.mrf.mxu0
        %v5845 = vadd.f32 0.0, %v5844
        %5846 = vmatmul.bf16.gmra.mxu0 %v5562
        %v5847 = vpop.f32.mrf.mxu0
        %v5848 = vadd.f32 0.0, %v5847
        %v5849 = vpop.f32.mrf.mxu0
        %v5850 = vadd.f32 0.0, %v5849
        %5851 = vmatmul.bf16.gmra.mxu0 %v5566
        %v5852 = vpop.f32.mrf.mxu0
        %v5853 = vadd.f32 0.0, %v5852
        %v5854 = vpop.f32.mrf.mxu0
        %v5855 = vadd.f32 0.0, %v5854
        %5856 = vdwg.mxu0
        %5857 = vmatpush.bf16.msra.mxu0 %v5743
        %5858 = vmatpush.bf16.msra.mxu0 %v5742
        %5859 = vmatpush.bf16.msra.mxu0 %v5741
        %5860 = vmatpush.bf16.msra.mxu0 %v5740
        %5861 = vmatpush.bf16.msra.mxu0 %v5739
        %5862 = vmatpush.bf16.msra.mxu0 %v5738
        %5863 = vmatpush.bf16.msra.mxu0 %v5737
        %5864 = vmatpush.bf16.msra.mxu0 %v5736
        %5865 = vmatmul.bf16.gmra.mxu0 %v5570
        %v5866 = vpop.f32.mrf.mxu0
        %v5867 = vadd.f32 %v5808, %v5866
        %v5868 = vpop.f32.mrf.mxu0
        %v5869 = vadd.f32 %v5810, %v5868
        %5870 = vmatmul.bf16.gmra.mxu0 %v5574
        %v5871 = vpop.f32.mrf.mxu0
        %v5872 = vadd.f32 %v5813, %v5871
        %v5873 = vpop.f32.mrf.mxu0
        %v5874 = vadd.f32 %v5815, %v5873
        %5875 = vmatmul.bf16.gmra.mxu0 %v5578
        %v5876 = vpop.f32.mrf.mxu0
        %v5877 = vadd.f32 %v5818, %v5876
        %v5878 = vpop.f32.mrf.mxu0
        %v5879 = vadd.f32 %v5820, %v5878
        %5880 = vmatmul.bf16.gmra.mxu0 %v5582
        %v5881 = vpop.f32.mrf.mxu0
        %v5882 = vadd.f32 %v5823, %v5881
        %v5883 = vpop.f32.mrf.mxu0
        %v5884 = vadd.f32 %v5825, %v5883
        %5885 = vmatmul.bf16.gmra.mxu0 %v5586
        %v5886 = vpop.f32.mrf.mxu0
        %v5887 = vadd.f32 %v5828, %v5886
        %v5888 = vpop.f32.mrf.mxu0
        %v5889 = vadd.f32 %v5830, %v5888
        %5890 = vmatmul.bf16.gmra.mxu0 %v5590
        %v5891 = vpop.f32.mrf.mxu0
        %v5892 = vadd.f32 %v5833, %v5891
        %v5893 = vpop.f32.mrf.mxu0
        %v5894 = vadd.f32 %v5835, %v5893
        %5895 = vmatmul.bf16.gmra.mxu0 %v5594
        %v5896 = vpop.f32.mrf.mxu0
        %v5897 = vadd.f32 %v5838, %v5896
        %v5898 = vpop.f32.mrf.mxu0
        %v5899 = vadd.f32 %v5840, %v5898
        %5900 = vmatmul.bf16.gmra.mxu0 %v5598
        %v5901 = vpop.f32.mrf.mxu0
        %v5902 = vadd.f32 %v5843, %v5901
        %v5903 = vpop.f32.mrf.mxu0
        %v5904 = vadd.f32 %v5845, %v5903
        %5905 = vmatmul.bf16.gmra.mxu0 %v5602
        %v5906 = vpop.f32.mrf.mxu0
        %v5907 = vadd.f32 %v5848, %v5906
        %v5908 = vpop.f32.mrf.mxu0
        %v5909 = vadd.f32 %v5850, %v5908
        %5910 = vmatmul.bf16.gmra.mxu0 %v5606
        %v5911 = vpop.f32.mrf.mxu0
        %v5912 = vadd.f32 %v5853, %v5911
        %v5913 = vpop.f32.mrf.mxu0
        %v5914 = vadd.f32 %v5855, %v5913
        %5915 = vdwg.mxu0
        %5916 = vmatpush.bf16.msra.mxu0 0
        %5917 = vmatpush.bf16.msra.mxu0 0
        %5918 = vmatpush.bf16.msra.mxu0 0
        %5919 = vmatpush.bf16.msra.mxu0 0
        %5920 = vmatpush.bf16.msra.mxu0 %v5747
        %5921 = vmatpush.bf16.msra.mxu0 %v5746
        %5922 = vmatpush.bf16.msra.mxu0 %v5745
        %5923 = vmatpush.bf16.msra.mxu0 %v5744
        %5924 = vmatmul.bf16.gmra.mxu0 %v5769
        %v5925 = vpop.f32.mrf.mxu0
        %v5926 = vadd.f32 %v5867, %v5925
        %v5927 = vpop.f32.mrf.mxu0
        %v5928 = vadd.f32 %v5869, %v5927
        %5929 = vmatmul.bf16.gmra.mxu0 %v5772
        %v5930 = vpop.f32.mrf.mxu0
        %v5931 = vadd.f32 %v5872, %v5930
        %v5932 = vpop.f32.mrf.mxu0
        %v5933 = vadd.f32 %v5874, %v5932
        %5934 = vmatmul.bf16.gmra.mxu0 %v5775
        %v5935 = vpop.f32.mrf.mxu0
        %v5936 = vadd.f32 %v5877, %v5935
        %v5937 = vpop.f32.mrf.mxu0
        %v5938 = vadd.f32 %v5879, %v5937
        %5939 = vmatmul.bf16.gmra.mxu0 %v5778
        %v5940 = vpop.f32.mrf.mxu0
        %v5941 = vadd.f32 %v5882, %v5940
        %v5942 = vpop.f32.mrf.mxu0
        %v5943 = vadd.f32 %v5884, %v5942
        %5944 = vmatmul.bf16.gmra.mxu0 %v5781
        %v5945 = vpop.f32.mrf.mxu0
        %v5946 = vadd.f32 %v5887, %v5945
        %v5947 = vpop.f32.mrf.mxu0
        %v5948 = vadd.f32 %v5889, %v5947
        %5949 = vmatmul.bf16.gmra.mxu0 %v5784
        %v5950 = vpop.f32.mrf.mxu0
        %v5951 = vadd.f32 %v5892, %v5950
        %v5952 = vpop.f32.mrf.mxu0
        %v5953 = vadd.f32 %v5894, %v5952
        %5954 = vmatmul.bf16.gmra.mxu0 %v5787
        %v5955 = vpop.f32.mrf.mxu0
        %v5956 = vadd.f32 %v5897, %v5955
        %v5957 = vpop.f32.mrf.mxu0
        %v5958 = vadd.f32 %v5899, %v5957
        %5959 = vmatmul.bf16.gmra.mxu0 %v5790
        %v5960 = vpop.f32.mrf.mxu0
        %v5961 = vadd.f32 %v5902, %v5960
        %v5962 = vpop.f32.mrf.mxu0
        %v5963 = vadd.f32 %v5904, %v5962
        %5964 = vmatmul.bf16.gmra.mxu0 %v5793
        %v5965 = vpop.f32.mrf.mxu0
        %v5966 = vadd.f32 %v5907, %v5965
        %v5967 = vpop.f32.mrf.mxu0
        %v5968 = vadd.f32 %v5909, %v5967
        %5969 = vmatmul.bf16.gmra.mxu0 %v5796
        %v5970 = vpop.f32.mrf.mxu0
        %v5971 = vadd.f32 %v5912, %v5970
        %v5972 = vpop.f32.mrf.mxu0
        %v5973 = vadd.f32 %v5914, %v5972
        %5974 = vdwg.mxu0
        %v5975 = vld [vmem:[%s11] sm:$0x1]
        %v5977 = vperm.slane %v5975, 0
        %v5979 = vmul.f32 %v5926, %v5977
        %v5980 = vmul.f32 %v5928, %v5977
        %v5981 = vmul.f32 %v5931, %v5977
        %v5982 = vmul.f32 %v5933, %v5977
        %v5983 = vmul.f32 %v5936, %v5977
        %v5984 = vmul.f32 %v5938, %v5977
        %v5985 = vmul.f32 %v5941, %v5977
        %v5986 = vmul.f32 %v5943, %v5977
        %v5987 = vmul.f32 %v5946, %v5977
        %v5988 = vmul.f32 %v5948, %v5977
        %v5989 = vmul.f32 %v5951, %v5977
        %v5990 = vmul.f32 %v5953, %v5977
        %v5991 = vmul.f32 %v5956, %v5977
        %v5992 = vmul.f32 %v5958, %v5977
        %v5993 = vmul.f32 %v5961, %v5977
        %v5994 = vmul.f32 %v5963, %v5977
        %v5995 = vmul.f32 %v5966, %v5977
        %v5996 = vmul.f32 %v5968, %v5977
        %v5997 = vmul.f32 %v5971, %v5977
        %v5998 = vmul.f32 %v5973, %v5977
        %v5999 = vld [vmem:[%s12] sm:$0x1]
        %v6001 = vperm.slane %v5999, 0
        %v6003 = vadd.f32 %v5979, %v6001
        %v6004 = vadd.f32 %v5980, %v6001
        %v6005 = vadd.f32 %v5981, %v6001
        %v6006 = vadd.f32 %v5982, %v6001
        %v6007 = vadd.f32 %v5983, %v6001
        %v6008 = vadd.f32 %v5984, %v6001
        %v6009 = vadd.f32 %v5985, %v6001
        %v6010 = vadd.f32 %v5986, %v6001
        %v6011 = vadd.f32 %v5987, %v6001
        %v6012 = vadd.f32 %v5988, %v6001
        %v6013 = vadd.f32 %v5989, %v6001
        %v6014 = vadd.f32 %v5990, %v6001
        %v6015 = vadd.f32 %v5991, %v6001
        %v6016 = vadd.f32 %v5992, %v6001
        %v6017 = vadd.f32 %v5993, %v6001
        %v6018 = vadd.f32 %v5994, %v6001
        %v6019 = vadd.f32 %v5995, %v6001
        %v6020 = vadd.f32 %v5996, %v6001
        %v6021 = vadd.f32 %v5997, %v6001
        %v6022 = vadd.f32 %v5998, %v6001
        %v6023 = vmax.f32 %v6003, 0.0
        %v6024 = vmax.f32 %v6004, 0.0
        %v6025 = vmax.f32 %v6005, 0.0
        %v6026 = vmax.f32 %v6006, 0.0
        %v6027 = vmax.f32 %v6007, 0.0
        %v6028 = vmax.f32 %v6008, 0.0
        %v6029 = vmax.f32 %v6009, 0.0
        %v6030 = vmax.f32 %v6010, 0.0
        %v6031 = vmax.f32 %v6011, 0.0
        %v6032 = vmax.f32 %v6012, 0.0
        %v6033 = vmax.f32 %v6013, 0.0
        %v6034 = vmax.f32 %v6014, 0.0
        %v6035 = vmax.f32 %v6015, 0.0
        %v6036 = vmax.f32 %v6016, 0.0
        %v6037 = vmax.f32 %v6017, 0.0
        %v6038 = vmax.f32 %v6018, 0.0
        %v6039 = vmax.f32 %v6019, 0.0
        %v6040 = vmax.f32 %v6020, 0.0
        %v6041 = vmax.f32 %v6021, 0.0
        %v6042 = vmax.f32 %v6022, 0.0
        %v6043 = vld [vmem:[#allocation6] sm:$0x1]
        %v6044 = vsel %vm1246, 0, %v6043
        %6045 = vst [vmem:[#allocation6] sm:$0x1] %v6044
        %v6046 = vld [vmem:[#allocation6 + $0xc] sm:$0x1]
        %v6047 = vsel %vm1246, 0, %v6046
        %6048 = vst [vmem:[#allocation6 + $0xc] sm:$0x1] %v6047
        %v6049 = vld [vmem:[#allocation6 + $0x18] sm:$0x1]
        %v6050 = vsel %vm1246, 0, %v6049
        %6051 = vst [vmem:[#allocation6 + $0x18] sm:$0x1] %v6050
        %v6052 = vld [vmem:[#allocation6 + $0x24] sm:$0x1]
        %v6053 = vsel %vm1246, 0, %v6052
        %6054 = vst [vmem:[#allocation6 + $0x24] sm:$0x1] %v6053
        %v6055 = vld [vmem:[#allocation6 + $0x30] sm:$0x1]
        %v6056 = vsel %vm1246, 0, %v6055
        %6057 = vst [vmem:[#allocation6 + $0x30] sm:$0x1] %v6056
        %v6058 = vld [vmem:[#allocation6 + $0x3c] sm:$0x1]
        %v6059 = vsel %vm1246, 0, %v6058
        %6060 = vst [vmem:[#allocation6 + $0x3c] sm:$0x1] %v6059
        %v6061 = vld [vmem:[#allocation6 + $0x48] sm:$0x1]
        %v6062 = vsel %vm1246, 0, %v6061
        %6063 = vst [vmem:[#allocation6 + $0x48] sm:$0x1] %v6062
        %v6064 = vld [vmem:[#allocation6 + $0x54] sm:$0x1]
        %v6065 = vsel %vm1246, 0, %v6064
        %6066 = vst [vmem:[#allocation6 + $0x54] sm:$0x1] %v6065
        %v6067 = vld [vmem:[#allocation6 + $0x60] sm:$0x1]
        %v6068 = vsel %vm1246, 0, %v6067
        %6069 = vst [vmem:[#allocation6 + $0x60] sm:$0x1] %v6068
        %v6070 = vld [vmem:[#allocation6 + $0x6c] sm:$0x1]
        %v6071 = vsel %vm1246, 0, %v6070
        %6072 = vst [vmem:[#allocation6 + $0x6c] sm:$0x1] %v6071
        %v6073 = vld [vmem:[#allocation6 + $0x8] sm:$0x1]
        %v6074 = vsel %vm1278, 0, %v6073
        %6075 = vst [vmem:[#allocation6 + $0x8] sm:$0x1] %v6074
        %v6076 = vld [vmem:[#allocation6 + $0x14] sm:$0x1]
        %v6077 = vsel %vm1278, 0, %v6076
        %6078 = vst [vmem:[#allocation6 + $0x14] sm:$0x1] %v6077
        %v6079 = vld [vmem:[#allocation6 + $0x20] sm:$0x1]
        %v6080 = vsel %vm1278, 0, %v6079
        %6081 = vst [vmem:[#allocation6 + $0x20] sm:$0x1] %v6080
        %v6082 = vld [vmem:[#allocation6 + $0x2c] sm:$0x1]
        %v6083 = vsel %vm1278, 0, %v6082
        %6084 = vst [vmem:[#allocation6 + $0x2c] sm:$0x1] %v6083
        %v6085 = vld [vmem:[#allocation6 + $0x38] sm:$0x1]
        %v6086 = vsel %vm1278, 0, %v6085
        %6087 = vst [vmem:[#allocation6 + $0x38] sm:$0x1] %v6086
        %v6088 = vld [vmem:[#allocation6 + $0x44] sm:$0x1]
        %v6089 = vsel %vm1278, 0, %v6088
        %6090 = vst [vmem:[#allocation6 + $0x44] sm:$0x1] %v6089
        %v6091 = vld [vmem:[#allocation6 + $0x50] sm:$0x1]
        %v6092 = vsel %vm1278, 0, %v6091
        %6093 = vst [vmem:[#allocation6 + $0x50] sm:$0x1] %v6092
        %v6094 = vld [vmem:[#allocation6 + $0x5c] sm:$0x1]
        %v6095 = vsel %vm1278, 0, %v6094
        %6096 = vst [vmem:[#allocation6 + $0x5c] sm:$0x1] %v6095
        %v6097 = vld [vmem:[#allocation6 + $0x68] sm:$0x1]
        %v6098 = vsel %vm1278, 0, %v6097
        %6099 = vst [vmem:[#allocation6 + $0x68] sm:$0x1] %v6098
        %v6100 = vld [vmem:[#allocation6 + $0x74] sm:$0x1]
        %v6101 = vsel %vm1278, 0, %v6100
        %6102 = vst [vmem:[#allocation6 + $0x74] sm:$0x1] %v6101
        %v6103 = vpack.c.bf16 %v6023, %v6023
        %v6104 = vpack.c.bf16 %v6024, %v6024
        %v6105 = vpack.c.bf16 %v6025, %v6025
        %v6106 = vpack.c.bf16 %v6026, %v6026
        %v6107 = vpack.c.bf16 %v6027, %v6027
        %v6108 = vpack.c.bf16 %v6028, %v6028
        %v6109 = vpack.c.bf16 %v6029, %v6029
        %v6110 = vpack.c.bf16 %v6030, %v6030
        %v6111 = vpack.c.bf16 %v6031, %v6031
        %v6112 = vpack.c.bf16 %v6032, %v6032
        %v6113 = vpack.c.bf16 %v6033, %v6033
        %v6114 = vpack.c.bf16 %v6034, %v6034
        %v6115 = vpack.c.bf16 %v6035, %v6035
        %v6116 = vpack.c.bf16 %v6036, %v6036
        %v6117 = vpack.c.bf16 %v6037, %v6037
        %v6118 = vpack.c.bf16 %v6038, %v6038
        %v6119 = vpack.c.bf16 %v6039, %v6039
        %v6120 = vpack.c.bf16 %v6040, %v6040
        %v6121 = vpack.c.bf16 %v6041, %v6041
        %v6122 = vpack.c.bf16 %v6042, %v6042
        %v6124 = vshrl.u32 %v6103, 16
        %v6126 = vrot.slane %v6124, 7
        %v6127 = vshll.u32 %v6103, 16
        %v6129 = vor.u32 %v6126, %v6127
        %v6130 = vrot.slane %v6126, 4
        %v6132 = vshrl.u32 %v6104, 16
        %v6134 = vrot.slane %v6132, 7
        %v6135 = vshll.u32 %v6104, 16
        %v6137 = vor.u32 %v6134, %v6135
        %v6138 = vsel %vm1331, %v6130, %v6137
        %v6139 = vrot.slane %v6134, 4
        %v6141 = vshrl.u32 %v6105, 16
        %v6143 = vrot.slane %v6141, 7
        %v6144 = vshll.u32 %v6105, 16
        %v6146 = vor.u32 %v6143, %v6144
        %v6147 = vrot.slane %v6143, 4
        %v6149 = vshrl.u32 %v6106, 16
        %v6151 = vrot.slane %v6149, 7
        %v6152 = vshll.u32 %v6106, 16
        %v6154 = vor.u32 %v6151, %v6152
        %v6155 = vsel %vm1331, %v6147, %v6154
        %v6156 = vrot.slane %v6151, 4
        %v6158 = vshrl.u32 %v6107, 16
        %v6160 = vrot.slane %v6158, 7
        %v6161 = vshll.u32 %v6107, 16
        %v6163 = vor.u32 %v6160, %v6161
        %v6164 = vrot.slane %v6160, 4
        %v6166 = vshrl.u32 %v6108, 16
        %v6168 = vrot.slane %v6166, 7
        %v6169 = vshll.u32 %v6108, 16
        %v6171 = vor.u32 %v6168, %v6169
        %v6172 = vsel %vm1331, %v6164, %v6171
        %v6173 = vrot.slane %v6168, 4
        %v6175 = vshrl.u32 %v6109, 16
        %v6177 = vrot.slane %v6175, 7
        %v6178 = vshll.u32 %v6109, 16
        %v6180 = vor.u32 %v6177, %v6178
        %v6181 = vrot.slane %v6177, 4
        %v6183 = vshrl.u32 %v6110, 16
        %v6185 = vrot.slane %v6183, 7
        %v6186 = vshll.u32 %v6110, 16
        %v6188 = vor.u32 %v6185, %v6186
        %v6189 = vsel %vm1331, %v6181, %v6188
        %v6190 = vrot.slane %v6185, 4
        %v6192 = vshrl.u32 %v6111, 16
        %v6194 = vrot.slane %v6192, 7
        %v6195 = vshll.u32 %v6111, 16
        %v6197 = vor.u32 %v6194, %v6195
        %v6198 = vrot.slane %v6194, 4
        %v6200 = vshrl.u32 %v6112, 16
        %v6202 = vrot.slane %v6200, 7
        %v6203 = vshll.u32 %v6112, 16
        %v6205 = vor.u32 %v6202, %v6203
        %v6206 = vsel %vm1331, %v6198, %v6205
        %v6207 = vrot.slane %v6202, 4
        %v6209 = vshrl.u32 %v6113, 16
        %v6211 = vrot.slane %v6209, 7
        %v6212 = vshll.u32 %v6113, 16
        %v6214 = vor.u32 %v6211, %v6212
        %v6215 = vrot.slane %v6211, 4
        %v6217 = vshrl.u32 %v6114, 16
        %v6219 = vrot.slane %v6217, 7
        %v6220 = vshll.u32 %v6114, 16
        %v6222 = vor.u32 %v6219, %v6220
        %v6223 = vsel %vm1331, %v6215, %v6222
        %v6224 = vrot.slane %v6219, 4
        %v6226 = vshrl.u32 %v6115, 16
        %v6228 = vrot.slane %v6226, 7
        %v6229 = vshll.u32 %v6115, 16
        %v6231 = vor.u32 %v6228, %v6229
        %v6232 = vrot.slane %v6228, 4
        %v6234 = vshrl.u32 %v6116, 16
        %v6236 = vrot.slane %v6234, 7
        %v6237 = vshll.u32 %v6116, 16
        %v6239 = vor.u32 %v6236, %v6237
        %v6240 = vsel %vm1331, %v6232, %v6239
        %v6241 = vrot.slane %v6236, 4
        %v6243 = vshrl.u32 %v6117, 16
        %v6245 = vrot.slane %v6243, 7
        %v6246 = vshll.u32 %v6117, 16
        %v6248 = vor.u32 %v6245, %v6246
        %v6249 = vrot.slane %v6245, 4
        %v6251 = vshrl.u32 %v6118, 16
        %v6253 = vrot.slane %v6251, 7
        %v6254 = vshll.u32 %v6118, 16
        %v6256 = vor.u32 %v6253, %v6254
        %v6257 = vsel %vm1331, %v6249, %v6256
        %v6258 = vrot.slane %v6253, 4
        %v6260 = vshrl.u32 %v6119, 16
        %v6262 = vrot.slane %v6260, 7
        %v6263 = vshll.u32 %v6119, 16
        %v6265 = vor.u32 %v6262, %v6263
        %v6266 = vrot.slane %v6262, 4
        %v6268 = vshrl.u32 %v6120, 16
        %v6270 = vrot.slane %v6268, 7
        %v6271 = vshll.u32 %v6120, 16
        %v6273 = vor.u32 %v6270, %v6271
        %v6274 = vsel %vm1331, %v6266, %v6273
        %v6275 = vrot.slane %v6270, 4
        %v6277 = vshrl.u32 %v6121, 16
        %v6279 = vrot.slane %v6277, 7
        %v6280 = vshll.u32 %v6121, 16
        %v6282 = vor.u32 %v6279, %v6280
        %v6283 = vrot.slane %v6279, 4
        %v6285 = vshrl.u32 %v6122, 16
        %v6287 = vrot.slane %v6285, 7
        %v6288 = vshll.u32 %v6122, 16
        %v6290 = vor.u32 %v6287, %v6288
        %v6291 = vsel %vm1331, %v6283, %v6290
        %v6292 = vrot.slane %v6287, 4
        %v6323 = vld [vmem:[#allocation6] sm:$0xf]
        %v6324 = vsel %vm1533, %v6129, %v6323
        %6325 = vst [vmem:[#allocation6] sm:$0xf] %v6324
        %6326 = vst.msk [vmem:[#allocation6 + $0x4] sm:$0xf] %vm1537, %v6138
        %v6327 = vld [vmem:[#allocation6 + $0x8] sm:$0x1]
        %v6328 = vsel %vm1246, %v6139, %v6327
        %6329 = vst [vmem:[#allocation6 + $0x8] sm:$0x1] %v6328
        %v6330 = vld [vmem:[#allocation6 + $0xc] sm:$0xf]
        %v6331 = vsel %vm1533, %v6146, %v6330
        %6332 = vst [vmem:[#allocation6 + $0xc] sm:$0xf] %v6331
        %6333 = vst.msk [vmem:[#allocation6 + $0x10] sm:$0xf] %vm1537, %v6155
        %v6334 = vld [vmem:[#allocation6 + $0x14] sm:$0x1]
        %v6335 = vsel %vm1246, %v6156, %v6334
        %6336 = vst [vmem:[#allocation6 + $0x14] sm:$0x1] %v6335
        %v6337 = vld [vmem:[#allocation6 + $0x18] sm:$0xf]
        %v6338 = vsel %vm1533, %v6163, %v6337
        %6339 = vst [vmem:[#allocation6 + $0x18] sm:$0xf] %v6338
        %6340 = vst.msk [vmem:[#allocation6 + $0x1c] sm:$0xf] %vm1537, %v6172
        %v6341 = vld [vmem:[#allocation6 + $0x20] sm:$0x1]
        %v6342 = vsel %vm1246, %v6173, %v6341
        %6343 = vst [vmem:[#allocation6 + $0x20] sm:$0x1] %v6342
        %v6344 = vld [vmem:[#allocation6 + $0x24] sm:$0xf]
        %v6345 = vsel %vm1533, %v6180, %v6344
        %6346 = vst [vmem:[#allocation6 + $0x24] sm:$0xf] %v6345
        %6347 = vst.msk [vmem:[#allocation6 + $0x28] sm:$0xf] %vm1537, %v6189
        %v6348 = vld [vmem:[#allocation6 + $0x2c] sm:$0x1]
        %v6349 = vsel %vm1246, %v6190, %v6348
        %6350 = vst [vmem:[#allocation6 + $0x2c] sm:$0x1] %v6349
        %v6351 = vld [vmem:[#allocation6 + $0x30] sm:$0xf]
        %v6352 = vsel %vm1533, %v6197, %v6351
        %6353 = vst [vmem:[#allocation6 + $0x30] sm:$0xf] %v6352
        %6354 = vst.msk [vmem:[#allocation6 + $0x34] sm:$0xf] %vm1537, %v6206
        %v6355 = vld [vmem:[#allocation6 + $0x38] sm:$0x1]
        %v6356 = vsel %vm1246, %v6207, %v6355
        %6357 = vst [vmem:[#allocation6 + $0x38] sm:$0x1] %v6356
        %v6358 = vld [vmem:[#allocation6 + $0x3c] sm:$0xf]
        %v6359 = vsel %vm1533, %v6214, %v6358
        %6360 = vst [vmem:[#allocation6 + $0x3c] sm:$0xf] %v6359
        %6361 = vst.msk [vmem:[#allocation6 + $0x40] sm:$0xf] %vm1537, %v6223
        %v6362 = vld [vmem:[#allocation6 + $0x44] sm:$0x1]
        %v6363 = vsel %vm1246, %v6224, %v6362
        %6364 = vst [vmem:[#allocation6 + $0x44] sm:$0x1] %v6363
        %v6365 = vld [vmem:[#allocation6 + $0x48] sm:$0xf]
        %v6366 = vsel %vm1533, %v6231, %v6365
        %6367 = vst [vmem:[#allocation6 + $0x48] sm:$0xf] %v6366
        %6368 = vst.msk [vmem:[#allocation6 + $0x4c] sm:$0xf] %vm1537, %v6240
        %v6369 = vld [vmem:[#allocation6 + $0x50] sm:$0x1]
        %v6370 = vsel %vm1246, %v6241, %v6369
        %6371 = vst [vmem:[#allocation6 + $0x50] sm:$0x1] %v6370
        %v6372 = vld [vmem:[#allocation6 + $0x54] sm:$0xf]
        %v6373 = vsel %vm1533, %v6248, %v6372
        %6374 = vst [vmem:[#allocation6 + $0x54] sm:$0xf] %v6373
        %6375 = vst.msk [vmem:[#allocation6 + $0x58] sm:$0xf] %vm1537, %v6257
        %v6376 = vld [vmem:[#allocation6 + $0x5c] sm:$0x1]
        %v6377 = vsel %vm1246, %v6258, %v6376
        %6378 = vst [vmem:[#allocation6 + $0x5c] sm:$0x1] %v6377
        %v6379 = vld [vmem:[#allocation6 + $0x60] sm:$0xf]
        %v6380 = vsel %vm1533, %v6265, %v6379
        %6381 = vst [vmem:[#allocation6 + $0x60] sm:$0xf] %v6380
        %6382 = vst.msk [vmem:[#allocation6 + $0x64] sm:$0xf] %vm1537, %v6274
        %v6383 = vld [vmem:[#allocation6 + $0x68] sm:$0x1]
        %v6384 = vsel %vm1246, %v6275, %v6383
        %6385 = vst [vmem:[#allocation6 + $0x68] sm:$0x1] %v6384
        %v6386 = vld [vmem:[#allocation6 + $0x6c] sm:$0xf]
        %v6387 = vsel %vm1533, %v6282, %v6386
        %6388 = vst [vmem:[#allocation6 + $0x6c] sm:$0xf] %v6387
        %6389 = vst.msk [vmem:[#allocation6 + $0x70] sm:$0xf] %vm1537, %v6291
        %v6390 = vld [vmem:[#allocation6 + $0x74] sm:$0x1]
        %v6391 = vsel %vm1246, %v6292, %v6390
        %6392 = vst [vmem:[#allocation6 + $0x74] sm:$0x1] %v6391
        // Predicated region
        $region109: #{_lambda_.1} parent=83 // pred_check
          %p6393 = pneg %p576
        $region110: #{_lambda_.1} parent=83 // pred_check_branch
          %6395 = sbr.rel (%p6393) target = $region112
        $region111: #{_lambda_.1} parent=83 // pred_region
          %6396 = vst.msk [vmem:[#allocation6] sm:$0xf] %vm1537, 0
          %6397 = vst.msk [vmem:[#allocation6 + $0x4] sm:$0xf] %vm1537, 0
          %6398 = vst.msk [vmem:[#allocation6 + $0x8] sm:$0x1] %vm4426, 0
        $region112: #{_lambda_.1} parent=83 // pred_fallthru
          _
        // Predicated region
        $region113: #{_lambda_.1} parent=83 // pred_check
          %p6399 = pneg %p608
        $region114: #{_lambda_.1} parent=83 // pred_check_branch
          %6401 = sbr.rel (%p6399) target = $region116
        $region115: #{_lambda_.1} parent=83 // pred_region
          %s6402 = scalar_lea.vmem [#allocation6], 108
          %6403 = vst.msk [vmem:[%s6402] sm:$0xf] %vm1537, 0
          %6404 = vst.msk [vmem:[%s6402 + $0x4] sm:$0xf] %vm1537, 0
          %6405 = vst.msk [vmem:[%s6402 + $0x8] sm:$0x1] %vm4426, 0
        $region116: #{_lambda_.1} parent=83 // pred_fallthru
          _
        %v6406 = vld [vmem:[#allocation6] sm:$0xf]
        %v6407 = vld [vmem:[#allocation6 + $0x4] sm:$0xf]
        %v6408 = vld [vmem:[#allocation6 + $0xc] sm:$0xf]
        %v6409 = vld [vmem:[#allocation6 + $0x10] sm:$0xf]
        %v6410 = vld [vmem:[#allocation6 + $0x18] sm:$0xf]
        %v6411 = vld [vmem:[#allocation6 + $0x1c] sm:$0xf]
        %v6412 = vld [vmem:[#allocation6 + $0x24] sm:$0xf]
        %v6413 = vld [vmem:[#allocation6 + $0x28] sm:$0xf]
        %v6414 = vld [vmem:[#allocation6 + $0x30] sm:$0xf]
        %v6415 = vld [vmem:[#allocation6 + $0x34] sm:$0xf]
        %v6416 = vld [vmem:[#allocation6 + $0x3c] sm:$0xf]
        %v6417 = vld [vmem:[#allocation6 + $0x40] sm:$0xf]
        %v6418 = vld [vmem:[#allocation6 + $0x48] sm:$0xf]
        %v6419 = vld [vmem:[#allocation6 + $0x4c] sm:$0xf]
        %v6420 = vld [vmem:[#allocation6 + $0x54] sm:$0xf]
        %v6421 = vld [vmem:[#allocation6 + $0x58] sm:$0xf]
        %v6422 = vld [vmem:[#allocation6 + $0x8] sm:$0x1]
        %v6423 = vld [vmem:[#allocation6 + $0x14] sm:$0x1]
        %v6424 = vld [vmem:[#allocation6 + $0x20] sm:$0x1]
        %v6425 = vld [vmem:[#allocation6 + $0x2c] sm:$0x1]
        %v6426 = vld [vmem:[#allocation6 + $0x38] sm:$0x1]
        %v6427 = vld [vmem:[#allocation6 + $0x44] sm:$0x1]
        %v6428 = vld [vmem:[#allocation6 + $0x50] sm:$0x1]
        %v6429 = vld [vmem:[#allocation6 + $0x5c] sm:$0x1]
        %v6431 = vshrl.u32 %v6406, 16
        %v6433 = vrot.slane %v6431, 4
        %v6434 = vshll.u32 %v6406, 16
        %v6436 = vrot.slane %v6434, 5
        %v6437 = vor.u32 %v6433, %v6436
        %v6438 = vrot.slane %v6437, 4
        %v6440 = vshll.u32 %v6407, 16
        %v6442 = vrot.slane %v6440, 5
        %v6443 = vsel %vm1631, %v6438, %v6442
        %v6444 = vshrl.u32 %v6407, 16
        %v6446 = vrot.slane %v6444, 4
        %v6447 = vor.u32 %v6446, %v6442
        %v6448 = vrot.slane %v6447, 4
        %v6450 = vshll.u32 %v6422, 16
        %v6452 = vrot.slane %v6450, 5
        %v6453 = vsel %vm1631, %v6448, %v6452
        %v6455 = vshrl.u32 %v6408, 16
        %v6457 = vrot.slane %v6455, 4
        %v6458 = vshll.u32 %v6408, 16
        %v6460 = vrot.slane %v6458, 5
        %v6461 = vor.u32 %v6457, %v6460
        %v6462 = vrot.slane %v6461, 4
        %v6464 = vshll.u32 %v6409, 16
        %v6466 = vrot.slane %v6464, 5
        %v6467 = vsel %vm1631, %v6462, %v6466
        %v6468 = vshrl.u32 %v6409, 16
        %v6470 = vrot.slane %v6468, 4
        %v6471 = vor.u32 %v6470, %v6466
        %v6472 = vrot.slane %v6471, 4
        %v6474 = vshll.u32 %v6423, 16
        %v6476 = vrot.slane %v6474, 5
        %v6477 = vsel %vm1631, %v6472, %v6476
        %v6479 = vshrl.u32 %v6410, 16
        %v6481 = vrot.slane %v6479, 4
        %v6482 = vshll.u32 %v6410, 16
        %v6484 = vrot.slane %v6482, 5
        %v6485 = vor.u32 %v6481, %v6484
        %v6486 = vrot.slane %v6485, 4
        %v6488 = vshll.u32 %v6411, 16
        %v6490 = vrot.slane %v6488, 5
        %v6491 = vsel %vm1631, %v6486, %v6490
        %v6492 = vshrl.u32 %v6411, 16
        %v6494 = vrot.slane %v6492, 4
        %v6495 = vor.u32 %v6494, %v6490
        %v6496 = vrot.slane %v6495, 4
        %v6498 = vshll.u32 %v6424, 16
        %v6500 = vrot.slane %v6498, 5
        %v6501 = vsel %vm1631, %v6496, %v6500
        %v6503 = vshrl.u32 %v6412, 16
        %v6505 = vrot.slane %v6503, 4
        %v6506 = vshll.u32 %v6412, 16
        %v6508 = vrot.slane %v6506, 5
        %v6509 = vor.u32 %v6505, %v6508
        %v6510 = vrot.slane %v6509, 4
        %v6512 = vshll.u32 %v6413, 16
        %v6514 = vrot.slane %v6512, 5
        %v6515 = vsel %vm1631, %v6510, %v6514
        %v6516 = vshrl.u32 %v6413, 16
        %v6518 = vrot.slane %v6516, 4
        %v6519 = vor.u32 %v6518, %v6514
        %v6520 = vrot.slane %v6519, 4
        %v6522 = vshll.u32 %v6425, 16
        %v6524 = vrot.slane %v6522, 5
        %v6525 = vsel %vm1631, %v6520, %v6524
        %v6527 = vshrl.u32 %v6414, 16
        %v6529 = vrot.slane %v6527, 4
        %v6530 = vshll.u32 %v6414, 16
        %v6532 = vrot.slane %v6530, 5
        %v6533 = vor.u32 %v6529, %v6532
        %v6534 = vrot.slane %v6533, 4
        %v6536 = vshll.u32 %v6415, 16
        %v6538 = vrot.slane %v6536, 5
        %v6539 = vsel %vm1631, %v6534, %v6538
        %v6540 = vshrl.u32 %v6415, 16
        %v6542 = vrot.slane %v6540, 4
        %v6543 = vor.u32 %v6542, %v6538
        %v6544 = vrot.slane %v6543, 4
        %v6546 = vshll.u32 %v6426, 16
        %v6548 = vrot.slane %v6546, 5
        %v6549 = vsel %vm1631, %v6544, %v6548
        %v6551 = vshrl.u32 %v6416, 16
        %v6553 = vrot.slane %v6551, 4
        %v6554 = vshll.u32 %v6416, 16
        %v6556 = vrot.slane %v6554, 5
        %v6557 = vor.u32 %v6553, %v6556
        %v6558 = vrot.slane %v6557, 4
        %v6560 = vshll.u32 %v6417, 16
        %v6562 = vrot.slane %v6560, 5
        %v6563 = vsel %vm1631, %v6558, %v6562
        %v6564 = vshrl.u32 %v6417, 16
        %v6566 = vrot.slane %v6564, 4
        %v6567 = vor.u32 %v6566, %v6562
        %v6568 = vrot.slane %v6567, 4
        %v6570 = vshll.u32 %v6427, 16
        %v6572 = vrot.slane %v6570, 5
        %v6573 = vsel %vm1631, %v6568, %v6572
        %v6575 = vshrl.u32 %v6418, 16
        %v6577 = vrot.slane %v6575, 4
        %v6578 = vshll.u32 %v6418, 16
        %v6580 = vrot.slane %v6578, 5
        %v6581 = vor.u32 %v6577, %v6580
        %v6582 = vrot.slane %v6581, 4
        %v6584 = vshll.u32 %v6419, 16
        %v6586 = vrot.slane %v6584, 5
        %v6587 = vsel %vm1631, %v6582, %v6586
        %v6588 = vshrl.u32 %v6419, 16
        %v6590 = vrot.slane %v6588, 4
        %v6591 = vor.u32 %v6590, %v6586
        %v6592 = vrot.slane %v6591, 4
        %v6594 = vshll.u32 %v6428, 16
        %v6596 = vrot.slane %v6594, 5
        %v6597 = vsel %vm1631, %v6592, %v6596
        %v6599 = vshrl.u32 %v6420, 16
        %v6601 = vrot.slane %v6599, 4
        %v6602 = vshll.u32 %v6420, 16
        %v6604 = vrot.slane %v6602, 5
        %v6605 = vor.u32 %v6601, %v6604
        %v6606 = vrot.slane %v6605, 4
        %v6608 = vshll.u32 %v6421, 16
        %v6610 = vrot.slane %v6608, 5
        %v6611 = vsel %vm1631, %v6606, %v6610
        %v6612 = vshrl.u32 %v6421, 16
        %v6614 = vrot.slane %v6612, 4
        %v6615 = vor.u32 %v6614, %v6610
        %v6616 = vrot.slane %v6615, 4
        %v6618 = vshll.u32 %v6429, 16
        %v6620 = vrot.slane %v6618, 5
        %v6621 = vsel %vm1631, %v6616, %v6620
        %v6622 = vld [vmem:[#allocation6] sm:$0xe]
        %v6623 = vld [vmem:[#allocation6 + $0xc] sm:$0xe]
        %v6624 = vld [vmem:[#allocation6 + $0x18] sm:$0xe]
        %v6625 = vld [vmem:[#allocation6 + $0x24] sm:$0xe]
        %v6626 = vld [vmem:[#allocation6 + $0x30] sm:$0xe]
        %v6627 = vld [vmem:[#allocation6 + $0x3c] sm:$0xe]
        %v6628 = vld [vmem:[#allocation6 + $0x48] sm:$0xe]
        %v6629 = vld [vmem:[#allocation6 + $0x54] sm:$0xe]
        %v6654 = vrot.slane %v6622, 5
        %v6655 = vrot.slane %v6654, 4
        %v6656 = vrot.slane %v6407, 5
        %v6657 = vsel %vm1858, %v6655, %v6656
        %v6658 = vrot.slane %v6656, 4
        %v6659 = vrot.slane %v6422, 5
        %v6660 = vsel %vm1858, %v6658, %v6659
        %v6661 = vrot.slane %v6623, 5
        %v6662 = vrot.slane %v6661, 4
        %v6663 = vrot.slane %v6409, 5
        %v6664 = vsel %vm1858, %v6662, %v6663
        %v6665 = vrot.slane %v6663, 4
        %v6666 = vrot.slane %v6423, 5
        %v6667 = vsel %vm1858, %v6665, %v6666
        %v6668 = vrot.slane %v6624, 5
        %v6669 = vrot.slane %v6668, 4
        %v6670 = vrot.slane %v6411, 5
        %v6671 = vsel %vm1858, %v6669, %v6670
        %v6672 = vrot.slane %v6670, 4
        %v6673 = vrot.slane %v6424, 5
        %v6674 = vsel %vm1858, %v6672, %v6673
        %v6675 = vrot.slane %v6625, 5
        %v6676 = vrot.slane %v6675, 4
        %v6677 = vrot.slane %v6413, 5
        %v6678 = vsel %vm1858, %v6676, %v6677
        %v6679 = vrot.slane %v6677, 4
        %v6680 = vrot.slane %v6425, 5
        %v6681 = vsel %vm1858, %v6679, %v6680
        %v6682 = vrot.slane %v6626, 5
        %v6683 = vrot.slane %v6682, 4
        %v6684 = vrot.slane %v6415, 5
        %v6685 = vsel %vm1858, %v6683, %v6684
        %v6686 = vrot.slane %v6684, 4
        %v6687 = vrot.slane %v6426, 5
        %v6688 = vsel %vm1858, %v6686, %v6687
        %v6689 = vrot.slane %v6627, 5
        %v6690 = vrot.slane %v6689, 4
        %v6691 = vrot.slane %v6417, 5
        %v6692 = vsel %vm1858, %v6690, %v6691
        %v6693 = vrot.slane %v6691, 4
        %v6694 = vrot.slane %v6427, 5
        %v6695 = vsel %vm1858, %v6693, %v6694
        %v6696 = vrot.slane %v6628, 5
        %v6697 = vrot.slane %v6696, 4
        %v6698 = vrot.slane %v6419, 5
        %v6699 = vsel %vm1858, %v6697, %v6698
        %v6700 = vrot.slane %v6698, 4
        %v6701 = vrot.slane %v6428, 5
        %v6702 = vsel %vm1858, %v6700, %v6701
        %v6703 = vrot.slane %v6629, 5
        %v6704 = vrot.slane %v6703, 4
        %v6705 = vrot.slane %v6421, 5
        %v6706 = vsel %vm1858, %v6704, %v6705
        %v6707 = vrot.slane %v6705, 4
        %v6708 = vrot.slane %v6429, 5
        %v6709 = vsel %vm1858, %v6707, %v6708
        %v6718 = vunpack.c.l.b16 %v6406
        %v6719 = vunpack.c.l.b16 %v6407
        %v6720 = vunpack.c.l.b16 %v6408
        %v6721 = vunpack.c.l.b16 %v6409
        %v6722 = vunpack.c.l.b16 %v6410
        %v6723 = vunpack.c.l.b16 %v6411
        %v6724 = vunpack.c.l.b16 %v6412
        %v6725 = vunpack.c.l.b16 %v6413
        %v6726 = vunpack.c.l.b16 %v6414
        %v6727 = vunpack.c.l.b16 %v6415
        %v6728 = vunpack.c.l.b16 %v6416
        %v6729 = vunpack.c.l.b16 %v6417
        %v6730 = vunpack.c.l.b16 %v6418
        %v6731 = vunpack.c.l.b16 %v6419
        %v6732 = vunpack.c.l.b16 %v6420
        %v6733 = vunpack.c.l.b16 %v6421
        %v6734 = vpack.c.b16 %v6719, %v6718
        %v6735 = vpack.c.b16 %v6721, %v6720
        %v6736 = vpack.c.b16 %v6723, %v6722
        %v6737 = vpack.c.b16 %v6725, %v6724
        %v6738 = vpack.c.b16 %v6727, %v6726
        %v6739 = vpack.c.b16 %v6729, %v6728
        %v6740 = vpack.c.b16 %v6731, %v6730
        %v6741 = vpack.c.b16 %v6733, %v6732
        %v6742 = vunpack.c.l.b16 %v6443
        %v6743 = vunpack.c.l.b16 %v6453
        %v6744 = vunpack.c.l.b16 %v6467
        %v6745 = vunpack.c.l.b16 %v6477
        %v6746 = vunpack.c.l.b16 %v6491
        %v6747 = vunpack.c.l.b16 %v6501
        %v6748 = vunpack.c.l.b16 %v6515
        %v6749 = vunpack.c.l.b16 %v6525
        %v6750 = vunpack.c.l.b16 %v6539
        %v6751 = vunpack.c.l.b16 %v6549
        %v6752 = vunpack.c.l.b16 %v6563
        %v6753 = vunpack.c.l.b16 %v6573
        %v6754 = vunpack.c.l.b16 %v6587
        %v6755 = vunpack.c.l.b16 %v6597
        %v6756 = vunpack.c.l.b16 %v6611
        %v6757 = vunpack.c.l.b16 %v6621
        %v6758 = vpack.c.b16 %v6743, %v6742
        %v6759 = vpack.c.b16 %v6745, %v6744
        %v6760 = vpack.c.b16 %v6747, %v6746
        %v6761 = vpack.c.b16 %v6749, %v6748
        %v6762 = vpack.c.b16 %v6751, %v6750
        %v6763 = vpack.c.b16 %v6753, %v6752
        %v6764 = vpack.c.b16 %v6755, %v6754
        %v6765 = vpack.c.b16 %v6757, %v6756
        %6766 = vrot.lane.b32.xlu0 %v6758, 64
        %v6767 = vpop.permute.xlu0 %6766
        %6768 = vrot.lane.b32.xlu0 %v6759, 64
        %v6769 = vpop.permute.xlu0 %6768
        %6770 = vrot.lane.b32.xlu0 %v6760, 64
        %v6771 = vpop.permute.xlu0 %6770
        %6772 = vrot.lane.b32.xlu0 %v6761, 64
        %v6773 = vpop.permute.xlu0 %6772
        %6774 = vrot.lane.b32.xlu0 %v6762, 64
        %v6775 = vpop.permute.xlu0 %6774
        %6776 = vrot.lane.b32.xlu0 %v6763, 64
        %v6777 = vpop.permute.xlu0 %6776
        %6778 = vrot.lane.b32.xlu0 %v6764, 64
        %v6779 = vpop.permute.xlu0 %6778
        %6780 = vrot.lane.b32.xlu0 %v6765, 64
        %v6781 = vpop.permute.xlu0 %6780
        %v6782 = vunpack.c.l.b16 %v6657
        %v6783 = vunpack.c.l.b16 %v6660
        %v6784 = vunpack.c.l.b16 %v6664
        %v6785 = vunpack.c.l.b16 %v6667
        %v6786 = vunpack.c.l.b16 %v6671
        %v6787 = vunpack.c.l.b16 %v6674
        %v6788 = vunpack.c.l.b16 %v6678
        %v6789 = vunpack.c.l.b16 %v6681
        %v6790 = vunpack.c.l.b16 %v6685
        %v6791 = vunpack.c.l.b16 %v6688
        %v6792 = vunpack.c.l.b16 %v6692
        %v6793 = vunpack.c.l.b16 %v6695
        %v6794 = vunpack.c.l.b16 %v6699
        %v6795 = vunpack.c.l.b16 %v6702
        %v6796 = vunpack.c.l.b16 %v6706
        %v6797 = vunpack.c.l.b16 %v6709
        %v6798 = vpack.c.b16 %v6783, %v6782
        %v6799 = vpack.c.b16 %v6785, %v6784
        %v6800 = vpack.c.b16 %v6787, %v6786
        %v6801 = vpack.c.b16 %v6789, %v6788
        %v6802 = vpack.c.b16 %v6791, %v6790
        %v6803 = vpack.c.b16 %v6793, %v6792
        %v6804 = vpack.c.b16 %v6795, %v6794
        %v6805 = vpack.c.b16 %v6797, %v6796
        %v6808 = vsel %vm2011, %v6734, %v6767
        %v6812 = vsel %vm2011, %v6735, %v6769
        %v6816 = vsel %vm2011, %v6736, %v6771
        %v6820 = vsel %vm2011, %v6737, %v6773
        %v6824 = vsel %vm2011, %v6738, %v6775
        %v6828 = vsel %vm2011, %v6739, %v6777
        %v6832 = vsel %vm2011, %v6740, %v6779
        %v6836 = vsel %vm2011, %v6741, %v6781
        %v6838 = vld [vmem:[%s13] sm:$0xf]
        %v6839 = vld [vmem:[%s13 + $0x4] sm:$0xf]
        %v6840 = vld [vmem:[%s13 + $0x8] sm:$0xf]
        %v6841 = vld [vmem:[%s13 + $0xc] sm:$0xf]
        %v6842 = vld [vmem:[%s13 + $0x10] sm:$0xf]
        %v6843 = vld [vmem:[%s13 + $0x14] sm:$0xf]
        %v6844 = vld [vmem:[%s13 + $0x18] sm:$0xf]
        %v6845 = vld [vmem:[%s13 + $0x1c] sm:$0xf]
        %v6846 = vld [vmem:[%s13 + $0x20] sm:$0xf]
        %v6847 = vld [vmem:[%s13 + $0x24] sm:$0xf]
        %v6848 = vld [vmem:[%s13 + $0x28] sm:$0xf]
        %v6849 = vld [vmem:[%s13 + $0x2c] sm:$0xf]
        %v6850 = vld [vmem:[%s13 + $0x30] sm:$0xf]
        %v6851 = vld [vmem:[%s13 + $0x34] sm:$0xf]
        %v6852 = vld [vmem:[%s13 + $0x38] sm:$0xf]
        %v6853 = vld [vmem:[%s13 + $0x3c] sm:$0xf]
        %v6854 = vld [vmem:[%s13 + $0x40] sm:$0xf]
        %v6855 = vld [vmem:[%s13 + $0x44] sm:$0xf]
        %v6856 = vld [vmem:[%s13 + $0x48] sm:$0xf]
        %v6857 = vld [vmem:[%s13 + $0x4c] sm:$0xf]
        %v6858 = vld [vmem:[%s13 + $0x50] sm:$0xf]
        %v6859 = vld [vmem:[%s13 + $0x54] sm:$0xf]
        %v6860 = vld [vmem:[%s13 + $0x58] sm:$0xf]
        %v6861 = vld [vmem:[%s13 + $0x5c] sm:$0xf]
        %s6862 = scalar_lea.vmem [#allocation6], 12
        %v6863 = vld [vmem:[%s6862] sm:$0xf]
        %v6864 = vld [vmem:[%s6862 + $0x4] sm:$0xf]
        %v6865 = vld [vmem:[%s6862 + $0xc] sm:$0xf]
        %v6866 = vld [vmem:[%s6862 + $0x10] sm:$0xf]
        %v6867 = vld [vmem:[%s6862 + $0x18] sm:$0xf]
        %v6868 = vld [vmem:[%s6862 + $0x1c] sm:$0xf]
        %v6869 = vld [vmem:[%s6862 + $0x24] sm:$0xf]
        %v6870 = vld [vmem:[%s6862 + $0x28] sm:$0xf]
        %v6871 = vld [vmem:[%s6862 + $0x30] sm:$0xf]
        %v6872 = vld [vmem:[%s6862 + $0x34] sm:$0xf]
        %v6873 = vld [vmem:[%s6862 + $0x3c] sm:$0xf]
        %v6874 = vld [vmem:[%s6862 + $0x40] sm:$0xf]
        %v6875 = vld [vmem:[%s6862 + $0x48] sm:$0xf]
        %v6876 = vld [vmem:[%s6862 + $0x4c] sm:$0xf]
        %v6877 = vld [vmem:[%s6862 + $0x54] sm:$0xf]
        %v6878 = vld [vmem:[%s6862 + $0x58] sm:$0xf]
        %v6879 = vld [vmem:[%s6862 + $0x8] sm:$0x1]
        %v6880 = vld [vmem:[%s6862 + $0x14] sm:$0x1]
        %v6881 = vld [vmem:[%s6862 + $0x20] sm:$0x1]
        %v6882 = vld [vmem:[%s6862 + $0x2c] sm:$0x1]
        %v6883 = vld [vmem:[%s6862 + $0x38] sm:$0x1]
        %v6884 = vld [vmem:[%s6862 + $0x44] sm:$0x1]
        %v6885 = vld [vmem:[%s6862 + $0x50] sm:$0x1]
        %v6886 = vld [vmem:[%s6862 + $0x5c] sm:$0x1]
        %v6888 = vshrl.u32 %v6863, 16
        %v6890 = vrot.slane %v6888, 4
        %v6891 = vshll.u32 %v6863, 16
        %v6893 = vrot.slane %v6891, 5
        %v6894 = vor.u32 %v6890, %v6893
        %v6895 = vrot.slane %v6894, 4
        %v6897 = vshll.u32 %v6864, 16
        %v6899 = vrot.slane %v6897, 5
        %v6900 = vsel %vm1631, %v6895, %v6899
        %v6901 = vshrl.u32 %v6864, 16
        %v6903 = vrot.slane %v6901, 4
        %v6904 = vor.u32 %v6903, %v6899
        %v6905 = vrot.slane %v6904, 4
        %v6907 = vshll.u32 %v6879, 16
        %v6909 = vrot.slane %v6907, 5
        %v6910 = vsel %vm1631, %v6905, %v6909
        %v6912 = vshrl.u32 %v6865, 16
        %v6914 = vrot.slane %v6912, 4
        %v6915 = vshll.u32 %v6865, 16
        %v6917 = vrot.slane %v6915, 5
        %v6918 = vor.u32 %v6914, %v6917
        %v6919 = vrot.slane %v6918, 4
        %v6921 = vshll.u32 %v6866, 16
        %v6923 = vrot.slane %v6921, 5
        %v6924 = vsel %vm1631, %v6919, %v6923
        %v6925 = vshrl.u32 %v6866, 16
        %v6927 = vrot.slane %v6925, 4
        %v6928 = vor.u32 %v6927, %v6923
        %v6929 = vrot.slane %v6928, 4
        %v6931 = vshll.u32 %v6880, 16
        %v6933 = vrot.slane %v6931, 5
        %v6934 = vsel %vm1631, %v6929, %v6933
        %v6936 = vshrl.u32 %v6867, 16
        %v6938 = vrot.slane %v6936, 4
        %v6939 = vshll.u32 %v6867, 16
        %v6941 = vrot.slane %v6939, 5
        %v6942 = vor.u32 %v6938, %v6941
        %v6943 = vrot.slane %v6942, 4
        %v6945 = vshll.u32 %v6868, 16
        %v6947 = vrot.slane %v6945, 5
        %v6948 = vsel %vm1631, %v6943, %v6947
        %v6949 = vshrl.u32 %v6868, 16
        %v6951 = vrot.slane %v6949, 4
        %v6952 = vor.u32 %v6951, %v6947
        %v6953 = vrot.slane %v6952, 4
        %v6955 = vshll.u32 %v6881, 16
        %v6957 = vrot.slane %v6955, 5
        %v6958 = vsel %vm1631, %v6953, %v6957
        %v6960 = vshrl.u32 %v6869, 16
        %v6962 = vrot.slane %v6960, 4
        %v6963 = vshll.u32 %v6869, 16
        %v6965 = vrot.slane %v6963, 5
        %v6966 = vor.u32 %v6962, %v6965
        %v6967 = vrot.slane %v6966, 4
        %v6969 = vshll.u32 %v6870, 16
        %v6971 = vrot.slane %v6969, 5
        %v6972 = vsel %vm1631, %v6967, %v6971
        %v6973 = vshrl.u32 %v6870, 16
        %v6975 = vrot.slane %v6973, 4
        %v6976 = vor.u32 %v6975, %v6971
        %v6977 = vrot.slane %v6976, 4
        %v6979 = vshll.u32 %v6882, 16
        %v6981 = vrot.slane %v6979, 5
        %v6982 = vsel %vm1631, %v6977, %v6981
        %v6984 = vshrl.u32 %v6871, 16
        %v6986 = vrot.slane %v6984, 4
        %v6987 = vshll.u32 %v6871, 16
        %v6989 = vrot.slane %v6987, 5
        %v6990 = vor.u32 %v6986, %v6989
        %v6991 = vrot.slane %v6990, 4
        %v6993 = vshll.u32 %v6872, 16
        %v6995 = vrot.slane %v6993, 5
        %v6996 = vsel %vm1631, %v6991, %v6995
        %v6997 = vshrl.u32 %v6872, 16
        %v6999 = vrot.slane %v6997, 4
        %v7000 = vor.u32 %v6999, %v6995
        %v7001 = vrot.slane %v7000, 4
        %v7003 = vshll.u32 %v6883, 16
        %v7005 = vrot.slane %v7003, 5
        %v7006 = vsel %vm1631, %v7001, %v7005
        %v7008 = vshrl.u32 %v6873, 16
        %v7010 = vrot.slane %v7008, 4
        %v7011 = vshll.u32 %v6873, 16
        %v7013 = vrot.slane %v7011, 5
        %v7014 = vor.u32 %v7010, %v7013
        %v7015 = vrot.slane %v7014, 4
        %v7017 = vshll.u32 %v6874, 16
        %v7019 = vrot.slane %v7017, 5
        %v7020 = vsel %vm1631, %v7015, %v7019
        %v7021 = vshrl.u32 %v6874, 16
        %v7023 = vrot.slane %v7021, 4
        %v7024 = vor.u32 %v7023, %v7019
        %v7025 = vrot.slane %v7024, 4
        %v7027 = vshll.u32 %v6884, 16
        %v7029 = vrot.slane %v7027, 5
        %v7030 = vsel %vm1631, %v7025, %v7029
        %v7032 = vshrl.u32 %v6875, 16
        %v7034 = vrot.slane %v7032, 4
        %v7035 = vshll.u32 %v6875, 16
        %v7037 = vrot.slane %v7035, 5
        %v7038 = vor.u32 %v7034, %v7037
        %v7039 = vrot.slane %v7038, 4
        %v7041 = vshll.u32 %v6876, 16
        %v7043 = vrot.slane %v7041, 5
        %v7044 = vsel %vm1631, %v7039, %v7043
        %v7045 = vshrl.u32 %v6876, 16
        %v7047 = vrot.slane %v7045, 4
        %v7048 = vor.u32 %v7047, %v7043
        %v7049 = vrot.slane %v7048, 4
        %v7051 = vshll.u32 %v6885, 16
        %v7053 = vrot.slane %v7051, 5
        %v7054 = vsel %vm1631, %v7049, %v7053
        %v7056 = vshrl.u32 %v6877, 16
        %v7058 = vrot.slane %v7056, 4
        %v7059 = vshll.u32 %v6877, 16
        %v7061 = vrot.slane %v7059, 5
        %v7062 = vor.u32 %v7058, %v7061
        %v7063 = vrot.slane %v7062, 4
        %v7065 = vshll.u32 %v6878, 16
        %v7067 = vrot.slane %v7065, 5
        %v7068 = vsel %vm1631, %v7063, %v7067
        %v7069 = vshrl.u32 %v6878, 16
        %v7071 = vrot.slane %v7069, 4
        %v7072 = vor.u32 %v7071, %v7067
        %v7073 = vrot.slane %v7072, 4
        %v7075 = vshll.u32 %v6886, 16
        %v7077 = vrot.slane %v7075, 5
        %v7078 = vsel %vm1631, %v7073, %v7077
        %v7079 = vld [vmem:[%s6862] sm:$0xe]
        %v7080 = vld [vmem:[%s6862 + $0xc] sm:$0xe]
        %v7081 = vld [vmem:[%s6862 + $0x18] sm:$0xe]
        %v7082 = vld [vmem:[%s6862 + $0x24] sm:$0xe]
        %v7083 = vld [vmem:[%s6862 + $0x30] sm:$0xe]
        %v7084 = vld [vmem:[%s6862 + $0x3c] sm:$0xe]
        %v7085 = vld [vmem:[%s6862 + $0x48] sm:$0xe]
        %v7086 = vld [vmem:[%s6862 + $0x54] sm:$0xe]
        %v7111 = vrot.slane %v7079, 5
        %v7112 = vrot.slane %v7111, 4
        %v7113 = vrot.slane %v6864, 5
        %v7114 = vsel %vm1858, %v7112, %v7113
        %v7115 = vrot.slane %v7113, 4
        %v7116 = vrot.slane %v6879, 5
        %v7117 = vsel %vm1858, %v7115, %v7116
        %v7118 = vrot.slane %v7080, 5
        %v7119 = vrot.slane %v7118, 4
        %v7120 = vrot.slane %v6866, 5
        %v7121 = vsel %vm1858, %v7119, %v7120
        %v7122 = vrot.slane %v7120, 4
        %v7123 = vrot.slane %v6880, 5
        %v7124 = vsel %vm1858, %v7122, %v7123
        %v7125 = vrot.slane %v7081, 5
        %v7126 = vrot.slane %v7125, 4
        %v7127 = vrot.slane %v6868, 5
        %v7128 = vsel %vm1858, %v7126, %v7127
        %v7129 = vrot.slane %v7127, 4
        %v7130 = vrot.slane %v6881, 5
        %v7131 = vsel %vm1858, %v7129, %v7130
        %v7132 = vrot.slane %v7082, 5
        %v7133 = vrot.slane %v7132, 4
        %v7134 = vrot.slane %v6870, 5
        %v7135 = vsel %vm1858, %v7133, %v7134
        %v7136 = vrot.slane %v7134, 4
        %v7137 = vrot.slane %v6882, 5
        %v7138 = vsel %vm1858, %v7136, %v7137
        %v7139 = vrot.slane %v7083, 5
        %v7140 = vrot.slane %v7139, 4
        %v7141 = vrot.slane %v6872, 5
        %v7142 = vsel %vm1858, %v7140, %v7141
        %v7143 = vrot.slane %v7141, 4
        %v7144 = vrot.slane %v6883, 5
        %v7145 = vsel %vm1858, %v7143, %v7144
        %v7146 = vrot.slane %v7084, 5
        %v7147 = vrot.slane %v7146, 4
        %v7148 = vrot.slane %v6874, 5
        %v7149 = vsel %vm1858, %v7147, %v7148
        %v7150 = vrot.slane %v7148, 4
        %v7151 = vrot.slane %v6884, 5
        %v7152 = vsel %vm1858, %v7150, %v7151
        %v7153 = vrot.slane %v7085, 5
        %v7154 = vrot.slane %v7153, 4
        %v7155 = vrot.slane %v6876, 5
        %v7156 = vsel %vm1858, %v7154, %v7155
        %v7157 = vrot.slane %v7155, 4
        %v7158 = vrot.slane %v6885, 5
        %v7159 = vsel %vm1858, %v7157, %v7158
        %v7160 = vrot.slane %v7086, 5
        %v7161 = vrot.slane %v7160, 4
        %v7162 = vrot.slane %v6878, 5
        %v7163 = vsel %vm1858, %v7161, %v7162
        %v7164 = vrot.slane %v7162, 4
        %v7165 = vrot.slane %v6886, 5
        %v7166 = vsel %vm1858, %v7164, %v7165
        %v7175 = vunpack.c.l.b16 %v6863
        %v7176 = vunpack.c.l.b16 %v6864
        %v7177 = vunpack.c.l.b16 %v6865
        %v7178 = vunpack.c.l.b16 %v6866
        %v7179 = vunpack.c.l.b16 %v6867
        %v7180 = vunpack.c.l.b16 %v6868
        %v7181 = vunpack.c.l.b16 %v6869
        %v7182 = vunpack.c.l.b16 %v6870
        %v7183 = vunpack.c.l.b16 %v6871
        %v7184 = vunpack.c.l.b16 %v6872
        %v7185 = vunpack.c.l.b16 %v6873
        %v7186 = vunpack.c.l.b16 %v6874
        %v7187 = vunpack.c.l.b16 %v6875
        %v7188 = vunpack.c.l.b16 %v6876
        %v7189 = vunpack.c.l.b16 %v6877
        %v7190 = vunpack.c.l.b16 %v6878
        %v7191 = vpack.c.b16 %v7176, %v7175
        %v7192 = vpack.c.b16 %v7178, %v7177
        %v7193 = vpack.c.b16 %v7180, %v7179
        %v7194 = vpack.c.b16 %v7182, %v7181
        %v7195 = vpack.c.b16 %v7184, %v7183
        %v7196 = vpack.c.b16 %v7186, %v7185
        %v7197 = vpack.c.b16 %v7188, %v7187
        %v7198 = vpack.c.b16 %v7190, %v7189
        %v7199 = vunpack.c.l.b16 %v6900
        %v7200 = vunpack.c.l.b16 %v6910
        %v7201 = vunpack.c.l.b16 %v6924
        %v7202 = vunpack.c.l.b16 %v6934
        %v7203 = vunpack.c.l.b16 %v6948
        %v7204 = vunpack.c.l.b16 %v6958
        %v7205 = vunpack.c.l.b16 %v6972
        %v7206 = vunpack.c.l.b16 %v6982
        %v7207 = vunpack.c.l.b16 %v6996
        %v7208 = vunpack.c.l.b16 %v7006
        %v7209 = vunpack.c.l.b16 %v7020
        %v7210 = vunpack.c.l.b16 %v7030
        %v7211 = vunpack.c.l.b16 %v7044
        %v7212 = vunpack.c.l.b16 %v7054
        %v7213 = vunpack.c.l.b16 %v7068
        %v7214 = vunpack.c.l.b16 %v7078
        %v7215 = vpack.c.b16 %v7200, %v7199
        %v7216 = vpack.c.b16 %v7202, %v7201
        %v7217 = vpack.c.b16 %v7204, %v7203
        %v7218 = vpack.c.b16 %v7206, %v7205
        %v7219 = vpack.c.b16 %v7208, %v7207
        %v7220 = vpack.c.b16 %v7210, %v7209
        %v7221 = vpack.c.b16 %v7212, %v7211
        %v7222 = vpack.c.b16 %v7214, %v7213
        %7223 = vrot.lane.b32.xlu0 %v7215, 64
        %v7224 = vpop.permute.xlu0 %7223
        %7225 = vrot.lane.b32.xlu0 %v7216, 64
        %v7226 = vpop.permute.xlu0 %7225
        %7227 = vrot.lane.b32.xlu0 %v7217, 64
        %v7228 = vpop.permute.xlu0 %7227
        %7229 = vrot.lane.b32.xlu0 %v7218, 64
        %v7230 = vpop.permute.xlu0 %7229
        %7231 = vrot.lane.b32.xlu0 %v7219, 64
        %v7232 = vpop.permute.xlu0 %7231
        %7233 = vrot.lane.b32.xlu0 %v7220, 64
        %v7234 = vpop.permute.xlu0 %7233
        %7235 = vrot.lane.b32.xlu0 %v7221, 64
        %v7236 = vpop.permute.xlu0 %7235
        %7237 = vrot.lane.b32.xlu0 %v7222, 64
        %v7238 = vpop.permute.xlu0 %7237
        %v7239 = vunpack.c.l.b16 %v7114
        %v7240 = vunpack.c.l.b16 %v7117
        %v7241 = vunpack.c.l.b16 %v7121
        %v7242 = vunpack.c.l.b16 %v7124
        %v7243 = vunpack.c.l.b16 %v7128
        %v7244 = vunpack.c.l.b16 %v7131
        %v7245 = vunpack.c.l.b16 %v7135
        %v7246 = vunpack.c.l.b16 %v7138
        %v7247 = vunpack.c.l.b16 %v7142
        %v7248 = vunpack.c.l.b16 %v7145
        %v7249 = vunpack.c.l.b16 %v7149
        %v7250 = vunpack.c.l.b16 %v7152
        %v7251 = vunpack.c.l.b16 %v7156
        %v7252 = vunpack.c.l.b16 %v7159
        %v7253 = vunpack.c.l.b16 %v7163
        %v7254 = vunpack.c.l.b16 %v7166
        %v7255 = vpack.c.b16 %v7240, %v7239
        %v7256 = vpack.c.b16 %v7242, %v7241
        %v7257 = vpack.c.b16 %v7244, %v7243
        %v7258 = vpack.c.b16 %v7246, %v7245
        %v7259 = vpack.c.b16 %v7248, %v7247
        %v7260 = vpack.c.b16 %v7250, %v7249
        %v7261 = vpack.c.b16 %v7252, %v7251
        %v7262 = vpack.c.b16 %v7254, %v7253
        %v7265 = vsel %vm2011, %v7191, %v7224
        %v7269 = vsel %vm2011, %v7192, %v7226
        %v7273 = vsel %vm2011, %v7193, %v7228
        %v7277 = vsel %vm2011, %v7194, %v7230
        %v7281 = vsel %vm2011, %v7195, %v7232
        %v7285 = vsel %vm2011, %v7196, %v7234
        %v7289 = vsel %vm2011, %v7197, %v7236
        %v7293 = vsel %vm2011, %v7198, %v7238
        %s7295 = scalar_lea.vmem %s13, 96
        %v7296 = vld [vmem:[%s7295] sm:$0xf]
        %v7297 = vld [vmem:[%s7295 + $0x4] sm:$0xf]
        %v7298 = vld [vmem:[%s7295 + $0x8] sm:$0xf]
        %v7299 = vld [vmem:[%s7295 + $0xc] sm:$0xf]
        %v7300 = vld [vmem:[%s7295 + $0x10] sm:$0xf]
        %v7301 = vld [vmem:[%s7295 + $0x14] sm:$0xf]
        %v7302 = vld [vmem:[%s7295 + $0x18] sm:$0xf]
        %v7303 = vld [vmem:[%s7295 + $0x1c] sm:$0xf]
        %v7304 = vld [vmem:[%s7295 + $0x20] sm:$0xf]
        %v7305 = vld [vmem:[%s7295 + $0x24] sm:$0xf]
        %v7306 = vld [vmem:[%s7295 + $0x28] sm:$0xf]
        %v7307 = vld [vmem:[%s7295 + $0x2c] sm:$0xf]
        %v7308 = vld [vmem:[%s7295 + $0x30] sm:$0xf]
        %v7309 = vld [vmem:[%s7295 + $0x34] sm:$0xf]
        %v7310 = vld [vmem:[%s7295 + $0x38] sm:$0xf]
        %v7311 = vld [vmem:[%s7295 + $0x3c] sm:$0xf]
        %v7312 = vld [vmem:[%s7295 + $0x40] sm:$0xf]
        %v7313 = vld [vmem:[%s7295 + $0x44] sm:$0xf]
        %v7314 = vld [vmem:[%s7295 + $0x48] sm:$0xf]
        %v7315 = vld [vmem:[%s7295 + $0x4c] sm:$0xf]
        %v7316 = vld [vmem:[%s7295 + $0x50] sm:$0xf]
        %v7317 = vld [vmem:[%s7295 + $0x54] sm:$0xf]
        %v7318 = vld [vmem:[%s7295 + $0x58] sm:$0xf]
        %v7319 = vld [vmem:[%s7295 + $0x5c] sm:$0xf]
        %v7344 = vunpack.c.l.b16 %v7296
        %v7345 = vunpack.c.l.b16 %v7297
        %v7346 = vunpack.c.l.b16 %v7298
        %v7347 = vunpack.c.l.b16 %v7299
        %v7348 = vunpack.c.l.b16 %v7300
        %v7349 = vunpack.c.l.b16 %v7301
        %v7350 = vunpack.c.l.b16 %v7302
        %v7351 = vunpack.c.l.b16 %v7303
        %v7352 = vunpack.c.l.b16 %v7304
        %v7353 = vunpack.c.l.b16 %v7305
        %v7354 = vunpack.c.l.b16 %v7306
        %v7355 = vunpack.c.l.b16 %v7307
        %v7356 = vunpack.c.l.b16 %v7308
        %v7357 = vunpack.c.l.b16 %v7309
        %v7358 = vunpack.c.l.b16 %v7310
        %v7359 = vunpack.c.l.b16 %v7311
        %v7360 = vunpack.c.l.b16 %v7312
        %v7361 = vunpack.c.l.b16 %v7313
        %v7362 = vunpack.c.l.b16 %v7314
        %v7363 = vunpack.c.l.b16 %v7315
        %v7364 = vunpack.c.l.b16 %v7316
        %v7365 = vunpack.c.l.b16 %v7317
        %v7366 = vunpack.c.l.b16 %v7318
        %v7367 = vunpack.c.l.b16 %v7319
        %v7368 = vpack.c.b16 %v7345, %v7344
        %v7369 = vpack.c.b16 %v7347, %v7346
        %v7370 = vpack.c.b16 %v7349, %v7348
        %v7371 = vpack.c.b16 %v7351, %v7350
        %v7372 = vpack.c.b16 %v7353, %v7352
        %v7373 = vpack.c.b16 %v7355, %v7354
        %v7374 = vpack.c.b16 %v7357, %v7356
        %v7375 = vpack.c.b16 %v7359, %v7358
        %v7376 = vpack.c.b16 %v7361, %v7360
        %v7377 = vpack.c.b16 %v7363, %v7362
        %v7378 = vpack.c.b16 %v7365, %v7364
        %v7379 = vpack.c.b16 %v7367, %v7366
        %v7393 = vsel %vm2011, %v7255, 0
        %v7396 = vsel %vm2011, %v7256, 0
        %v7399 = vsel %vm2011, %v7257, 0
        %v7402 = vsel %vm2011, %v7258, 0
        %v7405 = vsel %vm2011, %v7259, 0
        %v7408 = vsel %vm2011, %v7260, 0
        %v7411 = vsel %vm2011, %v7261, 0
        %v7414 = vsel %vm2011, %v7262, 0
        %7416 = vmatpush.bf16.msra.mxu0 %v7375
        %7417 = vmatpush.bf16.msra.mxu0 %v7374
        %7418 = vmatpush.bf16.msra.mxu0 %v7373
        %7419 = vmatpush.bf16.msra.mxu0 %v7372
        %7420 = vmatpush.bf16.msra.mxu0 %v7371
        %7421 = vmatpush.bf16.msra.mxu0 %v7370
        %7422 = vmatpush.bf16.msra.mxu0 %v7369
        %7423 = vmatpush.bf16.msra.mxu0 %v7368
        %7424 = vmatmul.bf16.gmra.mxu0 %v7265
        %v7425 = vpop.f32.mrf.mxu0
        %v7426 = vadd.f32 0.0, %v7425
        %v7427 = vpop.f32.mrf.mxu0
        %v7428 = vadd.f32 0.0, %v7427
        %7429 = vmatmul.bf16.gmra.mxu0 %v7269
        %v7430 = vpop.f32.mrf.mxu0
        %v7431 = vadd.f32 0.0, %v7430
        %v7432 = vpop.f32.mrf.mxu0
        %v7433 = vadd.f32 0.0, %v7432
        %7434 = vmatmul.bf16.gmra.mxu0 %v7273
        %v7435 = vpop.f32.mrf.mxu0
        %v7436 = vadd.f32 0.0, %v7435
        %v7437 = vpop.f32.mrf.mxu0
        %v7438 = vadd.f32 0.0, %v7437
        %7439 = vmatmul.bf16.gmra.mxu0 %v7277
        %v7440 = vpop.f32.mrf.mxu0
        %v7441 = vadd.f32 0.0, %v7440
        %v7442 = vpop.f32.mrf.mxu0
        %v7443 = vadd.f32 0.0, %v7442
        %7444 = vmatmul.bf16.gmra.mxu0 %v7281
        %v7445 = vpop.f32.mrf.mxu0
        %v7446 = vadd.f32 0.0, %v7445
        %v7447 = vpop.f32.mrf.mxu0
        %v7448 = vadd.f32 0.0, %v7447
        %7449 = vmatmul.bf16.gmra.mxu0 %v7285
        %v7450 = vpop.f32.mrf.mxu0
        %v7451 = vadd.f32 0.0, %v7450
        %v7452 = vpop.f32.mrf.mxu0
        %v7453 = vadd.f32 0.0, %v7452
        %7454 = vmatmul.bf16.gmra.mxu0 %v7289
        %v7455 = vpop.f32.mrf.mxu0
        %v7456 = vadd.f32 0.0, %v7455
        %v7457 = vpop.f32.mrf.mxu0
        %v7458 = vadd.f32 0.0, %v7457
        %7459 = vmatmul.bf16.gmra.mxu0 %v7293
        %v7460 = vpop.f32.mrf.mxu0
        %v7461 = vadd.f32 0.0, %v7460
        %v7462 = vpop.f32.mrf.mxu0
        %v7463 = vadd.f32 0.0, %v7462
        %7464 = vdwg.mxu0
        %7465 = vmatpush.bf16.msra.mxu0 0
        %7466 = vmatpush.bf16.msra.mxu0 0
        %7467 = vmatpush.bf16.msra.mxu0 0
        %7468 = vmatpush.bf16.msra.mxu0 0
        %7469 = vmatpush.bf16.msra.mxu0 %v7379
        %7470 = vmatpush.bf16.msra.mxu0 %v7378
        %7471 = vmatpush.bf16.msra.mxu0 %v7377
        %7472 = vmatpush.bf16.msra.mxu0 %v7376
        %7473 = vmatmul.bf16.gmra.mxu0 %v7393
        %v7474 = vpop.f32.mrf.mxu0
        %v7475 = vadd.f32 %v7426, %v7474
        %v7476 = vpop.f32.mrf.mxu0
        %v7477 = vadd.f32 %v7428, %v7476
        %7478 = vmatmul.bf16.gmra.mxu0 %v7396
        %v7479 = vpop.f32.mrf.mxu0
        %v7480 = vadd.f32 %v7431, %v7479
        %v7481 = vpop.f32.mrf.mxu0
        %v7482 = vadd.f32 %v7433, %v7481
        %7483 = vmatmul.bf16.gmra.mxu0 %v7399
        %v7484 = vpop.f32.mrf.mxu0
        %v7485 = vadd.f32 %v7436, %v7484
        %v7486 = vpop.f32.mrf.mxu0
        %v7487 = vadd.f32 %v7438, %v7486
        %7488 = vmatmul.bf16.gmra.mxu0 %v7402
        %v7489 = vpop.f32.mrf.mxu0
        %v7490 = vadd.f32 %v7441, %v7489
        %v7491 = vpop.f32.mrf.mxu0
        %v7492 = vadd.f32 %v7443, %v7491
        %7493 = vmatmul.bf16.gmra.mxu0 %v7405
        %v7494 = vpop.f32.mrf.mxu0
        %v7495 = vadd.f32 %v7446, %v7494
        %v7496 = vpop.f32.mrf.mxu0
        %v7497 = vadd.f32 %v7448, %v7496
        %7498 = vmatmul.bf16.gmra.mxu0 %v7408
        %v7499 = vpop.f32.mrf.mxu0
        %v7500 = vadd.f32 %v7451, %v7499
        %v7501 = vpop.f32.mrf.mxu0
        %v7502 = vadd.f32 %v7453, %v7501
        %7503 = vmatmul.bf16.gmra.mxu0 %v7411
        %v7504 = vpop.f32.mrf.mxu0
        %v7505 = vadd.f32 %v7456, %v7504
        %v7506 = vpop.f32.mrf.mxu0
        %v7507 = vadd.f32 %v7458, %v7506
        %7508 = vmatmul.bf16.gmra.mxu0 %v7414
        %v7509 = vpop.f32.mrf.mxu0
        %v7510 = vadd.f32 %v7461, %v7509
        %v7511 = vpop.f32.mrf.mxu0
        %v7512 = vadd.f32 %v7463, %v7511
        %7513 = vdwg.mxu0
        %v7538 = vunpack.c.l.b16 %v6838
        %v7539 = vunpack.c.l.b16 %v6839
        %v7540 = vunpack.c.l.b16 %v6840
        %v7541 = vunpack.c.l.b16 %v6841
        %v7542 = vunpack.c.l.b16 %v6842
        %v7543 = vunpack.c.l.b16 %v6843
        %v7544 = vunpack.c.l.b16 %v6844
        %v7545 = vunpack.c.l.b16 %v6845
        %v7546 = vunpack.c.l.b16 %v6846
        %v7547 = vunpack.c.l.b16 %v6847
        %v7548 = vunpack.c.l.b16 %v6848
        %v7549 = vunpack.c.l.b16 %v6849
        %v7550 = vunpack.c.l.b16 %v6850
        %v7551 = vunpack.c.l.b16 %v6851
        %v7552 = vunpack.c.l.b16 %v6852
        %v7553 = vunpack.c.l.b16 %v6853
        %v7554 = vunpack.c.l.b16 %v6854
        %v7555 = vunpack.c.l.b16 %v6855
        %v7556 = vunpack.c.l.b16 %v6856
        %v7557 = vunpack.c.l.b16 %v6857
        %v7558 = vunpack.c.l.b16 %v6858
        %v7559 = vunpack.c.l.b16 %v6859
        %v7560 = vunpack.c.l.b16 %v6860
        %v7561 = vunpack.c.l.b16 %v6861
        %v7562 = vpack.c.b16 %v7539, %v7538
        %v7563 = vpack.c.b16 %v7541, %v7540
        %v7564 = vpack.c.b16 %v7543, %v7542
        %v7565 = vpack.c.b16 %v7545, %v7544
        %v7566 = vpack.c.b16 %v7547, %v7546
        %v7567 = vpack.c.b16 %v7549, %v7548
        %v7568 = vpack.c.b16 %v7551, %v7550
        %v7569 = vpack.c.b16 %v7553, %v7552
        %v7570 = vpack.c.b16 %v7555, %v7554
        %v7571 = vpack.c.b16 %v7557, %v7556
        %v7572 = vpack.c.b16 %v7559, %v7558
        %v7573 = vpack.c.b16 %v7561, %v7560
        %v7587 = vsel %vm2011, %v6798, 0
        %v7590 = vsel %vm2011, %v6799, 0
        %v7593 = vsel %vm2011, %v6800, 0
        %v7596 = vsel %vm2011, %v6801, 0
        %v7599 = vsel %vm2011, %v6802, 0
        %v7602 = vsel %vm2011, %v6803, 0
        %v7605 = vsel %vm2011, %v6804, 0
        %v7608 = vsel %vm2011, %v6805, 0
        %7610 = vmatpush.bf16.msra.mxu0 %v7569
        %7611 = vmatpush.bf16.msra.mxu0 %v7568
        %7612 = vmatpush.bf16.msra.mxu0 %v7567
        %7613 = vmatpush.bf16.msra.mxu0 %v7566
        %7614 = vmatpush.bf16.msra.mxu0 %v7565
        %7615 = vmatpush.bf16.msra.mxu0 %v7564
        %7616 = vmatpush.bf16.msra.mxu0 %v7563
        %7617 = vmatpush.bf16.msra.mxu0 %v7562
        %7618 = vmatmul.bf16.gmra.mxu0 %v6808
        %v7619 = vpop.f32.mrf.mxu0
        %v7620 = vadd.f32 %v7475, %v7619
        %v7621 = vpop.f32.mrf.mxu0
        %v7622 = vadd.f32 %v7477, %v7621
        %7623 = vmatmul.bf16.gmra.mxu0 %v6812
        %v7624 = vpop.f32.mrf.mxu0
        %v7625 = vadd.f32 %v7480, %v7624
        %v7626 = vpop.f32.mrf.mxu0
        %v7627 = vadd.f32 %v7482, %v7626
        %7628 = vmatmul.bf16.gmra.mxu0 %v6816
        %v7629 = vpop.f32.mrf.mxu0
        %v7630 = vadd.f32 %v7485, %v7629
        %v7631 = vpop.f32.mrf.mxu0
        %v7632 = vadd.f32 %v7487, %v7631
        %7633 = vmatmul.bf16.gmra.mxu0 %v6820
        %v7634 = vpop.f32.mrf.mxu0
        %v7635 = vadd.f32 %v7490, %v7634
        %v7636 = vpop.f32.mrf.mxu0
        %v7637 = vadd.f32 %v7492, %v7636
        %7638 = vmatmul.bf16.gmra.mxu0 %v6824
        %v7639 = vpop.f32.mrf.mxu0
        %v7640 = vadd.f32 %v7495, %v7639
        %v7641 = vpop.f32.mrf.mxu0
        %v7642 = vadd.f32 %v7497, %v7641
        %7643 = vmatmul.bf16.gmra.mxu0 %v6828
        %v7644 = vpop.f32.mrf.mxu0
        %v7645 = vadd.f32 %v7500, %v7644
        %v7646 = vpop.f32.mrf.mxu0
        %v7647 = vadd.f32 %v7502, %v7646
        %7648 = vmatmul.bf16.gmra.mxu0 %v6832
        %v7649 = vpop.f32.mrf.mxu0
        %v7650 = vadd.f32 %v7505, %v7649
        %v7651 = vpop.f32.mrf.mxu0
        %v7652 = vadd.f32 %v7507, %v7651
        %7653 = vmatmul.bf16.gmra.mxu0 %v6836
        %v7654 = vpop.f32.mrf.mxu0
        %v7655 = vadd.f32 %v7510, %v7654
        %v7656 = vpop.f32.mrf.mxu0
        %v7657 = vadd.f32 %v7512, %v7656
        %7658 = vdwg.mxu0
        %7659 = vmatpush.bf16.msra.mxu0 0
        %7660 = vmatpush.bf16.msra.mxu0 0
        %7661 = vmatpush.bf16.msra.mxu0 0
        %7662 = vmatpush.bf16.msra.mxu0 0
        %7663 = vmatpush.bf16.msra.mxu0 %v7573
        %7664 = vmatpush.bf16.msra.mxu0 %v7572
        %7665 = vmatpush.bf16.msra.mxu0 %v7571
        %7666 = vmatpush.bf16.msra.mxu0 %v7570
        %7667 = vmatmul.bf16.gmra.mxu0 %v7587
        %v7668 = vpop.f32.mrf.mxu0
        %v7669 = vadd.f32 %v7620, %v7668
        %v7670 = vpop.f32.mrf.mxu0
        %v7671 = vadd.f32 %v7622, %v7670
        %7672 = vmatmul.bf16.gmra.mxu0 %v7590
        %v7673 = vpop.f32.mrf.mxu0
        %v7674 = vadd.f32 %v7625, %v7673
        %v7675 = vpop.f32.mrf.mxu0
        %v7676 = vadd.f32 %v7627, %v7675
        %7677 = vmatmul.bf16.gmra.mxu0 %v7593
        %v7678 = vpop.f32.mrf.mxu0
        %v7679 = vadd.f32 %v7630, %v7678
        %v7680 = vpop.f32.mrf.mxu0
        %v7681 = vadd.f32 %v7632, %v7680
        %7682 = vmatmul.bf16.gmra.mxu0 %v7596
        %v7683 = vpop.f32.mrf.mxu0
        %v7684 = vadd.f32 %v7635, %v7683
        %v7685 = vpop.f32.mrf.mxu0
        %v7686 = vadd.f32 %v7637, %v7685
        %7687 = vmatmul.bf16.gmra.mxu0 %v7599
        %v7688 = vpop.f32.mrf.mxu0
        %v7689 = vadd.f32 %v7640, %v7688
        %v7690 = vpop.f32.mrf.mxu0
        %v7691 = vadd.f32 %v7642, %v7690
        %7692 = vmatmul.bf16.gmra.mxu0 %v7602
        %v7693 = vpop.f32.mrf.mxu0
        %v7694 = vadd.f32 %v7645, %v7693
        %v7695 = vpop.f32.mrf.mxu0
        %v7696 = vadd.f32 %v7647, %v7695
        %7697 = vmatmul.bf16.gmra.mxu0 %v7605
        %v7698 = vpop.f32.mrf.mxu0
        %v7699 = vadd.f32 %v7650, %v7698
        %v7700 = vpop.f32.mrf.mxu0
        %v7701 = vadd.f32 %v7652, %v7700
        %7702 = vmatmul.bf16.gmra.mxu0 %v7608
        %v7703 = vpop.f32.mrf.mxu0
        %v7704 = vadd.f32 %v7655, %v7703
        %v7705 = vpop.f32.mrf.mxu0
        %v7706 = vadd.f32 %v7657, %v7705
        %7707 = vdwg.mxu0
        %s7708 = scalar_lea.vmem [#allocation6], 24
        %v7709 = vld [vmem:[%s7708] sm:$0xf]
        %v7710 = vld [vmem:[%s7708 + $0x4] sm:$0xf]
        %v7711 = vld [vmem:[%s7708 + $0xc] sm:$0xf]
        %v7712 = vld [vmem:[%s7708 + $0x10] sm:$0xf]
        %v7713 = vld [vmem:[%s7708 + $0x18] sm:$0xf]
        %v7714 = vld [vmem:[%s7708 + $0x1c] sm:$0xf]
        %v7715 = vld [vmem:[%s7708 + $0x24] sm:$0xf]
        %v7716 = vld [vmem:[%s7708 + $0x28] sm:$0xf]
        %v7717 = vld [vmem:[%s7708 + $0x30] sm:$0xf]
        %v7718 = vld [vmem:[%s7708 + $0x34] sm:$0xf]
        %v7719 = vld [vmem:[%s7708 + $0x3c] sm:$0xf]
        %v7720 = vld [vmem:[%s7708 + $0x40] sm:$0xf]
        %v7721 = vld [vmem:[%s7708 + $0x48] sm:$0xf]
        %v7722 = vld [vmem:[%s7708 + $0x4c] sm:$0xf]
        %v7723 = vld [vmem:[%s7708 + $0x54] sm:$0xf]
        %v7724 = vld [vmem:[%s7708 + $0x58] sm:$0xf]
        %v7725 = vld [vmem:[%s7708 + $0x8] sm:$0x1]
        %v7726 = vld [vmem:[%s7708 + $0x14] sm:$0x1]
        %v7727 = vld [vmem:[%s7708 + $0x20] sm:$0x1]
        %v7728 = vld [vmem:[%s7708 + $0x2c] sm:$0x1]
        %v7729 = vld [vmem:[%s7708 + $0x38] sm:$0x1]
        %v7730 = vld [vmem:[%s7708 + $0x44] sm:$0x1]
        %v7731 = vld [vmem:[%s7708 + $0x50] sm:$0x1]
        %v7732 = vld [vmem:[%s7708 + $0x5c] sm:$0x1]
        %v7734 = vshrl.u32 %v7709, 16
        %v7736 = vrot.slane %v7734, 4
        %v7737 = vshll.u32 %v7709, 16
        %v7739 = vrot.slane %v7737, 5
        %v7740 = vor.u32 %v7736, %v7739
        %v7741 = vrot.slane %v7740, 4
        %v7743 = vshll.u32 %v7710, 16
        %v7745 = vrot.slane %v7743, 5
        %v7746 = vsel %vm1631, %v7741, %v7745
        %v7747 = vshrl.u32 %v7710, 16
        %v7749 = vrot.slane %v7747, 4
        %v7750 = vor.u32 %v7749, %v7745
        %v7751 = vrot.slane %v7750, 4
        %v7753 = vshll.u32 %v7725, 16
        %v7755 = vrot.slane %v7753, 5
        %v7756 = vsel %vm1631, %v7751, %v7755
        %v7758 = vshrl.u32 %v7711, 16
        %v7760 = vrot.slane %v7758, 4
        %v7761 = vshll.u32 %v7711, 16
        %v7763 = vrot.slane %v7761, 5
        %v7764 = vor.u32 %v7760, %v7763
        %v7765 = vrot.slane %v7764, 4
        %v7767 = vshll.u32 %v7712, 16
        %v7769 = vrot.slane %v7767, 5
        %v7770 = vsel %vm1631, %v7765, %v7769
        %v7771 = vshrl.u32 %v7712, 16
        %v7773 = vrot.slane %v7771, 4
        %v7774 = vor.u32 %v7773, %v7769
        %v7775 = vrot.slane %v7774, 4
        %v7777 = vshll.u32 %v7726, 16
        %v7779 = vrot.slane %v7777, 5
        %v7780 = vsel %vm1631, %v7775, %v7779
        %v7782 = vshrl.u32 %v7713, 16
        %v7784 = vrot.slane %v7782, 4
        %v7785 = vshll.u32 %v7713, 16
        %v7787 = vrot.slane %v7785, 5
        %v7788 = vor.u32 %v7784, %v7787
        %v7789 = vrot.slane %v7788, 4
        %v7791 = vshll.u32 %v7714, 16
        %v7793 = vrot.slane %v7791, 5
        %v7794 = vsel %vm1631, %v7789, %v7793
        %v7795 = vshrl.u32 %v7714, 16
        %v7797 = vrot.slane %v7795, 4
        %v7798 = vor.u32 %v7797, %v7793
        %v7799 = vrot.slane %v7798, 4
        %v7801 = vshll.u32 %v7727, 16
        %v7803 = vrot.slane %v7801, 5
        %v7804 = vsel %vm1631, %v7799, %v7803
        %v7806 = vshrl.u32 %v7715, 16
        %v7808 = vrot.slane %v7806, 4
        %v7809 = vshll.u32 %v7715, 16
        %v7811 = vrot.slane %v7809, 5
        %v7812 = vor.u32 %v7808, %v7811
        %v7813 = vrot.slane %v7812, 4
        %v7815 = vshll.u32 %v7716, 16
        %v7817 = vrot.slane %v7815, 5
        %v7818 = vsel %vm1631, %v7813, %v7817
        %v7819 = vshrl.u32 %v7716, 16
        %v7821 = vrot.slane %v7819, 4
        %v7822 = vor.u32 %v7821, %v7817
        %v7823 = vrot.slane %v7822, 4
        %v7825 = vshll.u32 %v7728, 16
        %v7827 = vrot.slane %v7825, 5
        %v7828 = vsel %vm1631, %v7823, %v7827
        %v7830 = vshrl.u32 %v7717, 16
        %v7832 = vrot.slane %v7830, 4
        %v7833 = vshll.u32 %v7717, 16
        %v7835 = vrot.slane %v7833, 5
        %v7836 = vor.u32 %v7832, %v7835
        %v7837 = vrot.slane %v7836, 4
        %v7839 = vshll.u32 %v7718, 16
        %v7841 = vrot.slane %v7839, 5
        %v7842 = vsel %vm1631, %v7837, %v7841
        %v7843 = vshrl.u32 %v7718, 16
        %v7845 = vrot.slane %v7843, 4
        %v7846 = vor.u32 %v7845, %v7841
        %v7847 = vrot.slane %v7846, 4
        %v7849 = vshll.u32 %v7729, 16
        %v7851 = vrot.slane %v7849, 5
        %v7852 = vsel %vm1631, %v7847, %v7851
        %v7854 = vshrl.u32 %v7719, 16
        %v7856 = vrot.slane %v7854, 4
        %v7857 = vshll.u32 %v7719, 16
        %v7859 = vrot.slane %v7857, 5
        %v7860 = vor.u32 %v7856, %v7859
        %v7861 = vrot.slane %v7860, 4
        %v7863 = vshll.u32 %v7720, 16
        %v7865 = vrot.slane %v7863, 5
        %v7866 = vsel %vm1631, %v7861, %v7865
        %v7867 = vshrl.u32 %v7720, 16
        %v7869 = vrot.slane %v7867, 4
        %v7870 = vor.u32 %v7869, %v7865
        %v7871 = vrot.slane %v7870, 4
        %v7873 = vshll.u32 %v7730, 16
        %v7875 = vrot.slane %v7873, 5
        %v7876 = vsel %vm1631, %v7871, %v7875
        %v7878 = vshrl.u32 %v7721, 16
        %v7880 = vrot.slane %v7878, 4
        %v7881 = vshll.u32 %v7721, 16
        %v7883 = vrot.slane %v7881, 5
        %v7884 = vor.u32 %v7880, %v7883
        %v7885 = vrot.slane %v7884, 4
        %v7887 = vshll.u32 %v7722, 16
        %v7889 = vrot.slane %v7887, 5
        %v7890 = vsel %vm1631, %v7885, %v7889
        %v7891 = vshrl.u32 %v7722, 16
        %v7893 = vrot.slane %v7891, 4
        %v7894 = vor.u32 %v7893, %v7889
        %v7895 = vrot.slane %v7894, 4
        %v7897 = vshll.u32 %v7731, 16
        %v7899 = vrot.slane %v7897, 5
        %v7900 = vsel %vm1631, %v7895, %v7899
        %v7902 = vshrl.u32 %v7723, 16
        %v7904 = vrot.slane %v7902, 4
        %v7905 = vshll.u32 %v7723, 16
        %v7907 = vrot.slane %v7905, 5
        %v7908 = vor.u32 %v7904, %v7907
        %v7909 = vrot.slane %v7908, 4
        %v7911 = vshll.u32 %v7724, 16
        %v7913 = vrot.slane %v7911, 5
        %v7914 = vsel %vm1631, %v7909, %v7913
        %v7915 = vshrl.u32 %v7724, 16
        %v7917 = vrot.slane %v7915, 4
        %v7918 = vor.u32 %v7917, %v7913
        %v7919 = vrot.slane %v7918, 4
        %v7921 = vshll.u32 %v7732, 16
        %v7923 = vrot.slane %v7921, 5
        %v7924 = vsel %vm1631, %v7919, %v7923
        %v7925 = vld [vmem:[%s7708] sm:$0xe]
        %v7926 = vld [vmem:[%s7708 + $0xc] sm:$0xe]
        %v7927 = vld [vmem:[%s7708 + $0x18] sm:$0xe]
        %v7928 = vld [vmem:[%s7708 + $0x24] sm:$0xe]
        %v7929 = vld [vmem:[%s7708 + $0x30] sm:$0xe]
        %v7930 = vld [vmem:[%s7708 + $0x3c] sm:$0xe]
        %v7931 = vld [vmem:[%s7708 + $0x48] sm:$0xe]
        %v7932 = vld [vmem:[%s7708 + $0x54] sm:$0xe]
        %v7957 = vrot.slane %v7925, 5
        %v7958 = vrot.slane %v7957, 4
        %v7959 = vrot.slane %v7710, 5
        %v7960 = vsel %vm1858, %v7958, %v7959
        %v7961 = vrot.slane %v7959, 4
        %v7962 = vrot.slane %v7725, 5
        %v7963 = vsel %vm1858, %v7961, %v7962
        %v7964 = vrot.slane %v7926, 5
        %v7965 = vrot.slane %v7964, 4
        %v7966 = vrot.slane %v7712, 5
        %v7967 = vsel %vm1858, %v7965, %v7966
        %v7968 = vrot.slane %v7966, 4
        %v7969 = vrot.slane %v7726, 5
        %v7970 = vsel %vm1858, %v7968, %v7969
        %v7971 = vrot.slane %v7927, 5
        %v7972 = vrot.slane %v7971, 4
        %v7973 = vrot.slane %v7714, 5
        %v7974 = vsel %vm1858, %v7972, %v7973
        %v7975 = vrot.slane %v7973, 4
        %v7976 = vrot.slane %v7727, 5
        %v7977 = vsel %vm1858, %v7975, %v7976
        %v7978 = vrot.slane %v7928, 5
        %v7979 = vrot.slane %v7978, 4
        %v7980 = vrot.slane %v7716, 5
        %v7981 = vsel %vm1858, %v7979, %v7980
        %v7982 = vrot.slane %v7980, 4
        %v7983 = vrot.slane %v7728, 5
        %v7984 = vsel %vm1858, %v7982, %v7983
        %v7985 = vrot.slane %v7929, 5
        %v7986 = vrot.slane %v7985, 4
        %v7987 = vrot.slane %v7718, 5
        %v7988 = vsel %vm1858, %v7986, %v7987
        %v7989 = vrot.slane %v7987, 4
        %v7990 = vrot.slane %v7729, 5
        %v7991 = vsel %vm1858, %v7989, %v7990
        %v7992 = vrot.slane %v7930, 5
        %v7993 = vrot.slane %v7992, 4
        %v7994 = vrot.slane %v7720, 5
        %v7995 = vsel %vm1858, %v7993, %v7994
        %v7996 = vrot.slane %v7994, 4
        %v7997 = vrot.slane %v7730, 5
        %v7998 = vsel %vm1858, %v7996, %v7997
        %v7999 = vrot.slane %v7931, 5
        %v8000 = vrot.slane %v7999, 4
        %v8001 = vrot.slane %v7722, 5
        %v8002 = vsel %vm1858, %v8000, %v8001
        %v8003 = vrot.slane %v8001, 4
        %v8004 = vrot.slane %v7731, 5
        %v8005 = vsel %vm1858, %v8003, %v8004
        %v8006 = vrot.slane %v7932, 5
        %v8007 = vrot.slane %v8006, 4
        %v8008 = vrot.slane %v7724, 5
        %v8009 = vsel %vm1858, %v8007, %v8008
        %v8010 = vrot.slane %v8008, 4
        %v8011 = vrot.slane %v7732, 5
        %v8012 = vsel %vm1858, %v8010, %v8011
        %v8021 = vunpack.c.l.b16 %v7709
        %v8022 = vunpack.c.l.b16 %v7710
        %v8023 = vunpack.c.l.b16 %v7711
        %v8024 = vunpack.c.l.b16 %v7712
        %v8025 = vunpack.c.l.b16 %v7713
        %v8026 = vunpack.c.l.b16 %v7714
        %v8027 = vunpack.c.l.b16 %v7715
        %v8028 = vunpack.c.l.b16 %v7716
        %v8029 = vunpack.c.l.b16 %v7717
        %v8030 = vunpack.c.l.b16 %v7718
        %v8031 = vunpack.c.l.b16 %v7719
        %v8032 = vunpack.c.l.b16 %v7720
        %v8033 = vunpack.c.l.b16 %v7721
        %v8034 = vunpack.c.l.b16 %v7722
        %v8035 = vunpack.c.l.b16 %v7723
        %v8036 = vunpack.c.l.b16 %v7724
        %v8037 = vpack.c.b16 %v8022, %v8021
        %v8038 = vpack.c.b16 %v8024, %v8023
        %v8039 = vpack.c.b16 %v8026, %v8025
        %v8040 = vpack.c.b16 %v8028, %v8027
        %v8041 = vpack.c.b16 %v8030, %v8029
        %v8042 = vpack.c.b16 %v8032, %v8031
        %v8043 = vpack.c.b16 %v8034, %v8033
        %v8044 = vpack.c.b16 %v8036, %v8035
        %v8045 = vunpack.c.l.b16 %v7746
        %v8046 = vunpack.c.l.b16 %v7756
        %v8047 = vunpack.c.l.b16 %v7770
        %v8048 = vunpack.c.l.b16 %v7780
        %v8049 = vunpack.c.l.b16 %v7794
        %v8050 = vunpack.c.l.b16 %v7804
        %v8051 = vunpack.c.l.b16 %v7818
        %v8052 = vunpack.c.l.b16 %v7828
        %v8053 = vunpack.c.l.b16 %v7842
        %v8054 = vunpack.c.l.b16 %v7852
        %v8055 = vunpack.c.l.b16 %v7866
        %v8056 = vunpack.c.l.b16 %v7876
        %v8057 = vunpack.c.l.b16 %v7890
        %v8058 = vunpack.c.l.b16 %v7900
        %v8059 = vunpack.c.l.b16 %v7914
        %v8060 = vunpack.c.l.b16 %v7924
        %v8061 = vpack.c.b16 %v8046, %v8045
        %v8062 = vpack.c.b16 %v8048, %v8047
        %v8063 = vpack.c.b16 %v8050, %v8049
        %v8064 = vpack.c.b16 %v8052, %v8051
        %v8065 = vpack.c.b16 %v8054, %v8053
        %v8066 = vpack.c.b16 %v8056, %v8055
        %v8067 = vpack.c.b16 %v8058, %v8057
        %v8068 = vpack.c.b16 %v8060, %v8059
        %8069 = vrot.lane.b32.xlu0 %v8061, 64
        %v8070 = vpop.permute.xlu0 %8069
        %8071 = vrot.lane.b32.xlu0 %v8062, 64
        %v8072 = vpop.permute.xlu0 %8071
        %8073 = vrot.lane.b32.xlu0 %v8063, 64
        %v8074 = vpop.permute.xlu0 %8073
        %8075 = vrot.lane.b32.xlu0 %v8064, 64
        %v8076 = vpop.permute.xlu0 %8075
        %8077 = vrot.lane.b32.xlu0 %v8065, 64
        %v8078 = vpop.permute.xlu0 %8077
        %8079 = vrot.lane.b32.xlu0 %v8066, 64
        %v8080 = vpop.permute.xlu0 %8079
        %8081 = vrot.lane.b32.xlu0 %v8067, 64
        %v8082 = vpop.permute.xlu0 %8081
        %8083 = vrot.lane.b32.xlu0 %v8068, 64
        %v8084 = vpop.permute.xlu0 %8083
        %v8085 = vunpack.c.l.b16 %v7960
        %v8086 = vunpack.c.l.b16 %v7963
        %v8087 = vunpack.c.l.b16 %v7967
        %v8088 = vunpack.c.l.b16 %v7970
        %v8089 = vunpack.c.l.b16 %v7974
        %v8090 = vunpack.c.l.b16 %v7977
        %v8091 = vunpack.c.l.b16 %v7981
        %v8092 = vunpack.c.l.b16 %v7984
        %v8093 = vunpack.c.l.b16 %v7988
        %v8094 = vunpack.c.l.b16 %v7991
        %v8095 = vunpack.c.l.b16 %v7995
        %v8096 = vunpack.c.l.b16 %v7998
        %v8097 = vunpack.c.l.b16 %v8002
        %v8098 = vunpack.c.l.b16 %v8005
        %v8099 = vunpack.c.l.b16 %v8009
        %v8100 = vunpack.c.l.b16 %v8012
        %v8101 = vpack.c.b16 %v8086, %v8085
        %v8102 = vpack.c.b16 %v8088, %v8087
        %v8103 = vpack.c.b16 %v8090, %v8089
        %v8104 = vpack.c.b16 %v8092, %v8091
        %v8105 = vpack.c.b16 %v8094, %v8093
        %v8106 = vpack.c.b16 %v8096, %v8095
        %v8107 = vpack.c.b16 %v8098, %v8097
        %v8108 = vpack.c.b16 %v8100, %v8099
        %v8111 = vsel %vm2011, %v8037, %v8070
        %v8115 = vsel %vm2011, %v8038, %v8072
        %v8119 = vsel %vm2011, %v8039, %v8074
        %v8123 = vsel %vm2011, %v8040, %v8076
        %v8127 = vsel %vm2011, %v8041, %v8078
        %v8131 = vsel %vm2011, %v8042, %v8080
        %v8135 = vsel %vm2011, %v8043, %v8082
        %v8139 = vsel %vm2011, %v8044, %v8084
        %s8141 = scalar_lea.vmem %s13, 192
        %v8142 = vld [vmem:[%s8141] sm:$0xf]
        %v8143 = vld [vmem:[%s8141 + $0x4] sm:$0xf]
        %v8144 = vld [vmem:[%s8141 + $0x8] sm:$0xf]
        %v8145 = vld [vmem:[%s8141 + $0xc] sm:$0xf]
        %v8146 = vld [vmem:[%s8141 + $0x10] sm:$0xf]
        %v8147 = vld [vmem:[%s8141 + $0x14] sm:$0xf]
        %v8148 = vld [vmem:[%s8141 + $0x18] sm:$0xf]
        %v8149 = vld [vmem:[%s8141 + $0x1c] sm:$0xf]
        %v8150 = vld [vmem:[%s8141 + $0x20] sm:$0xf]
        %v8151 = vld [vmem:[%s8141 + $0x24] sm:$0xf]
        %v8152 = vld [vmem:[%s8141 + $0x28] sm:$0xf]
        %v8153 = vld [vmem:[%s8141 + $0x2c] sm:$0xf]
        %v8154 = vld [vmem:[%s8141 + $0x30] sm:$0xf]
        %v8155 = vld [vmem:[%s8141 + $0x34] sm:$0xf]
        %v8156 = vld [vmem:[%s8141 + $0x38] sm:$0xf]
        %v8157 = vld [vmem:[%s8141 + $0x3c] sm:$0xf]
        %v8158 = vld [vmem:[%s8141 + $0x40] sm:$0xf]
        %v8159 = vld [vmem:[%s8141 + $0x44] sm:$0xf]
        %v8160 = vld [vmem:[%s8141 + $0x48] sm:$0xf]
        %v8161 = vld [vmem:[%s8141 + $0x4c] sm:$0xf]
        %v8162 = vld [vmem:[%s8141 + $0x50] sm:$0xf]
        %v8163 = vld [vmem:[%s8141 + $0x54] sm:$0xf]
        %v8164 = vld [vmem:[%s8141 + $0x58] sm:$0xf]
        %v8165 = vld [vmem:[%s8141 + $0x5c] sm:$0xf]
        %v8190 = vunpack.c.l.b16 %v8142
        %v8191 = vunpack.c.l.b16 %v8143
        %v8192 = vunpack.c.l.b16 %v8144
        %v8193 = vunpack.c.l.b16 %v8145
        %v8194 = vunpack.c.l.b16 %v8146
        %v8195 = vunpack.c.l.b16 %v8147
        %v8196 = vunpack.c.l.b16 %v8148
        %v8197 = vunpack.c.l.b16 %v8149
        %v8198 = vunpack.c.l.b16 %v8150
        %v8199 = vunpack.c.l.b16 %v8151
        %v8200 = vunpack.c.l.b16 %v8152
        %v8201 = vunpack.c.l.b16 %v8153
        %v8202 = vunpack.c.l.b16 %v8154
        %v8203 = vunpack.c.l.b16 %v8155
        %v8204 = vunpack.c.l.b16 %v8156
        %v8205 = vunpack.c.l.b16 %v8157
        %v8206 = vunpack.c.l.b16 %v8158
        %v8207 = vunpack.c.l.b16 %v8159
        %v8208 = vunpack.c.l.b16 %v8160
        %v8209 = vunpack.c.l.b16 %v8161
        %v8210 = vunpack.c.l.b16 %v8162
        %v8211 = vunpack.c.l.b16 %v8163
        %v8212 = vunpack.c.l.b16 %v8164
        %v8213 = vunpack.c.l.b16 %v8165
        %v8214 = vpack.c.b16 %v8191, %v8190
        %v8215 = vpack.c.b16 %v8193, %v8192
        %v8216 = vpack.c.b16 %v8195, %v8194
        %v8217 = vpack.c.b16 %v8197, %v8196
        %v8218 = vpack.c.b16 %v8199, %v8198
        %v8219 = vpack.c.b16 %v8201, %v8200
        %v8220 = vpack.c.b16 %v8203, %v8202
        %v8221 = vpack.c.b16 %v8205, %v8204
        %v8222 = vpack.c.b16 %v8207, %v8206
        %v8223 = vpack.c.b16 %v8209, %v8208
        %v8224 = vpack.c.b16 %v8211, %v8210
        %v8225 = vpack.c.b16 %v8213, %v8212
        %v8239 = vsel %vm2011, %v8101, 0
        %v8242 = vsel %vm2011, %v8102, 0
        %v8245 = vsel %vm2011, %v8103, 0
        %v8248 = vsel %vm2011, %v8104, 0
        %v8251 = vsel %vm2011, %v8105, 0
        %v8254 = vsel %vm2011, %v8106, 0
        %v8257 = vsel %vm2011, %v8107, 0
        %v8260 = vsel %vm2011, %v8108, 0
        %8262 = vmatpush.bf16.msra.mxu0 %v8221
        %8263 = vmatpush.bf16.msra.mxu0 %v8220
        %8264 = vmatpush.bf16.msra.mxu0 %v8219
        %8265 = vmatpush.bf16.msra.mxu0 %v8218
        %8266 = vmatpush.bf16.msra.mxu0 %v8217
        %8267 = vmatpush.bf16.msra.mxu0 %v8216
        %8268 = vmatpush.bf16.msra.mxu0 %v8215
        %8269 = vmatpush.bf16.msra.mxu0 %v8214
        %8270 = vmatmul.bf16.gmra.mxu0 %v8111
        %v8271 = vpop.f32.mrf.mxu0
        %v8272 = vadd.f32 0.0, %v8271
        %v8273 = vpop.f32.mrf.mxu0
        %v8274 = vadd.f32 0.0, %v8273
        %8275 = vmatmul.bf16.gmra.mxu0 %v8115
        %v8276 = vpop.f32.mrf.mxu0
        %v8277 = vadd.f32 0.0, %v8276
        %v8278 = vpop.f32.mrf.mxu0
        %v8279 = vadd.f32 0.0, %v8278
        %8280 = vmatmul.bf16.gmra.mxu0 %v8119
        %v8281 = vpop.f32.mrf.mxu0
        %v8282 = vadd.f32 0.0, %v8281
        %v8283 = vpop.f32.mrf.mxu0
        %v8284 = vadd.f32 0.0, %v8283
        %8285 = vmatmul.bf16.gmra.mxu0 %v8123
        %v8286 = vpop.f32.mrf.mxu0
        %v8287 = vadd.f32 0.0, %v8286
        %v8288 = vpop.f32.mrf.mxu0
        %v8289 = vadd.f32 0.0, %v8288
        %8290 = vmatmul.bf16.gmra.mxu0 %v8127
        %v8291 = vpop.f32.mrf.mxu0
        %v8292 = vadd.f32 0.0, %v8291
        %v8293 = vpop.f32.mrf.mxu0
        %v8294 = vadd.f32 0.0, %v8293
        %8295 = vmatmul.bf16.gmra.mxu0 %v8131
        %v8296 = vpop.f32.mrf.mxu0
        %v8297 = vadd.f32 0.0, %v8296
        %v8298 = vpop.f32.mrf.mxu0
        %v8299 = vadd.f32 0.0, %v8298
        %8300 = vmatmul.bf16.gmra.mxu0 %v8135
        %v8301 = vpop.f32.mrf.mxu0
        %v8302 = vadd.f32 0.0, %v8301
        %v8303 = vpop.f32.mrf.mxu0
        %v8304 = vadd.f32 0.0, %v8303
        %8305 = vmatmul.bf16.gmra.mxu0 %v8139
        %v8306 = vpop.f32.mrf.mxu0
        %v8307 = vadd.f32 0.0, %v8306
        %v8308 = vpop.f32.mrf.mxu0
        %v8309 = vadd.f32 0.0, %v8308
        %8310 = vdwg.mxu0
        %8311 = vmatpush.bf16.msra.mxu0 0
        %8312 = vmatpush.bf16.msra.mxu0 0
        %8313 = vmatpush.bf16.msra.mxu0 0
        %8314 = vmatpush.bf16.msra.mxu0 0
        %8315 = vmatpush.bf16.msra.mxu0 %v8225
        %8316 = vmatpush.bf16.msra.mxu0 %v8224
        %8317 = vmatpush.bf16.msra.mxu0 %v8223
        %8318 = vmatpush.bf16.msra.mxu0 %v8222
        %8319 = vmatmul.bf16.gmra.mxu0 %v8239
        %v8320 = vpop.f32.mrf.mxu0
        %v8321 = vadd.f32 %v8272, %v8320
        %v8322 = vpop.f32.mrf.mxu0
        %v8323 = vadd.f32 %v8274, %v8322
        %8324 = vmatmul.bf16.gmra.mxu0 %v8242
        %v8325 = vpop.f32.mrf.mxu0
        %v8326 = vadd.f32 %v8277, %v8325
        %v8327 = vpop.f32.mrf.mxu0
        %v8328 = vadd.f32 %v8279, %v8327
        %8329 = vmatmul.bf16.gmra.mxu0 %v8245
        %v8330 = vpop.f32.mrf.mxu0
        %v8331 = vadd.f32 %v8282, %v8330
        %v8332 = vpop.f32.mrf.mxu0
        %v8333 = vadd.f32 %v8284, %v8332
        %8334 = vmatmul.bf16.gmra.mxu0 %v8248
        %v8335 = vpop.f32.mrf.mxu0
        %v8336 = vadd.f32 %v8287, %v8335
        %v8337 = vpop.f32.mrf.mxu0
        %v8338 = vadd.f32 %v8289, %v8337
        %8339 = vmatmul.bf16.gmra.mxu0 %v8251
        %v8340 = vpop.f32.mrf.mxu0
        %v8341 = vadd.f32 %v8292, %v8340
        %v8342 = vpop.f32.mrf.mxu0
        %v8343 = vadd.f32 %v8294, %v8342
        %8344 = vmatmul.bf16.gmra.mxu0 %v8254
        %v8345 = vpop.f32.mrf.mxu0
        %v8346 = vadd.f32 %v8297, %v8345
        %v8347 = vpop.f32.mrf.mxu0
        %v8348 = vadd.f32 %v8299, %v8347
        %8349 = vmatmul.bf16.gmra.mxu0 %v8257
        %v8350 = vpop.f32.mrf.mxu0
        %v8351 = vadd.f32 %v8302, %v8350
        %v8352 = vpop.f32.mrf.mxu0
        %v8353 = vadd.f32 %v8304, %v8352
        %8354 = vmatmul.bf16.gmra.mxu0 %v8260
        %v8355 = vpop.f32.mrf.mxu0
        %v8356 = vadd.f32 %v8307, %v8355
        %v8357 = vpop.f32.mrf.mxu0
        %v8358 = vadd.f32 %v8309, %v8357
        %8359 = vdwg.mxu0
        %v8360 = vadd.f32 %v7669, %v8321
        %v8361 = vadd.f32 %v7671, %v8323
        %v8362 = vadd.f32 %v7674, %v8326
        %v8363 = vadd.f32 %v7676, %v8328
        %v8364 = vadd.f32 %v7679, %v8331
        %v8365 = vadd.f32 %v7681, %v8333
        %v8366 = vadd.f32 %v7684, %v8336
        %v8367 = vadd.f32 %v7686, %v8338
        %v8368 = vadd.f32 %v7689, %v8341
        %v8369 = vadd.f32 %v7691, %v8343
        %v8370 = vadd.f32 %v7694, %v8346
        %v8371 = vadd.f32 %v7696, %v8348
        %v8372 = vadd.f32 %v7699, %v8351
        %v8373 = vadd.f32 %v7701, %v8353
        %v8374 = vadd.f32 %v7704, %v8356
        %v8375 = vadd.f32 %v7706, %v8358
        %v8376 = vld [vmem:[%s14] sm:$0x1]
        %v8378 = vperm.slane %v8376, 0
        %v8380 = vmul.f32 %v8360, %v8378
        %v8381 = vmul.f32 %v8361, %v8378
        %v8382 = vmul.f32 %v8362, %v8378
        %v8383 = vmul.f32 %v8363, %v8378
        %v8384 = vmul.f32 %v8364, %v8378
        %v8385 = vmul.f32 %v8365, %v8378
        %v8386 = vmul.f32 %v8366, %v8378
        %v8387 = vmul.f32 %v8367, %v8378
        %v8388 = vmul.f32 %v8368, %v8378
        %v8389 = vmul.f32 %v8369, %v8378
        %v8390 = vmul.f32 %v8370, %v8378
        %v8391 = vmul.f32 %v8371, %v8378
        %v8392 = vmul.f32 %v8372, %v8378
        %v8393 = vmul.f32 %v8373, %v8378
        %v8394 = vmul.f32 %v8374, %v8378
        %v8395 = vmul.f32 %v8375, %v8378
        %v8396 = vld [vmem:[%s15] sm:$0x1]
        %v8398 = vperm.slane %v8396, 0
        %v8400 = vadd.f32 %v8380, %v8398
        %v8401 = vadd.f32 %v8381, %v8398
        %v8402 = vadd.f32 %v8382, %v8398
        %v8403 = vadd.f32 %v8383, %v8398
        %v8404 = vadd.f32 %v8384, %v8398
        %v8405 = vadd.f32 %v8385, %v8398
        %v8406 = vadd.f32 %v8386, %v8398
        %v8407 = vadd.f32 %v8387, %v8398
        %v8408 = vadd.f32 %v8388, %v8398
        %v8409 = vadd.f32 %v8389, %v8398
        %v8410 = vadd.f32 %v8390, %v8398
        %v8411 = vadd.f32 %v8391, %v8398
        %v8412 = vadd.f32 %v8392, %v8398
        %v8413 = vadd.f32 %v8393, %v8398
        %v8414 = vadd.f32 %v8394, %v8398
        %v8415 = vadd.f32 %v8395, %v8398
        %v8416 = vmax.f32 %v8400, 0.0
        %v8417 = vmax.f32 %v8401, 0.0
        %v8418 = vmax.f32 %v8402, 0.0
        %v8419 = vmax.f32 %v8403, 0.0
        %v8420 = vmax.f32 %v8404, 0.0
        %v8421 = vmax.f32 %v8405, 0.0
        %v8422 = vmax.f32 %v8406, 0.0
        %v8423 = vmax.f32 %v8407, 0.0
        %v8424 = vmax.f32 %v8408, 0.0
        %v8425 = vmax.f32 %v8409, 0.0
        %v8426 = vmax.f32 %v8410, 0.0
        %v8427 = vmax.f32 %v8411, 0.0
        %v8428 = vmax.f32 %v8412, 0.0
        %v8429 = vmax.f32 %v8413, 0.0
        %v8430 = vmax.f32 %v8414, 0.0
        %v8431 = vmax.f32 %v8415, 0.0
        %v8432 = vpack.c.bf16 %v8416, %v8416
        %v8433 = vpack.c.bf16 %v8417, %v8417
        %v8434 = vpack.c.bf16 %v8418, %v8418
        %v8435 = vpack.c.bf16 %v8419, %v8419
        %v8436 = vpack.c.bf16 %v8420, %v8420
        %v8437 = vpack.c.bf16 %v8421, %v8421
        %v8438 = vpack.c.bf16 %v8422, %v8422
        %v8439 = vpack.c.bf16 %v8423, %v8423
        %v8440 = vpack.c.bf16 %v8424, %v8424
        %v8441 = vpack.c.bf16 %v8425, %v8425
        %v8442 = vpack.c.bf16 %v8426, %v8426
        %v8443 = vpack.c.bf16 %v8427, %v8427
        %v8444 = vpack.c.bf16 %v8428, %v8428
        %v8445 = vpack.c.bf16 %v8429, %v8429
        %v8446 = vpack.c.bf16 %v8430, %v8430
        %v8447 = vpack.c.bf16 %v8431, %v8431
        %8464 = vrot.lane.b32.xlu0 %v8432, 96
        %v8465 = vpop.permute.xlu0 %8464
        %8466 = vrot.lane.b32.xlu0 %v8433, 96
        %v8467 = vpop.permute.xlu0 %8466
        %8468 = vrot.lane.b32.xlu0 %v8434, 96
        %v8469 = vpop.permute.xlu0 %8468
        %8470 = vrot.lane.b32.xlu0 %v8435, 96
        %v8471 = vpop.permute.xlu0 %8470
        %8472 = vrot.lane.b32.xlu0 %v8436, 96
        %v8473 = vpop.permute.xlu0 %8472
        %8474 = vrot.lane.b32.xlu0 %v8437, 96
        %v8475 = vpop.permute.xlu0 %8474
        %8476 = vrot.lane.b32.xlu0 %v8438, 96
        %v8477 = vpop.permute.xlu0 %8476
        %8478 = vrot.lane.b32.xlu0 %v8439, 96
        %v8479 = vpop.permute.xlu0 %8478
        %8480 = vrot.lane.b32.xlu0 %v8440, 96
        %v8481 = vpop.permute.xlu0 %8480
        %8482 = vrot.lane.b32.xlu0 %v8441, 96
        %v8483 = vpop.permute.xlu0 %8482
        %8484 = vrot.lane.b32.xlu0 %v8442, 96
        %v8485 = vpop.permute.xlu0 %8484
        %8486 = vrot.lane.b32.xlu0 %v8443, 96
        %v8487 = vpop.permute.xlu0 %8486
        %8488 = vrot.lane.b32.xlu0 %v8444, 96
        %v8489 = vpop.permute.xlu0 %8488
        %8490 = vrot.lane.b32.xlu0 %v8445, 96
        %v8491 = vpop.permute.xlu0 %8490
        %8492 = vrot.lane.b32.xlu0 %v8446, 96
        %v8493 = vpop.permute.xlu0 %8492
        %8494 = vrot.lane.b32.xlu0 %v8447, 96
        %v8495 = vpop.permute.xlu0 %8494
        %v8496 = vrot.slane %v8465, 4
        %v8497 = vrot.slane %v8467, 4
        %v8498 = vrot.slane %v8469, 4
        %v8499 = vrot.slane %v8471, 4
        %v8500 = vrot.slane %v8473, 4
        %v8501 = vrot.slane %v8475, 4
        %v8502 = vrot.slane %v8477, 4
        %v8503 = vrot.slane %v8479, 4
        %v8504 = vrot.slane %v8481, 4
        %v8505 = vrot.slane %v8483, 4
        %v8506 = vrot.slane %v8485, 4
        %v8507 = vrot.slane %v8487, 4
        %v8508 = vrot.slane %v8489, 4
        %v8509 = vrot.slane %v8491, 4
        %v8510 = vrot.slane %v8493, 4
        %v8511 = vrot.slane %v8495, 4
        %vm8512 = vcmask 785408
        %v8513 = vsel %vm8512, %v8496, %v8465
        %v8514 = vsel %vm8512, %v8497, %v8467
        %v8515 = vsel %vm8512, %v8498, %v8469
        %v8516 = vsel %vm8512, %v8499, %v8471
        %v8517 = vsel %vm8512, %v8500, %v8473
        %v8518 = vsel %vm8512, %v8501, %v8475
        %v8519 = vsel %vm8512, %v8502, %v8477
        %v8520 = vsel %vm8512, %v8503, %v8479
        %v8521 = vsel %vm8512, %v8504, %v8481
        %v8522 = vsel %vm8512, %v8505, %v8483
        %v8523 = vsel %vm8512, %v8506, %v8485
        %v8524 = vsel %vm8512, %v8507, %v8487
        %v8525 = vsel %vm8512, %v8508, %v8489
        %v8526 = vsel %vm8512, %v8509, %v8491
        %v8527 = vsel %vm8512, %v8510, %v8493
        %v8528 = vsel %vm8512, %v8511, %v8495
        %vm8545 = vcmask 1044224
        %vm8546 = vcmask 523268
        %vm8547 = vmor %vm8546, %vm8545
        %8548 = vst.msk [vmem:[%s528] sm:$0xff] %vm8547, %v8513
        %8549 = vst.msk [vmem:[%s528 + $0x8] sm:$0xff] %vm8547, %v8514
        %8550 = vst.msk [vmem:[%s528 + $0x10] sm:$0xff] %vm8547, %v8515
        %8551 = vst.msk [vmem:[%s528 + $0x18] sm:$0xff] %vm8547, %v8516
        %8552 = vst.msk [vmem:[%s528 + $0x20] sm:$0xff] %vm8547, %v8517
        %8553 = vst.msk [vmem:[%s528 + $0x28] sm:$0xff] %vm8547, %v8518
        %8554 = vst.msk [vmem:[%s528 + $0x30] sm:$0xff] %vm8547, %v8519
        %8555 = vst.msk [vmem:[%s528 + $0x38] sm:$0xff] %vm8547, %v8520
        %8556 = vst.msk [vmem:[%s528 + $0x40] sm:$0xff] %vm8547, %v8521
        %8557 = vst.msk [vmem:[%s528 + $0x48] sm:$0xff] %vm8547, %v8522
        %8558 = vst.msk [vmem:[%s528 + $0x50] sm:$0xff] %vm8547, %v8523
        %8559 = vst.msk [vmem:[%s528 + $0x58] sm:$0xff] %vm8547, %v8524
        %8560 = vst.msk [vmem:[%s528 + $0x60] sm:$0xff] %vm8547, %v8525
        %8561 = vst.msk [vmem:[%s528 + $0x68] sm:$0xff] %vm8547, %v8526
        %8562 = vst.msk [vmem:[%s528 + $0x70] sm:$0xff] %vm8547, %v8527
        %8563 = vst.msk [vmem:[%s528 + $0x78] sm:$0xff] %vm8547, %v8528
        %s8564 = sand.u32 %s393, 1
        %s8565 = scalar_lea.sflag [#allocation8], %s8564
        %s8566 = sand.u32 %s393, 1
        %s8567 = smul.addr %s8566, 128
        %s8568 = scalar_lea.vmem [#allocation7], %s8567
        // Predicated region
        $region117: #{_lambda_.1} parent=83 // pred_check
          %p8569 = pneg %p403
        $region118: #{_lambda_.1} parent=83 // pred_check_branch
          %8571 = sbr.rel (%p8569) target = $region120
        $region119: #{_lambda_.1} parent=83 // pred_region
          %s8572 = smul.u32 8, %s35
          %8574 = vsyncadd %s8565, 0
          %s8575 = smul.addr %s8572, 4
          %s8576 = smul.addr %s34, 64
          %s8577 = sadd.s32 %s8575, %s8576
          %s8578 = smul.addr %s8577, 4
          %s8579 = scalar_lea.hbm %s16, %s8578
          %s8580 = sshll.u32 %s8568, 4
          %s8581 = int_to_ptr.vmem [resolvable:$true] %s8580
          %s8582 = sshll.u32 %s8579, 4
          %s8583 = int_to_ptr.hbm [resolvable:$true] %s8582
          %8588 = dma.vmem_to_hbm [thread:$0]  %s8581, 2048, %s8583, %s8565, 128, 128, 8
        $region120: #{_lambda_.1} parent=83 // pred_fallthru
          _
      $region84: #{_lambda_.1} parent=5 // pred_fallthru
        _
      %p8589 = scmp.le.s32.totalorder 2, %s25
      // Predicated region
      $region121: #{_lambda_.1} parent=5 // pred_check
        %p8590 = pneg %p8589
      $region122: #{_lambda_.1} parent=5 // pred_check_branch
        %8592 = sbr.rel (%p8590) target = $region124
      $region123: #{_lambda_.1} parent=5 // pred_region
        %s8593 = ssub.s32 %s25, 2
        // Predicated region
        $region125: #{_lambda_.1} parent=123 // pred_check
          %p8594 = pneg %p409
        $region126: #{_lambda_.1} parent=123 // pred_check_branch
          %8596 = sbr.rel (%p8594) target = $region128
        $region127: #{_lambda_.1} parent=123 // pred_region
          %s8597 = sand.u32 %s394, 1
          %s8598 = scalar_lea.sflag [#allocation8], %s8597
          %s8599 = sand.u32 %s394, 1
          %s8600 = smul.addr %s8599, 128
          %s8601 = scalar_lea.vmem [#allocation7], %s8600
          %8603 = dma.done %s8598, 2048
        $region128: #{_lambda_.1} parent=123 // pred_fallthru
          _
      $region124: #{_lambda_.1} parent=5 // pred_fallthru
        _
    $region6: #{_lambda_.1} parent=1 // loop_footer
      %s29 = sadd.s32 1, %s25
    $region7: #{_lambda_.1} parent=1 // loop_footer_branch
      %24 = sbr.rel target = $region3
    $region8: #{_lambda_.1} parent=1 // loop_exit
      _
    %8604 = vsyncpa [#allocation8], 1
    %s8605 = scalar_lea.sflag [#allocation8], 1
    %8606 = vsyncpa %s8605, 1

</llo_original>
